<compile_context>
chip_gen: v5e
topology: v5e:2x2
jax: 0.10.0
libtpu: 0.0.40
codegen_flags: <defaults>
</compile_context>

<pallas_src>
import functools

import jax
import jax.numpy as jnp
from jax.experimental import pallas as pl
from jax.experimental.pallas import tpu as pltpu


def _round_up(x, m):
    return ((x + m - 1) // m) * m


def mlp_kernel(*refs, num_layers):
    """refs = (x_ref, w0, b0, w1, b1, ..., w_{L-1}, b_{L-1}, out_ref).

    Layouts (batch on lanes for all intermediates / output):
      x_ref   : (TB, F0)        native PyTorch activation layout (padded batch)
      w_i     : (out_i, in_i)   PyTorch nn.Linear layout, NOT transposed
      b_i     : (out_i, 1)      broadcasts across the lane (batch) axis
      out_ref : (out_last, TB)  lane-dense output slab
    """
    x_ref = refs[0]
    out_ref = refs[-1]
    params = refs[1:-1]

    hp = jax.lax.Precision.HIGHEST

    # Layer 0: fuse the activation "transpose" into the MXU contraction:
    #   (out0, F0) . (TB, F0) contracted on F0  ->  (out0, TB)
    w0 = params[0][...]
    b0 = params[1][...]
    h = jax.lax.dot_general(
        w0, x_ref[...],
        dimension_numbers=(((1,), (1,)), ((), ())),
        preferred_element_type=jnp.float32,
        precision=hp,
    ) + b0
    if num_layers > 1:
        h = jnp.maximum(h, 0.0)                              # nn.ReLU

    # Remaining layers: plain (out_i, in_i) @ (in_i, TB).
    for i in range(1, num_layers):
        w = params[2 * i][...]                               # (out_i, in_i)
        b = params[2 * i + 1][...]                           # (out_i, 1)
        z = jnp.dot(w, h, preferred_element_type=jnp.float32,
                    precision=hp) + b
        if i < num_layers - 1:
            h = jnp.maximum(z, 0.0)                          # nn.ReLU
        else:
            h = z                                            # last layer: linear
    out_ref[...] = h.astype(out_ref.dtype)


@jax.jit
def titanic_mlp_forward(x, weights, biases):
    """Forward pass equivalent to titanic_classification.forward.

    x:          (B, F0) float32 (PyTorch activation layout).
    weights[i]: (out_i, in_i) float32 (PyTorch nn.Linear weight layout).
    biases[i]:  (out_i,) float32.
    Returns:    (B, out_last) float32.
    """
    num_layers = len(weights)
    B, F0 = x.shape
    out_dim = weights[-1].shape[0]

    # One 128-aligned batch tile, single grid step.  Pallas pads the ragged
    # edge of the x block; padded batch columns only affect padded output
    # columns, which are sliced off below.
    tb = _round_up(B, 128)

    operands = [x.astype(jnp.float32)]
    in_specs = [pl.BlockSpec((tb, F0), lambda i: (0, 0))]
    for w, b in zip(weights, biases):
        w = w.astype(jnp.float32)
        b = b.astype(jnp.float32).reshape(-1, 1)
        operands += [w, b]
        in_specs += [
            pl.BlockSpec(w.shape, lambda i: (0, 0)),
            pl.BlockSpec(b.shape, lambda i: (0, 0)),
        ]

    kernel = functools.partial(mlp_kernel, num_layers=num_layers)

    out_t = pl.pallas_call(
        kernel,
        grid=(1,),
        in_specs=in_specs,
        out_specs=pl.BlockSpec((out_dim, tb), lambda i: (0, 0)),
        out_shape=jax.ShapeDtypeStruct((out_dim, tb), jnp.float32),
        compiler_params=pltpu.CompilerParams(
            dimension_semantics=("arbitrary",),
        ),
    )(*operands)

    # Drop padded batch columns, return PyTorch (B, out) layout.
    return out_t[:, :B].T


def init_params(layers, key):
    """PyTorch-style init: U(-1/sqrt(fan_in), 1/sqrt(fan_in)), (out, in) weights."""
    weights, biases = [], []
    for i in range(len(layers) - 1):
        fan_in, fan_out = layers[i], layers[i + 1]
        key, kw, kb = jax.random.split(key, 3)
        bound = 1.0 / jnp.sqrt(jnp.float32(fan_in))
        w = jax.random.uniform(kw, (fan_out, fan_in), jnp.float32, -bound, bound)
        b = jax.random.uniform(kb, (fan_out,), jnp.float32, -bound, bound)
        weights.append(w)
        biases.append(b)
    return weights, biases


def reference_forward(x, weights, biases):
    """Pure-JAX reference with PyTorch semantics: y = x @ W.T + b."""
    h = x
    n = len(weights)
    for i in range(n):
        z = jnp.dot(h, weights[i].T, precision=jax.lax.Precision.HIGHEST) + biases[i]
        h = jnp.maximum(z, 0.0) if i < n - 1 else z
    return h


if __name__ == "__main__":
    # Titanic-style MLP: 8 input features -> 32 -> 32 -> 1; batch ~= train.csv rows.
    # TODO(synk): CSV loading, MSE training loop, and test-time thresholding in
    # the original module are host-side and not part of forward(); not implemented.
    layers = [8, 32, 32, 1]
    batch = 891

    key = jax.random.PRNGKey(0)
    key, kx = jax.random.split(key)
    x = jax.random.normal(kx, (batch, layers[0]), jnp.float32)

    weights, biases = init_params(layers, key)

    out = titanic_mlp_forward(x, weights, biases)
    out = jax.block_until_ready(out)

    ref = reference_forward(x, weights, biases)
    assert out.shape == (batch, layers[-1])
    assert jnp.allclose(out, ref, atol=1e-4, rtol=1e-4), "mismatch vs reference"

    print("KERNEL_OK")
</pallas_src>

<mosaic_0001>
module attributes {stable_mosaic.version = 11 : i64} {
  func.func @mlp_kernel(%arg0: i32, %arg1: memref<896x8xf32, #tpu.memory_space<vmem>>, %arg2: memref<32x8xf32, #tpu.memory_space<vmem>>, %arg3: memref<32x1xf32, #tpu.memory_space<vmem>>, %arg4: memref<32x32xf32, #tpu.memory_space<vmem>>, %arg5: memref<32x1xf32, #tpu.memory_space<vmem>>, %arg6: memref<1x32xf32, #tpu.memory_space<vmem>>, %arg7: memref<1x1xf32, #tpu.memory_space<vmem>>, %arg8: memref<1x896xf32, #tpu.memory_space<vmem>>) attributes {dimension_semantics = [#tpu.dimension_semantics<arbitrary>], iteration_bounds = array<i64: 1>, scalar_prefetch = 0 : i64, scratch_operands = 0 : i64, tpu.core_type = #tpu.core_type<tc>, window_params = [{transform_indices = @transform_0, window_bounds = array<i64: 896, 8>}, {pipeline_mode = #tpu.pipeline_mode<synchronous>, transform_indices = @transform_1, window_bounds = array<i64: 32, 8>}, {pipeline_mode = #tpu.pipeline_mode<synchronous>, transform_indices = @transform_2, window_bounds = array<i64: 32, 1>}, {pipeline_mode = #tpu.pipeline_mode<synchronous>, transform_indices = @transform_3, window_bounds = array<i64: 32, 32>}, {pipeline_mode = #tpu.pipeline_mode<synchronous>, transform_indices = @transform_4, window_bounds = array<i64: 32, 1>}, {pipeline_mode = #tpu.pipeline_mode<synchronous>, transform_indices = @transform_5, window_bounds = array<i64: 1, 32>}, {pipeline_mode = #tpu.pipeline_mode<synchronous>, transform_indices = @transform_6, window_bounds = array<i64: 1, 1>}, {pipeline_mode = #tpu.pipeline_mode<synchronous>, transform_indices = @transform_7, window_bounds = array<i64: 1, 896>}]} {
    %c0 = arith.constant 0 : index
    %c0_0 = arith.constant 0 : index
    %0 = vector.load %arg2[%c0, %c0_0] : memref<32x8xf32, #tpu.memory_space<vmem>>, vector<32x8xf32>
    %c0_1 = arith.constant 0 : index
    %c0_2 = arith.constant 0 : index
    %1 = vector.load %arg3[%c0_1, %c0_2] : memref<32x1xf32, #tpu.memory_space<vmem>>, vector<32x1xf32>
    %c0_3 = arith.constant 0 : index
    %c0_4 = arith.constant 0 : index
    %2 = vector.load %arg1[%c0_3, %c0_4] : memref<896x8xf32, #tpu.memory_space<vmem>>, vector<896x8xf32>
    %cst = arith.constant dense<0.000000e+00> : vector<32x896xf32>
    %3 = tpu.matmul %0, %2, %cst {dimension_numbers = #tpu.dot_dimension_numbers<[1], [1], [0], [0], [0, 0, 1, 0], [], []>, precision = #tpu.contract_precision<fp32>} : vector<32x8xf32>, vector<896x8xf32>, vector<32x896xf32> -> vector<32x896xf32>
    %4 = vector.broadcast %1 : vector<32x1xf32> to vector<32x896xf32>
    %5 = arith.addf %3, %4 : vector<32x896xf32>
    %cst_5 = arith.constant 0.000000e+00 : f32
    %6 = vector.broadcast %cst_5 : f32 to vector<32x896xf32>
    %7 = arith.maximumf %5, %6 : vector<32x896xf32>
    %c0_6 = arith.constant 0 : index
    %c0_7 = arith.constant 0 : index
    %8 = vector.load %arg4[%c0_6, %c0_7] : memref<32x32xf32, #tpu.memory_space<vmem>>, vector<32x32xf32>
    %c0_8 = arith.constant 0 : index
    %c0_9 = arith.constant 0 : index
    %9 = vector.load %arg5[%c0_8, %c0_9] : memref<32x1xf32, #tpu.memory_space<vmem>>, vector<32x1xf32>
    %cst_10 = arith.constant dense<0.000000e+00> : vector<32x896xf32>
    %10 = tpu.matmul %8, %7, %cst_10 {dimension_numbers = #tpu.dot_dimension_numbers<[1], [0], [0], [1], [0, 0, 1, 1], [], []>, precision = #tpu.contract_precision<fp32>} : vector<32x32xf32>, vector<32x896xf32>, vector<32x896xf32> -> vector<32x896xf32>
    %11 = vector.broadcast %9 : vector<32x1xf32> to vector<32x896xf32>
    %12 = arith.addf %10, %11 : vector<32x896xf32>
    %cst_11 = arith.constant 0.000000e+00 : f32
    %13 = vector.broadcast %cst_11 : f32 to vector<32x896xf32>
    %14 = arith.maximumf %12, %13 : vector<32x896xf32>
    %c0_12 = arith.constant 0 : index
    %c0_13 = arith.constant 0 : index
    %15 = vector.load %arg6[%c0_12, %c0_13] : memref<1x32xf32, #tpu.memory_space<vmem>>, vector<1x32xf32>
    %c0_14 = arith.constant 0 : index
    %c0_15 = arith.constant 0 : index
    %16 = vector.load %arg7[%c0_14, %c0_15] : memref<1x1xf32, #tpu.memory_space<vmem>>, vector<1x1xf32>
    %cst_16 = arith.constant dense<0.000000e+00> : vector<1x896xf32>
    %17 = tpu.matmul %15, %14, %cst_16 {dimension_numbers = #tpu.dot_dimension_numbers<[1], [0], [0], [1], [0, 0, 1, 1], [], []>, precision = #tpu.contract_precision<fp32>} : vector<1x32xf32>, vector<32x896xf32>, vector<1x896xf32> -> vector<1x896xf32>
    %18 = vector.broadcast %16 : vector<1x1xf32> to vector<1x896xf32>
    %19 = arith.addf %17, %18 : vector<1x896xf32>
    %c0_17 = arith.constant 0 : index
    %c0_18 = arith.constant 0 : index
    %20 = vector.load %arg8[%c0_17, %c0_18] : memref<1x896xf32, #tpu.memory_space<vmem>>, vector<1x896xf32>
    tpu.vector_store %arg8[%c0_17, %c0_18], %19 {strides = array<i32>} : memref<1x896xf32, #tpu.memory_space<vmem>>, vector<1x896xf32>,
    return
  }
  func.func @transform_0(%arg0: i32) -> (i32, i32) {
    %c0_i32 = arith.constant 0 : i32
    %c0_i32_0 = arith.constant 0 : i32
    %c0_i32_1 = arith.constant 0 : i32
    return %c0_i32, %c0_i32_0 : i32, i32
  }
  func.func @transform_1(%arg0: i32) -> (i32, i32) {
    %c0_i32 = arith.constant 0 : i32
    %c0_i32_0 = arith.constant 0 : i32
    %c0_i32_1 = arith.constant 0 : i32
    return %c0_i32, %c0_i32_0 : i32, i32
  }
  func.func @transform_2(%arg0: i32) -> (i32, i32) {
    %c0_i32 = arith.constant 0 : i32
    %c0_i32_0 = arith.constant 0 : i32
    %c0_i32_1 = arith.constant 0 : i32
    return %c0_i32, %c0_i32_0 : i32, i32
  }
  func.func @transform_3(%arg0: i32) -> (i32, i32) {
    %c0_i32 = arith.constant 0 : i32
    %c0_i32_0 = arith.constant 0 : i32
    %c0_i32_1 = arith.constant 0 : i32
    return %c0_i32, %c0_i32_0 : i32, i32
  }
  func.func @transform_4(%arg0: i32) -> (i32, i32) {
    %c0_i32 = arith.constant 0 : i32
    %c0_i32_0 = arith.constant 0 : i32
    %c0_i32_1 = arith.constant 0 : i32
    return %c0_i32, %c0_i32_0 : i32, i32
  }
  func.func @transform_5(%arg0: i32) -> (i32, i32) {
    %c0_i32 = arith.constant 0 : i32
    %c0_i32_0 = arith.constant 0 : i32
    %c0_i32_1 = arith.constant 0 : i32
    return %c0_i32, %c0_i32_0 : i32, i32
  }
  func.func @transform_6(%arg0: i32) -> (i32, i32) {
    %c0_i32 = arith.constant 0 : i32
    %c0_i32_0 = arith.constant 0 : i32
    %c0_i32_1 = arith.constant 0 : i32
    return %c0_i32, %c0_i32_0 : i32, i32
  }
  func.func @transform_7(%arg0: i32) -> (i32, i32) {
    %c0_i32 = arith.constant 0 : i32
    %c0_i32_0 = arith.constant 0 : i32
    %c0_i32_1 = arith.constant 0 : i32
    return %c0_i32, %c0_i32_0 : i32, i32
  }
}

</mosaic_0001>

<llo_original>
// kernel: titanic_mlp_forward.1
$region0: #{titanic_mlp_forward.1}
  #allocation0 [shape = 'u32[]', space=smem, size = 0x4, offset = 0x4, fixed_abs, tag = 'smem constant byte address 0x4 - core index']
  #allocation1 [shape = 'u32[72,128]{1,0:T(1,128)}', space=vmem, size = 0x9000, scoped, tag = 'internal scratch']
  #allocation2 [shape = 'f32[1,1]{1,0:T(1,128)S(1)}', space=vmem, size = 0x200, scoped, tag = 'scoped memory for titanic_mlp_forward.1']
  %s0 = inlined_call_operand.vmem [shape: f32[891,8], index: 0, kind: input, shape index: {}]
  %s1 = inlined_call_operand.vmem [shape: f32[32,8], index: 1, kind: input, shape index: {}]
  %s2 = inlined_call_operand.vmem [shape: f32[32,1], index: 2, kind: input, shape index: {}]
  %s3 = inlined_call_operand.vmem [shape: f32[32,32], index: 3, kind: input, shape index: {}]
  %s4 = inlined_call_operand.vmem [shape: f32[32,1], index: 4, kind: input, shape index: {}]
  %s5 = inlined_call_operand.vmem [shape: f32[1,32], index: 5, kind: input, shape index: {}]
  %s6 = inlined_call_operand.<no memory space> [shape: f32[1,1], index: 6, kind: input, shape index: {}]
  %s7 = inlined_call_operand.vmem [shape: f32[1,896], index: 7, kind: output, shape index: {}]
  %s8 = sld [smem:[#allocation0]]
  $region38: #{titanic_mlp_forward.1} parent=0
    _
  %s10 = ssub.s32 1, %s8
  %s11 = scalar_select 0, %s10, %s8
  %v12 = vstv %s6
  %13 = vst [vmem:[#allocation2] sm:$0x1] %v12
  // Predicated region
  $region2: #{titanic_mlp_forward.1} parent=0 // pred_check
    _
  $region3: #{titanic_mlp_forward.1} parent=0 // pred_check_branch
    %15 = sbr.rel (0) target = $region5
  $region4: #{titanic_mlp_forward.1} parent=0 // pred_region
    _
  $region5: #{titanic_mlp_forward.1} parent=0 // pred_fallthru
    _
  // Predicated region
  $region6: #{titanic_mlp_forward.1} parent=0 // pred_check
    _
  $region7: #{titanic_mlp_forward.1} parent=0 // pred_check_branch
    %17 = sbr.rel (0) target = $region9
  $region8: #{titanic_mlp_forward.1} parent=0 // pred_region
    _
  $region9: #{titanic_mlp_forward.1} parent=0 // pred_fallthru
    _
  // Predicated region
  $region10: #{titanic_mlp_forward.1} parent=0 // pred_check
    _
  $region11: #{titanic_mlp_forward.1} parent=0 // pred_check_branch
    %19 = sbr.rel (0) target = $region13
  $region12: #{titanic_mlp_forward.1} parent=0 // pred_region
    _
  $region13: #{titanic_mlp_forward.1} parent=0 // pred_fallthru
    _
  // Predicated region
  $region14: #{titanic_mlp_forward.1} parent=0 // pred_check
    _
  $region15: #{titanic_mlp_forward.1} parent=0 // pred_check_branch
    %21 = sbr.rel (0) target = $region17
  $region16: #{titanic_mlp_forward.1} parent=0 // pred_region
    _
  $region17: #{titanic_mlp_forward.1} parent=0 // pred_fallthru
    _
  // Predicated region
  $region18: #{titanic_mlp_forward.1} parent=0 // pred_check
    _
  $region19: #{titanic_mlp_forward.1} parent=0 // pred_check_branch
    %23 = sbr.rel (0) target = $region21
  $region20: #{titanic_mlp_forward.1} parent=0 // pred_region
    _
  $region21: #{titanic_mlp_forward.1} parent=0 // pred_fallthru
    _
  // Predicated region
  $region22: #{titanic_mlp_forward.1} parent=0 // pred_check
    _
  $region23: #{titanic_mlp_forward.1} parent=0 // pred_check_branch
    %25 = sbr.rel (0) target = $region25
  $region24: #{titanic_mlp_forward.1} parent=0 // pred_region
    _
  $region25: #{titanic_mlp_forward.1} parent=0 // pred_fallthru
    _
  // Predicated region
  $region26: #{titanic_mlp_forward.1} parent=0 // pred_check
    _
  $region27: #{titanic_mlp_forward.1} parent=0 // pred_check_branch
    %27 = sbr.rel (0) target = $region29
  $region28: #{titanic_mlp_forward.1} parent=0 // pred_region
    _
  $region29: #{titanic_mlp_forward.1} parent=0 // pred_fallthru
    _
  %v28 = vld [vmem:[%s1] sm:$0xff]
  %v29 = vld [vmem:[%s1 + $0x8] sm:$0xff]
  %v30 = vld [vmem:[%s1 + $0x10] sm:$0xff]
  %v31 = vld [vmem:[%s1 + $0x18] sm:$0xff]
  %v32 = vld [vmem:[%s2] sm:$0xff]
  %v33 = vld [vmem:[%s2 + $0x8] sm:$0xff]
  %v34 = vld [vmem:[%s2 + $0x10] sm:$0xff]
  %v35 = vld [vmem:[%s2 + $0x18] sm:$0xff]
  %v36 = vld [vmem:[%s0] sm:$0xff]
  %v37 = vld [vmem:[%s0 + $0x8] sm:$0xff]
  %v38 = vld [vmem:[%s0 + $0x10] sm:$0xff]
  %v39 = vld [vmem:[%s0 + $0x18] sm:$0xff]
  %v40 = vld [vmem:[%s0 + $0x20] sm:$0xff]
  %v41 = vld [vmem:[%s0 + $0x28] sm:$0xff]
  %v42 = vld [vmem:[%s0 + $0x30] sm:$0xff]
  %v43 = vld [vmem:[%s0 + $0x38] sm:$0xff]
  %v44 = vld [vmem:[%s0 + $0x40] sm:$0xff]
  %v45 = vld [vmem:[%s0 + $0x48] sm:$0xff]
  %v46 = vld [vmem:[%s0 + $0x50] sm:$0xff]
  %v47 = vld [vmem:[%s0 + $0x58] sm:$0xff]
  %v48 = vld [vmem:[%s0 + $0x60] sm:$0xff]
  %v49 = vld [vmem:[%s0 + $0x68] sm:$0xff]
  %v50 = vld [vmem:[%s0 + $0x70] sm:$0xff]
  %v51 = vld [vmem:[%s0 + $0x78] sm:$0xff]
  %v52 = vld [vmem:[%s0 + $0x80] sm:$0xff]
  %v53 = vld [vmem:[%s0 + $0x88] sm:$0xff]
  %v54 = vld [vmem:[%s0 + $0x90] sm:$0xff]
  %v55 = vld [vmem:[%s0 + $0x98] sm:$0xff]
  %v56 = vld [vmem:[%s0 + $0xa0] sm:$0xff]
  %v57 = vld [vmem:[%s0 + $0xa8] sm:$0xff]
  %v58 = vld [vmem:[%s0 + $0xb0] sm:$0xff]
  %v59 = vld [vmem:[%s0 + $0xb8] sm:$0xff]
  %v60 = vld [vmem:[%s0 + $0xc0] sm:$0xff]
  %v61 = vld [vmem:[%s0 + $0xc8] sm:$0xff]
  %v62 = vld [vmem:[%s0 + $0xd0] sm:$0xff]
  %v63 = vld [vmem:[%s0 + $0xd8] sm:$0xff]
  %v64 = vld [vmem:[%s0 + $0xe0] sm:$0xff]
  %v65 = vld [vmem:[%s0 + $0xe8] sm:$0xff]
  %v66 = vld [vmem:[%s0 + $0xf0] sm:$0xff]
  %v67 = vld [vmem:[%s0 + $0xf8] sm:$0xff]
  %v68 = vld [vmem:[%s0 + $0x100] sm:$0xff]
  %v69 = vld [vmem:[%s0 + $0x108] sm:$0xff]
  %v70 = vld [vmem:[%s0 + $0x110] sm:$0xff]
  %v71 = vld [vmem:[%s0 + $0x118] sm:$0xff]
  %v72 = vld [vmem:[%s0 + $0x120] sm:$0xff]
  %v73 = vld [vmem:[%s0 + $0x128] sm:$0xff]
  %v74 = vld [vmem:[%s0 + $0x130] sm:$0xff]
  %v75 = vld [vmem:[%s0 + $0x138] sm:$0xff]
  %v76 = vld [vmem:[%s0 + $0x140] sm:$0xff]
  %v77 = vld [vmem:[%s0 + $0x148] sm:$0xff]
  %v78 = vld [vmem:[%s0 + $0x150] sm:$0xff]
  %v79 = vld [vmem:[%s0 + $0x158] sm:$0xff]
  %v80 = vld [vmem:[%s0 + $0x160] sm:$0xff]
  %v81 = vld [vmem:[%s0 + $0x168] sm:$0xff]
  %v82 = vld [vmem:[%s0 + $0x170] sm:$0xff]
  %v83 = vld [vmem:[%s0 + $0x178] sm:$0xff]
  %v84 = vld [vmem:[%s0 + $0x180] sm:$0xff]
  %v85 = vld [vmem:[%s0 + $0x188] sm:$0xff]
  %v86 = vld [vmem:[%s0 + $0x190] sm:$0xff]
  %v87 = vld [vmem:[%s0 + $0x198] sm:$0xff]
  %v88 = vld [vmem:[%s0 + $0x1a0] sm:$0xff]
  %v89 = vld [vmem:[%s0 + $0x1a8] sm:$0xff]
  %v90 = vld [vmem:[%s0 + $0x1b0] sm:$0xff]
  %v91 = vld [vmem:[%s0 + $0x1b8] sm:$0xff]
  %v92 = vld [vmem:[%s0 + $0x1c0] sm:$0xff]
  %v93 = vld [vmem:[%s0 + $0x1c8] sm:$0xff]
  %v94 = vld [vmem:[%s0 + $0x1d0] sm:$0xff]
  %v95 = vld [vmem:[%s0 + $0x1d8] sm:$0xff]
  %v96 = vld [vmem:[%s0 + $0x1e0] sm:$0xff]
  %v97 = vld [vmem:[%s0 + $0x1e8] sm:$0xff]
  %v98 = vld [vmem:[%s0 + $0x1f0] sm:$0xff]
  %v99 = vld [vmem:[%s0 + $0x1f8] sm:$0xff]
  %v100 = vld [vmem:[%s0 + $0x200] sm:$0xff]
  %v101 = vld [vmem:[%s0 + $0x208] sm:$0xff]
  %v102 = vld [vmem:[%s0 + $0x210] sm:$0xff]
  %v103 = vld [vmem:[%s0 + $0x218] sm:$0xff]
  %v104 = vld [vmem:[%s0 + $0x220] sm:$0xff]
  %v105 = vld [vmem:[%s0 + $0x228] sm:$0xff]
  %v106 = vld [vmem:[%s0 + $0x230] sm:$0xff]
  %v107 = vld [vmem:[%s0 + $0x238] sm:$0xff]
  %v108 = vld [vmem:[%s0 + $0x240] sm:$0xff]
  %v109 = vld [vmem:[%s0 + $0x248] sm:$0xff]
  %v110 = vld [vmem:[%s0 + $0x250] sm:$0xff]
  %v111 = vld [vmem:[%s0 + $0x258] sm:$0xff]
  %v112 = vld [vmem:[%s0 + $0x260] sm:$0xff]
  %v113 = vld [vmem:[%s0 + $0x268] sm:$0xff]
  %v114 = vld [vmem:[%s0 + $0x270] sm:$0xff]
  %v115 = vld [vmem:[%s0 + $0x278] sm:$0xff]
  %v116 = vld [vmem:[%s0 + $0x280] sm:$0xff]
  %v117 = vld [vmem:[%s0 + $0x288] sm:$0xff]
  %v118 = vld [vmem:[%s0 + $0x290] sm:$0xff]
  %v119 = vld [vmem:[%s0 + $0x298] sm:$0xff]
  %v120 = vld [vmem:[%s0 + $0x2a0] sm:$0xff]
  %v121 = vld [vmem:[%s0 + $0x2a8] sm:$0xff]
  %v122 = vld [vmem:[%s0 + $0x2b0] sm:$0xff]
  %v123 = vld [vmem:[%s0 + $0x2b8] sm:$0xff]
  %v124 = vld [vmem:[%s0 + $0x2c0] sm:$0xff]
  %v125 = vld [vmem:[%s0 + $0x2c8] sm:$0xff]
  %v126 = vld [vmem:[%s0 + $0x2d0] sm:$0xff]
  %v127 = vld [vmem:[%s0 + $0x2d8] sm:$0xff]
  %v128 = vld [vmem:[%s0 + $0x2e0] sm:$0xff]
  %v129 = vld [vmem:[%s0 + $0x2e8] sm:$0xff]
  %v130 = vld [vmem:[%s0 + $0x2f0] sm:$0xff]
  %v131 = vld [vmem:[%s0 + $0x2f8] sm:$0xff]
  %v132 = vld [vmem:[%s0 + $0x300] sm:$0xff]
  %v133 = vld [vmem:[%s0 + $0x308] sm:$0xff]
  %v134 = vld [vmem:[%s0 + $0x310] sm:$0xff]
  %v135 = vld [vmem:[%s0 + $0x318] sm:$0xff]
  %v136 = vld [vmem:[%s0 + $0x320] sm:$0xff]
  %v137 = vld [vmem:[%s0 + $0x328] sm:$0xff]
  %v138 = vld [vmem:[%s0 + $0x330] sm:$0xff]
  %v139 = vld [vmem:[%s0 + $0x338] sm:$0xff]
  %v140 = vld [vmem:[%s0 + $0x340] sm:$0xff]
  %v141 = vld [vmem:[%s0 + $0x348] sm:$0xff]
  %v142 = vld [vmem:[%s0 + $0x350] sm:$0xff]
  %v143 = vld [vmem:[%s0 + $0x358] sm:$0xff]
  %v144 = vld [vmem:[%s0 + $0x360] sm:$0xff]
  %v145 = vld [vmem:[%s0 + $0x368] sm:$0xff]
  %v146 = vld [vmem:[%s0 + $0x370] sm:$0xff]
  %v147 = vld [vmem:[%s0 + $0x378] sm:$0xff]
  %149 = vset.pattern.permute.xlu0 0
  %150 = vperm.xlu0 %149, %v32
  %v151 = vpop.permute.xlu0 %150
  %154 = vset.pattern.permute.xlu0 0
  %155 = vperm.xlu0 %154, %v33
  %v156 = vpop.permute.xlu0 %155
  %159 = vset.pattern.permute.xlu0 0
  %160 = vperm.xlu0 %159, %v34
  %v161 = vpop.permute.xlu0 %160
  %164 = vset.pattern.permute.xlu0 0
  %165 = vperm.xlu0 %164, %v35
  %v166 = vpop.permute.xlu0 %165
  %vm168 = vcmask 64512
  %v170 = vsel %vm168, %v28, 0
  %v173 = vsel %vm168, %v29, 0
  %v176 = vsel %vm168, %v30, 0
  %v179 = vsel %vm168, %v31, 0
  %v182 = vsel %vm168, %v36, 0
  %v185 = vsel %vm168, %v37, 0
  %v188 = vsel %vm168, %v38, 0
  %v191 = vsel %vm168, %v39, 0
  %v194 = vsel %vm168, %v40, 0
  %v197 = vsel %vm168, %v41, 0
  %v200 = vsel %vm168, %v42, 0
  %v203 = vsel %vm168, %v43, 0
  %v206 = vsel %vm168, %v44, 0
  %v209 = vsel %vm168, %v45, 0
  %v212 = vsel %vm168, %v46, 0
  %v215 = vsel %vm168, %v47, 0
  %v218 = vsel %vm168, %v48, 0
  %v221 = vsel %vm168, %v49, 0
  %v224 = vsel %vm168, %v50, 0
  %v227 = vsel %vm168, %v51, 0
  %v230 = vsel %vm168, %v52, 0
  %v233 = vsel %vm168, %v53, 0
  %v236 = vsel %vm168, %v54, 0
  %v239 = vsel %vm168, %v55, 0
  %v242 = vsel %vm168, %v56, 0
  %v245 = vsel %vm168, %v57, 0
  %v248 = vsel %vm168, %v58, 0
  %v251 = vsel %vm168, %v59, 0
  %v254 = vsel %vm168, %v60, 0
  %v257 = vsel %vm168, %v61, 0
  %v260 = vsel %vm168, %v62, 0
  %v263 = vsel %vm168, %v63, 0
  %v266 = vsel %vm168, %v64, 0
  %v269 = vsel %vm168, %v65, 0
  %v272 = vsel %vm168, %v66, 0
  %v275 = vsel %vm168, %v67, 0
  %v278 = vsel %vm168, %v68, 0
  %v281 = vsel %vm168, %v69, 0
  %v284 = vsel %vm168, %v70, 0
  %v287 = vsel %vm168, %v71, 0
  %v290 = vsel %vm168, %v72, 0
  %v293 = vsel %vm168, %v73, 0
  %v296 = vsel %vm168, %v74, 0
  %v299 = vsel %vm168, %v75, 0
  %v302 = vsel %vm168, %v76, 0
  %v305 = vsel %vm168, %v77, 0
  %v308 = vsel %vm168, %v78, 0
  %v311 = vsel %vm168, %v79, 0
  %v314 = vsel %vm168, %v80, 0
  %v317 = vsel %vm168, %v81, 0
  %v320 = vsel %vm168, %v82, 0
  %v323 = vsel %vm168, %v83, 0
  %v326 = vsel %vm168, %v84, 0
  %v329 = vsel %vm168, %v85, 0
  %v332 = vsel %vm168, %v86, 0
  %v335 = vsel %vm168, %v87, 0
  %v338 = vsel %vm168, %v88, 0
  %v341 = vsel %vm168, %v89, 0
  %v344 = vsel %vm168, %v90, 0
  %v347 = vsel %vm168, %v91, 0
  %v350 = vsel %vm168, %v92, 0
  %v353 = vsel %vm168, %v93, 0
  %v356 = vsel %vm168, %v94, 0
  %v359 = vsel %vm168, %v95, 0
  %v362 = vsel %vm168, %v96, 0
  %v365 = vsel %vm168, %v97, 0
  %v368 = vsel %vm168, %v98, 0
  %v371 = vsel %vm168, %v99, 0
  %v374 = vsel %vm168, %v100, 0
  %v377 = vsel %vm168, %v101, 0
  %v380 = vsel %vm168, %v102, 0
  %v383 = vsel %vm168, %v103, 0
  %v386 = vsel %vm168, %v104, 0
  %v389 = vsel %vm168, %v105, 0
  %v392 = vsel %vm168, %v106, 0
  %v395 = vsel %vm168, %v107, 0
  %v398 = vsel %vm168, %v108, 0
  %v401 = vsel %vm168, %v109, 0
  %v404 = vsel %vm168, %v110, 0
  %v407 = vsel %vm168, %v111, 0
  %v410 = vsel %vm168, %v112, 0
  %v413 = vsel %vm168, %v113, 0
  %v416 = vsel %vm168, %v114, 0
  %v419 = vsel %vm168, %v115, 0
  %v422 = vsel %vm168, %v116, 0
  %v425 = vsel %vm168, %v117, 0
  %v428 = vsel %vm168, %v118, 0
  %v431 = vsel %vm168, %v119, 0
  %v434 = vsel %vm168, %v120, 0
  %v437 = vsel %vm168, %v121, 0
  %v440 = vsel %vm168, %v122, 0
  %v443 = vsel %vm168, %v123, 0
  %v446 = vsel %vm168, %v124, 0
  %v449 = vsel %vm168, %v125, 0
  %v452 = vsel %vm168, %v126, 0
  %v455 = vsel %vm168, %v127, 0
  %v458 = vsel %vm168, %v128, 0
  %v461 = vsel %vm168, %v129, 0
  %v464 = vsel %vm168, %v130, 0
  %v467 = vsel %vm168, %v131, 0
  %v470 = vsel %vm168, %v132, 0
  %v473 = vsel %vm168, %v133, 0
  %v476 = vsel %vm168, %v134, 0
  %v479 = vsel %vm168, %v135, 0
  %v482 = vsel %vm168, %v136, 0
  %v485 = vsel %vm168, %v137, 0
  %v488 = vsel %vm168, %v138, 0
  %v491 = vsel %vm168, %v139, 0
  %v494 = vsel %vm168, %v140, 0
  %v497 = vsel %vm168, %v141, 0
  %v500 = vsel %vm168, %v142, 0
  %v503 = vsel %vm168, %v143, 0
  %v506 = vsel %vm168, %v144, 0
  %v509 = vsel %vm168, %v145, 0
  %v512 = vsel %vm168, %v146, 0
  %v515 = vsel %vm168, %v147, 0
  %v517 = vand.u32 %v227, 4294901760
  %518 = vmatpush.xpose.msra.mxu0 %v517
  %v519 = vand.u32 %v224, 4294901760
  %520 = vmatpush.xpose.msra.mxu0 %v519
  %v521 = vand.u32 %v221, 4294901760
  %522 = vmatpush.xpose.msra.mxu0 %v521
  %v523 = vand.u32 %v218, 4294901760
  %524 = vmatpush.xpose.msra.mxu0 %v523
  %v525 = vand.u32 %v215, 4294901760
  %526 = vmatpush.xpose.msra.mxu0 %v525
  %v527 = vand.u32 %v212, 4294901760
  %528 = vmatpush.xpose.msra.mxu0 %v527
  %v529 = vand.u32 %v209, 4294901760
  %530 = vmatpush.xpose.msra.mxu0 %v529
  %v531 = vand.u32 %v206, 4294901760
  %532 = vmatpush.xpose.msra.mxu0 %v531
  %v533 = vand.u32 %v203, 4294901760
  %534 = vmatpush.xpose.msra.mxu0 %v533
  %v535 = vand.u32 %v200, 4294901760
  %536 = vmatpush.xpose.msra.mxu0 %v535
  %v537 = vand.u32 %v197, 4294901760
  %538 = vmatpush.xpose.msra.mxu0 %v537
  %v539 = vand.u32 %v194, 4294901760
  %540 = vmatpush.xpose.msra.mxu0 %v539
  %v541 = vand.u32 %v191, 4294901760
  %542 = vmatpush.xpose.msra.mxu0 %v541
  %v543 = vand.u32 %v188, 4294901760
  %544 = vmatpush.xpose.msra.mxu0 %v543
  %v545 = vand.u32 %v185, 4294901760
  %546 = vmatpush.xpose.msra.mxu0 %v545
  %v547 = vand.u32 %v182, 4294901760
  %548 = vmatpush.xpose.msra.mxu0 %v547
  %v549 = vand.u32 %v170, 4294901760
  %v550 = vsub.f32 %v170, %v549
  %v551 = vand.u32 %v550, 4294901760
  %v552 = vsub.f32 %v550, %v551
  %v553 = vand.u32 %v552, 4294901760
  %554 = vmatmul.f32.gmra.mxu0 %v553
  %v555 = vpop.f32.mrf.mxu0
  %v556 = vadd.f32 %v151, %v555
  %v557 = vand.u32 %v173, 4294901760
  %v558 = vsub.f32 %v173, %v557
  %v559 = vand.u32 %v558, 4294901760
  %v560 = vsub.f32 %v558, %v559
  %v561 = vand.u32 %v560, 4294901760
  %562 = vmatmul.f32.gmra.mxu0 %v561
  %v563 = vpop.f32.mrf.mxu0
  %v564 = vadd.f32 %v156, %v563
  %v565 = vand.u32 %v176, 4294901760
  %v566 = vsub.f32 %v176, %v565
  %v567 = vand.u32 %v566, 4294901760
  %v568 = vsub.f32 %v566, %v567
  %v569 = vand.u32 %v568, 4294901760
  %570 = vmatmul.f32.gmra.mxu0 %v569
  %v571 = vpop.f32.mrf.mxu0
  %v572 = vadd.f32 %v161, %v571
  %v573 = vand.u32 %v179, 4294901760
  %v574 = vsub.f32 %v179, %v573
  %v575 = vand.u32 %v574, 4294901760
  %v576 = vsub.f32 %v574, %v575
  %v577 = vand.u32 %v576, 4294901760
  %578 = vmatmul.f32.gmra.mxu0 %v577
  %v579 = vpop.f32.mrf.mxu0
  %v580 = vadd.f32 %v166, %v579
  %581 = vdwg.mxu0
  %v582 = vand.u32 %v227, 4294901760
  %v583 = vsub.f32 %v227, %v582
  %v584 = vand.u32 %v583, 4294901760
  %v585 = vsub.f32 %v583, %v584
  %v586 = vand.u32 %v585, 4294901760
  %587 = vmatpush.xpose.msra.mxu0 %v586
  %v588 = vand.u32 %v224, 4294901760
  %v589 = vsub.f32 %v224, %v588
  %v590 = vand.u32 %v589, 4294901760
  %v591 = vsub.f32 %v589, %v590
  %v592 = vand.u32 %v591, 4294901760
  %593 = vmatpush.xpose.msra.mxu0 %v592
  %v594 = vand.u32 %v221, 4294901760
  %v595 = vsub.f32 %v221, %v594
  %v596 = vand.u32 %v595, 4294901760
  %v597 = vsub.f32 %v595, %v596
  %v598 = vand.u32 %v597, 4294901760
  %599 = vmatpush.xpose.msra.mxu0 %v598
  %v600 = vand.u32 %v218, 4294901760
  %v601 = vsub.f32 %v218, %v600
  %v602 = vand.u32 %v601, 4294901760
  %v603 = vsub.f32 %v601, %v602
  %v604 = vand.u32 %v603, 4294901760
  %605 = vmatpush.xpose.msra.mxu0 %v604
  %v606 = vand.u32 %v215, 4294901760
  %v607 = vsub.f32 %v215, %v606
  %v608 = vand.u32 %v607, 4294901760
  %v609 = vsub.f32 %v607, %v608
  %v610 = vand.u32 %v609, 4294901760
  %611 = vmatpush.xpose.msra.mxu0 %v610
  %v612 = vand.u32 %v212, 4294901760
  %v613 = vsub.f32 %v212, %v612
  %v614 = vand.u32 %v613, 4294901760
  %v615 = vsub.f32 %v613, %v614
  %v616 = vand.u32 %v615, 4294901760
  %617 = vmatpush.xpose.msra.mxu0 %v616
  %v618 = vand.u32 %v209, 4294901760
  %v619 = vsub.f32 %v209, %v618
  %v620 = vand.u32 %v619, 4294901760
  %v621 = vsub.f32 %v619, %v620
  %v622 = vand.u32 %v621, 4294901760
  %623 = vmatpush.xpose.msra.mxu0 %v622
  %v624 = vand.u32 %v206, 4294901760
  %v625 = vsub.f32 %v206, %v624
  %v626 = vand.u32 %v625, 4294901760
  %v627 = vsub.f32 %v625, %v626
  %v628 = vand.u32 %v627, 4294901760
  %629 = vmatpush.xpose.msra.mxu0 %v628
  %v630 = vand.u32 %v203, 4294901760
  %v631 = vsub.f32 %v203, %v630
  %v632 = vand.u32 %v631, 4294901760
  %v633 = vsub.f32 %v631, %v632
  %v634 = vand.u32 %v633, 4294901760
  %635 = vmatpush.xpose.msra.mxu0 %v634
  %v636 = vand.u32 %v200, 4294901760
  %v637 = vsub.f32 %v200, %v636
  %v638 = vand.u32 %v637, 4294901760
  %v639 = vsub.f32 %v637, %v638
  %v640 = vand.u32 %v639, 4294901760
  %641 = vmatpush.xpose.msra.mxu0 %v640
  %v642 = vand.u32 %v197, 4294901760
  %v643 = vsub.f32 %v197, %v642
  %v644 = vand.u32 %v643, 4294901760
  %v645 = vsub.f32 %v643, %v644
  %v646 = vand.u32 %v645, 4294901760
  %647 = vmatpush.xpose.msra.mxu0 %v646
  %v648 = vand.u32 %v194, 4294901760
  %v649 = vsub.f32 %v194, %v648
  %v650 = vand.u32 %v649, 4294901760
  %v651 = vsub.f32 %v649, %v650
  %v652 = vand.u32 %v651, 4294901760
  %653 = vmatpush.xpose.msra.mxu0 %v652
  %v654 = vand.u32 %v191, 4294901760
  %v655 = vsub.f32 %v191, %v654
  %v656 = vand.u32 %v655, 4294901760
  %v657 = vsub.f32 %v655, %v656
  %v658 = vand.u32 %v657, 4294901760
  %659 = vmatpush.xpose.msra.mxu0 %v658
  %v660 = vand.u32 %v188, 4294901760
  %v661 = vsub.f32 %v188, %v660
  %v662 = vand.u32 %v661, 4294901760
  %v663 = vsub.f32 %v661, %v662
  %v664 = vand.u32 %v663, 4294901760
  %665 = vmatpush.xpose.msra.mxu0 %v664
  %v666 = vand.u32 %v185, 4294901760
  %v667 = vsub.f32 %v185, %v666
  %v668 = vand.u32 %v667, 4294901760
  %v669 = vsub.f32 %v667, %v668
  %v670 = vand.u32 %v669, 4294901760
  %671 = vmatpush.xpose.msra.mxu0 %v670
  %v672 = vand.u32 %v182, 4294901760
  %v673 = vsub.f32 %v182, %v672
  %v674 = vand.u32 %v673, 4294901760
  %v675 = vsub.f32 %v673, %v674
  %v676 = vand.u32 %v675, 4294901760
  %677 = vmatpush.xpose.msra.mxu0 %v676
  %v678 = vand.u32 %v170, 4294901760
  %679 = vmatmul.f32.gmra.mxu0 %v678
  %v680 = vpop.f32.mrf.mxu0
  %v681 = vadd.f32 %v556, %v680
  %v682 = vand.u32 %v173, 4294901760
  %683 = vmatmul.f32.gmra.mxu0 %v682
  %v684 = vpop.f32.mrf.mxu0
  %v685 = vadd.f32 %v564, %v684
  %v686 = vand.u32 %v176, 4294901760
  %687 = vmatmul.f32.gmra.mxu0 %v686
  %v688 = vpop.f32.mrf.mxu0
  %v689 = vadd.f32 %v572, %v688
  %v690 = vand.u32 %v179, 4294901760
  %691 = vmatmul.f32.gmra.mxu0 %v690
  %v692 = vpop.f32.mrf.mxu0
  %v693 = vadd.f32 %v580, %v692
  %694 = vdwg.mxu0
  %v695 = vand.u32 %v227, 4294901760
  %v696 = vsub.f32 %v227, %v695
  %697 = vmatpush.xpose.msra.mxu0 %v696
  %v698 = vand.u32 %v224, 4294901760
  %v699 = vsub.f32 %v224, %v698
  %700 = vmatpush.xpose.msra.mxu0 %v699
  %v701 = vand.u32 %v221, 4294901760
  %v702 = vsub.f32 %v221, %v701
  %703 = vmatpush.xpose.msra.mxu0 %v702
  %v704 = vand.u32 %v218, 4294901760
  %v705 = vsub.f32 %v218, %v704
  %706 = vmatpush.xpose.msra.mxu0 %v705
  %v707 = vand.u32 %v215, 4294901760
  %v708 = vsub.f32 %v215, %v707
  %709 = vmatpush.xpose.msra.mxu0 %v708
  %v710 = vand.u32 %v212, 4294901760
  %v711 = vsub.f32 %v212, %v710
  %712 = vmatpush.xpose.msra.mxu0 %v711
  %v713 = vand.u32 %v209, 4294901760
  %v714 = vsub.f32 %v209, %v713
  %715 = vmatpush.xpose.msra.mxu0 %v714
  %v716 = vand.u32 %v206, 4294901760
  %v717 = vsub.f32 %v206, %v716
  %718 = vmatpush.xpose.msra.mxu0 %v717
  %v719 = vand.u32 %v203, 4294901760
  %v720 = vsub.f32 %v203, %v719
  %721 = vmatpush.xpose.msra.mxu0 %v720
  %v722 = vand.u32 %v200, 4294901760
  %v723 = vsub.f32 %v200, %v722
  %724 = vmatpush.xpose.msra.mxu0 %v723
  %v725 = vand.u32 %v197, 4294901760
  %v726 = vsub.f32 %v197, %v725
  %727 = vmatpush.xpose.msra.mxu0 %v726
  %v728 = vand.u32 %v194, 4294901760
  %v729 = vsub.f32 %v194, %v728
  %730 = vmatpush.xpose.msra.mxu0 %v729
  %v731 = vand.u32 %v191, 4294901760
  %v732 = vsub.f32 %v191, %v731
  %733 = vmatpush.xpose.msra.mxu0 %v732
  %v734 = vand.u32 %v188, 4294901760
  %v735 = vsub.f32 %v188, %v734
  %736 = vmatpush.xpose.msra.mxu0 %v735
  %v737 = vand.u32 %v185, 4294901760
  %v738 = vsub.f32 %v185, %v737
  %739 = vmatpush.xpose.msra.mxu0 %v738
  %v740 = vand.u32 %v182, 4294901760
  %v741 = vsub.f32 %v182, %v740
  %742 = vmatpush.xpose.msra.mxu0 %v741
  %v743 = vand.u32 %v170, 4294901760
  %v744 = vsub.f32 %v170, %v743
  %745 = vmatmul.f32.gmra.mxu0 %v744
  %v746 = vpop.f32.mrf.mxu0
  %v747 = vadd.f32 %v681, %v746
  %v748 = vand.u32 %v173, 4294901760
  %v749 = vsub.f32 %v173, %v748
  %750 = vmatmul.f32.gmra.mxu0 %v749
  %v751 = vpop.f32.mrf.mxu0
  %v752 = vadd.f32 %v685, %v751
  %v753 = vand.u32 %v176, 4294901760
  %v754 = vsub.f32 %v176, %v753
  %755 = vmatmul.f32.gmra.mxu0 %v754
  %v756 = vpop.f32.mrf.mxu0
  %v757 = vadd.f32 %v689, %v756
  %v758 = vand.u32 %v179, 4294901760
  %v759 = vsub.f32 %v179, %v758
  %760 = vmatmul.f32.gmra.mxu0 %v759
  %v761 = vpop.f32.mrf.mxu0
  %v762 = vadd.f32 %v693, %v761
  %763 = vdwg.mxu0
  %v764 = vand.u32 %v227, 4294901760
  %765 = vmatpush.xpose.msra.mxu0 %v764
  %v766 = vand.u32 %v224, 4294901760
  %767 = vmatpush.xpose.msra.mxu0 %v766
  %v768 = vand.u32 %v221, 4294901760
  %769 = vmatpush.xpose.msra.mxu0 %v768
  %v770 = vand.u32 %v218, 4294901760
  %771 = vmatpush.xpose.msra.mxu0 %v770
  %v772 = vand.u32 %v215, 4294901760
  %773 = vmatpush.xpose.msra.mxu0 %v772
  %v774 = vand.u32 %v212, 4294901760
  %775 = vmatpush.xpose.msra.mxu0 %v774
  %v776 = vand.u32 %v209, 4294901760
  %777 = vmatpush.xpose.msra.mxu0 %v776
  %v778 = vand.u32 %v206, 4294901760
  %779 = vmatpush.xpose.msra.mxu0 %v778
  %v780 = vand.u32 %v203, 4294901760
  %781 = vmatpush.xpose.msra.mxu0 %v780
  %v782 = vand.u32 %v200, 4294901760
  %783 = vmatpush.xpose.msra.mxu0 %v782
  %v784 = vand.u32 %v197, 4294901760
  %785 = vmatpush.xpose.msra.mxu0 %v784
  %v786 = vand.u32 %v194, 4294901760
  %787 = vmatpush.xpose.msra.mxu0 %v786
  %v788 = vand.u32 %v191, 4294901760
  %789 = vmatpush.xpose.msra.mxu0 %v788
  %v790 = vand.u32 %v188, 4294901760
  %791 = vmatpush.xpose.msra.mxu0 %v790
  %v792 = vand.u32 %v185, 4294901760
  %793 = vmatpush.xpose.msra.mxu0 %v792
  %v794 = vand.u32 %v182, 4294901760
  %795 = vmatpush.xpose.msra.mxu0 %v794
  %v796 = vand.u32 %v170, 4294901760
  %v797 = vsub.f32 %v170, %v796
  %v798 = vand.u32 %v797, 4294901760
  %799 = vmatmul.f32.gmra.mxu0 %v798
  %v800 = vpop.f32.mrf.mxu0
  %v801 = vadd.f32 %v747, %v800
  %v802 = vand.u32 %v173, 4294901760
  %v803 = vsub.f32 %v173, %v802
  %v804 = vand.u32 %v803, 4294901760
  %805 = vmatmul.f32.gmra.mxu0 %v804
  %v806 = vpop.f32.mrf.mxu0
  %v807 = vadd.f32 %v752, %v806
  %v808 = vand.u32 %v176, 4294901760
  %v809 = vsub.f32 %v176, %v808
  %v810 = vand.u32 %v809, 4294901760
  %811 = vmatmul.f32.gmra.mxu0 %v810
  %v812 = vpop.f32.mrf.mxu0
  %v813 = vadd.f32 %v757, %v812
  %v814 = vand.u32 %v179, 4294901760
  %v815 = vsub.f32 %v179, %v814
  %v816 = vand.u32 %v815, 4294901760
  %817 = vmatmul.f32.gmra.mxu0 %v816
  %v818 = vpop.f32.mrf.mxu0
  %v819 = vadd.f32 %v762, %v818
  %820 = vdwg.mxu0
  %v821 = vand.u32 %v227, 4294901760
  %v822 = vsub.f32 %v227, %v821
  %v823 = vand.u32 %v822, 4294901760
  %824 = vmatpush.xpose.msra.mxu0 %v823
  %v825 = vand.u32 %v224, 4294901760
  %v826 = vsub.f32 %v224, %v825
  %v827 = vand.u32 %v826, 4294901760
  %828 = vmatpush.xpose.msra.mxu0 %v827
  %v829 = vand.u32 %v221, 4294901760
  %v830 = vsub.f32 %v221, %v829
  %v831 = vand.u32 %v830, 4294901760
  %832 = vmatpush.xpose.msra.mxu0 %v831
  %v833 = vand.u32 %v218, 4294901760
  %v834 = vsub.f32 %v218, %v833
  %v835 = vand.u32 %v834, 4294901760
  %836 = vmatpush.xpose.msra.mxu0 %v835
  %v837 = vand.u32 %v215, 4294901760
  %v838 = vsub.f32 %v215, %v837
  %v839 = vand.u32 %v838, 4294901760
  %840 = vmatpush.xpose.msra.mxu0 %v839
  %v841 = vand.u32 %v212, 4294901760
  %v842 = vsub.f32 %v212, %v841
  %v843 = vand.u32 %v842, 4294901760
  %844 = vmatpush.xpose.msra.mxu0 %v843
  %v845 = vand.u32 %v209, 4294901760
  %v846 = vsub.f32 %v209, %v845
  %v847 = vand.u32 %v846, 4294901760
  %848 = vmatpush.xpose.msra.mxu0 %v847
  %v849 = vand.u32 %v206, 4294901760
  %v850 = vsub.f32 %v206, %v849
  %v851 = vand.u32 %v850, 4294901760
  %852 = vmatpush.xpose.msra.mxu0 %v851
  %v853 = vand.u32 %v203, 4294901760
  %v854 = vsub.f32 %v203, %v853
  %v855 = vand.u32 %v854, 4294901760
  %856 = vmatpush.xpose.msra.mxu0 %v855
  %v857 = vand.u32 %v200, 4294901760
  %v858 = vsub.f32 %v200, %v857
  %v859 = vand.u32 %v858, 4294901760
  %860 = vmatpush.xpose.msra.mxu0 %v859
  %v861 = vand.u32 %v197, 4294901760
  %v862 = vsub.f32 %v197, %v861
  %v863 = vand.u32 %v862, 4294901760
  %864 = vmatpush.xpose.msra.mxu0 %v863
  %v865 = vand.u32 %v194, 4294901760
  %v866 = vsub.f32 %v194, %v865
  %v867 = vand.u32 %v866, 4294901760
  %868 = vmatpush.xpose.msra.mxu0 %v867
  %v869 = vand.u32 %v191, 4294901760
  %v870 = vsub.f32 %v191, %v869
  %v871 = vand.u32 %v870, 4294901760
  %872 = vmatpush.xpose.msra.mxu0 %v871
  %v873 = vand.u32 %v188, 4294901760
  %v874 = vsub.f32 %v188, %v873
  %v875 = vand.u32 %v874, 4294901760
  %876 = vmatpush.xpose.msra.mxu0 %v875
  %v877 = vand.u32 %v185, 4294901760
  %v878 = vsub.f32 %v185, %v877
  %v879 = vand.u32 %v878, 4294901760
  %880 = vmatpush.xpose.msra.mxu0 %v879
  %v881 = vand.u32 %v182, 4294901760
  %v882 = vsub.f32 %v182, %v881
  %v883 = vand.u32 %v882, 4294901760
  %884 = vmatpush.xpose.msra.mxu0 %v883
  %v885 = vand.u32 %v170, 4294901760
  %886 = vmatmul.f32.gmra.mxu0 %v885
  %v887 = vpop.f32.mrf.mxu0
  %v888 = vadd.f32 %v801, %v887
  %v889 = vand.u32 %v173, 4294901760
  %890 = vmatmul.f32.gmra.mxu0 %v889
  %v891 = vpop.f32.mrf.mxu0
  %v892 = vadd.f32 %v807, %v891
  %v893 = vand.u32 %v176, 4294901760
  %894 = vmatmul.f32.gmra.mxu0 %v893
  %v895 = vpop.f32.mrf.mxu0
  %v896 = vadd.f32 %v813, %v895
  %v897 = vand.u32 %v179, 4294901760
  %898 = vmatmul.f32.gmra.mxu0 %v897
  %v899 = vpop.f32.mrf.mxu0
  %v900 = vadd.f32 %v819, %v899
  %901 = vdwg.mxu0
  %v902 = vand.u32 %v227, 4294901760
  %903 = vmatpush.xpose.msra.mxu0 %v902
  %v904 = vand.u32 %v224, 4294901760
  %905 = vmatpush.xpose.msra.mxu0 %v904
  %v906 = vand.u32 %v221, 4294901760
  %907 = vmatpush.xpose.msra.mxu0 %v906
  %v908 = vand.u32 %v218, 4294901760
  %909 = vmatpush.xpose.msra.mxu0 %v908
  %v910 = vand.u32 %v215, 4294901760
  %911 = vmatpush.xpose.msra.mxu0 %v910
  %v912 = vand.u32 %v212, 4294901760
  %913 = vmatpush.xpose.msra.mxu0 %v912
  %v914 = vand.u32 %v209, 4294901760
  %915 = vmatpush.xpose.msra.mxu0 %v914
  %v916 = vand.u32 %v206, 4294901760
  %917 = vmatpush.xpose.msra.mxu0 %v916
  %v918 = vand.u32 %v203, 4294901760
  %919 = vmatpush.xpose.msra.mxu0 %v918
  %v920 = vand.u32 %v200, 4294901760
  %921 = vmatpush.xpose.msra.mxu0 %v920
  %v922 = vand.u32 %v197, 4294901760
  %923 = vmatpush.xpose.msra.mxu0 %v922
  %v924 = vand.u32 %v194, 4294901760
  %925 = vmatpush.xpose.msra.mxu0 %v924
  %v926 = vand.u32 %v191, 4294901760
  %927 = vmatpush.xpose.msra.mxu0 %v926
  %v928 = vand.u32 %v188, 4294901760
  %929 = vmatpush.xpose.msra.mxu0 %v928
  %v930 = vand.u32 %v185, 4294901760
  %931 = vmatpush.xpose.msra.mxu0 %v930
  %v932 = vand.u32 %v182, 4294901760
  %933 = vmatpush.xpose.msra.mxu0 %v932
  %v934 = vand.u32 %v170, 4294901760
  %935 = vmatmul.f32.gmra.mxu0 %v934
  %v936 = vpop.f32.mrf.mxu0
  %v937 = vadd.f32 %v888, %v936
  %v938 = vand.u32 %v173, 4294901760
  %939 = vmatmul.f32.gmra.mxu0 %v938
  %v940 = vpop.f32.mrf.mxu0
  %v941 = vadd.f32 %v892, %v940
  %v942 = vand.u32 %v176, 4294901760
  %943 = vmatmul.f32.gmra.mxu0 %v942
  %v944 = vpop.f32.mrf.mxu0
  %v945 = vadd.f32 %v896, %v944
  %v946 = vand.u32 %v179, 4294901760
  %947 = vmatmul.f32.gmra.mxu0 %v946
  %v948 = vpop.f32.mrf.mxu0
  %v949 = vadd.f32 %v900, %v948
  %950 = vdwg.mxu0
  %v951 = vand.u32 %v275, 4294901760
  %952 = vmatpush.xpose.msra.mxu0 %v951
  %v953 = vand.u32 %v272, 4294901760
  %954 = vmatpush.xpose.msra.mxu0 %v953
  %v955 = vand.u32 %v269, 4294901760
  %956 = vmatpush.xpose.msra.mxu0 %v955
  %v957 = vand.u32 %v266, 4294901760
  %958 = vmatpush.xpose.msra.mxu0 %v957
  %v959 = vand.u32 %v263, 4294901760
  %960 = vmatpush.xpose.msra.mxu0 %v959
  %v961 = vand.u32 %v260, 4294901760
  %962 = vmatpush.xpose.msra.mxu0 %v961
  %v963 = vand.u32 %v257, 4294901760
  %964 = vmatpush.xpose.msra.mxu0 %v963
  %v965 = vand.u32 %v254, 4294901760
  %966 = vmatpush.xpose.msra.mxu0 %v965
  %v967 = vand.u32 %v251, 4294901760
  %968 = vmatpush.xpose.msra.mxu0 %v967
  %v969 = vand.u32 %v248, 4294901760
  %970 = vmatpush.xpose.msra.mxu0 %v969
  %v971 = vand.u32 %v245, 4294901760
  %972 = vmatpush.xpose.msra.mxu0 %v971
  %v973 = vand.u32 %v242, 4294901760
  %974 = vmatpush.xpose.msra.mxu0 %v973
  %v975 = vand.u32 %v239, 4294901760
  %976 = vmatpush.xpose.msra.mxu0 %v975
  %v977 = vand.u32 %v236, 4294901760
  %978 = vmatpush.xpose.msra.mxu0 %v977
  %v979 = vand.u32 %v233, 4294901760
  %980 = vmatpush.xpose.msra.mxu0 %v979
  %v981 = vand.u32 %v230, 4294901760
  %982 = vmatpush.xpose.msra.mxu0 %v981
  %v983 = vand.u32 %v170, 4294901760
  %v984 = vsub.f32 %v170, %v983
  %v985 = vand.u32 %v984, 4294901760
  %v986 = vsub.f32 %v984, %v985
  %v987 = vand.u32 %v986, 4294901760
  %988 = vmatmul.f32.gmra.mxu0 %v987
  %v989 = vpop.f32.mrf.mxu0
  %v990 = vadd.f32 %v151, %v989
  %v991 = vand.u32 %v173, 4294901760
  %v992 = vsub.f32 %v173, %v991
  %v993 = vand.u32 %v992, 4294901760
  %v994 = vsub.f32 %v992, %v993
  %v995 = vand.u32 %v994, 4294901760
  %996 = vmatmul.f32.gmra.mxu0 %v995
  %v997 = vpop.f32.mrf.mxu0
  %v998 = vadd.f32 %v156, %v997
  %v999 = vand.u32 %v176, 4294901760
  %v1000 = vsub.f32 %v176, %v999
  %v1001 = vand.u32 %v1000, 4294901760
  %v1002 = vsub.f32 %v1000, %v1001
  %v1003 = vand.u32 %v1002, 4294901760
  %1004 = vmatmul.f32.gmra.mxu0 %v1003
  %v1005 = vpop.f32.mrf.mxu0
  %v1006 = vadd.f32 %v161, %v1005
  %v1007 = vand.u32 %v179, 4294901760
  %v1008 = vsub.f32 %v179, %v1007
  %v1009 = vand.u32 %v1008, 4294901760
  %v1010 = vsub.f32 %v1008, %v1009
  %v1011 = vand.u32 %v1010, 4294901760
  %1012 = vmatmul.f32.gmra.mxu0 %v1011
  %v1013 = vpop.f32.mrf.mxu0
  %v1014 = vadd.f32 %v166, %v1013
  %1015 = vdwg.mxu0
  %v1016 = vand.u32 %v275, 4294901760
  %v1017 = vsub.f32 %v275, %v1016
  %v1018 = vand.u32 %v1017, 4294901760
  %v1019 = vsub.f32 %v1017, %v1018
  %v1020 = vand.u32 %v1019, 4294901760
  %1021 = vmatpush.xpose.msra.mxu0 %v1020
  %v1022 = vand.u32 %v272, 4294901760
  %v1023 = vsub.f32 %v272, %v1022
  %v1024 = vand.u32 %v1023, 4294901760
  %v1025 = vsub.f32 %v1023, %v1024
  %v1026 = vand.u32 %v1025, 4294901760
  %1027 = vmatpush.xpose.msra.mxu0 %v1026
  %v1028 = vand.u32 %v269, 4294901760
  %v1029 = vsub.f32 %v269, %v1028
  %v1030 = vand.u32 %v1029, 4294901760
  %v1031 = vsub.f32 %v1029, %v1030
  %v1032 = vand.u32 %v1031, 4294901760
  %1033 = vmatpush.xpose.msra.mxu0 %v1032
  %v1034 = vand.u32 %v266, 4294901760
  %v1035 = vsub.f32 %v266, %v1034
  %v1036 = vand.u32 %v1035, 4294901760
  %v1037 = vsub.f32 %v1035, %v1036
  %v1038 = vand.u32 %v1037, 4294901760
  %1039 = vmatpush.xpose.msra.mxu0 %v1038
  %v1040 = vand.u32 %v263, 4294901760
  %v1041 = vsub.f32 %v263, %v1040
  %v1042 = vand.u32 %v1041, 4294901760
  %v1043 = vsub.f32 %v1041, %v1042
  %v1044 = vand.u32 %v1043, 4294901760
  %1045 = vmatpush.xpose.msra.mxu0 %v1044
  %v1046 = vand.u32 %v260, 4294901760
  %v1047 = vsub.f32 %v260, %v1046
  %v1048 = vand.u32 %v1047, 4294901760
  %v1049 = vsub.f32 %v1047, %v1048
  %v1050 = vand.u32 %v1049, 4294901760
  %1051 = vmatpush.xpose.msra.mxu0 %v1050
  %v1052 = vand.u32 %v257, 4294901760
  %v1053 = vsub.f32 %v257, %v1052
  %v1054 = vand.u32 %v1053, 4294901760
  %v1055 = vsub.f32 %v1053, %v1054
  %v1056 = vand.u32 %v1055, 4294901760
  %1057 = vmatpush.xpose.msra.mxu0 %v1056
  %v1058 = vand.u32 %v254, 4294901760
  %v1059 = vsub.f32 %v254, %v1058
  %v1060 = vand.u32 %v1059, 4294901760
  %v1061 = vsub.f32 %v1059, %v1060
  %v1062 = vand.u32 %v1061, 4294901760
  %1063 = vmatpush.xpose.msra.mxu0 %v1062
  %v1064 = vand.u32 %v251, 4294901760
  %v1065 = vsub.f32 %v251, %v1064
  %v1066 = vand.u32 %v1065, 4294901760
  %v1067 = vsub.f32 %v1065, %v1066
  %v1068 = vand.u32 %v1067, 4294901760
  %1069 = vmatpush.xpose.msra.mxu0 %v1068
  %v1070 = vand.u32 %v248, 4294901760
  %v1071 = vsub.f32 %v248, %v1070
  %v1072 = vand.u32 %v1071, 4294901760
  %v1073 = vsub.f32 %v1071, %v1072
  %v1074 = vand.u32 %v1073, 4294901760
  %1075 = vmatpush.xpose.msra.mxu0 %v1074
  %v1076 = vand.u32 %v245, 4294901760
  %v1077 = vsub.f32 %v245, %v1076
  %v1078 = vand.u32 %v1077, 4294901760
  %v1079 = vsub.f32 %v1077, %v1078
  %v1080 = vand.u32 %v1079, 4294901760
  %1081 = vmatpush.xpose.msra.mxu0 %v1080
  %v1082 = vand.u32 %v242, 4294901760
  %v1083 = vsub.f32 %v242, %v1082
  %v1084 = vand.u32 %v1083, 4294901760
  %v1085 = vsub.f32 %v1083, %v1084
  %v1086 = vand.u32 %v1085, 4294901760
  %1087 = vmatpush.xpose.msra.mxu0 %v1086
  %v1088 = vand.u32 %v239, 4294901760
  %v1089 = vsub.f32 %v239, %v1088
  %v1090 = vand.u32 %v1089, 4294901760
  %v1091 = vsub.f32 %v1089, %v1090
  %v1092 = vand.u32 %v1091, 4294901760
  %1093 = vmatpush.xpose.msra.mxu0 %v1092
  %v1094 = vand.u32 %v236, 4294901760
  %v1095 = vsub.f32 %v236, %v1094
  %v1096 = vand.u32 %v1095, 4294901760
  %v1097 = vsub.f32 %v1095, %v1096
  %v1098 = vand.u32 %v1097, 4294901760
  %1099 = vmatpush.xpose.msra.mxu0 %v1098
  %v1100 = vand.u32 %v233, 4294901760
  %v1101 = vsub.f32 %v233, %v1100
  %v1102 = vand.u32 %v1101, 4294901760
  %v1103 = vsub.f32 %v1101, %v1102
  %v1104 = vand.u32 %v1103, 4294901760
  %1105 = vmatpush.xpose.msra.mxu0 %v1104
  %v1106 = vand.u32 %v230, 4294901760
  %v1107 = vsub.f32 %v230, %v1106
  %v1108 = vand.u32 %v1107, 4294901760
  %v1109 = vsub.f32 %v1107, %v1108
  %v1110 = vand.u32 %v1109, 4294901760
  %1111 = vmatpush.xpose.msra.mxu0 %v1110
  %v1112 = vand.u32 %v170, 4294901760
  %1113 = vmatmul.f32.gmra.mxu0 %v1112
  %v1114 = vpop.f32.mrf.mxu0
  %v1115 = vadd.f32 %v990, %v1114
  %v1116 = vand.u32 %v173, 4294901760
  %1117 = vmatmul.f32.gmra.mxu0 %v1116
  %v1118 = vpop.f32.mrf.mxu0
  %v1119 = vadd.f32 %v998, %v1118
  %v1120 = vand.u32 %v176, 4294901760
  %1121 = vmatmul.f32.gmra.mxu0 %v1120
  %v1122 = vpop.f32.mrf.mxu0
  %v1123 = vadd.f32 %v1006, %v1122
  %v1124 = vand.u32 %v179, 4294901760
  %1125 = vmatmul.f32.gmra.mxu0 %v1124
  %v1126 = vpop.f32.mrf.mxu0
  %v1127 = vadd.f32 %v1014, %v1126
  %1128 = vdwg.mxu0
  %v1129 = vand.u32 %v275, 4294901760
  %v1130 = vsub.f32 %v275, %v1129
  %1131 = vmatpush.xpose.msra.mxu0 %v1130
  %v1132 = vand.u32 %v272, 4294901760
  %v1133 = vsub.f32 %v272, %v1132
  %1134 = vmatpush.xpose.msra.mxu0 %v1133
  %v1135 = vand.u32 %v269, 4294901760
  %v1136 = vsub.f32 %v269, %v1135
  %1137 = vmatpush.xpose.msra.mxu0 %v1136
  %v1138 = vand.u32 %v266, 4294901760
  %v1139 = vsub.f32 %v266, %v1138
  %1140 = vmatpush.xpose.msra.mxu0 %v1139
  %v1141 = vand.u32 %v263, 4294901760
  %v1142 = vsub.f32 %v263, %v1141
  %1143 = vmatpush.xpose.msra.mxu0 %v1142
  %v1144 = vand.u32 %v260, 4294901760
  %v1145 = vsub.f32 %v260, %v1144
  %1146 = vmatpush.xpose.msra.mxu0 %v1145
  %v1147 = vand.u32 %v257, 4294901760
  %v1148 = vsub.f32 %v257, %v1147
  %1149 = vmatpush.xpose.msra.mxu0 %v1148
  %v1150 = vand.u32 %v254, 4294901760
  %v1151 = vsub.f32 %v254, %v1150
  %1152 = vmatpush.xpose.msra.mxu0 %v1151
  %v1153 = vand.u32 %v251, 4294901760
  %v1154 = vsub.f32 %v251, %v1153
  %1155 = vmatpush.xpose.msra.mxu0 %v1154
  %v1156 = vand.u32 %v248, 4294901760
  %v1157 = vsub.f32 %v248, %v1156
  %1158 = vmatpush.xpose.msra.mxu0 %v1157
  %v1159 = vand.u32 %v245, 4294901760
  %v1160 = vsub.f32 %v245, %v1159
  %1161 = vmatpush.xpose.msra.mxu0 %v1160
  %v1162 = vand.u32 %v242, 4294901760
  %v1163 = vsub.f32 %v242, %v1162
  %1164 = vmatpush.xpose.msra.mxu0 %v1163
  %v1165 = vand.u32 %v239, 4294901760
  %v1166 = vsub.f32 %v239, %v1165
  %1167 = vmatpush.xpose.msra.mxu0 %v1166
  %v1168 = vand.u32 %v236, 4294901760
  %v1169 = vsub.f32 %v236, %v1168
  %1170 = vmatpush.xpose.msra.mxu0 %v1169
  %v1171 = vand.u32 %v233, 4294901760
  %v1172 = vsub.f32 %v233, %v1171
  %1173 = vmatpush.xpose.msra.mxu0 %v1172
  %v1174 = vand.u32 %v230, 4294901760
  %v1175 = vsub.f32 %v230, %v1174
  %1176 = vmatpush.xpose.msra.mxu0 %v1175
  %v1177 = vand.u32 %v170, 4294901760
  %v1178 = vsub.f32 %v170, %v1177
  %1179 = vmatmul.f32.gmra.mxu0 %v1178
  %v1180 = vpop.f32.mrf.mxu0
  %v1181 = vadd.f32 %v1115, %v1180
  %v1182 = vand.u32 %v173, 4294901760
  %v1183 = vsub.f32 %v173, %v1182
  %1184 = vmatmul.f32.gmra.mxu0 %v1183
  %v1185 = vpop.f32.mrf.mxu0
  %v1186 = vadd.f32 %v1119, %v1185
  %v1187 = vand.u32 %v176, 4294901760
  %v1188 = vsub.f32 %v176, %v1187
  %1189 = vmatmul.f32.gmra.mxu0 %v1188
  %v1190 = vpop.f32.mrf.mxu0
  %v1191 = vadd.f32 %v1123, %v1190
  %v1192 = vand.u32 %v179, 4294901760
  %v1193 = vsub.f32 %v179, %v1192
  %1194 = vmatmul.f32.gmra.mxu0 %v1193
  %v1195 = vpop.f32.mrf.mxu0
  %v1196 = vadd.f32 %v1127, %v1195
  %1197 = vdwg.mxu0
  %v1198 = vand.u32 %v275, 4294901760
  %1199 = vmatpush.xpose.msra.mxu0 %v1198
  %v1200 = vand.u32 %v272, 4294901760
  %1201 = vmatpush.xpose.msra.mxu0 %v1200
  %v1202 = vand.u32 %v269, 4294901760
  %1203 = vmatpush.xpose.msra.mxu0 %v1202
  %v1204 = vand.u32 %v266, 4294901760
  %1205 = vmatpush.xpose.msra.mxu0 %v1204
  %v1206 = vand.u32 %v263, 4294901760
  %1207 = vmatpush.xpose.msra.mxu0 %v1206
  %v1208 = vand.u32 %v260, 4294901760
  %1209 = vmatpush.xpose.msra.mxu0 %v1208
  %v1210 = vand.u32 %v257, 4294901760
  %1211 = vmatpush.xpose.msra.mxu0 %v1210
  %v1212 = vand.u32 %v254, 4294901760
  %1213 = vmatpush.xpose.msra.mxu0 %v1212
  %v1214 = vand.u32 %v251, 4294901760
  %1215 = vmatpush.xpose.msra.mxu0 %v1214
  %v1216 = vand.u32 %v248, 4294901760
  %1217 = vmatpush.xpose.msra.mxu0 %v1216
  %v1218 = vand.u32 %v245, 4294901760
  %1219 = vmatpush.xpose.msra.mxu0 %v1218
  %v1220 = vand.u32 %v242, 4294901760
  %1221 = vmatpush.xpose.msra.mxu0 %v1220
  %v1222 = vand.u32 %v239, 4294901760
  %1223 = vmatpush.xpose.msra.mxu0 %v1222
  %v1224 = vand.u32 %v236, 4294901760
  %1225 = vmatpush.xpose.msra.mxu0 %v1224
  %v1226 = vand.u32 %v233, 4294901760
  %1227 = vmatpush.xpose.msra.mxu0 %v1226
  %v1228 = vand.u32 %v230, 4294901760
  %1229 = vmatpush.xpose.msra.mxu0 %v1228
  %v1230 = vand.u32 %v170, 4294901760
  %v1231 = vsub.f32 %v170, %v1230
  %v1232 = vand.u32 %v1231, 4294901760
  %1233 = vmatmul.f32.gmra.mxu0 %v1232
  %v1234 = vpop.f32.mrf.mxu0
  %v1235 = vadd.f32 %v1181, %v1234
  %v1236 = vand.u32 %v173, 4294901760
  %v1237 = vsub.f32 %v173, %v1236
  %v1238 = vand.u32 %v1237, 4294901760
  %1239 = vmatmul.f32.gmra.mxu0 %v1238
  %v1240 = vpop.f32.mrf.mxu0
  %v1241 = vadd.f32 %v1186, %v1240
  %v1242 = vand.u32 %v176, 4294901760
  %v1243 = vsub.f32 %v176, %v1242
  %v1244 = vand.u32 %v1243, 4294901760
  %1245 = vmatmul.f32.gmra.mxu0 %v1244
  %v1246 = vpop.f32.mrf.mxu0
  %v1247 = vadd.f32 %v1191, %v1246
  %v1248 = vand.u32 %v179, 4294901760
  %v1249 = vsub.f32 %v179, %v1248
  %v1250 = vand.u32 %v1249, 4294901760
  %1251 = vmatmul.f32.gmra.mxu0 %v1250
  %v1252 = vpop.f32.mrf.mxu0
  %v1253 = vadd.f32 %v1196, %v1252
  %1254 = vdwg.mxu0
  %v1255 = vand.u32 %v275, 4294901760
  %v1256 = vsub.f32 %v275, %v1255
  %v1257 = vand.u32 %v1256, 4294901760
  %1258 = vmatpush.xpose.msra.mxu0 %v1257
  %v1259 = vand.u32 %v272, 4294901760
  %v1260 = vsub.f32 %v272, %v1259
  %v1261 = vand.u32 %v1260, 4294901760
  %1262 = vmatpush.xpose.msra.mxu0 %v1261
  %v1263 = vand.u32 %v269, 4294901760
  %v1264 = vsub.f32 %v269, %v1263
  %v1265 = vand.u32 %v1264, 4294901760
  %1266 = vmatpush.xpose.msra.mxu0 %v1265
  %v1267 = vand.u32 %v266, 4294901760
  %v1268 = vsub.f32 %v266, %v1267
  %v1269 = vand.u32 %v1268, 4294901760
  %1270 = vmatpush.xpose.msra.mxu0 %v1269
  %v1271 = vand.u32 %v263, 4294901760
  %v1272 = vsub.f32 %v263, %v1271
  %v1273 = vand.u32 %v1272, 4294901760
  %1274 = vmatpush.xpose.msra.mxu0 %v1273
  %v1275 = vand.u32 %v260, 4294901760
  %v1276 = vsub.f32 %v260, %v1275
  %v1277 = vand.u32 %v1276, 4294901760
  %1278 = vmatpush.xpose.msra.mxu0 %v1277
  %v1279 = vand.u32 %v257, 4294901760
  %v1280 = vsub.f32 %v257, %v1279
  %v1281 = vand.u32 %v1280, 4294901760
  %1282 = vmatpush.xpose.msra.mxu0 %v1281
  %v1283 = vand.u32 %v254, 4294901760
  %v1284 = vsub.f32 %v254, %v1283
  %v1285 = vand.u32 %v1284, 4294901760
  %1286 = vmatpush.xpose.msra.mxu0 %v1285
  %v1287 = vand.u32 %v251, 4294901760
  %v1288 = vsub.f32 %v251, %v1287
  %v1289 = vand.u32 %v1288, 4294901760
  %1290 = vmatpush.xpose.msra.mxu0 %v1289
  %v1291 = vand.u32 %v248, 4294901760
  %v1292 = vsub.f32 %v248, %v1291
  %v1293 = vand.u32 %v1292, 4294901760
  %1294 = vmatpush.xpose.msra.mxu0 %v1293
  %v1295 = vand.u32 %v245, 4294901760
  %v1296 = vsub.f32 %v245, %v1295
  %v1297 = vand.u32 %v1296, 4294901760
  %1298 = vmatpush.xpose.msra.mxu0 %v1297
  %v1299 = vand.u32 %v242, 4294901760
  %v1300 = vsub.f32 %v242, %v1299
  %v1301 = vand.u32 %v1300, 4294901760
  %1302 = vmatpush.xpose.msra.mxu0 %v1301
  %v1303 = vand.u32 %v239, 4294901760
  %v1304 = vsub.f32 %v239, %v1303
  %v1305 = vand.u32 %v1304, 4294901760
  %1306 = vmatpush.xpose.msra.mxu0 %v1305
  %v1307 = vand.u32 %v236, 4294901760
  %v1308 = vsub.f32 %v236, %v1307
  %v1309 = vand.u32 %v1308, 4294901760
  %1310 = vmatpush.xpose.msra.mxu0 %v1309
  %v1311 = vand.u32 %v233, 4294901760
  %v1312 = vsub.f32 %v233, %v1311
  %v1313 = vand.u32 %v1312, 4294901760
  %1314 = vmatpush.xpose.msra.mxu0 %v1313
  %v1315 = vand.u32 %v230, 4294901760
  %v1316 = vsub.f32 %v230, %v1315
  %v1317 = vand.u32 %v1316, 4294901760
  %1318 = vmatpush.xpose.msra.mxu0 %v1317
  %v1319 = vand.u32 %v170, 4294901760
  %1320 = vmatmul.f32.gmra.mxu0 %v1319
  %v1321 = vpop.f32.mrf.mxu0
  %v1322 = vadd.f32 %v1235, %v1321
  %v1323 = vand.u32 %v173, 4294901760
  %1324 = vmatmul.f32.gmra.mxu0 %v1323
  %v1325 = vpop.f32.mrf.mxu0
  %v1326 = vadd.f32 %v1241, %v1325
  %v1327 = vand.u32 %v176, 4294901760
  %1328 = vmatmul.f32.gmra.mxu0 %v1327
  %v1329 = vpop.f32.mrf.mxu0
  %v1330 = vadd.f32 %v1247, %v1329
  %v1331 = vand.u32 %v179, 4294901760
  %1332 = vmatmul.f32.gmra.mxu0 %v1331
  %v1333 = vpop.f32.mrf.mxu0
  %v1334 = vadd.f32 %v1253, %v1333
  %1335 = vdwg.mxu0
  %v1336 = vand.u32 %v275, 4294901760
  %1337 = vmatpush.xpose.msra.mxu0 %v1336
  %v1338 = vand.u32 %v272, 4294901760
  %1339 = vmatpush.xpose.msra.mxu0 %v1338
  %v1340 = vand.u32 %v269, 4294901760
  %1341 = vmatpush.xpose.msra.mxu0 %v1340
  %v1342 = vand.u32 %v266, 4294901760
  %1343 = vmatpush.xpose.msra.mxu0 %v1342
  %v1344 = vand.u32 %v263, 4294901760
  %1345 = vmatpush.xpose.msra.mxu0 %v1344
  %v1346 = vand.u32 %v260, 4294901760
  %1347 = vmatpush.xpose.msra.mxu0 %v1346
  %v1348 = vand.u32 %v257, 4294901760
  %1349 = vmatpush.xpose.msra.mxu0 %v1348
  %v1350 = vand.u32 %v254, 4294901760
  %1351 = vmatpush.xpose.msra.mxu0 %v1350
  %v1352 = vand.u32 %v251, 4294901760
  %1353 = vmatpush.xpose.msra.mxu0 %v1352
  %v1354 = vand.u32 %v248, 4294901760
  %1355 = vmatpush.xpose.msra.mxu0 %v1354
  %v1356 = vand.u32 %v245, 4294901760
  %1357 = vmatpush.xpose.msra.mxu0 %v1356
  %v1358 = vand.u32 %v242, 4294901760
  %1359 = vmatpush.xpose.msra.mxu0 %v1358
  %v1360 = vand.u32 %v239, 4294901760
  %1361 = vmatpush.xpose.msra.mxu0 %v1360
  %v1362 = vand.u32 %v236, 4294901760
  %1363 = vmatpush.xpose.msra.mxu0 %v1362
  %v1364 = vand.u32 %v233, 4294901760
  %1365 = vmatpush.xpose.msra.mxu0 %v1364
  %v1366 = vand.u32 %v230, 4294901760
  %1367 = vmatpush.xpose.msra.mxu0 %v1366
  %v1368 = vand.u32 %v170, 4294901760
  %1369 = vmatmul.f32.gmra.mxu0 %v1368
  %v1370 = vpop.f32.mrf.mxu0
  %v1371 = vadd.f32 %v1322, %v1370
  %v1372 = vand.u32 %v173, 4294901760
  %1373 = vmatmul.f32.gmra.mxu0 %v1372
  %v1374 = vpop.f32.mrf.mxu0
  %v1375 = vadd.f32 %v1326, %v1374
  %v1376 = vand.u32 %v176, 4294901760
  %1377 = vmatmul.f32.gmra.mxu0 %v1376
  %v1378 = vpop.f32.mrf.mxu0
  %v1379 = vadd.f32 %v1330, %v1378
  %v1380 = vand.u32 %v179, 4294901760
  %1381 = vmatmul.f32.gmra.mxu0 %v1380
  %v1382 = vpop.f32.mrf.mxu0
  %v1383 = vadd.f32 %v1334, %v1382
  %1384 = vdwg.mxu0
  %v1385 = vand.u32 %v323, 4294901760
  %1386 = vmatpush.xpose.msra.mxu0 %v1385
  %v1387 = vand.u32 %v320, 4294901760
  %1388 = vmatpush.xpose.msra.mxu0 %v1387
  %v1389 = vand.u32 %v317, 4294901760
  %1390 = vmatpush.xpose.msra.mxu0 %v1389
  %v1391 = vand.u32 %v314, 4294901760
  %1392 = vmatpush.xpose.msra.mxu0 %v1391
  %v1393 = vand.u32 %v311, 4294901760
  %1394 = vmatpush.xpose.msra.mxu0 %v1393
  %v1395 = vand.u32 %v308, 4294901760
  %1396 = vmatpush.xpose.msra.mxu0 %v1395
  %v1397 = vand.u32 %v305, 4294901760
  %1398 = vmatpush.xpose.msra.mxu0 %v1397
  %v1399 = vand.u32 %v302, 4294901760
  %1400 = vmatpush.xpose.msra.mxu0 %v1399
  %v1401 = vand.u32 %v299, 4294901760
  %1402 = vmatpush.xpose.msra.mxu0 %v1401
  %v1403 = vand.u32 %v296, 4294901760
  %1404 = vmatpush.xpose.msra.mxu0 %v1403
  %v1405 = vand.u32 %v293, 4294901760
  %1406 = vmatpush.xpose.msra.mxu0 %v1405
  %v1407 = vand.u32 %v290, 4294901760
  %1408 = vmatpush.xpose.msra.mxu0 %v1407
  %v1409 = vand.u32 %v287, 4294901760
  %1410 = vmatpush.xpose.msra.mxu0 %v1409
  %v1411 = vand.u32 %v284, 4294901760
  %1412 = vmatpush.xpose.msra.mxu0 %v1411
  %v1413 = vand.u32 %v281, 4294901760
  %1414 = vmatpush.xpose.msra.mxu0 %v1413
  %v1415 = vand.u32 %v278, 4294901760
  %1416 = vmatpush.xpose.msra.mxu0 %v1415
  %v1417 = vand.u32 %v170, 4294901760
  %v1418 = vsub.f32 %v170, %v1417
  %v1419 = vand.u32 %v1418, 4294901760
  %v1420 = vsub.f32 %v1418, %v1419
  %v1421 = vand.u32 %v1420, 4294901760
  %1422 = vmatmul.f32.gmra.mxu0 %v1421
  %v1423 = vpop.f32.mrf.mxu0
  %v1424 = vadd.f32 %v151, %v1423
  %v1425 = vand.u32 %v173, 4294901760
  %v1426 = vsub.f32 %v173, %v1425
  %v1427 = vand.u32 %v1426, 4294901760
  %v1428 = vsub.f32 %v1426, %v1427
  %v1429 = vand.u32 %v1428, 4294901760
  %1430 = vmatmul.f32.gmra.mxu0 %v1429
  %v1431 = vpop.f32.mrf.mxu0
  %v1432 = vadd.f32 %v156, %v1431
  %v1433 = vand.u32 %v176, 4294901760
  %v1434 = vsub.f32 %v176, %v1433
  %v1435 = vand.u32 %v1434, 4294901760
  %v1436 = vsub.f32 %v1434, %v1435
  %v1437 = vand.u32 %v1436, 4294901760
  %1438 = vmatmul.f32.gmra.mxu0 %v1437
  %v1439 = vpop.f32.mrf.mxu0
  %v1440 = vadd.f32 %v161, %v1439
  %v1441 = vand.u32 %v179, 4294901760
  %v1442 = vsub.f32 %v179, %v1441
  %v1443 = vand.u32 %v1442, 4294901760
  %v1444 = vsub.f32 %v1442, %v1443
  %v1445 = vand.u32 %v1444, 4294901760
  %1446 = vmatmul.f32.gmra.mxu0 %v1445
  %v1447 = vpop.f32.mrf.mxu0
  %v1448 = vadd.f32 %v166, %v1447
  %1449 = vdwg.mxu0
  %v1450 = vand.u32 %v323, 4294901760
  %v1451 = vsub.f32 %v323, %v1450
  %v1452 = vand.u32 %v1451, 4294901760
  %v1453 = vsub.f32 %v1451, %v1452
  %v1454 = vand.u32 %v1453, 4294901760
  %1455 = vmatpush.xpose.msra.mxu0 %v1454
  %v1456 = vand.u32 %v320, 4294901760
  %v1457 = vsub.f32 %v320, %v1456
  %v1458 = vand.u32 %v1457, 4294901760
  %v1459 = vsub.f32 %v1457, %v1458
  %v1460 = vand.u32 %v1459, 4294901760
  %1461 = vmatpush.xpose.msra.mxu0 %v1460
  %v1462 = vand.u32 %v317, 4294901760
  %v1463 = vsub.f32 %v317, %v1462
  %v1464 = vand.u32 %v1463, 4294901760
  %v1465 = vsub.f32 %v1463, %v1464
  %v1466 = vand.u32 %v1465, 4294901760
  %1467 = vmatpush.xpose.msra.mxu0 %v1466
  %v1468 = vand.u32 %v314, 4294901760
  %v1469 = vsub.f32 %v314, %v1468
  %v1470 = vand.u32 %v1469, 4294901760
  %v1471 = vsub.f32 %v1469, %v1470
  %v1472 = vand.u32 %v1471, 4294901760
  %1473 = vmatpush.xpose.msra.mxu0 %v1472
  %v1474 = vand.u32 %v311, 4294901760
  %v1475 = vsub.f32 %v311, %v1474
  %v1476 = vand.u32 %v1475, 4294901760
  %v1477 = vsub.f32 %v1475, %v1476
  %v1478 = vand.u32 %v1477, 4294901760
  %1479 = vmatpush.xpose.msra.mxu0 %v1478
  %v1480 = vand.u32 %v308, 4294901760
  %v1481 = vsub.f32 %v308, %v1480
  %v1482 = vand.u32 %v1481, 4294901760
  %v1483 = vsub.f32 %v1481, %v1482
  %v1484 = vand.u32 %v1483, 4294901760
  %1485 = vmatpush.xpose.msra.mxu0 %v1484
  %v1486 = vand.u32 %v305, 4294901760
  %v1487 = vsub.f32 %v305, %v1486
  %v1488 = vand.u32 %v1487, 4294901760
  %v1489 = vsub.f32 %v1487, %v1488
  %v1490 = vand.u32 %v1489, 4294901760
  %1491 = vmatpush.xpose.msra.mxu0 %v1490
  %v1492 = vand.u32 %v302, 4294901760
  %v1493 = vsub.f32 %v302, %v1492
  %v1494 = vand.u32 %v1493, 4294901760
  %v1495 = vsub.f32 %v1493, %v1494
  %v1496 = vand.u32 %v1495, 4294901760
  %1497 = vmatpush.xpose.msra.mxu0 %v1496
  %v1498 = vand.u32 %v299, 4294901760
  %v1499 = vsub.f32 %v299, %v1498
  %v1500 = vand.u32 %v1499, 4294901760
  %v1501 = vsub.f32 %v1499, %v1500
  %v1502 = vand.u32 %v1501, 4294901760
  %1503 = vmatpush.xpose.msra.mxu0 %v1502
  %v1504 = vand.u32 %v296, 4294901760
  %v1505 = vsub.f32 %v296, %v1504
  %v1506 = vand.u32 %v1505, 4294901760
  %v1507 = vsub.f32 %v1505, %v1506
  %v1508 = vand.u32 %v1507, 4294901760
  %1509 = vmatpush.xpose.msra.mxu0 %v1508
  %v1510 = vand.u32 %v293, 4294901760
  %v1511 = vsub.f32 %v293, %v1510
  %v1512 = vand.u32 %v1511, 4294901760
  %v1513 = vsub.f32 %v1511, %v1512
  %v1514 = vand.u32 %v1513, 4294901760
  %1515 = vmatpush.xpose.msra.mxu0 %v1514
  %v1516 = vand.u32 %v290, 4294901760
  %v1517 = vsub.f32 %v290, %v1516
  %v1518 = vand.u32 %v1517, 4294901760
  %v1519 = vsub.f32 %v1517, %v1518
  %v1520 = vand.u32 %v1519, 4294901760
  %1521 = vmatpush.xpose.msra.mxu0 %v1520
  %v1522 = vand.u32 %v287, 4294901760
  %v1523 = vsub.f32 %v287, %v1522
  %v1524 = vand.u32 %v1523, 4294901760
  %v1525 = vsub.f32 %v1523, %v1524
  %v1526 = vand.u32 %v1525, 4294901760
  %1527 = vmatpush.xpose.msra.mxu0 %v1526
  %v1528 = vand.u32 %v284, 4294901760
  %v1529 = vsub.f32 %v284, %v1528
  %v1530 = vand.u32 %v1529, 4294901760
  %v1531 = vsub.f32 %v1529, %v1530
  %v1532 = vand.u32 %v1531, 4294901760
  %1533 = vmatpush.xpose.msra.mxu0 %v1532
  %v1534 = vand.u32 %v281, 4294901760
  %v1535 = vsub.f32 %v281, %v1534
  %v1536 = vand.u32 %v1535, 4294901760
  %v1537 = vsub.f32 %v1535, %v1536
  %v1538 = vand.u32 %v1537, 4294901760
  %1539 = vmatpush.xpose.msra.mxu0 %v1538
  %v1540 = vand.u32 %v278, 4294901760
  %v1541 = vsub.f32 %v278, %v1540
  %v1542 = vand.u32 %v1541, 4294901760
  %v1543 = vsub.f32 %v1541, %v1542
  %v1544 = vand.u32 %v1543, 4294901760
  %1545 = vmatpush.xpose.msra.mxu0 %v1544
  %v1546 = vand.u32 %v170, 4294901760
  %1547 = vmatmul.f32.gmra.mxu0 %v1546
  %v1548 = vpop.f32.mrf.mxu0
  %v1549 = vadd.f32 %v1424, %v1548
  %v1550 = vand.u32 %v173, 4294901760
  %1551 = vmatmul.f32.gmra.mxu0 %v1550
  %v1552 = vpop.f32.mrf.mxu0
  %v1553 = vadd.f32 %v1432, %v1552
  %v1554 = vand.u32 %v176, 4294901760
  %1555 = vmatmul.f32.gmra.mxu0 %v1554
  %v1556 = vpop.f32.mrf.mxu0
  %v1557 = vadd.f32 %v1440, %v1556
  %v1558 = vand.u32 %v179, 4294901760
  %1559 = vmatmul.f32.gmra.mxu0 %v1558
  %v1560 = vpop.f32.mrf.mxu0
  %v1561 = vadd.f32 %v1448, %v1560
  %1562 = vdwg.mxu0
  %v1563 = vand.u32 %v323, 4294901760
  %v1564 = vsub.f32 %v323, %v1563
  %1565 = vmatpush.xpose.msra.mxu0 %v1564
  %v1566 = vand.u32 %v320, 4294901760
  %v1567 = vsub.f32 %v320, %v1566
  %1568 = vmatpush.xpose.msra.mxu0 %v1567
  %v1569 = vand.u32 %v317, 4294901760
  %v1570 = vsub.f32 %v317, %v1569
  %1571 = vmatpush.xpose.msra.mxu0 %v1570
  %v1572 = vand.u32 %v314, 4294901760
  %v1573 = vsub.f32 %v314, %v1572
  %1574 = vmatpush.xpose.msra.mxu0 %v1573
  %v1575 = vand.u32 %v311, 4294901760
  %v1576 = vsub.f32 %v311, %v1575
  %1577 = vmatpush.xpose.msra.mxu0 %v1576
  %v1578 = vand.u32 %v308, 4294901760
  %v1579 = vsub.f32 %v308, %v1578
  %1580 = vmatpush.xpose.msra.mxu0 %v1579
  %v1581 = vand.u32 %v305, 4294901760
  %v1582 = vsub.f32 %v305, %v1581
  %1583 = vmatpush.xpose.msra.mxu0 %v1582
  %v1584 = vand.u32 %v302, 4294901760
  %v1585 = vsub.f32 %v302, %v1584
  %1586 = vmatpush.xpose.msra.mxu0 %v1585
  %v1587 = vand.u32 %v299, 4294901760
  %v1588 = vsub.f32 %v299, %v1587
  %1589 = vmatpush.xpose.msra.mxu0 %v1588
  %v1590 = vand.u32 %v296, 4294901760
  %v1591 = vsub.f32 %v296, %v1590
  %1592 = vmatpush.xpose.msra.mxu0 %v1591
  %v1593 = vand.u32 %v293, 4294901760
  %v1594 = vsub.f32 %v293, %v1593
  %1595 = vmatpush.xpose.msra.mxu0 %v1594
  %v1596 = vand.u32 %v290, 4294901760
  %v1597 = vsub.f32 %v290, %v1596
  %1598 = vmatpush.xpose.msra.mxu0 %v1597
  %v1599 = vand.u32 %v287, 4294901760
  %v1600 = vsub.f32 %v287, %v1599
  %1601 = vmatpush.xpose.msra.mxu0 %v1600
  %v1602 = vand.u32 %v284, 4294901760
  %v1603 = vsub.f32 %v284, %v1602
  %1604 = vmatpush.xpose.msra.mxu0 %v1603
  %v1605 = vand.u32 %v281, 4294901760
  %v1606 = vsub.f32 %v281, %v1605
  %1607 = vmatpush.xpose.msra.mxu0 %v1606
  %v1608 = vand.u32 %v278, 4294901760
  %v1609 = vsub.f32 %v278, %v1608
  %1610 = vmatpush.xpose.msra.mxu0 %v1609
  %v1611 = vand.u32 %v170, 4294901760
  %v1612 = vsub.f32 %v170, %v1611
  %1613 = vmatmul.f32.gmra.mxu0 %v1612
  %v1614 = vpop.f32.mrf.mxu0
  %v1615 = vadd.f32 %v1549, %v1614
  %v1616 = vand.u32 %v173, 4294901760
  %v1617 = vsub.f32 %v173, %v1616
  %1618 = vmatmul.f32.gmra.mxu0 %v1617
  %v1619 = vpop.f32.mrf.mxu0
  %v1620 = vadd.f32 %v1553, %v1619
  %v1621 = vand.u32 %v176, 4294901760
  %v1622 = vsub.f32 %v176, %v1621
  %1623 = vmatmul.f32.gmra.mxu0 %v1622
  %v1624 = vpop.f32.mrf.mxu0
  %v1625 = vadd.f32 %v1557, %v1624
  %v1626 = vand.u32 %v179, 4294901760
  %v1627 = vsub.f32 %v179, %v1626
  %1628 = vmatmul.f32.gmra.mxu0 %v1627
  %v1629 = vpop.f32.mrf.mxu0
  %v1630 = vadd.f32 %v1561, %v1629
  %1631 = vdwg.mxu0
  %v1632 = vand.u32 %v323, 4294901760
  %1633 = vmatpush.xpose.msra.mxu0 %v1632
  %v1634 = vand.u32 %v320, 4294901760
  %1635 = vmatpush.xpose.msra.mxu0 %v1634
  %v1636 = vand.u32 %v317, 4294901760
  %1637 = vmatpush.xpose.msra.mxu0 %v1636
  %v1638 = vand.u32 %v314, 4294901760
  %1639 = vmatpush.xpose.msra.mxu0 %v1638
  %v1640 = vand.u32 %v311, 4294901760
  %1641 = vmatpush.xpose.msra.mxu0 %v1640
  %v1642 = vand.u32 %v308, 4294901760
  %1643 = vmatpush.xpose.msra.mxu0 %v1642
  %v1644 = vand.u32 %v305, 4294901760
  %1645 = vmatpush.xpose.msra.mxu0 %v1644
  %v1646 = vand.u32 %v302, 4294901760
  %1647 = vmatpush.xpose.msra.mxu0 %v1646
  %v1648 = vand.u32 %v299, 4294901760
  %1649 = vmatpush.xpose.msra.mxu0 %v1648
  %v1650 = vand.u32 %v296, 4294901760
  %1651 = vmatpush.xpose.msra.mxu0 %v1650
  %v1652 = vand.u32 %v293, 4294901760
  %1653 = vmatpush.xpose.msra.mxu0 %v1652
  %v1654 = vand.u32 %v290, 4294901760
  %1655 = vmatpush.xpose.msra.mxu0 %v1654
  %v1656 = vand.u32 %v287, 4294901760
  %1657 = vmatpush.xpose.msra.mxu0 %v1656
  %v1658 = vand.u32 %v284, 4294901760
  %1659 = vmatpush.xpose.msra.mxu0 %v1658
  %v1660 = vand.u32 %v281, 4294901760
  %1661 = vmatpush.xpose.msra.mxu0 %v1660
  %v1662 = vand.u32 %v278, 4294901760
  %1663 = vmatpush.xpose.msra.mxu0 %v1662
  %v1664 = vand.u32 %v170, 4294901760
  %v1665 = vsub.f32 %v170, %v1664
  %v1666 = vand.u32 %v1665, 4294901760
  %1667 = vmatmul.f32.gmra.mxu0 %v1666
  %v1668 = vpop.f32.mrf.mxu0
  %v1669 = vadd.f32 %v1615, %v1668
  %v1670 = vand.u32 %v173, 4294901760
  %v1671 = vsub.f32 %v173, %v1670
  %v1672 = vand.u32 %v1671, 4294901760
  %1673 = vmatmul.f32.gmra.mxu0 %v1672
  %v1674 = vpop.f32.mrf.mxu0
  %v1675 = vadd.f32 %v1620, %v1674
  %v1676 = vand.u32 %v176, 4294901760
  %v1677 = vsub.f32 %v176, %v1676
  %v1678 = vand.u32 %v1677, 4294901760
  %1679 = vmatmul.f32.gmra.mxu0 %v1678
  %v1680 = vpop.f32.mrf.mxu0
  %v1681 = vadd.f32 %v1625, %v1680
  %v1682 = vand.u32 %v179, 4294901760
  %v1683 = vsub.f32 %v179, %v1682
  %v1684 = vand.u32 %v1683, 4294901760
  %1685 = vmatmul.f32.gmra.mxu0 %v1684
  %v1686 = vpop.f32.mrf.mxu0
  %v1687 = vadd.f32 %v1630, %v1686
  %1688 = vdwg.mxu0
  %v1689 = vand.u32 %v323, 4294901760
  %v1690 = vsub.f32 %v323, %v1689
  %v1691 = vand.u32 %v1690, 4294901760
  %1692 = vmatpush.xpose.msra.mxu0 %v1691
  %v1693 = vand.u32 %v320, 4294901760
  %v1694 = vsub.f32 %v320, %v1693
  %v1695 = vand.u32 %v1694, 4294901760
  %1696 = vmatpush.xpose.msra.mxu0 %v1695
  %v1697 = vand.u32 %v317, 4294901760
  %v1698 = vsub.f32 %v317, %v1697
  %v1699 = vand.u32 %v1698, 4294901760
  %1700 = vmatpush.xpose.msra.mxu0 %v1699
  %v1701 = vand.u32 %v314, 4294901760
  %v1702 = vsub.f32 %v314, %v1701
  %v1703 = vand.u32 %v1702, 4294901760
  %1704 = vmatpush.xpose.msra.mxu0 %v1703
  %v1705 = vand.u32 %v311, 4294901760
  %v1706 = vsub.f32 %v311, %v1705
  %v1707 = vand.u32 %v1706, 4294901760
  %1708 = vmatpush.xpose.msra.mxu0 %v1707
  %v1709 = vand.u32 %v308, 4294901760
  %v1710 = vsub.f32 %v308, %v1709
  %v1711 = vand.u32 %v1710, 4294901760
  %1712 = vmatpush.xpose.msra.mxu0 %v1711
  %v1713 = vand.u32 %v305, 4294901760
  %v1714 = vsub.f32 %v305, %v1713
  %v1715 = vand.u32 %v1714, 4294901760
  %1716 = vmatpush.xpose.msra.mxu0 %v1715
  %v1717 = vand.u32 %v302, 4294901760
  %v1718 = vsub.f32 %v302, %v1717
  %v1719 = vand.u32 %v1718, 4294901760
  %1720 = vmatpush.xpose.msra.mxu0 %v1719
  %v1721 = vand.u32 %v299, 4294901760
  %v1722 = vsub.f32 %v299, %v1721
  %v1723 = vand.u32 %v1722, 4294901760
  %1724 = vmatpush.xpose.msra.mxu0 %v1723
  %v1725 = vand.u32 %v296, 4294901760
  %v1726 = vsub.f32 %v296, %v1725
  %v1727 = vand.u32 %v1726, 4294901760
  %1728 = vmatpush.xpose.msra.mxu0 %v1727
  %v1729 = vand.u32 %v293, 4294901760
  %v1730 = vsub.f32 %v293, %v1729
  %v1731 = vand.u32 %v1730, 4294901760
  %1732 = vmatpush.xpose.msra.mxu0 %v1731
  %v1733 = vand.u32 %v290, 4294901760
  %v1734 = vsub.f32 %v290, %v1733
  %v1735 = vand.u32 %v1734, 4294901760
  %1736 = vmatpush.xpose.msra.mxu0 %v1735
  %v1737 = vand.u32 %v287, 4294901760
  %v1738 = vsub.f32 %v287, %v1737
  %v1739 = vand.u32 %v1738, 4294901760
  %1740 = vmatpush.xpose.msra.mxu0 %v1739
  %v1741 = vand.u32 %v284, 4294901760
  %v1742 = vsub.f32 %v284, %v1741
  %v1743 = vand.u32 %v1742, 4294901760
  %1744 = vmatpush.xpose.msra.mxu0 %v1743
  %v1745 = vand.u32 %v281, 4294901760
  %v1746 = vsub.f32 %v281, %v1745
  %v1747 = vand.u32 %v1746, 4294901760
  %1748 = vmatpush.xpose.msra.mxu0 %v1747
  %v1749 = vand.u32 %v278, 4294901760
  %v1750 = vsub.f32 %v278, %v1749
  %v1751 = vand.u32 %v1750, 4294901760
  %1752 = vmatpush.xpose.msra.mxu0 %v1751
  %v1753 = vand.u32 %v170, 4294901760
  %1754 = vmatmul.f32.gmra.mxu0 %v1753
  %v1755 = vpop.f32.mrf.mxu0
  %v1756 = vadd.f32 %v1669, %v1755
  %v1757 = vand.u32 %v173, 4294901760
  %1758 = vmatmul.f32.gmra.mxu0 %v1757
  %v1759 = vpop.f32.mrf.mxu0
  %v1760 = vadd.f32 %v1675, %v1759
  %v1761 = vand.u32 %v176, 4294901760
  %1762 = vmatmul.f32.gmra.mxu0 %v1761
  %v1763 = vpop.f32.mrf.mxu0
  %v1764 = vadd.f32 %v1681, %v1763
  %v1765 = vand.u32 %v179, 4294901760
  %1766 = vmatmul.f32.gmra.mxu0 %v1765
  %v1767 = vpop.f32.mrf.mxu0
  %v1768 = vadd.f32 %v1687, %v1767
  %1769 = vdwg.mxu0
  %v1770 = vand.u32 %v323, 4294901760
  %1771 = vmatpush.xpose.msra.mxu0 %v1770
  %v1772 = vand.u32 %v320, 4294901760
  %1773 = vmatpush.xpose.msra.mxu0 %v1772
  %v1774 = vand.u32 %v317, 4294901760
  %1775 = vmatpush.xpose.msra.mxu0 %v1774
  %v1776 = vand.u32 %v314, 4294901760
  %1777 = vmatpush.xpose.msra.mxu0 %v1776
  %v1778 = vand.u32 %v311, 4294901760
  %1779 = vmatpush.xpose.msra.mxu0 %v1778
  %v1780 = vand.u32 %v308, 4294901760
  %1781 = vmatpush.xpose.msra.mxu0 %v1780
  %v1782 = vand.u32 %v305, 4294901760
  %1783 = vmatpush.xpose.msra.mxu0 %v1782
  %v1784 = vand.u32 %v302, 4294901760
  %1785 = vmatpush.xpose.msra.mxu0 %v1784
  %v1786 = vand.u32 %v299, 4294901760
  %1787 = vmatpush.xpose.msra.mxu0 %v1786
  %v1788 = vand.u32 %v296, 4294901760
  %1789 = vmatpush.xpose.msra.mxu0 %v1788
  %v1790 = vand.u32 %v293, 4294901760
  %1791 = vmatpush.xpose.msra.mxu0 %v1790
  %v1792 = vand.u32 %v290, 4294901760
  %1793 = vmatpush.xpose.msra.mxu0 %v1792
  %v1794 = vand.u32 %v287, 4294901760
  %1795 = vmatpush.xpose.msra.mxu0 %v1794
  %v1796 = vand.u32 %v284, 4294901760
  %1797 = vmatpush.xpose.msra.mxu0 %v1796
  %v1798 = vand.u32 %v281, 4294901760
  %1799 = vmatpush.xpose.msra.mxu0 %v1798
  %v1800 = vand.u32 %v278, 4294901760
  %1801 = vmatpush.xpose.msra.mxu0 %v1800
  %v1802 = vand.u32 %v170, 4294901760
  %1803 = vmatmul.f32.gmra.mxu0 %v1802
  %v1804 = vpop.f32.mrf.mxu0
  %v1805 = vadd.f32 %v1756, %v1804
  %v1806 = vand.u32 %v173, 4294901760
  %1807 = vmatmul.f32.gmra.mxu0 %v1806
  %v1808 = vpop.f32.mrf.mxu0
  %v1809 = vadd.f32 %v1760, %v1808
  %v1810 = vand.u32 %v176, 4294901760
  %1811 = vmatmul.f32.gmra.mxu0 %v1810
  %v1812 = vpop.f32.mrf.mxu0
  %v1813 = vadd.f32 %v1764, %v1812
  %v1814 = vand.u32 %v179, 4294901760
  %1815 = vmatmul.f32.gmra.mxu0 %v1814
  %v1816 = vpop.f32.mrf.mxu0
  %v1817 = vadd.f32 %v1768, %v1816
  %1818 = vdwg.mxu0
  %v1819 = vand.u32 %v371, 4294901760
  %1820 = vmatpush.xpose.msra.mxu0 %v1819
  %v1821 = vand.u32 %v368, 4294901760
  %1822 = vmatpush.xpose.msra.mxu0 %v1821
  %v1823 = vand.u32 %v365, 4294901760
  %1824 = vmatpush.xpose.msra.mxu0 %v1823
  %v1825 = vand.u32 %v362, 4294901760
  %1826 = vmatpush.xpose.msra.mxu0 %v1825
  %v1827 = vand.u32 %v359, 4294901760
  %1828 = vmatpush.xpose.msra.mxu0 %v1827
  %v1829 = vand.u32 %v356, 4294901760
  %1830 = vmatpush.xpose.msra.mxu0 %v1829
  %v1831 = vand.u32 %v353, 4294901760
  %1832 = vmatpush.xpose.msra.mxu0 %v1831
  %v1833 = vand.u32 %v350, 4294901760
  %1834 = vmatpush.xpose.msra.mxu0 %v1833
  %v1835 = vand.u32 %v347, 4294901760
  %1836 = vmatpush.xpose.msra.mxu0 %v1835
  %v1837 = vand.u32 %v344, 4294901760
  %1838 = vmatpush.xpose.msra.mxu0 %v1837
  %v1839 = vand.u32 %v341, 4294901760
  %1840 = vmatpush.xpose.msra.mxu0 %v1839
  %v1841 = vand.u32 %v338, 4294901760
  %1842 = vmatpush.xpose.msra.mxu0 %v1841
  %v1843 = vand.u32 %v335, 4294901760
  %1844 = vmatpush.xpose.msra.mxu0 %v1843
  %v1845 = vand.u32 %v332, 4294901760
  %1846 = vmatpush.xpose.msra.mxu0 %v1845
  %v1847 = vand.u32 %v329, 4294901760
  %1848 = vmatpush.xpose.msra.mxu0 %v1847
  %v1849 = vand.u32 %v326, 4294901760
  %1850 = vmatpush.xpose.msra.mxu0 %v1849
  %v1851 = vand.u32 %v170, 4294901760
  %v1852 = vsub.f32 %v170, %v1851
  %v1853 = vand.u32 %v1852, 4294901760
  %v1854 = vsub.f32 %v1852, %v1853
  %v1855 = vand.u32 %v1854, 4294901760
  %1856 = vmatmul.f32.gmra.mxu0 %v1855
  %v1857 = vpop.f32.mrf.mxu0
  %v1858 = vadd.f32 %v151, %v1857
  %v1859 = vand.u32 %v173, 4294901760
  %v1860 = vsub.f32 %v173, %v1859
  %v1861 = vand.u32 %v1860, 4294901760
  %v1862 = vsub.f32 %v1860, %v1861
  %v1863 = vand.u32 %v1862, 4294901760
  %1864 = vmatmul.f32.gmra.mxu0 %v1863
  %v1865 = vpop.f32.mrf.mxu0
  %v1866 = vadd.f32 %v156, %v1865
  %v1867 = vand.u32 %v176, 4294901760
  %v1868 = vsub.f32 %v176, %v1867
  %v1869 = vand.u32 %v1868, 4294901760
  %v1870 = vsub.f32 %v1868, %v1869
  %v1871 = vand.u32 %v1870, 4294901760
  %1872 = vmatmul.f32.gmra.mxu0 %v1871
  %v1873 = vpop.f32.mrf.mxu0
  %v1874 = vadd.f32 %v161, %v1873
  %v1875 = vand.u32 %v179, 4294901760
  %v1876 = vsub.f32 %v179, %v1875
  %v1877 = vand.u32 %v1876, 4294901760
  %v1878 = vsub.f32 %v1876, %v1877
  %v1879 = vand.u32 %v1878, 4294901760
  %1880 = vmatmul.f32.gmra.mxu0 %v1879
  %v1881 = vpop.f32.mrf.mxu0
  %v1882 = vadd.f32 %v166, %v1881
  %1883 = vdwg.mxu0
  %v1884 = vand.u32 %v371, 4294901760
  %v1885 = vsub.f32 %v371, %v1884
  %v1886 = vand.u32 %v1885, 4294901760
  %v1887 = vsub.f32 %v1885, %v1886
  %v1888 = vand.u32 %v1887, 4294901760
  %1889 = vmatpush.xpose.msra.mxu0 %v1888
  %v1890 = vand.u32 %v368, 4294901760
  %v1891 = vsub.f32 %v368, %v1890
  %v1892 = vand.u32 %v1891, 4294901760
  %v1893 = vsub.f32 %v1891, %v1892
  %v1894 = vand.u32 %v1893, 4294901760
  %1895 = vmatpush.xpose.msra.mxu0 %v1894
  %v1896 = vand.u32 %v365, 4294901760
  %v1897 = vsub.f32 %v365, %v1896
  %v1898 = vand.u32 %v1897, 4294901760
  %v1899 = vsub.f32 %v1897, %v1898
  %v1900 = vand.u32 %v1899, 4294901760
  %1901 = vmatpush.xpose.msra.mxu0 %v1900
  %v1902 = vand.u32 %v362, 4294901760
  %v1903 = vsub.f32 %v362, %v1902
  %v1904 = vand.u32 %v1903, 4294901760
  %v1905 = vsub.f32 %v1903, %v1904
  %v1906 = vand.u32 %v1905, 4294901760
  %1907 = vmatpush.xpose.msra.mxu0 %v1906
  %v1908 = vand.u32 %v359, 4294901760
  %v1909 = vsub.f32 %v359, %v1908
  %v1910 = vand.u32 %v1909, 4294901760
  %v1911 = vsub.f32 %v1909, %v1910
  %v1912 = vand.u32 %v1911, 4294901760
  %1913 = vmatpush.xpose.msra.mxu0 %v1912
  %v1914 = vand.u32 %v356, 4294901760
  %v1915 = vsub.f32 %v356, %v1914
  %v1916 = vand.u32 %v1915, 4294901760
  %v1917 = vsub.f32 %v1915, %v1916
  %v1918 = vand.u32 %v1917, 4294901760
  %1919 = vmatpush.xpose.msra.mxu0 %v1918
  %v1920 = vand.u32 %v353, 4294901760
  %v1921 = vsub.f32 %v353, %v1920
  %v1922 = vand.u32 %v1921, 4294901760
  %v1923 = vsub.f32 %v1921, %v1922
  %v1924 = vand.u32 %v1923, 4294901760
  %1925 = vmatpush.xpose.msra.mxu0 %v1924
  %v1926 = vand.u32 %v350, 4294901760
  %v1927 = vsub.f32 %v350, %v1926
  %v1928 = vand.u32 %v1927, 4294901760
  %v1929 = vsub.f32 %v1927, %v1928
  %v1930 = vand.u32 %v1929, 4294901760
  %1931 = vmatpush.xpose.msra.mxu0 %v1930
  %v1932 = vand.u32 %v347, 4294901760
  %v1933 = vsub.f32 %v347, %v1932
  %v1934 = vand.u32 %v1933, 4294901760
  %v1935 = vsub.f32 %v1933, %v1934
  %v1936 = vand.u32 %v1935, 4294901760
  %1937 = vmatpush.xpose.msra.mxu0 %v1936
  %v1938 = vand.u32 %v344, 4294901760
  %v1939 = vsub.f32 %v344, %v1938
  %v1940 = vand.u32 %v1939, 4294901760
  %v1941 = vsub.f32 %v1939, %v1940
  %v1942 = vand.u32 %v1941, 4294901760
  %1943 = vmatpush.xpose.msra.mxu0 %v1942
  %v1944 = vand.u32 %v341, 4294901760
  %v1945 = vsub.f32 %v341, %v1944
  %v1946 = vand.u32 %v1945, 4294901760
  %v1947 = vsub.f32 %v1945, %v1946
  %v1948 = vand.u32 %v1947, 4294901760
  %1949 = vmatpush.xpose.msra.mxu0 %v1948
  %v1950 = vand.u32 %v338, 4294901760
  %v1951 = vsub.f32 %v338, %v1950
  %v1952 = vand.u32 %v1951, 4294901760
  %v1953 = vsub.f32 %v1951, %v1952
  %v1954 = vand.u32 %v1953, 4294901760
  %1955 = vmatpush.xpose.msra.mxu0 %v1954
  %v1956 = vand.u32 %v335, 4294901760
  %v1957 = vsub.f32 %v335, %v1956
  %v1958 = vand.u32 %v1957, 4294901760
  %v1959 = vsub.f32 %v1957, %v1958
  %v1960 = vand.u32 %v1959, 4294901760
  %1961 = vmatpush.xpose.msra.mxu0 %v1960
  %v1962 = vand.u32 %v332, 4294901760
  %v1963 = vsub.f32 %v332, %v1962
  %v1964 = vand.u32 %v1963, 4294901760
  %v1965 = vsub.f32 %v1963, %v1964
  %v1966 = vand.u32 %v1965, 4294901760
  %1967 = vmatpush.xpose.msra.mxu0 %v1966
  %v1968 = vand.u32 %v329, 4294901760
  %v1969 = vsub.f32 %v329, %v1968
  %v1970 = vand.u32 %v1969, 4294901760
  %v1971 = vsub.f32 %v1969, %v1970
  %v1972 = vand.u32 %v1971, 4294901760
  %1973 = vmatpush.xpose.msra.mxu0 %v1972
  %v1974 = vand.u32 %v326, 4294901760
  %v1975 = vsub.f32 %v326, %v1974
  %v1976 = vand.u32 %v1975, 4294901760
  %v1977 = vsub.f32 %v1975, %v1976
  %v1978 = vand.u32 %v1977, 4294901760
  %1979 = vmatpush.xpose.msra.mxu0 %v1978
  %v1980 = vand.u32 %v170, 4294901760
  %1981 = vmatmul.f32.gmra.mxu0 %v1980
  %v1982 = vpop.f32.mrf.mxu0
  %v1983 = vadd.f32 %v1858, %v1982
  %v1984 = vand.u32 %v173, 4294901760
  %1985 = vmatmul.f32.gmra.mxu0 %v1984
  %v1986 = vpop.f32.mrf.mxu0
  %v1987 = vadd.f32 %v1866, %v1986
  %v1988 = vand.u32 %v176, 4294901760
  %1989 = vmatmul.f32.gmra.mxu0 %v1988
  %v1990 = vpop.f32.mrf.mxu0
  %v1991 = vadd.f32 %v1874, %v1990
  %v1992 = vand.u32 %v179, 4294901760
  %1993 = vmatmul.f32.gmra.mxu0 %v1992
  %v1994 = vpop.f32.mrf.mxu0
  %v1995 = vadd.f32 %v1882, %v1994
  %1996 = vdwg.mxu0
  %v1997 = vand.u32 %v371, 4294901760
  %v1998 = vsub.f32 %v371, %v1997
  %1999 = vmatpush.xpose.msra.mxu0 %v1998
  %v2000 = vand.u32 %v368, 4294901760
  %v2001 = vsub.f32 %v368, %v2000
  %2002 = vmatpush.xpose.msra.mxu0 %v2001
  %v2003 = vand.u32 %v365, 4294901760
  %v2004 = vsub.f32 %v365, %v2003
  %2005 = vmatpush.xpose.msra.mxu0 %v2004
  %v2006 = vand.u32 %v362, 4294901760
  %v2007 = vsub.f32 %v362, %v2006
  %2008 = vmatpush.xpose.msra.mxu0 %v2007
  %v2009 = vand.u32 %v359, 4294901760
  %v2010 = vsub.f32 %v359, %v2009
  %2011 = vmatpush.xpose.msra.mxu0 %v2010
  %v2012 = vand.u32 %v356, 4294901760
  %v2013 = vsub.f32 %v356, %v2012
  %2014 = vmatpush.xpose.msra.mxu0 %v2013
  %v2015 = vand.u32 %v353, 4294901760
  %v2016 = vsub.f32 %v353, %v2015
  %2017 = vmatpush.xpose.msra.mxu0 %v2016
  %v2018 = vand.u32 %v350, 4294901760
  %v2019 = vsub.f32 %v350, %v2018
  %2020 = vmatpush.xpose.msra.mxu0 %v2019
  %v2021 = vand.u32 %v347, 4294901760
  %v2022 = vsub.f32 %v347, %v2021
  %2023 = vmatpush.xpose.msra.mxu0 %v2022
  %v2024 = vand.u32 %v344, 4294901760
  %v2025 = vsub.f32 %v344, %v2024
  %2026 = vmatpush.xpose.msra.mxu0 %v2025
  %v2027 = vand.u32 %v341, 4294901760
  %v2028 = vsub.f32 %v341, %v2027
  %2029 = vmatpush.xpose.msra.mxu0 %v2028
  %v2030 = vand.u32 %v338, 4294901760
  %v2031 = vsub.f32 %v338, %v2030
  %2032 = vmatpush.xpose.msra.mxu0 %v2031
  %v2033 = vand.u32 %v335, 4294901760
  %v2034 = vsub.f32 %v335, %v2033
  %2035 = vmatpush.xpose.msra.mxu0 %v2034
  %v2036 = vand.u32 %v332, 4294901760
  %v2037 = vsub.f32 %v332, %v2036
  %2038 = vmatpush.xpose.msra.mxu0 %v2037
  %v2039 = vand.u32 %v329, 4294901760
  %v2040 = vsub.f32 %v329, %v2039
  %2041 = vmatpush.xpose.msra.mxu0 %v2040
  %v2042 = vand.u32 %v326, 4294901760
  %v2043 = vsub.f32 %v326, %v2042
  %2044 = vmatpush.xpose.msra.mxu0 %v2043
  %v2045 = vand.u32 %v170, 4294901760
  %v2046 = vsub.f32 %v170, %v2045
  %2047 = vmatmul.f32.gmra.mxu0 %v2046
  %v2048 = vpop.f32.mrf.mxu0
  %v2049 = vadd.f32 %v1983, %v2048
  %v2050 = vand.u32 %v173, 4294901760
  %v2051 = vsub.f32 %v173, %v2050
  %2052 = vmatmul.f32.gmra.mxu0 %v2051
  %v2053 = vpop.f32.mrf.mxu0
  %v2054 = vadd.f32 %v1987, %v2053
  %v2055 = vand.u32 %v176, 4294901760
  %v2056 = vsub.f32 %v176, %v2055
  %2057 = vmatmul.f32.gmra.mxu0 %v2056
  %v2058 = vpop.f32.mrf.mxu0
  %v2059 = vadd.f32 %v1991, %v2058
  %v2060 = vand.u32 %v179, 4294901760
  %v2061 = vsub.f32 %v179, %v2060
  %2062 = vmatmul.f32.gmra.mxu0 %v2061
  %v2063 = vpop.f32.mrf.mxu0
  %v2064 = vadd.f32 %v1995, %v2063
  %2065 = vdwg.mxu0
  %v2066 = vand.u32 %v371, 4294901760
  %2067 = vmatpush.xpose.msra.mxu0 %v2066
  %v2068 = vand.u32 %v368, 4294901760
  %2069 = vmatpush.xpose.msra.mxu0 %v2068
  %v2070 = vand.u32 %v365, 4294901760
  %2071 = vmatpush.xpose.msra.mxu0 %v2070
  %v2072 = vand.u32 %v362, 4294901760
  %2073 = vmatpush.xpose.msra.mxu0 %v2072
  %v2074 = vand.u32 %v359, 4294901760
  %2075 = vmatpush.xpose.msra.mxu0 %v2074
  %v2076 = vand.u32 %v356, 4294901760
  %2077 = vmatpush.xpose.msra.mxu0 %v2076
  %v2078 = vand.u32 %v353, 4294901760
  %2079 = vmatpush.xpose.msra.mxu0 %v2078
  %v2080 = vand.u32 %v350, 4294901760
  %2081 = vmatpush.xpose.msra.mxu0 %v2080
  %v2082 = vand.u32 %v347, 4294901760
  %2083 = vmatpush.xpose.msra.mxu0 %v2082
  %v2084 = vand.u32 %v344, 4294901760
  %2085 = vmatpush.xpose.msra.mxu0 %v2084
  %v2086 = vand.u32 %v341, 4294901760
  %2087 = vmatpush.xpose.msra.mxu0 %v2086
  %v2088 = vand.u32 %v338, 4294901760
  %2089 = vmatpush.xpose.msra.mxu0 %v2088
  %v2090 = vand.u32 %v335, 4294901760
  %2091 = vmatpush.xpose.msra.mxu0 %v2090
  %v2092 = vand.u32 %v332, 4294901760
  %2093 = vmatpush.xpose.msra.mxu0 %v2092
  %v2094 = vand.u32 %v329, 4294901760
  %2095 = vmatpush.xpose.msra.mxu0 %v2094
  %v2096 = vand.u32 %v326, 4294901760
  %2097 = vmatpush.xpose.msra.mxu0 %v2096
  %v2098 = vand.u32 %v170, 4294901760
  %v2099 = vsub.f32 %v170, %v2098
  %v2100 = vand.u32 %v2099, 4294901760
  %2101 = vmatmul.f32.gmra.mxu0 %v2100
  %v2102 = vpop.f32.mrf.mxu0
  %v2103 = vadd.f32 %v2049, %v2102
  %v2104 = vand.u32 %v173, 4294901760
  %v2105 = vsub.f32 %v173, %v2104
  %v2106 = vand.u32 %v2105, 4294901760
  %2107 = vmatmul.f32.gmra.mxu0 %v2106
  %v2108 = vpop.f32.mrf.mxu0
  %v2109 = vadd.f32 %v2054, %v2108
  %v2110 = vand.u32 %v176, 4294901760
  %v2111 = vsub.f32 %v176, %v2110
  %v2112 = vand.u32 %v2111, 4294901760
  %2113 = vmatmul.f32.gmra.mxu0 %v2112
  %v2114 = vpop.f32.mrf.mxu0
  %v2115 = vadd.f32 %v2059, %v2114
  %v2116 = vand.u32 %v179, 4294901760
  %v2117 = vsub.f32 %v179, %v2116
  %v2118 = vand.u32 %v2117, 4294901760
  %2119 = vmatmul.f32.gmra.mxu0 %v2118
  %v2120 = vpop.f32.mrf.mxu0
  %v2121 = vadd.f32 %v2064, %v2120
  %2122 = vdwg.mxu0
  %v2123 = vand.u32 %v371, 4294901760
  %v2124 = vsub.f32 %v371, %v2123
  %v2125 = vand.u32 %v2124, 4294901760
  %2126 = vmatpush.xpose.msra.mxu0 %v2125
  %v2127 = vand.u32 %v368, 4294901760
  %v2128 = vsub.f32 %v368, %v2127
  %v2129 = vand.u32 %v2128, 4294901760
  %2130 = vmatpush.xpose.msra.mxu0 %v2129
  %v2131 = vand.u32 %v365, 4294901760
  %v2132 = vsub.f32 %v365, %v2131
  %v2133 = vand.u32 %v2132, 4294901760
  %2134 = vmatpush.xpose.msra.mxu0 %v2133
  %v2135 = vand.u32 %v362, 4294901760
  %v2136 = vsub.f32 %v362, %v2135
  %v2137 = vand.u32 %v2136, 4294901760
  %2138 = vmatpush.xpose.msra.mxu0 %v2137
  %v2139 = vand.u32 %v359, 4294901760
  %v2140 = vsub.f32 %v359, %v2139
  %v2141 = vand.u32 %v2140, 4294901760
  %2142 = vmatpush.xpose.msra.mxu0 %v2141
  %v2143 = vand.u32 %v356, 4294901760
  %v2144 = vsub.f32 %v356, %v2143
  %v2145 = vand.u32 %v2144, 4294901760
  %2146 = vmatpush.xpose.msra.mxu0 %v2145
  %v2147 = vand.u32 %v353, 4294901760
  %v2148 = vsub.f32 %v353, %v2147
  %v2149 = vand.u32 %v2148, 4294901760
  %2150 = vmatpush.xpose.msra.mxu0 %v2149
  %v2151 = vand.u32 %v350, 4294901760
  %v2152 = vsub.f32 %v350, %v2151
  %v2153 = vand.u32 %v2152, 4294901760
  %2154 = vmatpush.xpose.msra.mxu0 %v2153
  %v2155 = vand.u32 %v347, 4294901760
  %v2156 = vsub.f32 %v347, %v2155
  %v2157 = vand.u32 %v2156, 4294901760
  %2158 = vmatpush.xpose.msra.mxu0 %v2157
  %v2159 = vand.u32 %v344, 4294901760
  %v2160 = vsub.f32 %v344, %v2159
  %v2161 = vand.u32 %v2160, 4294901760
  %2162 = vmatpush.xpose.msra.mxu0 %v2161
  %v2163 = vand.u32 %v341, 4294901760
  %v2164 = vsub.f32 %v341, %v2163
  %v2165 = vand.u32 %v2164, 4294901760
  %2166 = vmatpush.xpose.msra.mxu0 %v2165
  %v2167 = vand.u32 %v338, 4294901760
  %v2168 = vsub.f32 %v338, %v2167
  %v2169 = vand.u32 %v2168, 4294901760
  %2170 = vmatpush.xpose.msra.mxu0 %v2169
  %v2171 = vand.u32 %v335, 4294901760
  %v2172 = vsub.f32 %v335, %v2171
  %v2173 = vand.u32 %v2172, 4294901760
  %2174 = vmatpush.xpose.msra.mxu0 %v2173
  %v2175 = vand.u32 %v332, 4294901760
  %v2176 = vsub.f32 %v332, %v2175
  %v2177 = vand.u32 %v2176, 4294901760
  %2178 = vmatpush.xpose.msra.mxu0 %v2177
  %v2179 = vand.u32 %v329, 4294901760
  %v2180 = vsub.f32 %v329, %v2179
  %v2181 = vand.u32 %v2180, 4294901760
  %2182 = vmatpush.xpose.msra.mxu0 %v2181
  %v2183 = vand.u32 %v326, 4294901760
  %v2184 = vsub.f32 %v326, %v2183
  %v2185 = vand.u32 %v2184, 4294901760
  %2186 = vmatpush.xpose.msra.mxu0 %v2185
  %v2187 = vand.u32 %v170, 4294901760
  %2188 = vmatmul.f32.gmra.mxu0 %v2187
  %v2189 = vpop.f32.mrf.mxu0
  %v2190 = vadd.f32 %v2103, %v2189
  %v2191 = vand.u32 %v173, 4294901760
  %2192 = vmatmul.f32.gmra.mxu0 %v2191
  %v2193 = vpop.f32.mrf.mxu0
  %v2194 = vadd.f32 %v2109, %v2193
  %v2195 = vand.u32 %v176, 4294901760
  %2196 = vmatmul.f32.gmra.mxu0 %v2195
  %v2197 = vpop.f32.mrf.mxu0
  %v2198 = vadd.f32 %v2115, %v2197
  %v2199 = vand.u32 %v179, 4294901760
  %2200 = vmatmul.f32.gmra.mxu0 %v2199
  %v2201 = vpop.f32.mrf.mxu0
  %v2202 = vadd.f32 %v2121, %v2201
  %2203 = vdwg.mxu0
  %v2204 = vand.u32 %v371, 4294901760
  %2205 = vmatpush.xpose.msra.mxu0 %v2204
  %v2206 = vand.u32 %v368, 4294901760
  %2207 = vmatpush.xpose.msra.mxu0 %v2206
  %v2208 = vand.u32 %v365, 4294901760
  %2209 = vmatpush.xpose.msra.mxu0 %v2208
  %v2210 = vand.u32 %v362, 4294901760
  %2211 = vmatpush.xpose.msra.mxu0 %v2210
  %v2212 = vand.u32 %v359, 4294901760
  %2213 = vmatpush.xpose.msra.mxu0 %v2212
  %v2214 = vand.u32 %v356, 4294901760
  %2215 = vmatpush.xpose.msra.mxu0 %v2214
  %v2216 = vand.u32 %v353, 4294901760
  %2217 = vmatpush.xpose.msra.mxu0 %v2216
  %v2218 = vand.u32 %v350, 4294901760
  %2219 = vmatpush.xpose.msra.mxu0 %v2218
  %v2220 = vand.u32 %v347, 4294901760
  %2221 = vmatpush.xpose.msra.mxu0 %v2220
  %v2222 = vand.u32 %v344, 4294901760
  %2223 = vmatpush.xpose.msra.mxu0 %v2222
  %v2224 = vand.u32 %v341, 4294901760
  %2225 = vmatpush.xpose.msra.mxu0 %v2224
  %v2226 = vand.u32 %v338, 4294901760
  %2227 = vmatpush.xpose.msra.mxu0 %v2226
  %v2228 = vand.u32 %v335, 4294901760
  %2229 = vmatpush.xpose.msra.mxu0 %v2228
  %v2230 = vand.u32 %v332, 4294901760
  %2231 = vmatpush.xpose.msra.mxu0 %v2230
  %v2232 = vand.u32 %v329, 4294901760
  %2233 = vmatpush.xpose.msra.mxu0 %v2232
  %v2234 = vand.u32 %v326, 4294901760
  %2235 = vmatpush.xpose.msra.mxu0 %v2234
  %v2236 = vand.u32 %v170, 4294901760
  %2237 = vmatmul.f32.gmra.mxu0 %v2236
  %v2238 = vpop.f32.mrf.mxu0
  %v2239 = vadd.f32 %v2190, %v2238
  %v2240 = vand.u32 %v173, 4294901760
  %2241 = vmatmul.f32.gmra.mxu0 %v2240
  %v2242 = vpop.f32.mrf.mxu0
  %v2243 = vadd.f32 %v2194, %v2242
  %v2244 = vand.u32 %v176, 4294901760
  %2245 = vmatmul.f32.gmra.mxu0 %v2244
  %v2246 = vpop.f32.mrf.mxu0
  %v2247 = vadd.f32 %v2198, %v2246
  %v2248 = vand.u32 %v179, 4294901760
  %2249 = vmatmul.f32.gmra.mxu0 %v2248
  %v2250 = vpop.f32.mrf.mxu0
  %v2251 = vadd.f32 %v2202, %v2250
  %2252 = vdwg.mxu0
  %v2253 = vand.u32 %v419, 4294901760
  %2254 = vmatpush.xpose.msra.mxu0 %v2253
  %v2255 = vand.u32 %v416, 4294901760
  %2256 = vmatpush.xpose.msra.mxu0 %v2255
  %v2257 = vand.u32 %v413, 4294901760
  %2258 = vmatpush.xpose.msra.mxu0 %v2257
  %v2259 = vand.u32 %v410, 4294901760
  %2260 = vmatpush.xpose.msra.mxu0 %v2259
  %v2261 = vand.u32 %v407, 4294901760
  %2262 = vmatpush.xpose.msra.mxu0 %v2261
  %v2263 = vand.u32 %v404, 4294901760
  %2264 = vmatpush.xpose.msra.mxu0 %v2263
  %v2265 = vand.u32 %v401, 4294901760
  %2266 = vmatpush.xpose.msra.mxu0 %v2265
  %v2267 = vand.u32 %v398, 4294901760
  %2268 = vmatpush.xpose.msra.mxu0 %v2267
  %v2269 = vand.u32 %v395, 4294901760
  %2270 = vmatpush.xpose.msra.mxu0 %v2269
  %v2271 = vand.u32 %v392, 4294901760
  %2272 = vmatpush.xpose.msra.mxu0 %v2271
  %v2273 = vand.u32 %v389, 4294901760
  %2274 = vmatpush.xpose.msra.mxu0 %v2273
  %v2275 = vand.u32 %v386, 4294901760
  %2276 = vmatpush.xpose.msra.mxu0 %v2275
  %v2277 = vand.u32 %v383, 4294901760
  %2278 = vmatpush.xpose.msra.mxu0 %v2277
  %v2279 = vand.u32 %v380, 4294901760
  %2280 = vmatpush.xpose.msra.mxu0 %v2279
  %v2281 = vand.u32 %v377, 4294901760
  %2282 = vmatpush.xpose.msra.mxu0 %v2281
  %v2283 = vand.u32 %v374, 4294901760
  %2284 = vmatpush.xpose.msra.mxu0 %v2283
  %v2285 = vand.u32 %v170, 4294901760
  %v2286 = vsub.f32 %v170, %v2285
  %v2287 = vand.u32 %v2286, 4294901760
  %v2288 = vsub.f32 %v2286, %v2287
  %v2289 = vand.u32 %v2288, 4294901760
  %2290 = vmatmul.f32.gmra.mxu0 %v2289
  %v2291 = vpop.f32.mrf.mxu0
  %v2292 = vadd.f32 %v151, %v2291
  %v2293 = vand.u32 %v173, 4294901760
  %v2294 = vsub.f32 %v173, %v2293
  %v2295 = vand.u32 %v2294, 4294901760
  %v2296 = vsub.f32 %v2294, %v2295
  %v2297 = vand.u32 %v2296, 4294901760
  %2298 = vmatmul.f32.gmra.mxu0 %v2297
  %v2299 = vpop.f32.mrf.mxu0
  %v2300 = vadd.f32 %v156, %v2299
  %v2301 = vand.u32 %v176, 4294901760
  %v2302 = vsub.f32 %v176, %v2301
  %v2303 = vand.u32 %v2302, 4294901760
  %v2304 = vsub.f32 %v2302, %v2303
  %v2305 = vand.u32 %v2304, 4294901760
  %2306 = vmatmul.f32.gmra.mxu0 %v2305
  %v2307 = vpop.f32.mrf.mxu0
  %v2308 = vadd.f32 %v161, %v2307
  %v2309 = vand.u32 %v179, 4294901760
  %v2310 = vsub.f32 %v179, %v2309
  %v2311 = vand.u32 %v2310, 4294901760
  %v2312 = vsub.f32 %v2310, %v2311
  %v2313 = vand.u32 %v2312, 4294901760
  %2314 = vmatmul.f32.gmra.mxu0 %v2313
  %v2315 = vpop.f32.mrf.mxu0
  %v2316 = vadd.f32 %v166, %v2315
  %2317 = vdwg.mxu0
  %v2318 = vand.u32 %v419, 4294901760
  %v2319 = vsub.f32 %v419, %v2318
  %v2320 = vand.u32 %v2319, 4294901760
  %v2321 = vsub.f32 %v2319, %v2320
  %v2322 = vand.u32 %v2321, 4294901760
  %2323 = vmatpush.xpose.msra.mxu0 %v2322
  %v2324 = vand.u32 %v416, 4294901760
  %v2325 = vsub.f32 %v416, %v2324
  %v2326 = vand.u32 %v2325, 4294901760
  %v2327 = vsub.f32 %v2325, %v2326
  %v2328 = vand.u32 %v2327, 4294901760
  %2329 = vmatpush.xpose.msra.mxu0 %v2328
  %v2330 = vand.u32 %v413, 4294901760
  %v2331 = vsub.f32 %v413, %v2330
  %v2332 = vand.u32 %v2331, 4294901760
  %v2333 = vsub.f32 %v2331, %v2332
  %v2334 = vand.u32 %v2333, 4294901760
  %2335 = vmatpush.xpose.msra.mxu0 %v2334
  %v2336 = vand.u32 %v410, 4294901760
  %v2337 = vsub.f32 %v410, %v2336
  %v2338 = vand.u32 %v2337, 4294901760
  %v2339 = vsub.f32 %v2337, %v2338
  %v2340 = vand.u32 %v2339, 4294901760
  %2341 = vmatpush.xpose.msra.mxu0 %v2340
  %v2342 = vand.u32 %v407, 4294901760
  %v2343 = vsub.f32 %v407, %v2342
  %v2344 = vand.u32 %v2343, 4294901760
  %v2345 = vsub.f32 %v2343, %v2344
  %v2346 = vand.u32 %v2345, 4294901760
  %2347 = vmatpush.xpose.msra.mxu0 %v2346
  %v2348 = vand.u32 %v404, 4294901760
  %v2349 = vsub.f32 %v404, %v2348
  %v2350 = vand.u32 %v2349, 4294901760
  %v2351 = vsub.f32 %v2349, %v2350
  %v2352 = vand.u32 %v2351, 4294901760
  %2353 = vmatpush.xpose.msra.mxu0 %v2352
  %v2354 = vand.u32 %v401, 4294901760
  %v2355 = vsub.f32 %v401, %v2354
  %v2356 = vand.u32 %v2355, 4294901760
  %v2357 = vsub.f32 %v2355, %v2356
  %v2358 = vand.u32 %v2357, 4294901760
  %2359 = vmatpush.xpose.msra.mxu0 %v2358
  %v2360 = vand.u32 %v398, 4294901760
  %v2361 = vsub.f32 %v398, %v2360
  %v2362 = vand.u32 %v2361, 4294901760
  %v2363 = vsub.f32 %v2361, %v2362
  %v2364 = vand.u32 %v2363, 4294901760
  %2365 = vmatpush.xpose.msra.mxu0 %v2364
  %v2366 = vand.u32 %v395, 4294901760
  %v2367 = vsub.f32 %v395, %v2366
  %v2368 = vand.u32 %v2367, 4294901760
  %v2369 = vsub.f32 %v2367, %v2368
  %v2370 = vand.u32 %v2369, 4294901760
  %2371 = vmatpush.xpose.msra.mxu0 %v2370
  %v2372 = vand.u32 %v392, 4294901760
  %v2373 = vsub.f32 %v392, %v2372
  %v2374 = vand.u32 %v2373, 4294901760
  %v2375 = vsub.f32 %v2373, %v2374
  %v2376 = vand.u32 %v2375, 4294901760
  %2377 = vmatpush.xpose.msra.mxu0 %v2376
  %v2378 = vand.u32 %v389, 4294901760
  %v2379 = vsub.f32 %v389, %v2378
  %v2380 = vand.u32 %v2379, 4294901760
  %v2381 = vsub.f32 %v2379, %v2380
  %v2382 = vand.u32 %v2381, 4294901760
  %2383 = vmatpush.xpose.msra.mxu0 %v2382
  %v2384 = vand.u32 %v386, 4294901760
  %v2385 = vsub.f32 %v386, %v2384
  %v2386 = vand.u32 %v2385, 4294901760
  %v2387 = vsub.f32 %v2385, %v2386
  %v2388 = vand.u32 %v2387, 4294901760
  %2389 = vmatpush.xpose.msra.mxu0 %v2388
  %v2390 = vand.u32 %v383, 4294901760
  %v2391 = vsub.f32 %v383, %v2390
  %v2392 = vand.u32 %v2391, 4294901760
  %v2393 = vsub.f32 %v2391, %v2392
  %v2394 = vand.u32 %v2393, 4294901760
  %2395 = vmatpush.xpose.msra.mxu0 %v2394
  %v2396 = vand.u32 %v380, 4294901760
  %v2397 = vsub.f32 %v380, %v2396
  %v2398 = vand.u32 %v2397, 4294901760
  %v2399 = vsub.f32 %v2397, %v2398
  %v2400 = vand.u32 %v2399, 4294901760
  %2401 = vmatpush.xpose.msra.mxu0 %v2400
  %v2402 = vand.u32 %v377, 4294901760
  %v2403 = vsub.f32 %v377, %v2402
  %v2404 = vand.u32 %v2403, 4294901760
  %v2405 = vsub.f32 %v2403, %v2404
  %v2406 = vand.u32 %v2405, 4294901760
  %2407 = vmatpush.xpose.msra.mxu0 %v2406
  %v2408 = vand.u32 %v374, 4294901760
  %v2409 = vsub.f32 %v374, %v2408
  %v2410 = vand.u32 %v2409, 4294901760
  %v2411 = vsub.f32 %v2409, %v2410
  %v2412 = vand.u32 %v2411, 4294901760
  %2413 = vmatpush.xpose.msra.mxu0 %v2412
  %v2414 = vand.u32 %v170, 4294901760
  %2415 = vmatmul.f32.gmra.mxu0 %v2414
  %v2416 = vpop.f32.mrf.mxu0
  %v2417 = vadd.f32 %v2292, %v2416
  %v2418 = vand.u32 %v173, 4294901760
  %2419 = vmatmul.f32.gmra.mxu0 %v2418
  %v2420 = vpop.f32.mrf.mxu0
  %v2421 = vadd.f32 %v2300, %v2420
  %v2422 = vand.u32 %v176, 4294901760
  %2423 = vmatmul.f32.gmra.mxu0 %v2422
  %v2424 = vpop.f32.mrf.mxu0
  %v2425 = vadd.f32 %v2308, %v2424
  %v2426 = vand.u32 %v179, 4294901760
  %2427 = vmatmul.f32.gmra.mxu0 %v2426
  %v2428 = vpop.f32.mrf.mxu0
  %v2429 = vadd.f32 %v2316, %v2428
  %2430 = vdwg.mxu0
  %v2431 = vand.u32 %v419, 4294901760
  %v2432 = vsub.f32 %v419, %v2431
  %2433 = vmatpush.xpose.msra.mxu0 %v2432
  %v2434 = vand.u32 %v416, 4294901760
  %v2435 = vsub.f32 %v416, %v2434
  %2436 = vmatpush.xpose.msra.mxu0 %v2435
  %v2437 = vand.u32 %v413, 4294901760
  %v2438 = vsub.f32 %v413, %v2437
  %2439 = vmatpush.xpose.msra.mxu0 %v2438
  %v2440 = vand.u32 %v410, 4294901760
  %v2441 = vsub.f32 %v410, %v2440
  %2442 = vmatpush.xpose.msra.mxu0 %v2441
  %v2443 = vand.u32 %v407, 4294901760
  %v2444 = vsub.f32 %v407, %v2443
  %2445 = vmatpush.xpose.msra.mxu0 %v2444
  %v2446 = vand.u32 %v404, 4294901760
  %v2447 = vsub.f32 %v404, %v2446
  %2448 = vmatpush.xpose.msra.mxu0 %v2447
  %v2449 = vand.u32 %v401, 4294901760
  %v2450 = vsub.f32 %v401, %v2449
  %2451 = vmatpush.xpose.msra.mxu0 %v2450
  %v2452 = vand.u32 %v398, 4294901760
  %v2453 = vsub.f32 %v398, %v2452
  %2454 = vmatpush.xpose.msra.mxu0 %v2453
  %v2455 = vand.u32 %v395, 4294901760
  %v2456 = vsub.f32 %v395, %v2455
  %2457 = vmatpush.xpose.msra.mxu0 %v2456
  %v2458 = vand.u32 %v392, 4294901760
  %v2459 = vsub.f32 %v392, %v2458
  %2460 = vmatpush.xpose.msra.mxu0 %v2459
  %v2461 = vand.u32 %v389, 4294901760
  %v2462 = vsub.f32 %v389, %v2461
  %2463 = vmatpush.xpose.msra.mxu0 %v2462
  %v2464 = vand.u32 %v386, 4294901760
  %v2465 = vsub.f32 %v386, %v2464
  %2466 = vmatpush.xpose.msra.mxu0 %v2465
  %v2467 = vand.u32 %v383, 4294901760
  %v2468 = vsub.f32 %v383, %v2467
  %2469 = vmatpush.xpose.msra.mxu0 %v2468
  %v2470 = vand.u32 %v380, 4294901760
  %v2471 = vsub.f32 %v380, %v2470
  %2472 = vmatpush.xpose.msra.mxu0 %v2471
  %v2473 = vand.u32 %v377, 4294901760
  %v2474 = vsub.f32 %v377, %v2473
  %2475 = vmatpush.xpose.msra.mxu0 %v2474
  %v2476 = vand.u32 %v374, 4294901760
  %v2477 = vsub.f32 %v374, %v2476
  %2478 = vmatpush.xpose.msra.mxu0 %v2477
  %v2479 = vand.u32 %v170, 4294901760
  %v2480 = vsub.f32 %v170, %v2479
  %2481 = vmatmul.f32.gmra.mxu0 %v2480
  %v2482 = vpop.f32.mrf.mxu0
  %v2483 = vadd.f32 %v2417, %v2482
  %v2484 = vand.u32 %v173, 4294901760
  %v2485 = vsub.f32 %v173, %v2484
  %2486 = vmatmul.f32.gmra.mxu0 %v2485
  %v2487 = vpop.f32.mrf.mxu0
  %v2488 = vadd.f32 %v2421, %v2487
  %v2489 = vand.u32 %v176, 4294901760
  %v2490 = vsub.f32 %v176, %v2489
  %2491 = vmatmul.f32.gmra.mxu0 %v2490
  %v2492 = vpop.f32.mrf.mxu0
  %v2493 = vadd.f32 %v2425, %v2492
  %v2494 = vand.u32 %v179, 4294901760
  %v2495 = vsub.f32 %v179, %v2494
  %2496 = vmatmul.f32.gmra.mxu0 %v2495
  %v2497 = vpop.f32.mrf.mxu0
  %v2498 = vadd.f32 %v2429, %v2497
  %2499 = vdwg.mxu0
  %v2500 = vand.u32 %v419, 4294901760
  %2501 = vmatpush.xpose.msra.mxu0 %v2500
  %v2502 = vand.u32 %v416, 4294901760
  %2503 = vmatpush.xpose.msra.mxu0 %v2502
  %v2504 = vand.u32 %v413, 4294901760
  %2505 = vmatpush.xpose.msra.mxu0 %v2504
  %v2506 = vand.u32 %v410, 4294901760
  %2507 = vmatpush.xpose.msra.mxu0 %v2506
  %v2508 = vand.u32 %v407, 4294901760
  %2509 = vmatpush.xpose.msra.mxu0 %v2508
  %v2510 = vand.u32 %v404, 4294901760
  %2511 = vmatpush.xpose.msra.mxu0 %v2510
  %v2512 = vand.u32 %v401, 4294901760
  %2513 = vmatpush.xpose.msra.mxu0 %v2512
  %v2514 = vand.u32 %v398, 4294901760
  %2515 = vmatpush.xpose.msra.mxu0 %v2514
  %v2516 = vand.u32 %v395, 4294901760
  %2517 = vmatpush.xpose.msra.mxu0 %v2516
  %v2518 = vand.u32 %v392, 4294901760
  %2519 = vmatpush.xpose.msra.mxu0 %v2518
  %v2520 = vand.u32 %v389, 4294901760
  %2521 = vmatpush.xpose.msra.mxu0 %v2520
  %v2522 = vand.u32 %v386, 4294901760
  %2523 = vmatpush.xpose.msra.mxu0 %v2522
  %v2524 = vand.u32 %v383, 4294901760
  %2525 = vmatpush.xpose.msra.mxu0 %v2524
  %v2526 = vand.u32 %v380, 4294901760
  %2527 = vmatpush.xpose.msra.mxu0 %v2526
  %v2528 = vand.u32 %v377, 4294901760
  %2529 = vmatpush.xpose.msra.mxu0 %v2528
  %v2530 = vand.u32 %v374, 4294901760
  %2531 = vmatpush.xpose.msra.mxu0 %v2530
  %v2532 = vand.u32 %v170, 4294901760
  %v2533 = vsub.f32 %v170, %v2532
  %v2534 = vand.u32 %v2533, 4294901760
  %2535 = vmatmul.f32.gmra.mxu0 %v2534
  %v2536 = vpop.f32.mrf.mxu0
  %v2537 = vadd.f32 %v2483, %v2536
  %v2538 = vand.u32 %v173, 4294901760
  %v2539 = vsub.f32 %v173, %v2538
  %v2540 = vand.u32 %v2539, 4294901760
  %2541 = vmatmul.f32.gmra.mxu0 %v2540
  %v2542 = vpop.f32.mrf.mxu0
  %v2543 = vadd.f32 %v2488, %v2542
  %v2544 = vand.u32 %v176, 4294901760
  %v2545 = vsub.f32 %v176, %v2544
  %v2546 = vand.u32 %v2545, 4294901760
  %2547 = vmatmul.f32.gmra.mxu0 %v2546
  %v2548 = vpop.f32.mrf.mxu0
  %v2549 = vadd.f32 %v2493, %v2548
  %v2550 = vand.u32 %v179, 4294901760
  %v2551 = vsub.f32 %v179, %v2550
  %v2552 = vand.u32 %v2551, 4294901760
  %2553 = vmatmul.f32.gmra.mxu0 %v2552
  %v2554 = vpop.f32.mrf.mxu0
  %v2555 = vadd.f32 %v2498, %v2554
  %2556 = vdwg.mxu0
  %v2557 = vand.u32 %v419, 4294901760
  %v2558 = vsub.f32 %v419, %v2557
  %v2559 = vand.u32 %v2558, 4294901760
  %2560 = vmatpush.xpose.msra.mxu0 %v2559
  %v2561 = vand.u32 %v416, 4294901760
  %v2562 = vsub.f32 %v416, %v2561
  %v2563 = vand.u32 %v2562, 4294901760
  %2564 = vmatpush.xpose.msra.mxu0 %v2563
  %v2565 = vand.u32 %v413, 4294901760
  %v2566 = vsub.f32 %v413, %v2565
  %v2567 = vand.u32 %v2566, 4294901760
  %2568 = vmatpush.xpose.msra.mxu0 %v2567
  %v2569 = vand.u32 %v410, 4294901760
  %v2570 = vsub.f32 %v410, %v2569
  %v2571 = vand.u32 %v2570, 4294901760
  %2572 = vmatpush.xpose.msra.mxu0 %v2571
  %v2573 = vand.u32 %v407, 4294901760
  %v2574 = vsub.f32 %v407, %v2573
  %v2575 = vand.u32 %v2574, 4294901760
  %2576 = vmatpush.xpose.msra.mxu0 %v2575
  %v2577 = vand.u32 %v404, 4294901760
  %v2578 = vsub.f32 %v404, %v2577
  %v2579 = vand.u32 %v2578, 4294901760
  %2580 = vmatpush.xpose.msra.mxu0 %v2579
  %v2581 = vand.u32 %v401, 4294901760
  %v2582 = vsub.f32 %v401, %v2581
  %v2583 = vand.u32 %v2582, 4294901760
  %2584 = vmatpush.xpose.msra.mxu0 %v2583
  %v2585 = vand.u32 %v398, 4294901760
  %v2586 = vsub.f32 %v398, %v2585
  %v2587 = vand.u32 %v2586, 4294901760
  %2588 = vmatpush.xpose.msra.mxu0 %v2587
  %v2589 = vand.u32 %v395, 4294901760
  %v2590 = vsub.f32 %v395, %v2589
  %v2591 = vand.u32 %v2590, 4294901760
  %2592 = vmatpush.xpose.msra.mxu0 %v2591
  %v2593 = vand.u32 %v392, 4294901760
  %v2594 = vsub.f32 %v392, %v2593
  %v2595 = vand.u32 %v2594, 4294901760
  %2596 = vmatpush.xpose.msra.mxu0 %v2595
  %v2597 = vand.u32 %v389, 4294901760
  %v2598 = vsub.f32 %v389, %v2597
  %v2599 = vand.u32 %v2598, 4294901760
  %2600 = vmatpush.xpose.msra.mxu0 %v2599
  %v2601 = vand.u32 %v386, 4294901760
  %v2602 = vsub.f32 %v386, %v2601
  %v2603 = vand.u32 %v2602, 4294901760
  %2604 = vmatpush.xpose.msra.mxu0 %v2603
  %v2605 = vand.u32 %v383, 4294901760
  %v2606 = vsub.f32 %v383, %v2605
  %v2607 = vand.u32 %v2606, 4294901760
  %2608 = vmatpush.xpose.msra.mxu0 %v2607
  %v2609 = vand.u32 %v380, 4294901760
  %v2610 = vsub.f32 %v380, %v2609
  %v2611 = vand.u32 %v2610, 4294901760
  %2612 = vmatpush.xpose.msra.mxu0 %v2611
  %v2613 = vand.u32 %v377, 4294901760
  %v2614 = vsub.f32 %v377, %v2613
  %v2615 = vand.u32 %v2614, 4294901760
  %2616 = vmatpush.xpose.msra.mxu0 %v2615
  %v2617 = vand.u32 %v374, 4294901760
  %v2618 = vsub.f32 %v374, %v2617
  %v2619 = vand.u32 %v2618, 4294901760
  %2620 = vmatpush.xpose.msra.mxu0 %v2619
  %v2621 = vand.u32 %v170, 4294901760
  %2622 = vmatmul.f32.gmra.mxu0 %v2621
  %v2623 = vpop.f32.mrf.mxu0
  %v2624 = vadd.f32 %v2537, %v2623
  %v2625 = vand.u32 %v173, 4294901760
  %2626 = vmatmul.f32.gmra.mxu0 %v2625
  %v2627 = vpop.f32.mrf.mxu0
  %v2628 = vadd.f32 %v2543, %v2627
  %v2629 = vand.u32 %v176, 4294901760
  %2630 = vmatmul.f32.gmra.mxu0 %v2629
  %v2631 = vpop.f32.mrf.mxu0
  %v2632 = vadd.f32 %v2549, %v2631
  %v2633 = vand.u32 %v179, 4294901760
  %2634 = vmatmul.f32.gmra.mxu0 %v2633
  %v2635 = vpop.f32.mrf.mxu0
  %v2636 = vadd.f32 %v2555, %v2635
  %2637 = vdwg.mxu0
  %v2638 = vand.u32 %v419, 4294901760
  %2639 = vmatpush.xpose.msra.mxu0 %v2638
  %v2640 = vand.u32 %v416, 4294901760
  %2641 = vmatpush.xpose.msra.mxu0 %v2640
  %v2642 = vand.u32 %v413, 4294901760
  %2643 = vmatpush.xpose.msra.mxu0 %v2642
  %v2644 = vand.u32 %v410, 4294901760
  %2645 = vmatpush.xpose.msra.mxu0 %v2644
  %v2646 = vand.u32 %v407, 4294901760
  %2647 = vmatpush.xpose.msra.mxu0 %v2646
  %v2648 = vand.u32 %v404, 4294901760
  %2649 = vmatpush.xpose.msra.mxu0 %v2648
  %v2650 = vand.u32 %v401, 4294901760
  %2651 = vmatpush.xpose.msra.mxu0 %v2650
  %v2652 = vand.u32 %v398, 4294901760
  %2653 = vmatpush.xpose.msra.mxu0 %v2652
  %v2654 = vand.u32 %v395, 4294901760
  %2655 = vmatpush.xpose.msra.mxu0 %v2654
  %v2656 = vand.u32 %v392, 4294901760
  %2657 = vmatpush.xpose.msra.mxu0 %v2656
  %v2658 = vand.u32 %v389, 4294901760
  %2659 = vmatpush.xpose.msra.mxu0 %v2658
  %v2660 = vand.u32 %v386, 4294901760
  %2661 = vmatpush.xpose.msra.mxu0 %v2660
  %v2662 = vand.u32 %v383, 4294901760
  %2663 = vmatpush.xpose.msra.mxu0 %v2662
  %v2664 = vand.u32 %v380, 4294901760
  %2665 = vmatpush.xpose.msra.mxu0 %v2664
  %v2666 = vand.u32 %v377, 4294901760
  %2667 = vmatpush.xpose.msra.mxu0 %v2666
  %v2668 = vand.u32 %v374, 4294901760
  %2669 = vmatpush.xpose.msra.mxu0 %v2668
  %v2670 = vand.u32 %v170, 4294901760
  %2671 = vmatmul.f32.gmra.mxu0 %v2670
  %v2672 = vpop.f32.mrf.mxu0
  %v2673 = vadd.f32 %v2624, %v2672
  %v2674 = vand.u32 %v173, 4294901760
  %2675 = vmatmul.f32.gmra.mxu0 %v2674
  %v2676 = vpop.f32.mrf.mxu0
  %v2677 = vadd.f32 %v2628, %v2676
  %v2678 = vand.u32 %v176, 4294901760
  %2679 = vmatmul.f32.gmra.mxu0 %v2678
  %v2680 = vpop.f32.mrf.mxu0
  %v2681 = vadd.f32 %v2632, %v2680
  %v2682 = vand.u32 %v179, 4294901760
  %2683 = vmatmul.f32.gmra.mxu0 %v2682
  %v2684 = vpop.f32.mrf.mxu0
  %v2685 = vadd.f32 %v2636, %v2684
  %2686 = vdwg.mxu0
  %v2687 = vand.u32 %v467, 4294901760
  %2688 = vmatpush.xpose.msra.mxu0 %v2687
  %v2689 = vand.u32 %v464, 4294901760
  %2690 = vmatpush.xpose.msra.mxu0 %v2689
  %v2691 = vand.u32 %v461, 4294901760
  %2692 = vmatpush.xpose.msra.mxu0 %v2691
  %v2693 = vand.u32 %v458, 4294901760
  %2694 = vmatpush.xpose.msra.mxu0 %v2693
  %v2695 = vand.u32 %v455, 4294901760
  %2696 = vmatpush.xpose.msra.mxu0 %v2695
  %v2697 = vand.u32 %v452, 4294901760
  %2698 = vmatpush.xpose.msra.mxu0 %v2697
  %v2699 = vand.u32 %v449, 4294901760
  %2700 = vmatpush.xpose.msra.mxu0 %v2699
  %v2701 = vand.u32 %v446, 4294901760
  %2702 = vmatpush.xpose.msra.mxu0 %v2701
  %v2703 = vand.u32 %v443, 4294901760
  %2704 = vmatpush.xpose.msra.mxu0 %v2703
  %v2705 = vand.u32 %v440, 4294901760
  %2706 = vmatpush.xpose.msra.mxu0 %v2705
  %v2707 = vand.u32 %v437, 4294901760
  %2708 = vmatpush.xpose.msra.mxu0 %v2707
  %v2709 = vand.u32 %v434, 4294901760
  %2710 = vmatpush.xpose.msra.mxu0 %v2709
  %v2711 = vand.u32 %v431, 4294901760
  %2712 = vmatpush.xpose.msra.mxu0 %v2711
  %v2713 = vand.u32 %v428, 4294901760
  %2714 = vmatpush.xpose.msra.mxu0 %v2713
  %v2715 = vand.u32 %v425, 4294901760
  %2716 = vmatpush.xpose.msra.mxu0 %v2715
  %v2717 = vand.u32 %v422, 4294901760
  %2718 = vmatpush.xpose.msra.mxu0 %v2717
  %v2719 = vand.u32 %v170, 4294901760
  %v2720 = vsub.f32 %v170, %v2719
  %v2721 = vand.u32 %v2720, 4294901760
  %v2722 = vsub.f32 %v2720, %v2721
  %v2723 = vand.u32 %v2722, 4294901760
  %2724 = vmatmul.f32.gmra.mxu0 %v2723
  %v2725 = vpop.f32.mrf.mxu0
  %v2726 = vadd.f32 %v151, %v2725
  %v2727 = vand.u32 %v173, 4294901760
  %v2728 = vsub.f32 %v173, %v2727
  %v2729 = vand.u32 %v2728, 4294901760
  %v2730 = vsub.f32 %v2728, %v2729
  %v2731 = vand.u32 %v2730, 4294901760
  %2732 = vmatmul.f32.gmra.mxu0 %v2731
  %v2733 = vpop.f32.mrf.mxu0
  %v2734 = vadd.f32 %v156, %v2733
  %v2735 = vand.u32 %v176, 4294901760
  %v2736 = vsub.f32 %v176, %v2735
  %v2737 = vand.u32 %v2736, 4294901760
  %v2738 = vsub.f32 %v2736, %v2737
  %v2739 = vand.u32 %v2738, 4294901760
  %2740 = vmatmul.f32.gmra.mxu0 %v2739
  %v2741 = vpop.f32.mrf.mxu0
  %v2742 = vadd.f32 %v161, %v2741
  %v2743 = vand.u32 %v179, 4294901760
  %v2744 = vsub.f32 %v179, %v2743
  %v2745 = vand.u32 %v2744, 4294901760
  %v2746 = vsub.f32 %v2744, %v2745
  %v2747 = vand.u32 %v2746, 4294901760
  %2748 = vmatmul.f32.gmra.mxu0 %v2747
  %v2749 = vpop.f32.mrf.mxu0
  %v2750 = vadd.f32 %v166, %v2749
  %2751 = vdwg.mxu0
  %v2752 = vand.u32 %v467, 4294901760
  %v2753 = vsub.f32 %v467, %v2752
  %v2754 = vand.u32 %v2753, 4294901760
  %v2755 = vsub.f32 %v2753, %v2754
  %v2756 = vand.u32 %v2755, 4294901760
  %2757 = vmatpush.xpose.msra.mxu0 %v2756
  %v2758 = vand.u32 %v464, 4294901760
  %v2759 = vsub.f32 %v464, %v2758
  %v2760 = vand.u32 %v2759, 4294901760
  %v2761 = vsub.f32 %v2759, %v2760
  %v2762 = vand.u32 %v2761, 4294901760
  %2763 = vmatpush.xpose.msra.mxu0 %v2762
  %v2764 = vand.u32 %v461, 4294901760
  %v2765 = vsub.f32 %v461, %v2764
  %v2766 = vand.u32 %v2765, 4294901760
  %v2767 = vsub.f32 %v2765, %v2766
  %v2768 = vand.u32 %v2767, 4294901760
  %2769 = vmatpush.xpose.msra.mxu0 %v2768
  %v2770 = vand.u32 %v458, 4294901760
  %v2771 = vsub.f32 %v458, %v2770
  %v2772 = vand.u32 %v2771, 4294901760
  %v2773 = vsub.f32 %v2771, %v2772
  %v2774 = vand.u32 %v2773, 4294901760
  %2775 = vmatpush.xpose.msra.mxu0 %v2774
  %v2776 = vand.u32 %v455, 4294901760
  %v2777 = vsub.f32 %v455, %v2776
  %v2778 = vand.u32 %v2777, 4294901760
  %v2779 = vsub.f32 %v2777, %v2778
  %v2780 = vand.u32 %v2779, 4294901760
  %2781 = vmatpush.xpose.msra.mxu0 %v2780
  %v2782 = vand.u32 %v452, 4294901760
  %v2783 = vsub.f32 %v452, %v2782
  %v2784 = vand.u32 %v2783, 4294901760
  %v2785 = vsub.f32 %v2783, %v2784
  %v2786 = vand.u32 %v2785, 4294901760
  %2787 = vmatpush.xpose.msra.mxu0 %v2786
  %v2788 = vand.u32 %v449, 4294901760
  %v2789 = vsub.f32 %v449, %v2788
  %v2790 = vand.u32 %v2789, 4294901760
  %v2791 = vsub.f32 %v2789, %v2790
  %v2792 = vand.u32 %v2791, 4294901760
  %2793 = vmatpush.xpose.msra.mxu0 %v2792
  %v2794 = vand.u32 %v446, 4294901760
  %v2795 = vsub.f32 %v446, %v2794
  %v2796 = vand.u32 %v2795, 4294901760
  %v2797 = vsub.f32 %v2795, %v2796
  %v2798 = vand.u32 %v2797, 4294901760
  %2799 = vmatpush.xpose.msra.mxu0 %v2798
  %v2800 = vand.u32 %v443, 4294901760
  %v2801 = vsub.f32 %v443, %v2800
  %v2802 = vand.u32 %v2801, 4294901760
  %v2803 = vsub.f32 %v2801, %v2802
  %v2804 = vand.u32 %v2803, 4294901760
  %2805 = vmatpush.xpose.msra.mxu0 %v2804
  %v2806 = vand.u32 %v440, 4294901760
  %v2807 = vsub.f32 %v440, %v2806
  %v2808 = vand.u32 %v2807, 4294901760
  %v2809 = vsub.f32 %v2807, %v2808
  %v2810 = vand.u32 %v2809, 4294901760
  %2811 = vmatpush.xpose.msra.mxu0 %v2810
  %v2812 = vand.u32 %v437, 4294901760
  %v2813 = vsub.f32 %v437, %v2812
  %v2814 = vand.u32 %v2813, 4294901760
  %v2815 = vsub.f32 %v2813, %v2814
  %v2816 = vand.u32 %v2815, 4294901760
  %2817 = vmatpush.xpose.msra.mxu0 %v2816
  %v2818 = vand.u32 %v434, 4294901760
  %v2819 = vsub.f32 %v434, %v2818
  %v2820 = vand.u32 %v2819, 4294901760
  %v2821 = vsub.f32 %v2819, %v2820
  %v2822 = vand.u32 %v2821, 4294901760
  %2823 = vmatpush.xpose.msra.mxu0 %v2822
  %v2824 = vand.u32 %v431, 4294901760
  %v2825 = vsub.f32 %v431, %v2824
  %v2826 = vand.u32 %v2825, 4294901760
  %v2827 = vsub.f32 %v2825, %v2826
  %v2828 = vand.u32 %v2827, 4294901760
  %2829 = vmatpush.xpose.msra.mxu0 %v2828
  %v2830 = vand.u32 %v428, 4294901760
  %v2831 = vsub.f32 %v428, %v2830
  %v2832 = vand.u32 %v2831, 4294901760
  %v2833 = vsub.f32 %v2831, %v2832
  %v2834 = vand.u32 %v2833, 4294901760
  %2835 = vmatpush.xpose.msra.mxu0 %v2834
  %v2836 = vand.u32 %v425, 4294901760
  %v2837 = vsub.f32 %v425, %v2836
  %v2838 = vand.u32 %v2837, 4294901760
  %v2839 = vsub.f32 %v2837, %v2838
  %v2840 = vand.u32 %v2839, 4294901760
  %2841 = vmatpush.xpose.msra.mxu0 %v2840
  %v2842 = vand.u32 %v422, 4294901760
  %v2843 = vsub.f32 %v422, %v2842
  %v2844 = vand.u32 %v2843, 4294901760
  %v2845 = vsub.f32 %v2843, %v2844
  %v2846 = vand.u32 %v2845, 4294901760
  %2847 = vmatpush.xpose.msra.mxu0 %v2846
  %v2848 = vand.u32 %v170, 4294901760
  %2849 = vmatmul.f32.gmra.mxu0 %v2848
  %v2850 = vpop.f32.mrf.mxu0
  %v2851 = vadd.f32 %v2726, %v2850
  %v2852 = vand.u32 %v173, 4294901760
  %2853 = vmatmul.f32.gmra.mxu0 %v2852
  %v2854 = vpop.f32.mrf.mxu0
  %v2855 = vadd.f32 %v2734, %v2854
  %v2856 = vand.u32 %v176, 4294901760
  %2857 = vmatmul.f32.gmra.mxu0 %v2856
  %v2858 = vpop.f32.mrf.mxu0
  %v2859 = vadd.f32 %v2742, %v2858
  %v2860 = vand.u32 %v179, 4294901760
  %2861 = vmatmul.f32.gmra.mxu0 %v2860
  %v2862 = vpop.f32.mrf.mxu0
  %v2863 = vadd.f32 %v2750, %v2862
  %2864 = vdwg.mxu0
  %v2865 = vand.u32 %v467, 4294901760
  %v2866 = vsub.f32 %v467, %v2865
  %2867 = vmatpush.xpose.msra.mxu0 %v2866
  %v2868 = vand.u32 %v464, 4294901760
  %v2869 = vsub.f32 %v464, %v2868
  %2870 = vmatpush.xpose.msra.mxu0 %v2869
  %v2871 = vand.u32 %v461, 4294901760
  %v2872 = vsub.f32 %v461, %v2871
  %2873 = vmatpush.xpose.msra.mxu0 %v2872
  %v2874 = vand.u32 %v458, 4294901760
  %v2875 = vsub.f32 %v458, %v2874
  %2876 = vmatpush.xpose.msra.mxu0 %v2875
  %v2877 = vand.u32 %v455, 4294901760
  %v2878 = vsub.f32 %v455, %v2877
  %2879 = vmatpush.xpose.msra.mxu0 %v2878
  %v2880 = vand.u32 %v452, 4294901760
  %v2881 = vsub.f32 %v452, %v2880
  %2882 = vmatpush.xpose.msra.mxu0 %v2881
  %v2883 = vand.u32 %v449, 4294901760
  %v2884 = vsub.f32 %v449, %v2883
  %2885 = vmatpush.xpose.msra.mxu0 %v2884
  %v2886 = vand.u32 %v446, 4294901760
  %v2887 = vsub.f32 %v446, %v2886
  %2888 = vmatpush.xpose.msra.mxu0 %v2887
  %v2889 = vand.u32 %v443, 4294901760
  %v2890 = vsub.f32 %v443, %v2889
  %2891 = vmatpush.xpose.msra.mxu0 %v2890
  %v2892 = vand.u32 %v440, 4294901760
  %v2893 = vsub.f32 %v440, %v2892
  %2894 = vmatpush.xpose.msra.mxu0 %v2893
  %v2895 = vand.u32 %v437, 4294901760
  %v2896 = vsub.f32 %v437, %v2895
  %2897 = vmatpush.xpose.msra.mxu0 %v2896
  %v2898 = vand.u32 %v434, 4294901760
  %v2899 = vsub.f32 %v434, %v2898
  %2900 = vmatpush.xpose.msra.mxu0 %v2899
  %v2901 = vand.u32 %v431, 4294901760
  %v2902 = vsub.f32 %v431, %v2901
  %2903 = vmatpush.xpose.msra.mxu0 %v2902
  %v2904 = vand.u32 %v428, 4294901760
  %v2905 = vsub.f32 %v428, %v2904
  %2906 = vmatpush.xpose.msra.mxu0 %v2905
  %v2907 = vand.u32 %v425, 4294901760
  %v2908 = vsub.f32 %v425, %v2907
  %2909 = vmatpush.xpose.msra.mxu0 %v2908
  %v2910 = vand.u32 %v422, 4294901760
  %v2911 = vsub.f32 %v422, %v2910
  %2912 = vmatpush.xpose.msra.mxu0 %v2911
  %v2913 = vand.u32 %v170, 4294901760
  %v2914 = vsub.f32 %v170, %v2913
  %2915 = vmatmul.f32.gmra.mxu0 %v2914
  %v2916 = vpop.f32.mrf.mxu0
  %v2917 = vadd.f32 %v2851, %v2916
  %v2918 = vand.u32 %v173, 4294901760
  %v2919 = vsub.f32 %v173, %v2918
  %2920 = vmatmul.f32.gmra.mxu0 %v2919
  %v2921 = vpop.f32.mrf.mxu0
  %v2922 = vadd.f32 %v2855, %v2921
  %v2923 = vand.u32 %v176, 4294901760
  %v2924 = vsub.f32 %v176, %v2923
  %2925 = vmatmul.f32.gmra.mxu0 %v2924
  %v2926 = vpop.f32.mrf.mxu0
  %v2927 = vadd.f32 %v2859, %v2926
  %v2928 = vand.u32 %v179, 4294901760
  %v2929 = vsub.f32 %v179, %v2928
  %2930 = vmatmul.f32.gmra.mxu0 %v2929
  %v2931 = vpop.f32.mrf.mxu0
  %v2932 = vadd.f32 %v2863, %v2931
  %2933 = vdwg.mxu0
  %v2934 = vand.u32 %v467, 4294901760
  %2935 = vmatpush.xpose.msra.mxu0 %v2934
  %v2936 = vand.u32 %v464, 4294901760
  %2937 = vmatpush.xpose.msra.mxu0 %v2936
  %v2938 = vand.u32 %v461, 4294901760
  %2939 = vmatpush.xpose.msra.mxu0 %v2938
  %v2940 = vand.u32 %v458, 4294901760
  %2941 = vmatpush.xpose.msra.mxu0 %v2940
  %v2942 = vand.u32 %v455, 4294901760
  %2943 = vmatpush.xpose.msra.mxu0 %v2942
  %v2944 = vand.u32 %v452, 4294901760
  %2945 = vmatpush.xpose.msra.mxu0 %v2944
  %v2946 = vand.u32 %v449, 4294901760
  %2947 = vmatpush.xpose.msra.mxu0 %v2946
  %v2948 = vand.u32 %v446, 4294901760
  %2949 = vmatpush.xpose.msra.mxu0 %v2948
  %v2950 = vand.u32 %v443, 4294901760
  %2951 = vmatpush.xpose.msra.mxu0 %v2950
  %v2952 = vand.u32 %v440, 4294901760
  %2953 = vmatpush.xpose.msra.mxu0 %v2952
  %v2954 = vand.u32 %v437, 4294901760
  %2955 = vmatpush.xpose.msra.mxu0 %v2954
  %v2956 = vand.u32 %v434, 4294901760
  %2957 = vmatpush.xpose.msra.mxu0 %v2956
  %v2958 = vand.u32 %v431, 4294901760
  %2959 = vmatpush.xpose.msra.mxu0 %v2958
  %v2960 = vand.u32 %v428, 4294901760
  %2961 = vmatpush.xpose.msra.mxu0 %v2960
  %v2962 = vand.u32 %v425, 4294901760
  %2963 = vmatpush.xpose.msra.mxu0 %v2962
  %v2964 = vand.u32 %v422, 4294901760
  %2965 = vmatpush.xpose.msra.mxu0 %v2964
  %v2966 = vand.u32 %v170, 4294901760
  %v2967 = vsub.f32 %v170, %v2966
  %v2968 = vand.u32 %v2967, 4294901760
  %2969 = vmatmul.f32.gmra.mxu0 %v2968
  %v2970 = vpop.f32.mrf.mxu0
  %v2971 = vadd.f32 %v2917, %v2970
  %v2972 = vand.u32 %v173, 4294901760
  %v2973 = vsub.f32 %v173, %v2972
  %v2974 = vand.u32 %v2973, 4294901760
  %2975 = vmatmul.f32.gmra.mxu0 %v2974
  %v2976 = vpop.f32.mrf.mxu0
  %v2977 = vadd.f32 %v2922, %v2976
  %v2978 = vand.u32 %v176, 4294901760
  %v2979 = vsub.f32 %v176, %v2978
  %v2980 = vand.u32 %v2979, 4294901760
  %2981 = vmatmul.f32.gmra.mxu0 %v2980
  %v2982 = vpop.f32.mrf.mxu0
  %v2983 = vadd.f32 %v2927, %v2982
  %v2984 = vand.u32 %v179, 4294901760
  %v2985 = vsub.f32 %v179, %v2984
  %v2986 = vand.u32 %v2985, 4294901760
  %2987 = vmatmul.f32.gmra.mxu0 %v2986
  %v2988 = vpop.f32.mrf.mxu0
  %v2989 = vadd.f32 %v2932, %v2988
  %2990 = vdwg.mxu0
  %v2991 = vand.u32 %v467, 4294901760
  %v2992 = vsub.f32 %v467, %v2991
  %v2993 = vand.u32 %v2992, 4294901760
  %2994 = vmatpush.xpose.msra.mxu0 %v2993
  %v2995 = vand.u32 %v464, 4294901760
  %v2996 = vsub.f32 %v464, %v2995
  %v2997 = vand.u32 %v2996, 4294901760
  %2998 = vmatpush.xpose.msra.mxu0 %v2997
  %v2999 = vand.u32 %v461, 4294901760
  %v3000 = vsub.f32 %v461, %v2999
  %v3001 = vand.u32 %v3000, 4294901760
  %3002 = vmatpush.xpose.msra.mxu0 %v3001
  %v3003 = vand.u32 %v458, 4294901760
  %v3004 = vsub.f32 %v458, %v3003
  %v3005 = vand.u32 %v3004, 4294901760
  %3006 = vmatpush.xpose.msra.mxu0 %v3005
  %v3007 = vand.u32 %v455, 4294901760
  %v3008 = vsub.f32 %v455, %v3007
  %v3009 = vand.u32 %v3008, 4294901760
  %3010 = vmatpush.xpose.msra.mxu0 %v3009
  %v3011 = vand.u32 %v452, 4294901760
  %v3012 = vsub.f32 %v452, %v3011
  %v3013 = vand.u32 %v3012, 4294901760
  %3014 = vmatpush.xpose.msra.mxu0 %v3013
  %v3015 = vand.u32 %v449, 4294901760
  %v3016 = vsub.f32 %v449, %v3015
  %v3017 = vand.u32 %v3016, 4294901760
  %3018 = vmatpush.xpose.msra.mxu0 %v3017
  %v3019 = vand.u32 %v446, 4294901760
  %v3020 = vsub.f32 %v446, %v3019
  %v3021 = vand.u32 %v3020, 4294901760
  %3022 = vmatpush.xpose.msra.mxu0 %v3021
  %v3023 = vand.u32 %v443, 4294901760
  %v3024 = vsub.f32 %v443, %v3023
  %v3025 = vand.u32 %v3024, 4294901760
  %3026 = vmatpush.xpose.msra.mxu0 %v3025
  %v3027 = vand.u32 %v440, 4294901760
  %v3028 = vsub.f32 %v440, %v3027
  %v3029 = vand.u32 %v3028, 4294901760
  %3030 = vmatpush.xpose.msra.mxu0 %v3029
  %v3031 = vand.u32 %v437, 4294901760
  %v3032 = vsub.f32 %v437, %v3031
  %v3033 = vand.u32 %v3032, 4294901760
  %3034 = vmatpush.xpose.msra.mxu0 %v3033
  %v3035 = vand.u32 %v434, 4294901760
  %v3036 = vsub.f32 %v434, %v3035
  %v3037 = vand.u32 %v3036, 4294901760
  %3038 = vmatpush.xpose.msra.mxu0 %v3037
  %v3039 = vand.u32 %v431, 4294901760
  %v3040 = vsub.f32 %v431, %v3039
  %v3041 = vand.u32 %v3040, 4294901760
  %3042 = vmatpush.xpose.msra.mxu0 %v3041
  %v3043 = vand.u32 %v428, 4294901760
  %v3044 = vsub.f32 %v428, %v3043
  %v3045 = vand.u32 %v3044, 4294901760
  %3046 = vmatpush.xpose.msra.mxu0 %v3045
  %v3047 = vand.u32 %v425, 4294901760
  %v3048 = vsub.f32 %v425, %v3047
  %v3049 = vand.u32 %v3048, 4294901760
  %3050 = vmatpush.xpose.msra.mxu0 %v3049
  %v3051 = vand.u32 %v422, 4294901760
  %v3052 = vsub.f32 %v422, %v3051
  %v3053 = vand.u32 %v3052, 4294901760
  %3054 = vmatpush.xpose.msra.mxu0 %v3053
  %v3055 = vand.u32 %v170, 4294901760
  %3056 = vmatmul.f32.gmra.mxu0 %v3055
  %v3057 = vpop.f32.mrf.mxu0
  %v3058 = vadd.f32 %v2971, %v3057
  %v3059 = vand.u32 %v173, 4294901760
  %3060 = vmatmul.f32.gmra.mxu0 %v3059
  %v3061 = vpop.f32.mrf.mxu0
  %v3062 = vadd.f32 %v2977, %v3061
  %v3063 = vand.u32 %v176, 4294901760
  %3064 = vmatmul.f32.gmra.mxu0 %v3063
  %v3065 = vpop.f32.mrf.mxu0
  %v3066 = vadd.f32 %v2983, %v3065
  %v3067 = vand.u32 %v179, 4294901760
  %3068 = vmatmul.f32.gmra.mxu0 %v3067
  %v3069 = vpop.f32.mrf.mxu0
  %v3070 = vadd.f32 %v2989, %v3069
  %3071 = vdwg.mxu0
  %v3072 = vand.u32 %v467, 4294901760
  %3073 = vmatpush.xpose.msra.mxu0 %v3072
  %v3074 = vand.u32 %v464, 4294901760
  %3075 = vmatpush.xpose.msra.mxu0 %v3074
  %v3076 = vand.u32 %v461, 4294901760
  %3077 = vmatpush.xpose.msra.mxu0 %v3076
  %v3078 = vand.u32 %v458, 4294901760
  %3079 = vmatpush.xpose.msra.mxu0 %v3078
  %v3080 = vand.u32 %v455, 4294901760
  %3081 = vmatpush.xpose.msra.mxu0 %v3080
  %v3082 = vand.u32 %v452, 4294901760
  %3083 = vmatpush.xpose.msra.mxu0 %v3082
  %v3084 = vand.u32 %v449, 4294901760
  %3085 = vmatpush.xpose.msra.mxu0 %v3084
  %v3086 = vand.u32 %v446, 4294901760
  %3087 = vmatpush.xpose.msra.mxu0 %v3086
  %v3088 = vand.u32 %v443, 4294901760
  %3089 = vmatpush.xpose.msra.mxu0 %v3088
  %v3090 = vand.u32 %v440, 4294901760
  %3091 = vmatpush.xpose.msra.mxu0 %v3090
  %v3092 = vand.u32 %v437, 4294901760
  %3093 = vmatpush.xpose.msra.mxu0 %v3092
  %v3094 = vand.u32 %v434, 4294901760
  %3095 = vmatpush.xpose.msra.mxu0 %v3094
  %v3096 = vand.u32 %v431, 4294901760
  %3097 = vmatpush.xpose.msra.mxu0 %v3096
  %v3098 = vand.u32 %v428, 4294901760
  %3099 = vmatpush.xpose.msra.mxu0 %v3098
  %v3100 = vand.u32 %v425, 4294901760
  %3101 = vmatpush.xpose.msra.mxu0 %v3100
  %v3102 = vand.u32 %v422, 4294901760
  %3103 = vmatpush.xpose.msra.mxu0 %v3102
  %v3104 = vand.u32 %v170, 4294901760
  %3105 = vmatmul.f32.gmra.mxu0 %v3104
  %v3106 = vpop.f32.mrf.mxu0
  %v3107 = vadd.f32 %v3058, %v3106
  %v3108 = vand.u32 %v173, 4294901760
  %3109 = vmatmul.f32.gmra.mxu0 %v3108
  %v3110 = vpop.f32.mrf.mxu0
  %v3111 = vadd.f32 %v3062, %v3110
  %v3112 = vand.u32 %v176, 4294901760
  %3113 = vmatmul.f32.gmra.mxu0 %v3112
  %v3114 = vpop.f32.mrf.mxu0
  %v3115 = vadd.f32 %v3066, %v3114
  %v3116 = vand.u32 %v179, 4294901760
  %3117 = vmatmul.f32.gmra.mxu0 %v3116
  %v3118 = vpop.f32.mrf.mxu0
  %v3119 = vadd.f32 %v3070, %v3118
  %3120 = vdwg.mxu0
  %v3121 = vand.u32 %v515, 4294901760
  %3122 = vmatpush.xpose.msra.mxu0 %v3121
  %v3123 = vand.u32 %v512, 4294901760
  %3124 = vmatpush.xpose.msra.mxu0 %v3123
  %v3125 = vand.u32 %v509, 4294901760
  %3126 = vmatpush.xpose.msra.mxu0 %v3125
  %v3127 = vand.u32 %v506, 4294901760
  %3128 = vmatpush.xpose.msra.mxu0 %v3127
  %v3129 = vand.u32 %v503, 4294901760
  %3130 = vmatpush.xpose.msra.mxu0 %v3129
  %v3131 = vand.u32 %v500, 4294901760
  %3132 = vmatpush.xpose.msra.mxu0 %v3131
  %v3133 = vand.u32 %v497, 4294901760
  %3134 = vmatpush.xpose.msra.mxu0 %v3133
  %v3135 = vand.u32 %v494, 4294901760
  %3136 = vmatpush.xpose.msra.mxu0 %v3135
  %v3137 = vand.u32 %v491, 4294901760
  %3138 = vmatpush.xpose.msra.mxu0 %v3137
  %v3139 = vand.u32 %v488, 4294901760
  %3140 = vmatpush.xpose.msra.mxu0 %v3139
  %v3141 = vand.u32 %v485, 4294901760
  %3142 = vmatpush.xpose.msra.mxu0 %v3141
  %v3143 = vand.u32 %v482, 4294901760
  %3144 = vmatpush.xpose.msra.mxu0 %v3143
  %v3145 = vand.u32 %v479, 4294901760
  %3146 = vmatpush.xpose.msra.mxu0 %v3145
  %v3147 = vand.u32 %v476, 4294901760
  %3148 = vmatpush.xpose.msra.mxu0 %v3147
  %v3149 = vand.u32 %v473, 4294901760
  %3150 = vmatpush.xpose.msra.mxu0 %v3149
  %v3151 = vand.u32 %v470, 4294901760
  %3152 = vmatpush.xpose.msra.mxu0 %v3151
  %v3153 = vand.u32 %v170, 4294901760
  %v3154 = vsub.f32 %v170, %v3153
  %v3155 = vand.u32 %v3154, 4294901760
  %v3156 = vsub.f32 %v3154, %v3155
  %v3157 = vand.u32 %v3156, 4294901760
  %3158 = vmatmul.f32.gmra.mxu0 %v3157
  %v3159 = vpop.f32.mrf.mxu0
  %v3160 = vadd.f32 %v151, %v3159
  %v3161 = vand.u32 %v173, 4294901760
  %v3162 = vsub.f32 %v173, %v3161
  %v3163 = vand.u32 %v3162, 4294901760
  %v3164 = vsub.f32 %v3162, %v3163
  %v3165 = vand.u32 %v3164, 4294901760
  %3166 = vmatmul.f32.gmra.mxu0 %v3165
  %v3167 = vpop.f32.mrf.mxu0
  %v3168 = vadd.f32 %v156, %v3167
  %v3169 = vand.u32 %v176, 4294901760
  %v3170 = vsub.f32 %v176, %v3169
  %v3171 = vand.u32 %v3170, 4294901760
  %v3172 = vsub.f32 %v3170, %v3171
  %v3173 = vand.u32 %v3172, 4294901760
  %3174 = vmatmul.f32.gmra.mxu0 %v3173
  %v3175 = vpop.f32.mrf.mxu0
  %v3176 = vadd.f32 %v161, %v3175
  %v3177 = vand.u32 %v179, 4294901760
  %v3178 = vsub.f32 %v179, %v3177
  %v3179 = vand.u32 %v3178, 4294901760
  %v3180 = vsub.f32 %v3178, %v3179
  %v3181 = vand.u32 %v3180, 4294901760
  %3182 = vmatmul.f32.gmra.mxu0 %v3181
  %v3183 = vpop.f32.mrf.mxu0
  %v3184 = vadd.f32 %v166, %v3183
  %3185 = vdwg.mxu0
  %v3186 = vand.u32 %v515, 4294901760
  %v3187 = vsub.f32 %v515, %v3186
  %v3188 = vand.u32 %v3187, 4294901760
  %v3189 = vsub.f32 %v3187, %v3188
  %v3190 = vand.u32 %v3189, 4294901760
  %3191 = vmatpush.xpose.msra.mxu0 %v3190
  %v3192 = vand.u32 %v512, 4294901760
  %v3193 = vsub.f32 %v512, %v3192
  %v3194 = vand.u32 %v3193, 4294901760
  %v3195 = vsub.f32 %v3193, %v3194
  %v3196 = vand.u32 %v3195, 4294901760
  %3197 = vmatpush.xpose.msra.mxu0 %v3196
  %v3198 = vand.u32 %v509, 4294901760
  %v3199 = vsub.f32 %v509, %v3198
  %v3200 = vand.u32 %v3199, 4294901760
  %v3201 = vsub.f32 %v3199, %v3200
  %v3202 = vand.u32 %v3201, 4294901760
  %3203 = vmatpush.xpose.msra.mxu0 %v3202
  %v3204 = vand.u32 %v506, 4294901760
  %v3205 = vsub.f32 %v506, %v3204
  %v3206 = vand.u32 %v3205, 4294901760
  %v3207 = vsub.f32 %v3205, %v3206
  %v3208 = vand.u32 %v3207, 4294901760
  %3209 = vmatpush.xpose.msra.mxu0 %v3208
  %v3210 = vand.u32 %v503, 4294901760
  %v3211 = vsub.f32 %v503, %v3210
  %v3212 = vand.u32 %v3211, 4294901760
  %v3213 = vsub.f32 %v3211, %v3212
  %v3214 = vand.u32 %v3213, 4294901760
  %3215 = vmatpush.xpose.msra.mxu0 %v3214
  %v3216 = vand.u32 %v500, 4294901760
  %v3217 = vsub.f32 %v500, %v3216
  %v3218 = vand.u32 %v3217, 4294901760
  %v3219 = vsub.f32 %v3217, %v3218
  %v3220 = vand.u32 %v3219, 4294901760
  %3221 = vmatpush.xpose.msra.mxu0 %v3220
  %v3222 = vand.u32 %v497, 4294901760
  %v3223 = vsub.f32 %v497, %v3222
  %v3224 = vand.u32 %v3223, 4294901760
  %v3225 = vsub.f32 %v3223, %v3224
  %v3226 = vand.u32 %v3225, 4294901760
  %3227 = vmatpush.xpose.msra.mxu0 %v3226
  %v3228 = vand.u32 %v494, 4294901760
  %v3229 = vsub.f32 %v494, %v3228
  %v3230 = vand.u32 %v3229, 4294901760
  %v3231 = vsub.f32 %v3229, %v3230
  %v3232 = vand.u32 %v3231, 4294901760
  %3233 = vmatpush.xpose.msra.mxu0 %v3232
  %v3234 = vand.u32 %v491, 4294901760
  %v3235 = vsub.f32 %v491, %v3234
  %v3236 = vand.u32 %v3235, 4294901760
  %v3237 = vsub.f32 %v3235, %v3236
  %v3238 = vand.u32 %v3237, 4294901760
  %3239 = vmatpush.xpose.msra.mxu0 %v3238
  %v3240 = vand.u32 %v488, 4294901760
  %v3241 = vsub.f32 %v488, %v3240
  %v3242 = vand.u32 %v3241, 4294901760
  %v3243 = vsub.f32 %v3241, %v3242
  %v3244 = vand.u32 %v3243, 4294901760
  %3245 = vmatpush.xpose.msra.mxu0 %v3244
  %v3246 = vand.u32 %v485, 4294901760
  %v3247 = vsub.f32 %v485, %v3246
  %v3248 = vand.u32 %v3247, 4294901760
  %v3249 = vsub.f32 %v3247, %v3248
  %v3250 = vand.u32 %v3249, 4294901760
  %3251 = vmatpush.xpose.msra.mxu0 %v3250
  %v3252 = vand.u32 %v482, 4294901760
  %v3253 = vsub.f32 %v482, %v3252
  %v3254 = vand.u32 %v3253, 4294901760
  %v3255 = vsub.f32 %v3253, %v3254
  %v3256 = vand.u32 %v3255, 4294901760
  %3257 = vmatpush.xpose.msra.mxu0 %v3256
  %v3258 = vand.u32 %v479, 4294901760
  %v3259 = vsub.f32 %v479, %v3258
  %v3260 = vand.u32 %v3259, 4294901760
  %v3261 = vsub.f32 %v3259, %v3260
  %v3262 = vand.u32 %v3261, 4294901760
  %3263 = vmatpush.xpose.msra.mxu0 %v3262
  %v3264 = vand.u32 %v476, 4294901760
  %v3265 = vsub.f32 %v476, %v3264
  %v3266 = vand.u32 %v3265, 4294901760
  %v3267 = vsub.f32 %v3265, %v3266
  %v3268 = vand.u32 %v3267, 4294901760
  %3269 = vmatpush.xpose.msra.mxu0 %v3268
  %v3270 = vand.u32 %v473, 4294901760
  %v3271 = vsub.f32 %v473, %v3270
  %v3272 = vand.u32 %v3271, 4294901760
  %v3273 = vsub.f32 %v3271, %v3272
  %v3274 = vand.u32 %v3273, 4294901760
  %3275 = vmatpush.xpose.msra.mxu0 %v3274
  %v3276 = vand.u32 %v470, 4294901760
  %v3277 = vsub.f32 %v470, %v3276
  %v3278 = vand.u32 %v3277, 4294901760
  %v3279 = vsub.f32 %v3277, %v3278
  %v3280 = vand.u32 %v3279, 4294901760
  %3281 = vmatpush.xpose.msra.mxu0 %v3280
  %v3282 = vand.u32 %v170, 4294901760
  %3283 = vmatmul.f32.gmra.mxu0 %v3282
  %v3284 = vpop.f32.mrf.mxu0
  %v3285 = vadd.f32 %v3160, %v3284
  %v3286 = vand.u32 %v173, 4294901760
  %3287 = vmatmul.f32.gmra.mxu0 %v3286
  %v3288 = vpop.f32.mrf.mxu0
  %v3289 = vadd.f32 %v3168, %v3288
  %v3290 = vand.u32 %v176, 4294901760
  %3291 = vmatmul.f32.gmra.mxu0 %v3290
  %v3292 = vpop.f32.mrf.mxu0
  %v3293 = vadd.f32 %v3176, %v3292
  %v3294 = vand.u32 %v179, 4294901760
  %3295 = vmatmul.f32.gmra.mxu0 %v3294
  %v3296 = vpop.f32.mrf.mxu0
  %v3297 = vadd.f32 %v3184, %v3296
  %3298 = vdwg.mxu0
  %v3299 = vand.u32 %v515, 4294901760
  %v3300 = vsub.f32 %v515, %v3299
  %3301 = vmatpush.xpose.msra.mxu0 %v3300
  %v3302 = vand.u32 %v512, 4294901760
  %v3303 = vsub.f32 %v512, %v3302
  %3304 = vmatpush.xpose.msra.mxu0 %v3303
  %v3305 = vand.u32 %v509, 4294901760
  %v3306 = vsub.f32 %v509, %v3305
  %3307 = vmatpush.xpose.msra.mxu0 %v3306
  %v3308 = vand.u32 %v506, 4294901760
  %v3309 = vsub.f32 %v506, %v3308
  %3310 = vmatpush.xpose.msra.mxu0 %v3309
  %v3311 = vand.u32 %v503, 4294901760
  %v3312 = vsub.f32 %v503, %v3311
  %3313 = vmatpush.xpose.msra.mxu0 %v3312
  %v3314 = vand.u32 %v500, 4294901760
  %v3315 = vsub.f32 %v500, %v3314
  %3316 = vmatpush.xpose.msra.mxu0 %v3315
  %v3317 = vand.u32 %v497, 4294901760
  %v3318 = vsub.f32 %v497, %v3317
  %3319 = vmatpush.xpose.msra.mxu0 %v3318
  %v3320 = vand.u32 %v494, 4294901760
  %v3321 = vsub.f32 %v494, %v3320
  %3322 = vmatpush.xpose.msra.mxu0 %v3321
  %v3323 = vand.u32 %v491, 4294901760
  %v3324 = vsub.f32 %v491, %v3323
  %3325 = vmatpush.xpose.msra.mxu0 %v3324
  %v3326 = vand.u32 %v488, 4294901760
  %v3327 = vsub.f32 %v488, %v3326
  %3328 = vmatpush.xpose.msra.mxu0 %v3327
  %v3329 = vand.u32 %v485, 4294901760
  %v3330 = vsub.f32 %v485, %v3329
  %3331 = vmatpush.xpose.msra.mxu0 %v3330
  %v3332 = vand.u32 %v482, 4294901760
  %v3333 = vsub.f32 %v482, %v3332
  %3334 = vmatpush.xpose.msra.mxu0 %v3333
  %v3335 = vand.u32 %v479, 4294901760
  %v3336 = vsub.f32 %v479, %v3335
  %3337 = vmatpush.xpose.msra.mxu0 %v3336
  %v3338 = vand.u32 %v476, 4294901760
  %v3339 = vsub.f32 %v476, %v3338
  %3340 = vmatpush.xpose.msra.mxu0 %v3339
  %v3341 = vand.u32 %v473, 4294901760
  %v3342 = vsub.f32 %v473, %v3341
  %3343 = vmatpush.xpose.msra.mxu0 %v3342
  %v3344 = vand.u32 %v470, 4294901760
  %v3345 = vsub.f32 %v470, %v3344
  %3346 = vmatpush.xpose.msra.mxu0 %v3345
  %v3347 = vand.u32 %v170, 4294901760
  %v3348 = vsub.f32 %v170, %v3347
  %3349 = vmatmul.f32.gmra.mxu0 %v3348
  %v3350 = vpop.f32.mrf.mxu0
  %v3351 = vadd.f32 %v3285, %v3350
  %v3352 = vand.u32 %v173, 4294901760
  %v3353 = vsub.f32 %v173, %v3352
  %3354 = vmatmul.f32.gmra.mxu0 %v3353
  %v3355 = vpop.f32.mrf.mxu0
  %v3356 = vadd.f32 %v3289, %v3355
  %v3357 = vand.u32 %v176, 4294901760
  %v3358 = vsub.f32 %v176, %v3357
  %3359 = vmatmul.f32.gmra.mxu0 %v3358
  %v3360 = vpop.f32.mrf.mxu0
  %v3361 = vadd.f32 %v3293, %v3360
  %v3362 = vand.u32 %v179, 4294901760
  %v3363 = vsub.f32 %v179, %v3362
  %3364 = vmatmul.f32.gmra.mxu0 %v3363
  %v3365 = vpop.f32.mrf.mxu0
  %v3366 = vadd.f32 %v3297, %v3365
  %3367 = vdwg.mxu0
  %v3368 = vand.u32 %v515, 4294901760
  %3369 = vmatpush.xpose.msra.mxu0 %v3368
  %v3370 = vand.u32 %v512, 4294901760
  %3371 = vmatpush.xpose.msra.mxu0 %v3370
  %v3372 = vand.u32 %v509, 4294901760
  %3373 = vmatpush.xpose.msra.mxu0 %v3372
  %v3374 = vand.u32 %v506, 4294901760
  %3375 = vmatpush.xpose.msra.mxu0 %v3374
  %v3376 = vand.u32 %v503, 4294901760
  %3377 = vmatpush.xpose.msra.mxu0 %v3376
  %v3378 = vand.u32 %v500, 4294901760
  %3379 = vmatpush.xpose.msra.mxu0 %v3378
  %v3380 = vand.u32 %v497, 4294901760
  %3381 = vmatpush.xpose.msra.mxu0 %v3380
  %v3382 = vand.u32 %v494, 4294901760
  %3383 = vmatpush.xpose.msra.mxu0 %v3382
  %v3384 = vand.u32 %v491, 4294901760
  %3385 = vmatpush.xpose.msra.mxu0 %v3384
  %v3386 = vand.u32 %v488, 4294901760
  %3387 = vmatpush.xpose.msra.mxu0 %v3386
  %v3388 = vand.u32 %v485, 4294901760
  %3389 = vmatpush.xpose.msra.mxu0 %v3388
  %v3390 = vand.u32 %v482, 4294901760
  %3391 = vmatpush.xpose.msra.mxu0 %v3390
  %v3392 = vand.u32 %v479, 4294901760
  %3393 = vmatpush.xpose.msra.mxu0 %v3392
  %v3394 = vand.u32 %v476, 4294901760
  %3395 = vmatpush.xpose.msra.mxu0 %v3394
  %v3396 = vand.u32 %v473, 4294901760
  %3397 = vmatpush.xpose.msra.mxu0 %v3396
  %v3398 = vand.u32 %v470, 4294901760
  %3399 = vmatpush.xpose.msra.mxu0 %v3398
  %v3400 = vand.u32 %v170, 4294901760
  %v3401 = vsub.f32 %v170, %v3400
  %v3402 = vand.u32 %v3401, 4294901760
  %3403 = vmatmul.f32.gmra.mxu0 %v3402
  %v3404 = vpop.f32.mrf.mxu0
  %v3405 = vadd.f32 %v3351, %v3404
  %v3406 = vand.u32 %v173, 4294901760
  %v3407 = vsub.f32 %v173, %v3406
  %v3408 = vand.u32 %v3407, 4294901760
  %3409 = vmatmul.f32.gmra.mxu0 %v3408
  %v3410 = vpop.f32.mrf.mxu0
  %v3411 = vadd.f32 %v3356, %v3410
  %v3412 = vand.u32 %v176, 4294901760
  %v3413 = vsub.f32 %v176, %v3412
  %v3414 = vand.u32 %v3413, 4294901760
  %3415 = vmatmul.f32.gmra.mxu0 %v3414
  %v3416 = vpop.f32.mrf.mxu0
  %v3417 = vadd.f32 %v3361, %v3416
  %v3418 = vand.u32 %v179, 4294901760
  %v3419 = vsub.f32 %v179, %v3418
  %v3420 = vand.u32 %v3419, 4294901760
  %3421 = vmatmul.f32.gmra.mxu0 %v3420
  %v3422 = vpop.f32.mrf.mxu0
  %v3423 = vadd.f32 %v3366, %v3422
  %3424 = vdwg.mxu0
  %v3425 = vand.u32 %v515, 4294901760
  %v3426 = vsub.f32 %v515, %v3425
  %v3427 = vand.u32 %v3426, 4294901760
  %3428 = vmatpush.xpose.msra.mxu0 %v3427
  %v3429 = vand.u32 %v512, 4294901760
  %v3430 = vsub.f32 %v512, %v3429
  %v3431 = vand.u32 %v3430, 4294901760
  %3432 = vmatpush.xpose.msra.mxu0 %v3431
  %v3433 = vand.u32 %v509, 4294901760
  %v3434 = vsub.f32 %v509, %v3433
  %v3435 = vand.u32 %v3434, 4294901760
  %3436 = vmatpush.xpose.msra.mxu0 %v3435
  %v3437 = vand.u32 %v506, 4294901760
  %v3438 = vsub.f32 %v506, %v3437
  %v3439 = vand.u32 %v3438, 4294901760
  %3440 = vmatpush.xpose.msra.mxu0 %v3439
  %v3441 = vand.u32 %v503, 4294901760
  %v3442 = vsub.f32 %v503, %v3441
  %v3443 = vand.u32 %v3442, 4294901760
  %3444 = vmatpush.xpose.msra.mxu0 %v3443
  %v3445 = vand.u32 %v500, 4294901760
  %v3446 = vsub.f32 %v500, %v3445
  %v3447 = vand.u32 %v3446, 4294901760
  %3448 = vmatpush.xpose.msra.mxu0 %v3447
  %v3449 = vand.u32 %v497, 4294901760
  %v3450 = vsub.f32 %v497, %v3449
  %v3451 = vand.u32 %v3450, 4294901760
  %3452 = vmatpush.xpose.msra.mxu0 %v3451
  %v3453 = vand.u32 %v494, 4294901760
  %v3454 = vsub.f32 %v494, %v3453
  %v3455 = vand.u32 %v3454, 4294901760
  %3456 = vmatpush.xpose.msra.mxu0 %v3455
  %v3457 = vand.u32 %v491, 4294901760
  %v3458 = vsub.f32 %v491, %v3457
  %v3459 = vand.u32 %v3458, 4294901760
  %3460 = vmatpush.xpose.msra.mxu0 %v3459
  %v3461 = vand.u32 %v488, 4294901760
  %v3462 = vsub.f32 %v488, %v3461
  %v3463 = vand.u32 %v3462, 4294901760
  %3464 = vmatpush.xpose.msra.mxu0 %v3463
  %v3465 = vand.u32 %v485, 4294901760
  %v3466 = vsub.f32 %v485, %v3465
  %v3467 = vand.u32 %v3466, 4294901760
  %3468 = vmatpush.xpose.msra.mxu0 %v3467
  %v3469 = vand.u32 %v482, 4294901760
  %v3470 = vsub.f32 %v482, %v3469
  %v3471 = vand.u32 %v3470, 4294901760
  %3472 = vmatpush.xpose.msra.mxu0 %v3471
  %v3473 = vand.u32 %v479, 4294901760
  %v3474 = vsub.f32 %v479, %v3473
  %v3475 = vand.u32 %v3474, 4294901760
  %3476 = vmatpush.xpose.msra.mxu0 %v3475
  %v3477 = vand.u32 %v476, 4294901760
  %v3478 = vsub.f32 %v476, %v3477
  %v3479 = vand.u32 %v3478, 4294901760
  %3480 = vmatpush.xpose.msra.mxu0 %v3479
  %v3481 = vand.u32 %v473, 4294901760
  %v3482 = vsub.f32 %v473, %v3481
  %v3483 = vand.u32 %v3482, 4294901760
  %3484 = vmatpush.xpose.msra.mxu0 %v3483
  %v3485 = vand.u32 %v470, 4294901760
  %v3486 = vsub.f32 %v470, %v3485
  %v3487 = vand.u32 %v3486, 4294901760
  %3488 = vmatpush.xpose.msra.mxu0 %v3487
  %v3489 = vand.u32 %v170, 4294901760
  %3490 = vmatmul.f32.gmra.mxu0 %v3489
  %v3491 = vpop.f32.mrf.mxu0
  %v3492 = vadd.f32 %v3405, %v3491
  %v3493 = vand.u32 %v173, 4294901760
  %3494 = vmatmul.f32.gmra.mxu0 %v3493
  %v3495 = vpop.f32.mrf.mxu0
  %v3496 = vadd.f32 %v3411, %v3495
  %v3497 = vand.u32 %v176, 4294901760
  %3498 = vmatmul.f32.gmra.mxu0 %v3497
  %v3499 = vpop.f32.mrf.mxu0
  %v3500 = vadd.f32 %v3417, %v3499
  %v3501 = vand.u32 %v179, 4294901760
  %3502 = vmatmul.f32.gmra.mxu0 %v3501
  %v3503 = vpop.f32.mrf.mxu0
  %v3504 = vadd.f32 %v3423, %v3503
  %3505 = vdwg.mxu0
  %v3506 = vand.u32 %v515, 4294901760
  %3507 = vmatpush.xpose.msra.mxu0 %v3506
  %v3508 = vand.u32 %v512, 4294901760
  %3509 = vmatpush.xpose.msra.mxu0 %v3508
  %v3510 = vand.u32 %v509, 4294901760
  %3511 = vmatpush.xpose.msra.mxu0 %v3510
  %v3512 = vand.u32 %v506, 4294901760
  %3513 = vmatpush.xpose.msra.mxu0 %v3512
  %v3514 = vand.u32 %v503, 4294901760
  %3515 = vmatpush.xpose.msra.mxu0 %v3514
  %v3516 = vand.u32 %v500, 4294901760
  %3517 = vmatpush.xpose.msra.mxu0 %v3516
  %v3518 = vand.u32 %v497, 4294901760
  %3519 = vmatpush.xpose.msra.mxu0 %v3518
  %v3520 = vand.u32 %v494, 4294901760
  %3521 = vmatpush.xpose.msra.mxu0 %v3520
  %v3522 = vand.u32 %v491, 4294901760
  %3523 = vmatpush.xpose.msra.mxu0 %v3522
  %v3524 = vand.u32 %v488, 4294901760
  %3525 = vmatpush.xpose.msra.mxu0 %v3524
  %v3526 = vand.u32 %v485, 4294901760
  %3527 = vmatpush.xpose.msra.mxu0 %v3526
  %v3528 = vand.u32 %v482, 4294901760
  %3529 = vmatpush.xpose.msra.mxu0 %v3528
  %v3530 = vand.u32 %v479, 4294901760
  %3531 = vmatpush.xpose.msra.mxu0 %v3530
  %v3532 = vand.u32 %v476, 4294901760
  %3533 = vmatpush.xpose.msra.mxu0 %v3532
  %v3534 = vand.u32 %v473, 4294901760
  %3535 = vmatpush.xpose.msra.mxu0 %v3534
  %v3536 = vand.u32 %v470, 4294901760
  %3537 = vmatpush.xpose.msra.mxu0 %v3536
  %v3538 = vand.u32 %v170, 4294901760
  %3539 = vmatmul.f32.gmra.mxu0 %v3538
  %v3540 = vpop.f32.mrf.mxu0
  %v3541 = vadd.f32 %v3492, %v3540
  %v3542 = vand.u32 %v173, 4294901760
  %3543 = vmatmul.f32.gmra.mxu0 %v3542
  %v3544 = vpop.f32.mrf.mxu0
  %v3545 = vadd.f32 %v3496, %v3544
  %v3546 = vand.u32 %v176, 4294901760
  %3547 = vmatmul.f32.gmra.mxu0 %v3546
  %v3548 = vpop.f32.mrf.mxu0
  %v3549 = vadd.f32 %v3500, %v3548
  %v3550 = vand.u32 %v179, 4294901760
  %3551 = vmatmul.f32.gmra.mxu0 %v3550
  %v3552 = vpop.f32.mrf.mxu0
  %v3553 = vadd.f32 %v3504, %v3552
  %3554 = vdwg.mxu0
  %v3555 = vmax.f32 %v937, 0.0
  %v3556 = vmax.f32 %v1371, 0.0
  %v3557 = vmax.f32 %v1805, 0.0
  %v3558 = vmax.f32 %v2239, 0.0
  %v3559 = vmax.f32 %v2673, 0.0
  %v3560 = vmax.f32 %v3107, 0.0
  %v3561 = vmax.f32 %v3541, 0.0
  %v3562 = vmax.f32 %v941, 0.0
  %v3563 = vmax.f32 %v1375, 0.0
  %v3564 = vmax.f32 %v1809, 0.0
  %v3565 = vmax.f32 %v2243, 0.0
  %v3566 = vmax.f32 %v2677, 0.0
  %v3567 = vmax.f32 %v3111, 0.0
  %v3568 = vmax.f32 %v3545, 0.0
  %v3569 = vmax.f32 %v945, 0.0
  %v3570 = vmax.f32 %v1379, 0.0
  %v3571 = vmax.f32 %v1813, 0.0
  %v3572 = vmax.f32 %v2247, 0.0
  %v3573 = vmax.f32 %v2681, 0.0
  %v3574 = vmax.f32 %v3115, 0.0
  %v3575 = vmax.f32 %v3549, 0.0
  %v3576 = vmax.f32 %v949, 0.0
  %v3577 = vmax.f32 %v1383, 0.0
  %v3578 = vmax.f32 %v1817, 0.0
  %v3579 = vmax.f32 %v2251, 0.0
  %v3580 = vmax.f32 %v2685, 0.0
  %v3581 = vmax.f32 %v3119, 0.0
  %v3582 = vmax.f32 %v3553, 0.0
  %v3583 = vld [vmem:[%s3] sm:$0xff]
  %v3584 = vld [vmem:[%s3 + $0x8] sm:$0xff]
  %v3585 = vld [vmem:[%s3 + $0x10] sm:$0xff]
  %v3586 = vld [vmem:[%s3 + $0x18] sm:$0xff]
  %v3587 = vld [vmem:[%s4] sm:$0xff]
  %v3588 = vld [vmem:[%s4 + $0x8] sm:$0xff]
  %v3589 = vld [vmem:[%s4 + $0x10] sm:$0xff]
  %v3590 = vld [vmem:[%s4 + $0x18] sm:$0xff]
  %3592 = vset.pattern.permute.xlu0 0
  %3593 = vperm.xlu0 %3592, %v3587
  %v3594 = vpop.permute.xlu0 %3593
  %3597 = vset.pattern.permute.xlu0 0
  %3598 = vperm.xlu0 %3597, %v3588
  %v3599 = vpop.permute.xlu0 %3598
  %3602 = vset.pattern.permute.xlu0 0
  %3603 = vperm.xlu0 %3602, %v3589
  %v3604 = vpop.permute.xlu0 %3603
  %3607 = vset.pattern.permute.xlu0 0
  %3608 = vperm.xlu0 %3607, %v3590
  %v3609 = vpop.permute.xlu0 %3608
  %vm3611 = vcmask 261120
  %v3613 = vsel %vm3611, %v3583, 0
  %v3616 = vsel %vm3611, %v3584, 0
  %v3619 = vsel %vm3611, %v3585, 0
  %v3622 = vsel %vm3611, %v3586, 0
  %3624 = vmatpush.msra.mxu0 0.0
  %3625 = vmatpush.msra.mxu0 0.0
  %3626 = vmatpush.msra.mxu0 0.0
  %3627 = vmatpush.msra.mxu0 0.0
  %3628 = vmatpush.msra.mxu0 0.0
  %3629 = vmatpush.msra.mxu0 0.0
  %3630 = vmatpush.msra.mxu0 0.0
  %3631 = vmatpush.msra.mxu0 0.0
  %3632 = vmatpush.msra.mxu0 0.0
  %3633 = vmatpush.msra.mxu0 0.0
  %3634 = vmatpush.msra.mxu0 0.0
  %3635 = vmatpush.msra.mxu0 0.0
  %v3636 = vand.u32 %v3576, 4294901760
  %3637 = vmatpush.msra.mxu0 %v3636
  %v3638 = vand.u32 %v3569, 4294901760
  %3639 = vmatpush.msra.mxu0 %v3638
  %v3640 = vand.u32 %v3562, 4294901760
  %3641 = vmatpush.msra.mxu0 %v3640
  %v3642 = vand.u32 %v3555, 4294901760
  %3643 = vmatpush.msra.mxu0 %v3642
  %v3644 = vand.u32 %v3613, 4294901760
  %v3645 = vsub.f32 %v3613, %v3644
  %v3646 = vand.u32 %v3645, 4294901760
  %v3647 = vsub.f32 %v3645, %v3646
  %v3648 = vand.u32 %v3647, 4294901760
  %3649 = vmatmul.f32.gmra.mxu0 %v3648
  %v3650 = vpop.f32.mrf.mxu0
  %v3651 = vadd.f32 %v3594, %v3650
  %v3652 = vand.u32 %v3616, 4294901760
  %v3653 = vsub.f32 %v3616, %v3652
  %v3654 = vand.u32 %v3653, 4294901760
  %v3655 = vsub.f32 %v3653, %v3654
  %v3656 = vand.u32 %v3655, 4294901760
  %3657 = vmatmul.f32.gmra.mxu0 %v3656
  %v3658 = vpop.f32.mrf.mxu0
  %v3659 = vadd.f32 %v3599, %v3658
  %v3660 = vand.u32 %v3619, 4294901760
  %v3661 = vsub.f32 %v3619, %v3660
  %v3662 = vand.u32 %v3661, 4294901760
  %v3663 = vsub.f32 %v3661, %v3662
  %v3664 = vand.u32 %v3663, 4294901760
  %3665 = vmatmul.f32.gmra.mxu0 %v3664
  %v3666 = vpop.f32.mrf.mxu0
  %v3667 = vadd.f32 %v3604, %v3666
  %v3668 = vand.u32 %v3622, 4294901760
  %v3669 = vsub.f32 %v3622, %v3668
  %v3670 = vand.u32 %v3669, 4294901760
  %v3671 = vsub.f32 %v3669, %v3670
  %v3672 = vand.u32 %v3671, 4294901760
  %3673 = vmatmul.f32.gmra.mxu0 %v3672
  %v3674 = vpop.f32.mrf.mxu0
  %v3675 = vadd.f32 %v3609, %v3674
  %3676 = vdwg.mxu0
  %3677 = vmatpush.msra.mxu0 0.0
  %3678 = vmatpush.msra.mxu0 0.0
  %3679 = vmatpush.msra.mxu0 0.0
  %3680 = vmatpush.msra.mxu0 0.0
  %3681 = vmatpush.msra.mxu0 0.0
  %3682 = vmatpush.msra.mxu0 0.0
  %3683 = vmatpush.msra.mxu0 0.0
  %3684 = vmatpush.msra.mxu0 0.0
  %3685 = vmatpush.msra.mxu0 0.0
  %3686 = vmatpush.msra.mxu0 0.0
  %3687 = vmatpush.msra.mxu0 0.0
  %3688 = vmatpush.msra.mxu0 0.0
  %v3689 = vand.u32 %v3576, 4294901760
  %v3690 = vsub.f32 %v3576, %v3689
  %v3691 = vand.u32 %v3690, 4294901760
  %v3692 = vsub.f32 %v3690, %v3691
  %v3693 = vand.u32 %v3692, 4294901760
  %3694 = vmatpush.msra.mxu0 %v3693
  %v3695 = vand.u32 %v3569, 4294901760
  %v3696 = vsub.f32 %v3569, %v3695
  %v3697 = vand.u32 %v3696, 4294901760
  %v3698 = vsub.f32 %v3696, %v3697
  %v3699 = vand.u32 %v3698, 4294901760
  %3700 = vmatpush.msra.mxu0 %v3699
  %v3701 = vand.u32 %v3562, 4294901760
  %v3702 = vsub.f32 %v3562, %v3701
  %v3703 = vand.u32 %v3702, 4294901760
  %v3704 = vsub.f32 %v3702, %v3703
  %v3705 = vand.u32 %v3704, 4294901760
  %3706 = vmatpush.msra.mxu0 %v3705
  %v3707 = vand.u32 %v3555, 4294901760
  %v3708 = vsub.f32 %v3555, %v3707
  %v3709 = vand.u32 %v3708, 4294901760
  %v3710 = vsub.f32 %v3708, %v3709
  %v3711 = vand.u32 %v3710, 4294901760
  %3712 = vmatpush.msra.mxu0 %v3711
  %v3713 = vand.u32 %v3613, 4294901760
  %3714 = vmatmul.f32.gmra.mxu0 %v3713
  %v3715 = vpop.f32.mrf.mxu0
  %v3716 = vadd.f32 %v3651, %v3715
  %v3717 = vand.u32 %v3616, 4294901760
  %3718 = vmatmul.f32.gmra.mxu0 %v3717
  %v3719 = vpop.f32.mrf.mxu0
  %v3720 = vadd.f32 %v3659, %v3719
  %v3721 = vand.u32 %v3619, 4294901760
  %3722 = vmatmul.f32.gmra.mxu0 %v3721
  %v3723 = vpop.f32.mrf.mxu0
  %v3724 = vadd.f32 %v3667, %v3723
  %v3725 = vand.u32 %v3622, 4294901760
  %3726 = vmatmul.f32.gmra.mxu0 %v3725
  %v3727 = vpop.f32.mrf.mxu0
  %v3728 = vadd.f32 %v3675, %v3727
  %3729 = vdwg.mxu0
  %3730 = vmatpush.msra.mxu0 0.0
  %3731 = vmatpush.msra.mxu0 0.0
  %3732 = vmatpush.msra.mxu0 0.0
  %3733 = vmatpush.msra.mxu0 0.0
  %3734 = vmatpush.msra.mxu0 0.0
  %3735 = vmatpush.msra.mxu0 0.0
  %3736 = vmatpush.msra.mxu0 0.0
  %3737 = vmatpush.msra.mxu0 0.0
  %3738 = vmatpush.msra.mxu0 0.0
  %3739 = vmatpush.msra.mxu0 0.0
  %3740 = vmatpush.msra.mxu0 0.0
  %3741 = vmatpush.msra.mxu0 0.0
  %v3742 = vand.u32 %v3576, 4294901760
  %v3743 = vsub.f32 %v3576, %v3742
  %3744 = vmatpush.msra.mxu0 %v3743
  %v3745 = vand.u32 %v3569, 4294901760
  %v3746 = vsub.f32 %v3569, %v3745
  %3747 = vmatpush.msra.mxu0 %v3746
  %v3748 = vand.u32 %v3562, 4294901760
  %v3749 = vsub.f32 %v3562, %v3748
  %3750 = vmatpush.msra.mxu0 %v3749
  %v3751 = vand.u32 %v3555, 4294901760
  %v3752 = vsub.f32 %v3555, %v3751
  %3753 = vmatpush.msra.mxu0 %v3752
  %v3754 = vand.u32 %v3613, 4294901760
  %v3755 = vsub.f32 %v3613, %v3754
  %3756 = vmatmul.f32.gmra.mxu0 %v3755
  %v3757 = vpop.f32.mrf.mxu0
  %v3758 = vadd.f32 %v3716, %v3757
  %v3759 = vand.u32 %v3616, 4294901760
  %v3760 = vsub.f32 %v3616, %v3759
  %3761 = vmatmul.f32.gmra.mxu0 %v3760
  %v3762 = vpop.f32.mrf.mxu0
  %v3763 = vadd.f32 %v3720, %v3762
  %v3764 = vand.u32 %v3619, 4294901760
  %v3765 = vsub.f32 %v3619, %v3764
  %3766 = vmatmul.f32.gmra.mxu0 %v3765
  %v3767 = vpop.f32.mrf.mxu0
  %v3768 = vadd.f32 %v3724, %v3767
  %v3769 = vand.u32 %v3622, 4294901760
  %v3770 = vsub.f32 %v3622, %v3769
  %3771 = vmatmul.f32.gmra.mxu0 %v3770
  %v3772 = vpop.f32.mrf.mxu0
  %v3773 = vadd.f32 %v3728, %v3772
  %3774 = vdwg.mxu0
  %3775 = vmatpush.msra.mxu0 0.0
  %3776 = vmatpush.msra.mxu0 0.0
  %3777 = vmatpush.msra.mxu0 0.0
  %3778 = vmatpush.msra.mxu0 0.0
  %3779 = vmatpush.msra.mxu0 0.0
  %3780 = vmatpush.msra.mxu0 0.0
  %3781 = vmatpush.msra.mxu0 0.0
  %3782 = vmatpush.msra.mxu0 0.0
  %3783 = vmatpush.msra.mxu0 0.0
  %3784 = vmatpush.msra.mxu0 0.0
  %3785 = vmatpush.msra.mxu0 0.0
  %3786 = vmatpush.msra.mxu0 0.0
  %v3787 = vand.u32 %v3576, 4294901760
  %3788 = vmatpush.msra.mxu0 %v3787
  %v3789 = vand.u32 %v3569, 4294901760
  %3790 = vmatpush.msra.mxu0 %v3789
  %v3791 = vand.u32 %v3562, 4294901760
  %3792 = vmatpush.msra.mxu0 %v3791
  %v3793 = vand.u32 %v3555, 4294901760
  %3794 = vmatpush.msra.mxu0 %v3793
  %v3795 = vand.u32 %v3613, 4294901760
  %v3796 = vsub.f32 %v3613, %v3795
  %v3797 = vand.u32 %v3796, 4294901760
  %3798 = vmatmul.f32.gmra.mxu0 %v3797
  %v3799 = vpop.f32.mrf.mxu0
  %v3800 = vadd.f32 %v3758, %v3799
  %v3801 = vand.u32 %v3616, 4294901760
  %v3802 = vsub.f32 %v3616, %v3801
  %v3803 = vand.u32 %v3802, 4294901760
  %3804 = vmatmul.f32.gmra.mxu0 %v3803
  %v3805 = vpop.f32.mrf.mxu0
  %v3806 = vadd.f32 %v3763, %v3805
  %v3807 = vand.u32 %v3619, 4294901760
  %v3808 = vsub.f32 %v3619, %v3807
  %v3809 = vand.u32 %v3808, 4294901760
  %3810 = vmatmul.f32.gmra.mxu0 %v3809
  %v3811 = vpop.f32.mrf.mxu0
  %v3812 = vadd.f32 %v3768, %v3811
  %v3813 = vand.u32 %v3622, 4294901760
  %v3814 = vsub.f32 %v3622, %v3813
  %v3815 = vand.u32 %v3814, 4294901760
  %3816 = vmatmul.f32.gmra.mxu0 %v3815
  %v3817 = vpop.f32.mrf.mxu0
  %v3818 = vadd.f32 %v3773, %v3817
  %3819 = vdwg.mxu0
  %3820 = vmatpush.msra.mxu0 0.0
  %3821 = vmatpush.msra.mxu0 0.0
  %3822 = vmatpush.msra.mxu0 0.0
  %3823 = vmatpush.msra.mxu0 0.0
  %3824 = vmatpush.msra.mxu0 0.0
  %3825 = vmatpush.msra.mxu0 0.0
  %3826 = vmatpush.msra.mxu0 0.0
  %3827 = vmatpush.msra.mxu0 0.0
  %3828 = vmatpush.msra.mxu0 0.0
  %3829 = vmatpush.msra.mxu0 0.0
  %3830 = vmatpush.msra.mxu0 0.0
  %3831 = vmatpush.msra.mxu0 0.0
  %v3832 = vand.u32 %v3576, 4294901760
  %v3833 = vsub.f32 %v3576, %v3832
  %v3834 = vand.u32 %v3833, 4294901760
  %3835 = vmatpush.msra.mxu0 %v3834
  %v3836 = vand.u32 %v3569, 4294901760
  %v3837 = vsub.f32 %v3569, %v3836
  %v3838 = vand.u32 %v3837, 4294901760
  %3839 = vmatpush.msra.mxu0 %v3838
  %v3840 = vand.u32 %v3562, 4294901760
  %v3841 = vsub.f32 %v3562, %v3840
  %v3842 = vand.u32 %v3841, 4294901760
  %3843 = vmatpush.msra.mxu0 %v3842
  %v3844 = vand.u32 %v3555, 4294901760
  %v3845 = vsub.f32 %v3555, %v3844
  %v3846 = vand.u32 %v3845, 4294901760
  %3847 = vmatpush.msra.mxu0 %v3846
  %v3848 = vand.u32 %v3613, 4294901760
  %3849 = vmatmul.f32.gmra.mxu0 %v3848
  %v3850 = vpop.f32.mrf.mxu0
  %v3851 = vadd.f32 %v3800, %v3850
  %v3852 = vand.u32 %v3616, 4294901760
  %3853 = vmatmul.f32.gmra.mxu0 %v3852
  %v3854 = vpop.f32.mrf.mxu0
  %v3855 = vadd.f32 %v3806, %v3854
  %v3856 = vand.u32 %v3619, 4294901760
  %3857 = vmatmul.f32.gmra.mxu0 %v3856
  %v3858 = vpop.f32.mrf.mxu0
  %v3859 = vadd.f32 %v3812, %v3858
  %v3860 = vand.u32 %v3622, 4294901760
  %3861 = vmatmul.f32.gmra.mxu0 %v3860
  %v3862 = vpop.f32.mrf.mxu0
  %v3863 = vadd.f32 %v3818, %v3862
  %3864 = vdwg.mxu0
  %3865 = vmatpush.msra.mxu0 0.0
  %3866 = vmatpush.msra.mxu0 0.0
  %3867 = vmatpush.msra.mxu0 0.0
  %3868 = vmatpush.msra.mxu0 0.0
  %3869 = vmatpush.msra.mxu0 0.0
  %3870 = vmatpush.msra.mxu0 0.0
  %3871 = vmatpush.msra.mxu0 0.0
  %3872 = vmatpush.msra.mxu0 0.0
  %3873 = vmatpush.msra.mxu0 0.0
  %3874 = vmatpush.msra.mxu0 0.0
  %3875 = vmatpush.msra.mxu0 0.0
  %3876 = vmatpush.msra.mxu0 0.0
  %v3877 = vand.u32 %v3576, 4294901760
  %3878 = vmatpush.msra.mxu0 %v3877
  %v3879 = vand.u32 %v3569, 4294901760
  %3880 = vmatpush.msra.mxu0 %v3879
  %v3881 = vand.u32 %v3562, 4294901760
  %3882 = vmatpush.msra.mxu0 %v3881
  %v3883 = vand.u32 %v3555, 4294901760
  %3884 = vmatpush.msra.mxu0 %v3883
  %v3885 = vand.u32 %v3613, 4294901760
  %3886 = vmatmul.f32.gmra.mxu0 %v3885
  %v3887 = vpop.f32.mrf.mxu0
  %v3888 = vadd.f32 %v3851, %v3887
  %v3889 = vand.u32 %v3616, 4294901760
  %3890 = vmatmul.f32.gmra.mxu0 %v3889
  %v3891 = vpop.f32.mrf.mxu0
  %v3892 = vadd.f32 %v3855, %v3891
  %v3893 = vand.u32 %v3619, 4294901760
  %3894 = vmatmul.f32.gmra.mxu0 %v3893
  %v3895 = vpop.f32.mrf.mxu0
  %v3896 = vadd.f32 %v3859, %v3895
  %v3897 = vand.u32 %v3622, 4294901760
  %3898 = vmatmul.f32.gmra.mxu0 %v3897
  %v3899 = vpop.f32.mrf.mxu0
  %v3900 = vadd.f32 %v3863, %v3899
  %3901 = vdwg.mxu0
  %3902 = vmatpush.msra.mxu0 0.0
  %3903 = vmatpush.msra.mxu0 0.0
  %3904 = vmatpush.msra.mxu0 0.0
  %3905 = vmatpush.msra.mxu0 0.0
  %3906 = vmatpush.msra.mxu0 0.0
  %3907 = vmatpush.msra.mxu0 0.0
  %3908 = vmatpush.msra.mxu0 0.0
  %3909 = vmatpush.msra.mxu0 0.0
  %3910 = vmatpush.msra.mxu0 0.0
  %3911 = vmatpush.msra.mxu0 0.0
  %3912 = vmatpush.msra.mxu0 0.0
  %3913 = vmatpush.msra.mxu0 0.0
  %v3914 = vand.u32 %v3577, 4294901760
  %3915 = vmatpush.msra.mxu0 %v3914
  %v3916 = vand.u32 %v3570, 4294901760
  %3917 = vmatpush.msra.mxu0 %v3916
  %v3918 = vand.u32 %v3563, 4294901760
  %3919 = vmatpush.msra.mxu0 %v3918
  %v3920 = vand.u32 %v3556, 4294901760
  %3921 = vmatpush.msra.mxu0 %v3920
  %v3922 = vand.u32 %v3613, 4294901760
  %v3923 = vsub.f32 %v3613, %v3922
  %v3924 = vand.u32 %v3923, 4294901760
  %v3925 = vsub.f32 %v3923, %v3924
  %v3926 = vand.u32 %v3925, 4294901760
  %3927 = vmatmul.f32.gmra.mxu0 %v3926
  %v3928 = vpop.f32.mrf.mxu0
  %v3929 = vadd.f32 %v3594, %v3928
  %v3930 = vand.u32 %v3616, 4294901760
  %v3931 = vsub.f32 %v3616, %v3930
  %v3932 = vand.u32 %v3931, 4294901760
  %v3933 = vsub.f32 %v3931, %v3932
  %v3934 = vand.u32 %v3933, 4294901760
  %3935 = vmatmul.f32.gmra.mxu0 %v3934
  %v3936 = vpop.f32.mrf.mxu0
  %v3937 = vadd.f32 %v3599, %v3936
  %v3938 = vand.u32 %v3619, 4294901760
  %v3939 = vsub.f32 %v3619, %v3938
  %v3940 = vand.u32 %v3939, 4294901760
  %v3941 = vsub.f32 %v3939, %v3940
  %v3942 = vand.u32 %v3941, 4294901760
  %3943 = vmatmul.f32.gmra.mxu0 %v3942
  %v3944 = vpop.f32.mrf.mxu0
  %v3945 = vadd.f32 %v3604, %v3944
  %v3946 = vand.u32 %v3622, 4294901760
  %v3947 = vsub.f32 %v3622, %v3946
  %v3948 = vand.u32 %v3947, 4294901760
  %v3949 = vsub.f32 %v3947, %v3948
  %v3950 = vand.u32 %v3949, 4294901760
  %3951 = vmatmul.f32.gmra.mxu0 %v3950
  %v3952 = vpop.f32.mrf.mxu0
  %v3953 = vadd.f32 %v3609, %v3952
  %3954 = vdwg.mxu0
  %3955 = vmatpush.msra.mxu0 0.0
  %3956 = vmatpush.msra.mxu0 0.0
  %3957 = vmatpush.msra.mxu0 0.0
  %3958 = vmatpush.msra.mxu0 0.0
  %3959 = vmatpush.msra.mxu0 0.0
  %3960 = vmatpush.msra.mxu0 0.0
  %3961 = vmatpush.msra.mxu0 0.0
  %3962 = vmatpush.msra.mxu0 0.0
  %3963 = vmatpush.msra.mxu0 0.0
  %3964 = vmatpush.msra.mxu0 0.0
  %3965 = vmatpush.msra.mxu0 0.0
  %3966 = vmatpush.msra.mxu0 0.0
  %v3967 = vand.u32 %v3577, 4294901760
  %v3968 = vsub.f32 %v3577, %v3967
  %v3969 = vand.u32 %v3968, 4294901760
  %v3970 = vsub.f32 %v3968, %v3969
  %v3971 = vand.u32 %v3970, 4294901760
  %3972 = vmatpush.msra.mxu0 %v3971
  %v3973 = vand.u32 %v3570, 4294901760
  %v3974 = vsub.f32 %v3570, %v3973
  %v3975 = vand.u32 %v3974, 4294901760
  %v3976 = vsub.f32 %v3974, %v3975
  %v3977 = vand.u32 %v3976, 4294901760
  %3978 = vmatpush.msra.mxu0 %v3977
  %v3979 = vand.u32 %v3563, 4294901760
  %v3980 = vsub.f32 %v3563, %v3979
  %v3981 = vand.u32 %v3980, 4294901760
  %v3982 = vsub.f32 %v3980, %v3981
  %v3983 = vand.u32 %v3982, 4294901760
  %3984 = vmatpush.msra.mxu0 %v3983
  %v3985 = vand.u32 %v3556, 4294901760
  %v3986 = vsub.f32 %v3556, %v3985
  %v3987 = vand.u32 %v3986, 4294901760
  %v3988 = vsub.f32 %v3986, %v3987
  %v3989 = vand.u32 %v3988, 4294901760
  %3990 = vmatpush.msra.mxu0 %v3989
  %v3991 = vand.u32 %v3613, 4294901760
  %3992 = vmatmul.f32.gmra.mxu0 %v3991
  %v3993 = vpop.f32.mrf.mxu0
  %v3994 = vadd.f32 %v3929, %v3993
  %v3995 = vand.u32 %v3616, 4294901760
  %3996 = vmatmul.f32.gmra.mxu0 %v3995
  %v3997 = vpop.f32.mrf.mxu0
  %v3998 = vadd.f32 %v3937, %v3997
  %v3999 = vand.u32 %v3619, 4294901760
  %4000 = vmatmul.f32.gmra.mxu0 %v3999
  %v4001 = vpop.f32.mrf.mxu0
  %v4002 = vadd.f32 %v3945, %v4001
  %v4003 = vand.u32 %v3622, 4294901760
  %4004 = vmatmul.f32.gmra.mxu0 %v4003
  %v4005 = vpop.f32.mrf.mxu0
  %v4006 = vadd.f32 %v3953, %v4005
  %4007 = vdwg.mxu0
  %4008 = vmatpush.msra.mxu0 0.0
  %4009 = vmatpush.msra.mxu0 0.0
  %4010 = vmatpush.msra.mxu0 0.0
  %4011 = vmatpush.msra.mxu0 0.0
  %4012 = vmatpush.msra.mxu0 0.0
  %4013 = vmatpush.msra.mxu0 0.0
  %4014 = vmatpush.msra.mxu0 0.0
  %4015 = vmatpush.msra.mxu0 0.0
  %4016 = vmatpush.msra.mxu0 0.0
  %4017 = vmatpush.msra.mxu0 0.0
  %4018 = vmatpush.msra.mxu0 0.0
  %4019 = vmatpush.msra.mxu0 0.0
  %v4020 = vand.u32 %v3577, 4294901760
  %v4021 = vsub.f32 %v3577, %v4020
  %4022 = vmatpush.msra.mxu0 %v4021
  %v4023 = vand.u32 %v3570, 4294901760
  %v4024 = vsub.f32 %v3570, %v4023
  %4025 = vmatpush.msra.mxu0 %v4024
  %v4026 = vand.u32 %v3563, 4294901760
  %v4027 = vsub.f32 %v3563, %v4026
  %4028 = vmatpush.msra.mxu0 %v4027
  %v4029 = vand.u32 %v3556, 4294901760
  %v4030 = vsub.f32 %v3556, %v4029
  %4031 = vmatpush.msra.mxu0 %v4030
  %v4032 = vand.u32 %v3613, 4294901760
  %v4033 = vsub.f32 %v3613, %v4032
  %4034 = vmatmul.f32.gmra.mxu0 %v4033
  %v4035 = vpop.f32.mrf.mxu0
  %v4036 = vadd.f32 %v3994, %v4035
  %v4037 = vand.u32 %v3616, 4294901760
  %v4038 = vsub.f32 %v3616, %v4037
  %4039 = vmatmul.f32.gmra.mxu0 %v4038
  %v4040 = vpop.f32.mrf.mxu0
  %v4041 = vadd.f32 %v3998, %v4040
  %v4042 = vand.u32 %v3619, 4294901760
  %v4043 = vsub.f32 %v3619, %v4042
  %4044 = vmatmul.f32.gmra.mxu0 %v4043
  %v4045 = vpop.f32.mrf.mxu0
  %v4046 = vadd.f32 %v4002, %v4045
  %v4047 = vand.u32 %v3622, 4294901760
  %v4048 = vsub.f32 %v3622, %v4047
  %4049 = vmatmul.f32.gmra.mxu0 %v4048
  %v4050 = vpop.f32.mrf.mxu0
  %v4051 = vadd.f32 %v4006, %v4050
  %4052 = vdwg.mxu0
  %4053 = vmatpush.msra.mxu0 0.0
  %4054 = vmatpush.msra.mxu0 0.0
  %4055 = vmatpush.msra.mxu0 0.0
  %4056 = vmatpush.msra.mxu0 0.0
  %4057 = vmatpush.msra.mxu0 0.0
  %4058 = vmatpush.msra.mxu0 0.0
  %4059 = vmatpush.msra.mxu0 0.0
  %4060 = vmatpush.msra.mxu0 0.0
  %4061 = vmatpush.msra.mxu0 0.0
  %4062 = vmatpush.msra.mxu0 0.0
  %4063 = vmatpush.msra.mxu0 0.0
  %4064 = vmatpush.msra.mxu0 0.0
  %v4065 = vand.u32 %v3577, 4294901760
  %4066 = vmatpush.msra.mxu0 %v4065
  %v4067 = vand.u32 %v3570, 4294901760
  %4068 = vmatpush.msra.mxu0 %v4067
  %v4069 = vand.u32 %v3563, 4294901760
  %4070 = vmatpush.msra.mxu0 %v4069
  %v4071 = vand.u32 %v3556, 4294901760
  %4072 = vmatpush.msra.mxu0 %v4071
  %v4073 = vand.u32 %v3613, 4294901760
  %v4074 = vsub.f32 %v3613, %v4073
  %v4075 = vand.u32 %v4074, 4294901760
  %4076 = vmatmul.f32.gmra.mxu0 %v4075
  %v4077 = vpop.f32.mrf.mxu0
  %v4078 = vadd.f32 %v4036, %v4077
  %v4079 = vand.u32 %v3616, 4294901760
  %v4080 = vsub.f32 %v3616, %v4079
  %v4081 = vand.u32 %v4080, 4294901760
  %4082 = vmatmul.f32.gmra.mxu0 %v4081
  %v4083 = vpop.f32.mrf.mxu0
  %v4084 = vadd.f32 %v4041, %v4083
  %v4085 = vand.u32 %v3619, 4294901760
  %v4086 = vsub.f32 %v3619, %v4085
  %v4087 = vand.u32 %v4086, 4294901760
  %4088 = vmatmul.f32.gmra.mxu0 %v4087
  %v4089 = vpop.f32.mrf.mxu0
  %v4090 = vadd.f32 %v4046, %v4089
  %v4091 = vand.u32 %v3622, 4294901760
  %v4092 = vsub.f32 %v3622, %v4091
  %v4093 = vand.u32 %v4092, 4294901760
  %4094 = vmatmul.f32.gmra.mxu0 %v4093
  %v4095 = vpop.f32.mrf.mxu0
  %v4096 = vadd.f32 %v4051, %v4095
  %4097 = vdwg.mxu0
  %4098 = vmatpush.msra.mxu0 0.0
  %4099 = vmatpush.msra.mxu0 0.0
  %4100 = vmatpush.msra.mxu0 0.0
  %4101 = vmatpush.msra.mxu0 0.0
  %4102 = vmatpush.msra.mxu0 0.0
  %4103 = vmatpush.msra.mxu0 0.0
  %4104 = vmatpush.msra.mxu0 0.0
  %4105 = vmatpush.msra.mxu0 0.0
  %4106 = vmatpush.msra.mxu0 0.0
  %4107 = vmatpush.msra.mxu0 0.0
  %4108 = vmatpush.msra.mxu0 0.0
  %4109 = vmatpush.msra.mxu0 0.0
  %v4110 = vand.u32 %v3577, 4294901760
  %v4111 = vsub.f32 %v3577, %v4110
  %v4112 = vand.u32 %v4111, 4294901760
  %4113 = vmatpush.msra.mxu0 %v4112
  %v4114 = vand.u32 %v3570, 4294901760
  %v4115 = vsub.f32 %v3570, %v4114
  %v4116 = vand.u32 %v4115, 4294901760
  %4117 = vmatpush.msra.mxu0 %v4116
  %v4118 = vand.u32 %v3563, 4294901760
  %v4119 = vsub.f32 %v3563, %v4118
  %v4120 = vand.u32 %v4119, 4294901760
  %4121 = vmatpush.msra.mxu0 %v4120
  %v4122 = vand.u32 %v3556, 4294901760
  %v4123 = vsub.f32 %v3556, %v4122
  %v4124 = vand.u32 %v4123, 4294901760
  %4125 = vmatpush.msra.mxu0 %v4124
  %v4126 = vand.u32 %v3613, 4294901760
  %4127 = vmatmul.f32.gmra.mxu0 %v4126
  %v4128 = vpop.f32.mrf.mxu0
  %v4129 = vadd.f32 %v4078, %v4128
  %v4130 = vand.u32 %v3616, 4294901760
  %4131 = vmatmul.f32.gmra.mxu0 %v4130
  %v4132 = vpop.f32.mrf.mxu0
  %v4133 = vadd.f32 %v4084, %v4132
  %v4134 = vand.u32 %v3619, 4294901760
  %4135 = vmatmul.f32.gmra.mxu0 %v4134
  %v4136 = vpop.f32.mrf.mxu0
  %v4137 = vadd.f32 %v4090, %v4136
  %v4138 = vand.u32 %v3622, 4294901760
  %4139 = vmatmul.f32.gmra.mxu0 %v4138
  %v4140 = vpop.f32.mrf.mxu0
  %v4141 = vadd.f32 %v4096, %v4140
  %4142 = vdwg.mxu0
  %4143 = vmatpush.msra.mxu0 0.0
  %4144 = vmatpush.msra.mxu0 0.0
  %4145 = vmatpush.msra.mxu0 0.0
  %4146 = vmatpush.msra.mxu0 0.0
  %4147 = vmatpush.msra.mxu0 0.0
  %4148 = vmatpush.msra.mxu0 0.0
  %4149 = vmatpush.msra.mxu0 0.0
  %4150 = vmatpush.msra.mxu0 0.0
  %4151 = vmatpush.msra.mxu0 0.0
  %4152 = vmatpush.msra.mxu0 0.0
  %4153 = vmatpush.msra.mxu0 0.0
  %4154 = vmatpush.msra.mxu0 0.0
  %v4155 = vand.u32 %v3577, 4294901760
  %4156 = vmatpush.msra.mxu0 %v4155
  %v4157 = vand.u32 %v3570, 4294901760
  %4158 = vmatpush.msra.mxu0 %v4157
  %v4159 = vand.u32 %v3563, 4294901760
  %4160 = vmatpush.msra.mxu0 %v4159
  %v4161 = vand.u32 %v3556, 4294901760
  %4162 = vmatpush.msra.mxu0 %v4161
  %v4163 = vand.u32 %v3613, 4294901760
  %4164 = vmatmul.f32.gmra.mxu0 %v4163
  %v4165 = vpop.f32.mrf.mxu0
  %v4166 = vadd.f32 %v4129, %v4165
  %v4167 = vand.u32 %v3616, 4294901760
  %4168 = vmatmul.f32.gmra.mxu0 %v4167
  %v4169 = vpop.f32.mrf.mxu0
  %v4170 = vadd.f32 %v4133, %v4169
  %v4171 = vand.u32 %v3619, 4294901760
  %4172 = vmatmul.f32.gmra.mxu0 %v4171
  %v4173 = vpop.f32.mrf.mxu0
  %v4174 = vadd.f32 %v4137, %v4173
  %v4175 = vand.u32 %v3622, 4294901760
  %4176 = vmatmul.f32.gmra.mxu0 %v4175
  %v4177 = vpop.f32.mrf.mxu0
  %v4178 = vadd.f32 %v4141, %v4177
  %4179 = vdwg.mxu0
  %4180 = vmatpush.msra.mxu0 0.0
  %4181 = vmatpush.msra.mxu0 0.0
  %4182 = vmatpush.msra.mxu0 0.0
  %4183 = vmatpush.msra.mxu0 0.0
  %4184 = vmatpush.msra.mxu0 0.0
  %4185 = vmatpush.msra.mxu0 0.0
  %4186 = vmatpush.msra.mxu0 0.0
  %4187 = vmatpush.msra.mxu0 0.0
  %4188 = vmatpush.msra.mxu0 0.0
  %4189 = vmatpush.msra.mxu0 0.0
  %4190 = vmatpush.msra.mxu0 0.0
  %4191 = vmatpush.msra.mxu0 0.0
  %v4192 = vand.u32 %v3578, 4294901760
  %4193 = vmatpush.msra.mxu0 %v4192
  %v4194 = vand.u32 %v3571, 4294901760
  %4195 = vmatpush.msra.mxu0 %v4194
  %v4196 = vand.u32 %v3564, 4294901760
  %4197 = vmatpush.msra.mxu0 %v4196
  %v4198 = vand.u32 %v3557, 4294901760
  %4199 = vmatpush.msra.mxu0 %v4198
  %v4200 = vand.u32 %v3613, 4294901760
  %v4201 = vsub.f32 %v3613, %v4200
  %v4202 = vand.u32 %v4201, 4294901760
  %v4203 = vsub.f32 %v4201, %v4202
  %v4204 = vand.u32 %v4203, 4294901760
  %4205 = vmatmul.f32.gmra.mxu0 %v4204
  %v4206 = vpop.f32.mrf.mxu0
  %v4207 = vadd.f32 %v3594, %v4206
  %v4208 = vand.u32 %v3616, 4294901760
  %v4209 = vsub.f32 %v3616, %v4208
  %v4210 = vand.u32 %v4209, 4294901760
  %v4211 = vsub.f32 %v4209, %v4210
  %v4212 = vand.u32 %v4211, 4294901760
  %4213 = vmatmul.f32.gmra.mxu0 %v4212
  %v4214 = vpop.f32.mrf.mxu0
  %v4215 = vadd.f32 %v3599, %v4214
  %v4216 = vand.u32 %v3619, 4294901760
  %v4217 = vsub.f32 %v3619, %v4216
  %v4218 = vand.u32 %v4217, 4294901760
  %v4219 = vsub.f32 %v4217, %v4218
  %v4220 = vand.u32 %v4219, 4294901760
  %4221 = vmatmul.f32.gmra.mxu0 %v4220
  %v4222 = vpop.f32.mrf.mxu0
  %v4223 = vadd.f32 %v3604, %v4222
  %v4224 = vand.u32 %v3622, 4294901760
  %v4225 = vsub.f32 %v3622, %v4224
  %v4226 = vand.u32 %v4225, 4294901760
  %v4227 = vsub.f32 %v4225, %v4226
  %v4228 = vand.u32 %v4227, 4294901760
  %4229 = vmatmul.f32.gmra.mxu0 %v4228
  %v4230 = vpop.f32.mrf.mxu0
  %v4231 = vadd.f32 %v3609, %v4230
  %4232 = vdwg.mxu0
  %4233 = vmatpush.msra.mxu0 0.0
  %4234 = vmatpush.msra.mxu0 0.0
  %4235 = vmatpush.msra.mxu0 0.0
  %4236 = vmatpush.msra.mxu0 0.0
  %4237 = vmatpush.msra.mxu0 0.0
  %4238 = vmatpush.msra.mxu0 0.0
  %4239 = vmatpush.msra.mxu0 0.0
  %4240 = vmatpush.msra.mxu0 0.0
  %4241 = vmatpush.msra.mxu0 0.0
  %4242 = vmatpush.msra.mxu0 0.0
  %4243 = vmatpush.msra.mxu0 0.0
  %4244 = vmatpush.msra.mxu0 0.0
  %v4245 = vand.u32 %v3578, 4294901760
  %v4246 = vsub.f32 %v3578, %v4245
  %v4247 = vand.u32 %v4246, 4294901760
  %v4248 = vsub.f32 %v4246, %v4247
  %v4249 = vand.u32 %v4248, 4294901760
  %4250 = vmatpush.msra.mxu0 %v4249
  %v4251 = vand.u32 %v3571, 4294901760
  %v4252 = vsub.f32 %v3571, %v4251
  %v4253 = vand.u32 %v4252, 4294901760
  %v4254 = vsub.f32 %v4252, %v4253
  %v4255 = vand.u32 %v4254, 4294901760
  %4256 = vmatpush.msra.mxu0 %v4255
  %v4257 = vand.u32 %v3564, 4294901760
  %v4258 = vsub.f32 %v3564, %v4257
  %v4259 = vand.u32 %v4258, 4294901760
  %v4260 = vsub.f32 %v4258, %v4259
  %v4261 = vand.u32 %v4260, 4294901760
  %4262 = vmatpush.msra.mxu0 %v4261
  %v4263 = vand.u32 %v3557, 4294901760
  %v4264 = vsub.f32 %v3557, %v4263
  %v4265 = vand.u32 %v4264, 4294901760
  %v4266 = vsub.f32 %v4264, %v4265
  %v4267 = vand.u32 %v4266, 4294901760
  %4268 = vmatpush.msra.mxu0 %v4267
  %v4269 = vand.u32 %v3613, 4294901760
  %4270 = vmatmul.f32.gmra.mxu0 %v4269
  %v4271 = vpop.f32.mrf.mxu0
  %v4272 = vadd.f32 %v4207, %v4271
  %v4273 = vand.u32 %v3616, 4294901760
  %4274 = vmatmul.f32.gmra.mxu0 %v4273
  %v4275 = vpop.f32.mrf.mxu0
  %v4276 = vadd.f32 %v4215, %v4275
  %v4277 = vand.u32 %v3619, 4294901760
  %4278 = vmatmul.f32.gmra.mxu0 %v4277
  %v4279 = vpop.f32.mrf.mxu0
  %v4280 = vadd.f32 %v4223, %v4279
  %v4281 = vand.u32 %v3622, 4294901760
  %4282 = vmatmul.f32.gmra.mxu0 %v4281
  %v4283 = vpop.f32.mrf.mxu0
  %v4284 = vadd.f32 %v4231, %v4283
  %4285 = vdwg.mxu0
  %4286 = vmatpush.msra.mxu0 0.0
  %4287 = vmatpush.msra.mxu0 0.0
  %4288 = vmatpush.msra.mxu0 0.0
  %4289 = vmatpush.msra.mxu0 0.0
  %4290 = vmatpush.msra.mxu0 0.0
  %4291 = vmatpush.msra.mxu0 0.0
  %4292 = vmatpush.msra.mxu0 0.0
  %4293 = vmatpush.msra.mxu0 0.0
  %4294 = vmatpush.msra.mxu0 0.0
  %4295 = vmatpush.msra.mxu0 0.0
  %4296 = vmatpush.msra.mxu0 0.0
  %4297 = vmatpush.msra.mxu0 0.0
  %v4298 = vand.u32 %v3578, 4294901760
  %v4299 = vsub.f32 %v3578, %v4298
  %4300 = vmatpush.msra.mxu0 %v4299
  %v4301 = vand.u32 %v3571, 4294901760
  %v4302 = vsub.f32 %v3571, %v4301
  %4303 = vmatpush.msra.mxu0 %v4302
  %v4304 = vand.u32 %v3564, 4294901760
  %v4305 = vsub.f32 %v3564, %v4304
  %4306 = vmatpush.msra.mxu0 %v4305
  %v4307 = vand.u32 %v3557, 4294901760
  %v4308 = vsub.f32 %v3557, %v4307
  %4309 = vmatpush.msra.mxu0 %v4308
  %v4310 = vand.u32 %v3613, 4294901760
  %v4311 = vsub.f32 %v3613, %v4310
  %4312 = vmatmul.f32.gmra.mxu0 %v4311
  %v4313 = vpop.f32.mrf.mxu0
  %v4314 = vadd.f32 %v4272, %v4313
  %v4315 = vand.u32 %v3616, 4294901760
  %v4316 = vsub.f32 %v3616, %v4315
  %4317 = vmatmul.f32.gmra.mxu0 %v4316
  %v4318 = vpop.f32.mrf.mxu0
  %v4319 = vadd.f32 %v4276, %v4318
  %v4320 = vand.u32 %v3619, 4294901760
  %v4321 = vsub.f32 %v3619, %v4320
  %4322 = vmatmul.f32.gmra.mxu0 %v4321
  %v4323 = vpop.f32.mrf.mxu0
  %v4324 = vadd.f32 %v4280, %v4323
  %v4325 = vand.u32 %v3622, 4294901760
  %v4326 = vsub.f32 %v3622, %v4325
  %4327 = vmatmul.f32.gmra.mxu0 %v4326
  %v4328 = vpop.f32.mrf.mxu0
  %v4329 = vadd.f32 %v4284, %v4328
  %4330 = vdwg.mxu0
  %4331 = vmatpush.msra.mxu0 0.0
  %4332 = vmatpush.msra.mxu0 0.0
  %4333 = vmatpush.msra.mxu0 0.0
  %4334 = vmatpush.msra.mxu0 0.0
  %4335 = vmatpush.msra.mxu0 0.0
  %4336 = vmatpush.msra.mxu0 0.0
  %4337 = vmatpush.msra.mxu0 0.0
  %4338 = vmatpush.msra.mxu0 0.0
  %4339 = vmatpush.msra.mxu0 0.0
  %4340 = vmatpush.msra.mxu0 0.0
  %4341 = vmatpush.msra.mxu0 0.0
  %4342 = vmatpush.msra.mxu0 0.0
  %v4343 = vand.u32 %v3578, 4294901760
  %4344 = vmatpush.msra.mxu0 %v4343
  %v4345 = vand.u32 %v3571, 4294901760
  %4346 = vmatpush.msra.mxu0 %v4345
  %v4347 = vand.u32 %v3564, 4294901760
  %4348 = vmatpush.msra.mxu0 %v4347
  %v4349 = vand.u32 %v3557, 4294901760
  %4350 = vmatpush.msra.mxu0 %v4349
  %v4351 = vand.u32 %v3613, 4294901760
  %v4352 = vsub.f32 %v3613, %v4351
  %v4353 = vand.u32 %v4352, 4294901760
  %4354 = vmatmul.f32.gmra.mxu0 %v4353
  %v4355 = vpop.f32.mrf.mxu0
  %v4356 = vadd.f32 %v4314, %v4355
  %v4357 = vand.u32 %v3616, 4294901760
  %v4358 = vsub.f32 %v3616, %v4357
  %v4359 = vand.u32 %v4358, 4294901760
  %4360 = vmatmul.f32.gmra.mxu0 %v4359
  %v4361 = vpop.f32.mrf.mxu0
  %v4362 = vadd.f32 %v4319, %v4361
  %v4363 = vand.u32 %v3619, 4294901760
  %v4364 = vsub.f32 %v3619, %v4363
  %v4365 = vand.u32 %v4364, 4294901760
  %4366 = vmatmul.f32.gmra.mxu0 %v4365
  %v4367 = vpop.f32.mrf.mxu0
  %v4368 = vadd.f32 %v4324, %v4367
  %v4369 = vand.u32 %v3622, 4294901760
  %v4370 = vsub.f32 %v3622, %v4369
  %v4371 = vand.u32 %v4370, 4294901760
  %4372 = vmatmul.f32.gmra.mxu0 %v4371
  %v4373 = vpop.f32.mrf.mxu0
  %v4374 = vadd.f32 %v4329, %v4373
  %4375 = vdwg.mxu0
  %4376 = vmatpush.msra.mxu0 0.0
  %4377 = vmatpush.msra.mxu0 0.0
  %4378 = vmatpush.msra.mxu0 0.0
  %4379 = vmatpush.msra.mxu0 0.0
  %4380 = vmatpush.msra.mxu0 0.0
  %4381 = vmatpush.msra.mxu0 0.0
  %4382 = vmatpush.msra.mxu0 0.0
  %4383 = vmatpush.msra.mxu0 0.0
  %4384 = vmatpush.msra.mxu0 0.0
  %4385 = vmatpush.msra.mxu0 0.0
  %4386 = vmatpush.msra.mxu0 0.0
  %4387 = vmatpush.msra.mxu0 0.0
  %v4388 = vand.u32 %v3578, 4294901760
  %v4389 = vsub.f32 %v3578, %v4388
  %v4390 = vand.u32 %v4389, 4294901760
  %4391 = vmatpush.msra.mxu0 %v4390
  %v4392 = vand.u32 %v3571, 4294901760
  %v4393 = vsub.f32 %v3571, %v4392
  %v4394 = vand.u32 %v4393, 4294901760
  %4395 = vmatpush.msra.mxu0 %v4394
  %v4396 = vand.u32 %v3564, 4294901760
  %v4397 = vsub.f32 %v3564, %v4396
  %v4398 = vand.u32 %v4397, 4294901760
  %4399 = vmatpush.msra.mxu0 %v4398
  %v4400 = vand.u32 %v3557, 4294901760
  %v4401 = vsub.f32 %v3557, %v4400
  %v4402 = vand.u32 %v4401, 4294901760
  %4403 = vmatpush.msra.mxu0 %v4402
  %v4404 = vand.u32 %v3613, 4294901760
  %4405 = vmatmul.f32.gmra.mxu0 %v4404
  %v4406 = vpop.f32.mrf.mxu0
  %v4407 = vadd.f32 %v4356, %v4406
  %v4408 = vand.u32 %v3616, 4294901760
  %4409 = vmatmul.f32.gmra.mxu0 %v4408
  %v4410 = vpop.f32.mrf.mxu0
  %v4411 = vadd.f32 %v4362, %v4410
  %v4412 = vand.u32 %v3619, 4294901760
  %4413 = vmatmul.f32.gmra.mxu0 %v4412
  %v4414 = vpop.f32.mrf.mxu0
  %v4415 = vadd.f32 %v4368, %v4414
  %v4416 = vand.u32 %v3622, 4294901760
  %4417 = vmatmul.f32.gmra.mxu0 %v4416
  %v4418 = vpop.f32.mrf.mxu0
  %v4419 = vadd.f32 %v4374, %v4418
  %4420 = vdwg.mxu0
  %4421 = vmatpush.msra.mxu0 0.0
  %4422 = vmatpush.msra.mxu0 0.0
  %4423 = vmatpush.msra.mxu0 0.0
  %4424 = vmatpush.msra.mxu0 0.0
  %4425 = vmatpush.msra.mxu0 0.0
  %4426 = vmatpush.msra.mxu0 0.0
  %4427 = vmatpush.msra.mxu0 0.0
  %4428 = vmatpush.msra.mxu0 0.0
  %4429 = vmatpush.msra.mxu0 0.0
  %4430 = vmatpush.msra.mxu0 0.0
  %4431 = vmatpush.msra.mxu0 0.0
  %4432 = vmatpush.msra.mxu0 0.0
  %v4433 = vand.u32 %v3578, 4294901760
  %4434 = vmatpush.msra.mxu0 %v4433
  %v4435 = vand.u32 %v3571, 4294901760
  %4436 = vmatpush.msra.mxu0 %v4435
  %v4437 = vand.u32 %v3564, 4294901760
  %4438 = vmatpush.msra.mxu0 %v4437
  %v4439 = vand.u32 %v3557, 4294901760
  %4440 = vmatpush.msra.mxu0 %v4439
  %v4441 = vand.u32 %v3613, 4294901760
  %4442 = vmatmul.f32.gmra.mxu0 %v4441
  %v4443 = vpop.f32.mrf.mxu0
  %v4444 = vadd.f32 %v4407, %v4443
  %v4445 = vand.u32 %v3616, 4294901760
  %4446 = vmatmul.f32.gmra.mxu0 %v4445
  %v4447 = vpop.f32.mrf.mxu0
  %v4448 = vadd.f32 %v4411, %v4447
  %v4449 = vand.u32 %v3619, 4294901760
  %4450 = vmatmul.f32.gmra.mxu0 %v4449
  %v4451 = vpop.f32.mrf.mxu0
  %v4452 = vadd.f32 %v4415, %v4451
  %v4453 = vand.u32 %v3622, 4294901760
  %4454 = vmatmul.f32.gmra.mxu0 %v4453
  %v4455 = vpop.f32.mrf.mxu0
  %v4456 = vadd.f32 %v4419, %v4455
  %4457 = vdwg.mxu0
  %4458 = vmatpush.msra.mxu0 0.0
  %4459 = vmatpush.msra.mxu0 0.0
  %4460 = vmatpush.msra.mxu0 0.0
  %4461 = vmatpush.msra.mxu0 0.0
  %4462 = vmatpush.msra.mxu0 0.0
  %4463 = vmatpush.msra.mxu0 0.0
  %4464 = vmatpush.msra.mxu0 0.0
  %4465 = vmatpush.msra.mxu0 0.0
  %4466 = vmatpush.msra.mxu0 0.0
  %4467 = vmatpush.msra.mxu0 0.0
  %4468 = vmatpush.msra.mxu0 0.0
  %4469 = vmatpush.msra.mxu0 0.0
  %v4470 = vand.u32 %v3579, 4294901760
  %4471 = vmatpush.msra.mxu0 %v4470
  %v4472 = vand.u32 %v3572, 4294901760
  %4473 = vmatpush.msra.mxu0 %v4472
  %v4474 = vand.u32 %v3565, 4294901760
  %4475 = vmatpush.msra.mxu0 %v4474
  %v4476 = vand.u32 %v3558, 4294901760
  %4477 = vmatpush.msra.mxu0 %v4476
  %v4478 = vand.u32 %v3613, 4294901760
  %v4479 = vsub.f32 %v3613, %v4478
  %v4480 = vand.u32 %v4479, 4294901760
  %v4481 = vsub.f32 %v4479, %v4480
  %v4482 = vand.u32 %v4481, 4294901760
  %4483 = vmatmul.f32.gmra.mxu0 %v4482
  %v4484 = vpop.f32.mrf.mxu0
  %v4485 = vadd.f32 %v3594, %v4484
  %v4486 = vand.u32 %v3616, 4294901760
  %v4487 = vsub.f32 %v3616, %v4486
  %v4488 = vand.u32 %v4487, 4294901760
  %v4489 = vsub.f32 %v4487, %v4488
  %v4490 = vand.u32 %v4489, 4294901760
  %4491 = vmatmul.f32.gmra.mxu0 %v4490
  %v4492 = vpop.f32.mrf.mxu0
  %v4493 = vadd.f32 %v3599, %v4492
  %v4494 = vand.u32 %v3619, 4294901760
  %v4495 = vsub.f32 %v3619, %v4494
  %v4496 = vand.u32 %v4495, 4294901760
  %v4497 = vsub.f32 %v4495, %v4496
  %v4498 = vand.u32 %v4497, 4294901760
  %4499 = vmatmul.f32.gmra.mxu0 %v4498
  %v4500 = vpop.f32.mrf.mxu0
  %v4501 = vadd.f32 %v3604, %v4500
  %v4502 = vand.u32 %v3622, 4294901760
  %v4503 = vsub.f32 %v3622, %v4502
  %v4504 = vand.u32 %v4503, 4294901760
  %v4505 = vsub.f32 %v4503, %v4504
  %v4506 = vand.u32 %v4505, 4294901760
  %4507 = vmatmul.f32.gmra.mxu0 %v4506
  %v4508 = vpop.f32.mrf.mxu0
  %v4509 = vadd.f32 %v3609, %v4508
  %4510 = vdwg.mxu0
  %4511 = vmatpush.msra.mxu0 0.0
  %4512 = vmatpush.msra.mxu0 0.0
  %4513 = vmatpush.msra.mxu0 0.0
  %4514 = vmatpush.msra.mxu0 0.0
  %4515 = vmatpush.msra.mxu0 0.0
  %4516 = vmatpush.msra.mxu0 0.0
  %4517 = vmatpush.msra.mxu0 0.0
  %4518 = vmatpush.msra.mxu0 0.0
  %4519 = vmatpush.msra.mxu0 0.0
  %4520 = vmatpush.msra.mxu0 0.0
  %4521 = vmatpush.msra.mxu0 0.0
  %4522 = vmatpush.msra.mxu0 0.0
  %v4523 = vand.u32 %v3579, 4294901760
  %v4524 = vsub.f32 %v3579, %v4523
  %v4525 = vand.u32 %v4524, 4294901760
  %v4526 = vsub.f32 %v4524, %v4525
  %v4527 = vand.u32 %v4526, 4294901760
  %4528 = vmatpush.msra.mxu0 %v4527
  %v4529 = vand.u32 %v3572, 4294901760
  %v4530 = vsub.f32 %v3572, %v4529
  %v4531 = vand.u32 %v4530, 4294901760
  %v4532 = vsub.f32 %v4530, %v4531
  %v4533 = vand.u32 %v4532, 4294901760
  %4534 = vmatpush.msra.mxu0 %v4533
  %v4535 = vand.u32 %v3565, 4294901760
  %v4536 = vsub.f32 %v3565, %v4535
  %v4537 = vand.u32 %v4536, 4294901760
  %v4538 = vsub.f32 %v4536, %v4537
  %v4539 = vand.u32 %v4538, 4294901760
  %4540 = vmatpush.msra.mxu0 %v4539
  %v4541 = vand.u32 %v3558, 4294901760
  %v4542 = vsub.f32 %v3558, %v4541
  %v4543 = vand.u32 %v4542, 4294901760
  %v4544 = vsub.f32 %v4542, %v4543
  %v4545 = vand.u32 %v4544, 4294901760
  %4546 = vmatpush.msra.mxu0 %v4545
  %v4547 = vand.u32 %v3613, 4294901760
  %4548 = vmatmul.f32.gmra.mxu0 %v4547
  %v4549 = vpop.f32.mrf.mxu0
  %v4550 = vadd.f32 %v4485, %v4549
  %v4551 = vand.u32 %v3616, 4294901760
  %4552 = vmatmul.f32.gmra.mxu0 %v4551
  %v4553 = vpop.f32.mrf.mxu0
  %v4554 = vadd.f32 %v4493, %v4553
  %v4555 = vand.u32 %v3619, 4294901760
  %4556 = vmatmul.f32.gmra.mxu0 %v4555
  %v4557 = vpop.f32.mrf.mxu0
  %v4558 = vadd.f32 %v4501, %v4557
  %v4559 = vand.u32 %v3622, 4294901760
  %4560 = vmatmul.f32.gmra.mxu0 %v4559
  %v4561 = vpop.f32.mrf.mxu0
  %v4562 = vadd.f32 %v4509, %v4561
  %4563 = vdwg.mxu0
  %4564 = vmatpush.msra.mxu0 0.0
  %4565 = vmatpush.msra.mxu0 0.0
  %4566 = vmatpush.msra.mxu0 0.0
  %4567 = vmatpush.msra.mxu0 0.0
  %4568 = vmatpush.msra.mxu0 0.0
  %4569 = vmatpush.msra.mxu0 0.0
  %4570 = vmatpush.msra.mxu0 0.0
  %4571 = vmatpush.msra.mxu0 0.0
  %4572 = vmatpush.msra.mxu0 0.0
  %4573 = vmatpush.msra.mxu0 0.0
  %4574 = vmatpush.msra.mxu0 0.0
  %4575 = vmatpush.msra.mxu0 0.0
  %v4576 = vand.u32 %v3579, 4294901760
  %v4577 = vsub.f32 %v3579, %v4576
  %4578 = vmatpush.msra.mxu0 %v4577
  %v4579 = vand.u32 %v3572, 4294901760
  %v4580 = vsub.f32 %v3572, %v4579
  %4581 = vmatpush.msra.mxu0 %v4580
  %v4582 = vand.u32 %v3565, 4294901760
  %v4583 = vsub.f32 %v3565, %v4582
  %4584 = vmatpush.msra.mxu0 %v4583
  %v4585 = vand.u32 %v3558, 4294901760
  %v4586 = vsub.f32 %v3558, %v4585
  %4587 = vmatpush.msra.mxu0 %v4586
  %v4588 = vand.u32 %v3613, 4294901760
  %v4589 = vsub.f32 %v3613, %v4588
  %4590 = vmatmul.f32.gmra.mxu0 %v4589
  %v4591 = vpop.f32.mrf.mxu0
  %v4592 = vadd.f32 %v4550, %v4591
  %v4593 = vand.u32 %v3616, 4294901760
  %v4594 = vsub.f32 %v3616, %v4593
  %4595 = vmatmul.f32.gmra.mxu0 %v4594
  %v4596 = vpop.f32.mrf.mxu0
  %v4597 = vadd.f32 %v4554, %v4596
  %v4598 = vand.u32 %v3619, 4294901760
  %v4599 = vsub.f32 %v3619, %v4598
  %4600 = vmatmul.f32.gmra.mxu0 %v4599
  %v4601 = vpop.f32.mrf.mxu0
  %v4602 = vadd.f32 %v4558, %v4601
  %v4603 = vand.u32 %v3622, 4294901760
  %v4604 = vsub.f32 %v3622, %v4603
  %4605 = vmatmul.f32.gmra.mxu0 %v4604
  %v4606 = vpop.f32.mrf.mxu0
  %v4607 = vadd.f32 %v4562, %v4606
  %4608 = vdwg.mxu0
  %4609 = vmatpush.msra.mxu0 0.0
  %4610 = vmatpush.msra.mxu0 0.0
  %4611 = vmatpush.msra.mxu0 0.0
  %4612 = vmatpush.msra.mxu0 0.0
  %4613 = vmatpush.msra.mxu0 0.0
  %4614 = vmatpush.msra.mxu0 0.0
  %4615 = vmatpush.msra.mxu0 0.0
  %4616 = vmatpush.msra.mxu0 0.0
  %4617 = vmatpush.msra.mxu0 0.0
  %4618 = vmatpush.msra.mxu0 0.0
  %4619 = vmatpush.msra.mxu0 0.0
  %4620 = vmatpush.msra.mxu0 0.0
  %v4621 = vand.u32 %v3579, 4294901760
  %4622 = vmatpush.msra.mxu0 %v4621
  %v4623 = vand.u32 %v3572, 4294901760
  %4624 = vmatpush.msra.mxu0 %v4623
  %v4625 = vand.u32 %v3565, 4294901760
  %4626 = vmatpush.msra.mxu0 %v4625
  %v4627 = vand.u32 %v3558, 4294901760
  %4628 = vmatpush.msra.mxu0 %v4627
  %v4629 = vand.u32 %v3613, 4294901760
  %v4630 = vsub.f32 %v3613, %v4629
  %v4631 = vand.u32 %v4630, 4294901760
  %4632 = vmatmul.f32.gmra.mxu0 %v4631
  %v4633 = vpop.f32.mrf.mxu0
  %v4634 = vadd.f32 %v4592, %v4633
  %v4635 = vand.u32 %v3616, 4294901760
  %v4636 = vsub.f32 %v3616, %v4635
  %v4637 = vand.u32 %v4636, 4294901760
  %4638 = vmatmul.f32.gmra.mxu0 %v4637
  %v4639 = vpop.f32.mrf.mxu0
  %v4640 = vadd.f32 %v4597, %v4639
  %v4641 = vand.u32 %v3619, 4294901760
  %v4642 = vsub.f32 %v3619, %v4641
  %v4643 = vand.u32 %v4642, 4294901760
  %4644 = vmatmul.f32.gmra.mxu0 %v4643
  %v4645 = vpop.f32.mrf.mxu0
  %v4646 = vadd.f32 %v4602, %v4645
  %v4647 = vand.u32 %v3622, 4294901760
  %v4648 = vsub.f32 %v3622, %v4647
  %v4649 = vand.u32 %v4648, 4294901760
  %4650 = vmatmul.f32.gmra.mxu0 %v4649
  %v4651 = vpop.f32.mrf.mxu0
  %v4652 = vadd.f32 %v4607, %v4651
  %4653 = vdwg.mxu0
  %4654 = vmatpush.msra.mxu0 0.0
  %4655 = vmatpush.msra.mxu0 0.0
  %4656 = vmatpush.msra.mxu0 0.0
  %4657 = vmatpush.msra.mxu0 0.0
  %4658 = vmatpush.msra.mxu0 0.0
  %4659 = vmatpush.msra.mxu0 0.0
  %4660 = vmatpush.msra.mxu0 0.0
  %4661 = vmatpush.msra.mxu0 0.0
  %4662 = vmatpush.msra.mxu0 0.0
  %4663 = vmatpush.msra.mxu0 0.0
  %4664 = vmatpush.msra.mxu0 0.0
  %4665 = vmatpush.msra.mxu0 0.0
  %v4666 = vand.u32 %v3579, 4294901760
  %v4667 = vsub.f32 %v3579, %v4666
  %v4668 = vand.u32 %v4667, 4294901760
  %4669 = vmatpush.msra.mxu0 %v4668
  %v4670 = vand.u32 %v3572, 4294901760
  %v4671 = vsub.f32 %v3572, %v4670
  %v4672 = vand.u32 %v4671, 4294901760
  %4673 = vmatpush.msra.mxu0 %v4672
  %v4674 = vand.u32 %v3565, 4294901760
  %v4675 = vsub.f32 %v3565, %v4674
  %v4676 = vand.u32 %v4675, 4294901760
  %4677 = vmatpush.msra.mxu0 %v4676
  %v4678 = vand.u32 %v3558, 4294901760
  %v4679 = vsub.f32 %v3558, %v4678
  %v4680 = vand.u32 %v4679, 4294901760
  %4681 = vmatpush.msra.mxu0 %v4680
  %v4682 = vand.u32 %v3613, 4294901760
  %4683 = vmatmul.f32.gmra.mxu0 %v4682
  %v4684 = vpop.f32.mrf.mxu0
  %v4685 = vadd.f32 %v4634, %v4684
  %v4686 = vand.u32 %v3616, 4294901760
  %4687 = vmatmul.f32.gmra.mxu0 %v4686
  %v4688 = vpop.f32.mrf.mxu0
  %v4689 = vadd.f32 %v4640, %v4688
  %v4690 = vand.u32 %v3619, 4294901760
  %4691 = vmatmul.f32.gmra.mxu0 %v4690
  %v4692 = vpop.f32.mrf.mxu0
  %v4693 = vadd.f32 %v4646, %v4692
  %v4694 = vand.u32 %v3622, 4294901760
  %4695 = vmatmul.f32.gmra.mxu0 %v4694
  %v4696 = vpop.f32.mrf.mxu0
  %v4697 = vadd.f32 %v4652, %v4696
  %4698 = vdwg.mxu0
  %4699 = vmatpush.msra.mxu0 0.0
  %4700 = vmatpush.msra.mxu0 0.0
  %4701 = vmatpush.msra.mxu0 0.0
  %4702 = vmatpush.msra.mxu0 0.0
  %4703 = vmatpush.msra.mxu0 0.0
  %4704 = vmatpush.msra.mxu0 0.0
  %4705 = vmatpush.msra.mxu0 0.0
  %4706 = vmatpush.msra.mxu0 0.0
  %4707 = vmatpush.msra.mxu0 0.0
  %4708 = vmatpush.msra.mxu0 0.0
  %4709 = vmatpush.msra.mxu0 0.0
  %4710 = vmatpush.msra.mxu0 0.0
  %v4711 = vand.u32 %v3579, 4294901760
  %4712 = vmatpush.msra.mxu0 %v4711
  %v4713 = vand.u32 %v3572, 4294901760
  %4714 = vmatpush.msra.mxu0 %v4713
  %v4715 = vand.u32 %v3565, 4294901760
  %4716 = vmatpush.msra.mxu0 %v4715
  %v4717 = vand.u32 %v3558, 4294901760
  %4718 = vmatpush.msra.mxu0 %v4717
  %v4719 = vand.u32 %v3613, 4294901760
  %4720 = vmatmul.f32.gmra.mxu0 %v4719
  %v4721 = vpop.f32.mrf.mxu0
  %v4722 = vadd.f32 %v4685, %v4721
  %v4723 = vand.u32 %v3616, 4294901760
  %4724 = vmatmul.f32.gmra.mxu0 %v4723
  %v4725 = vpop.f32.mrf.mxu0
  %v4726 = vadd.f32 %v4689, %v4725
  %v4727 = vand.u32 %v3619, 4294901760
  %4728 = vmatmul.f32.gmra.mxu0 %v4727
  %v4729 = vpop.f32.mrf.mxu0
  %v4730 = vadd.f32 %v4693, %v4729
  %v4731 = vand.u32 %v3622, 4294901760
  %4732 = vmatmul.f32.gmra.mxu0 %v4731
  %v4733 = vpop.f32.mrf.mxu0
  %v4734 = vadd.f32 %v4697, %v4733
  %4735 = vdwg.mxu0
  %4736 = vmatpush.msra.mxu0 0.0
  %4737 = vmatpush.msra.mxu0 0.0
  %4738 = vmatpush.msra.mxu0 0.0
  %4739 = vmatpush.msra.mxu0 0.0
  %4740 = vmatpush.msra.mxu0 0.0
  %4741 = vmatpush.msra.mxu0 0.0
  %4742 = vmatpush.msra.mxu0 0.0
  %4743 = vmatpush.msra.mxu0 0.0
  %4744 = vmatpush.msra.mxu0 0.0
  %4745 = vmatpush.msra.mxu0 0.0
  %4746 = vmatpush.msra.mxu0 0.0
  %4747 = vmatpush.msra.mxu0 0.0
  %v4748 = vand.u32 %v3580, 4294901760
  %4749 = vmatpush.msra.mxu0 %v4748
  %v4750 = vand.u32 %v3573, 4294901760
  %4751 = vmatpush.msra.mxu0 %v4750
  %v4752 = vand.u32 %v3566, 4294901760
  %4753 = vmatpush.msra.mxu0 %v4752
  %v4754 = vand.u32 %v3559, 4294901760
  %4755 = vmatpush.msra.mxu0 %v4754
  %v4756 = vand.u32 %v3613, 4294901760
  %v4757 = vsub.f32 %v3613, %v4756
  %v4758 = vand.u32 %v4757, 4294901760
  %v4759 = vsub.f32 %v4757, %v4758
  %v4760 = vand.u32 %v4759, 4294901760
  %4761 = vmatmul.f32.gmra.mxu0 %v4760
  %v4762 = vpop.f32.mrf.mxu0
  %v4763 = vadd.f32 %v3594, %v4762
  %v4764 = vand.u32 %v3616, 4294901760
  %v4765 = vsub.f32 %v3616, %v4764
  %v4766 = vand.u32 %v4765, 4294901760
  %v4767 = vsub.f32 %v4765, %v4766
  %v4768 = vand.u32 %v4767, 4294901760
  %4769 = vmatmul.f32.gmra.mxu0 %v4768
  %v4770 = vpop.f32.mrf.mxu0
  %v4771 = vadd.f32 %v3599, %v4770
  %v4772 = vand.u32 %v3619, 4294901760
  %v4773 = vsub.f32 %v3619, %v4772
  %v4774 = vand.u32 %v4773, 4294901760
  %v4775 = vsub.f32 %v4773, %v4774
  %v4776 = vand.u32 %v4775, 4294901760
  %4777 = vmatmul.f32.gmra.mxu0 %v4776
  %v4778 = vpop.f32.mrf.mxu0
  %v4779 = vadd.f32 %v3604, %v4778
  %v4780 = vand.u32 %v3622, 4294901760
  %v4781 = vsub.f32 %v3622, %v4780
  %v4782 = vand.u32 %v4781, 4294901760
  %v4783 = vsub.f32 %v4781, %v4782
  %v4784 = vand.u32 %v4783, 4294901760
  %4785 = vmatmul.f32.gmra.mxu0 %v4784
  %v4786 = vpop.f32.mrf.mxu0
  %v4787 = vadd.f32 %v3609, %v4786
  %4788 = vdwg.mxu0
  %4789 = vmatpush.msra.mxu0 0.0
  %4790 = vmatpush.msra.mxu0 0.0
  %4791 = vmatpush.msra.mxu0 0.0
  %4792 = vmatpush.msra.mxu0 0.0
  %4793 = vmatpush.msra.mxu0 0.0
  %4794 = vmatpush.msra.mxu0 0.0
  %4795 = vmatpush.msra.mxu0 0.0
  %4796 = vmatpush.msra.mxu0 0.0
  %4797 = vmatpush.msra.mxu0 0.0
  %4798 = vmatpush.msra.mxu0 0.0
  %4799 = vmatpush.msra.mxu0 0.0
  %4800 = vmatpush.msra.mxu0 0.0
  %v4801 = vand.u32 %v3580, 4294901760
  %v4802 = vsub.f32 %v3580, %v4801
  %v4803 = vand.u32 %v4802, 4294901760
  %v4804 = vsub.f32 %v4802, %v4803
  %v4805 = vand.u32 %v4804, 4294901760
  %4806 = vmatpush.msra.mxu0 %v4805
  %v4807 = vand.u32 %v3573, 4294901760
  %v4808 = vsub.f32 %v3573, %v4807
  %v4809 = vand.u32 %v4808, 4294901760
  %v4810 = vsub.f32 %v4808, %v4809
  %v4811 = vand.u32 %v4810, 4294901760
  %4812 = vmatpush.msra.mxu0 %v4811
  %v4813 = vand.u32 %v3566, 4294901760
  %v4814 = vsub.f32 %v3566, %v4813
  %v4815 = vand.u32 %v4814, 4294901760
  %v4816 = vsub.f32 %v4814, %v4815
  %v4817 = vand.u32 %v4816, 4294901760
  %4818 = vmatpush.msra.mxu0 %v4817
  %v4819 = vand.u32 %v3559, 4294901760
  %v4820 = vsub.f32 %v3559, %v4819
  %v4821 = vand.u32 %v4820, 4294901760
  %v4822 = vsub.f32 %v4820, %v4821
  %v4823 = vand.u32 %v4822, 4294901760
  %4824 = vmatpush.msra.mxu0 %v4823
  %v4825 = vand.u32 %v3613, 4294901760
  %4826 = vmatmul.f32.gmra.mxu0 %v4825
  %v4827 = vpop.f32.mrf.mxu0
  %v4828 = vadd.f32 %v4763, %v4827
  %v4829 = vand.u32 %v3616, 4294901760
  %4830 = vmatmul.f32.gmra.mxu0 %v4829
  %v4831 = vpop.f32.mrf.mxu0
  %v4832 = vadd.f32 %v4771, %v4831
  %v4833 = vand.u32 %v3619, 4294901760
  %4834 = vmatmul.f32.gmra.mxu0 %v4833
  %v4835 = vpop.f32.mrf.mxu0
  %v4836 = vadd.f32 %v4779, %v4835
  %v4837 = vand.u32 %v3622, 4294901760
  %4838 = vmatmul.f32.gmra.mxu0 %v4837
  %v4839 = vpop.f32.mrf.mxu0
  %v4840 = vadd.f32 %v4787, %v4839
  %4841 = vdwg.mxu0
  %4842 = vmatpush.msra.mxu0 0.0
  %4843 = vmatpush.msra.mxu0 0.0
  %4844 = vmatpush.msra.mxu0 0.0
  %4845 = vmatpush.msra.mxu0 0.0
  %4846 = vmatpush.msra.mxu0 0.0
  %4847 = vmatpush.msra.mxu0 0.0
  %4848 = vmatpush.msra.mxu0 0.0
  %4849 = vmatpush.msra.mxu0 0.0
  %4850 = vmatpush.msra.mxu0 0.0
  %4851 = vmatpush.msra.mxu0 0.0
  %4852 = vmatpush.msra.mxu0 0.0
  %4853 = vmatpush.msra.mxu0 0.0
  %v4854 = vand.u32 %v3580, 4294901760
  %v4855 = vsub.f32 %v3580, %v4854
  %4856 = vmatpush.msra.mxu0 %v4855
  %v4857 = vand.u32 %v3573, 4294901760
  %v4858 = vsub.f32 %v3573, %v4857
  %4859 = vmatpush.msra.mxu0 %v4858
  %v4860 = vand.u32 %v3566, 4294901760
  %v4861 = vsub.f32 %v3566, %v4860
  %4862 = vmatpush.msra.mxu0 %v4861
  %v4863 = vand.u32 %v3559, 4294901760
  %v4864 = vsub.f32 %v3559, %v4863
  %4865 = vmatpush.msra.mxu0 %v4864
  %v4866 = vand.u32 %v3613, 4294901760
  %v4867 = vsub.f32 %v3613, %v4866
  %4868 = vmatmul.f32.gmra.mxu0 %v4867
  %v4869 = vpop.f32.mrf.mxu0
  %v4870 = vadd.f32 %v4828, %v4869
  %v4871 = vand.u32 %v3616, 4294901760
  %v4872 = vsub.f32 %v3616, %v4871
  %4873 = vmatmul.f32.gmra.mxu0 %v4872
  %v4874 = vpop.f32.mrf.mxu0
  %v4875 = vadd.f32 %v4832, %v4874
  %v4876 = vand.u32 %v3619, 4294901760
  %v4877 = vsub.f32 %v3619, %v4876
  %4878 = vmatmul.f32.gmra.mxu0 %v4877
  %v4879 = vpop.f32.mrf.mxu0
  %v4880 = vadd.f32 %v4836, %v4879
  %v4881 = vand.u32 %v3622, 4294901760
  %v4882 = vsub.f32 %v3622, %v4881
  %4883 = vmatmul.f32.gmra.mxu0 %v4882
  %v4884 = vpop.f32.mrf.mxu0
  %v4885 = vadd.f32 %v4840, %v4884
  %4886 = vdwg.mxu0
  %4887 = vmatpush.msra.mxu0 0.0
  %4888 = vmatpush.msra.mxu0 0.0
  %4889 = vmatpush.msra.mxu0 0.0
  %4890 = vmatpush.msra.mxu0 0.0
  %4891 = vmatpush.msra.mxu0 0.0
  %4892 = vmatpush.msra.mxu0 0.0
  %4893 = vmatpush.msra.mxu0 0.0
  %4894 = vmatpush.msra.mxu0 0.0
  %4895 = vmatpush.msra.mxu0 0.0
  %4896 = vmatpush.msra.mxu0 0.0
  %4897 = vmatpush.msra.mxu0 0.0
  %4898 = vmatpush.msra.mxu0 0.0
  %v4899 = vand.u32 %v3580, 4294901760
  %4900 = vmatpush.msra.mxu0 %v4899
  %v4901 = vand.u32 %v3573, 4294901760
  %4902 = vmatpush.msra.mxu0 %v4901
  %v4903 = vand.u32 %v3566, 4294901760
  %4904 = vmatpush.msra.mxu0 %v4903
  %v4905 = vand.u32 %v3559, 4294901760
  %4906 = vmatpush.msra.mxu0 %v4905
  %v4907 = vand.u32 %v3613, 4294901760
  %v4908 = vsub.f32 %v3613, %v4907
  %v4909 = vand.u32 %v4908, 4294901760
  %4910 = vmatmul.f32.gmra.mxu0 %v4909
  %v4911 = vpop.f32.mrf.mxu0
  %v4912 = vadd.f32 %v4870, %v4911
  %v4913 = vand.u32 %v3616, 4294901760
  %v4914 = vsub.f32 %v3616, %v4913
  %v4915 = vand.u32 %v4914, 4294901760
  %4916 = vmatmul.f32.gmra.mxu0 %v4915
  %v4917 = vpop.f32.mrf.mxu0
  %v4918 = vadd.f32 %v4875, %v4917
  %v4919 = vand.u32 %v3619, 4294901760
  %v4920 = vsub.f32 %v3619, %v4919
  %v4921 = vand.u32 %v4920, 4294901760
  %4922 = vmatmul.f32.gmra.mxu0 %v4921
  %v4923 = vpop.f32.mrf.mxu0
  %v4924 = vadd.f32 %v4880, %v4923
  %v4925 = vand.u32 %v3622, 4294901760
  %v4926 = vsub.f32 %v3622, %v4925
  %v4927 = vand.u32 %v4926, 4294901760
  %4928 = vmatmul.f32.gmra.mxu0 %v4927
  %v4929 = vpop.f32.mrf.mxu0
  %v4930 = vadd.f32 %v4885, %v4929
  %4931 = vdwg.mxu0
  %4932 = vmatpush.msra.mxu0 0.0
  %4933 = vmatpush.msra.mxu0 0.0
  %4934 = vmatpush.msra.mxu0 0.0
  %4935 = vmatpush.msra.mxu0 0.0
  %4936 = vmatpush.msra.mxu0 0.0
  %4937 = vmatpush.msra.mxu0 0.0
  %4938 = vmatpush.msra.mxu0 0.0
  %4939 = vmatpush.msra.mxu0 0.0
  %4940 = vmatpush.msra.mxu0 0.0
  %4941 = vmatpush.msra.mxu0 0.0
  %4942 = vmatpush.msra.mxu0 0.0
  %4943 = vmatpush.msra.mxu0 0.0
  %v4944 = vand.u32 %v3580, 4294901760
  %v4945 = vsub.f32 %v3580, %v4944
  %v4946 = vand.u32 %v4945, 4294901760
  %4947 = vmatpush.msra.mxu0 %v4946
  %v4948 = vand.u32 %v3573, 4294901760
  %v4949 = vsub.f32 %v3573, %v4948
  %v4950 = vand.u32 %v4949, 4294901760
  %4951 = vmatpush.msra.mxu0 %v4950
  %v4952 = vand.u32 %v3566, 4294901760
  %v4953 = vsub.f32 %v3566, %v4952
  %v4954 = vand.u32 %v4953, 4294901760
  %4955 = vmatpush.msra.mxu0 %v4954
  %v4956 = vand.u32 %v3559, 4294901760
  %v4957 = vsub.f32 %v3559, %v4956
  %v4958 = vand.u32 %v4957, 4294901760
  %4959 = vmatpush.msra.mxu0 %v4958
  %v4960 = vand.u32 %v3613, 4294901760
  %4961 = vmatmul.f32.gmra.mxu0 %v4960
  %v4962 = vpop.f32.mrf.mxu0
  %v4963 = vadd.f32 %v4912, %v4962
  %v4964 = vand.u32 %v3616, 4294901760
  %4965 = vmatmul.f32.gmra.mxu0 %v4964
  %v4966 = vpop.f32.mrf.mxu0
  %v4967 = vadd.f32 %v4918, %v4966
  %v4968 = vand.u32 %v3619, 4294901760
  %4969 = vmatmul.f32.gmra.mxu0 %v4968
  %v4970 = vpop.f32.mrf.mxu0
  %v4971 = vadd.f32 %v4924, %v4970
  %v4972 = vand.u32 %v3622, 4294901760
  %4973 = vmatmul.f32.gmra.mxu0 %v4972
  %v4974 = vpop.f32.mrf.mxu0
  %v4975 = vadd.f32 %v4930, %v4974
  %4976 = vdwg.mxu0
  %4977 = vmatpush.msra.mxu0 0.0
  %4978 = vmatpush.msra.mxu0 0.0
  %4979 = vmatpush.msra.mxu0 0.0
  %4980 = vmatpush.msra.mxu0 0.0
  %4981 = vmatpush.msra.mxu0 0.0
  %4982 = vmatpush.msra.mxu0 0.0
  %4983 = vmatpush.msra.mxu0 0.0
  %4984 = vmatpush.msra.mxu0 0.0
  %4985 = vmatpush.msra.mxu0 0.0
  %4986 = vmatpush.msra.mxu0 0.0
  %4987 = vmatpush.msra.mxu0 0.0
  %4988 = vmatpush.msra.mxu0 0.0
  %v4989 = vand.u32 %v3580, 4294901760
  %4990 = vmatpush.msra.mxu0 %v4989
  %v4991 = vand.u32 %v3573, 4294901760
  %4992 = vmatpush.msra.mxu0 %v4991
  %v4993 = vand.u32 %v3566, 4294901760
  %4994 = vmatpush.msra.mxu0 %v4993
  %v4995 = vand.u32 %v3559, 4294901760
  %4996 = vmatpush.msra.mxu0 %v4995
  %v4997 = vand.u32 %v3613, 4294901760
  %4998 = vmatmul.f32.gmra.mxu0 %v4997
  %v4999 = vpop.f32.mrf.mxu0
  %v5000 = vadd.f32 %v4963, %v4999
  %v5001 = vand.u32 %v3616, 4294901760
  %5002 = vmatmul.f32.gmra.mxu0 %v5001
  %v5003 = vpop.f32.mrf.mxu0
  %v5004 = vadd.f32 %v4967, %v5003
  %v5005 = vand.u32 %v3619, 4294901760
  %5006 = vmatmul.f32.gmra.mxu0 %v5005
  %v5007 = vpop.f32.mrf.mxu0
  %v5008 = vadd.f32 %v4971, %v5007
  %v5009 = vand.u32 %v3622, 4294901760
  %5010 = vmatmul.f32.gmra.mxu0 %v5009
  %v5011 = vpop.f32.mrf.mxu0
  %v5012 = vadd.f32 %v4975, %v5011
  %5013 = vdwg.mxu0
  %5014 = vmatpush.msra.mxu0 0.0
  %5015 = vmatpush.msra.mxu0 0.0
  %5016 = vmatpush.msra.mxu0 0.0
  %5017 = vmatpush.msra.mxu0 0.0
  %5018 = vmatpush.msra.mxu0 0.0
  %5019 = vmatpush.msra.mxu0 0.0
  %5020 = vmatpush.msra.mxu0 0.0
  %5021 = vmatpush.msra.mxu0 0.0
  %5022 = vmatpush.msra.mxu0 0.0
  %5023 = vmatpush.msra.mxu0 0.0
  %5024 = vmatpush.msra.mxu0 0.0
  %5025 = vmatpush.msra.mxu0 0.0
  %v5026 = vand.u32 %v3581, 4294901760
  %5027 = vmatpush.msra.mxu0 %v5026
  %v5028 = vand.u32 %v3574, 4294901760
  %5029 = vmatpush.msra.mxu0 %v5028
  %v5030 = vand.u32 %v3567, 4294901760
  %5031 = vmatpush.msra.mxu0 %v5030
  %v5032 = vand.u32 %v3560, 4294901760
  %5033 = vmatpush.msra.mxu0 %v5032
  %v5034 = vand.u32 %v3613, 4294901760
  %v5035 = vsub.f32 %v3613, %v5034
  %v5036 = vand.u32 %v5035, 4294901760
  %v5037 = vsub.f32 %v5035, %v5036
  %v5038 = vand.u32 %v5037, 4294901760
  %5039 = vmatmul.f32.gmra.mxu0 %v5038
  %v5040 = vpop.f32.mrf.mxu0
  %v5041 = vadd.f32 %v3594, %v5040
  %v5042 = vand.u32 %v3616, 4294901760
  %v5043 = vsub.f32 %v3616, %v5042
  %v5044 = vand.u32 %v5043, 4294901760
  %v5045 = vsub.f32 %v5043, %v5044
  %v5046 = vand.u32 %v5045, 4294901760
  %5047 = vmatmul.f32.gmra.mxu0 %v5046
  %v5048 = vpop.f32.mrf.mxu0
  %v5049 = vadd.f32 %v3599, %v5048
  %v5050 = vand.u32 %v3619, 4294901760
  %v5051 = vsub.f32 %v3619, %v5050
  %v5052 = vand.u32 %v5051, 4294901760
  %v5053 = vsub.f32 %v5051, %v5052
  %v5054 = vand.u32 %v5053, 4294901760
  %5055 = vmatmul.f32.gmra.mxu0 %v5054
  %v5056 = vpop.f32.mrf.mxu0
  %v5057 = vadd.f32 %v3604, %v5056
  %v5058 = vand.u32 %v3622, 4294901760
  %v5059 = vsub.f32 %v3622, %v5058
  %v5060 = vand.u32 %v5059, 4294901760
  %v5061 = vsub.f32 %v5059, %v5060
  %v5062 = vand.u32 %v5061, 4294901760
  %5063 = vmatmul.f32.gmra.mxu0 %v5062
  %v5064 = vpop.f32.mrf.mxu0
  %v5065 = vadd.f32 %v3609, %v5064
  %5066 = vdwg.mxu0
  %5067 = vmatpush.msra.mxu0 0.0
  %5068 = vmatpush.msra.mxu0 0.0
  %5069 = vmatpush.msra.mxu0 0.0
  %5070 = vmatpush.msra.mxu0 0.0
  %5071 = vmatpush.msra.mxu0 0.0
  %5072 = vmatpush.msra.mxu0 0.0
  %5073 = vmatpush.msra.mxu0 0.0
  %5074 = vmatpush.msra.mxu0 0.0
  %5075 = vmatpush.msra.mxu0 0.0
  %5076 = vmatpush.msra.mxu0 0.0
  %5077 = vmatpush.msra.mxu0 0.0
  %5078 = vmatpush.msra.mxu0 0.0
  %v5079 = vand.u32 %v3581, 4294901760
  %v5080 = vsub.f32 %v3581, %v5079
  %v5081 = vand.u32 %v5080, 4294901760
  %v5082 = vsub.f32 %v5080, %v5081
  %v5083 = vand.u32 %v5082, 4294901760
  %5084 = vmatpush.msra.mxu0 %v5083
  %v5085 = vand.u32 %v3574, 4294901760
  %v5086 = vsub.f32 %v3574, %v5085
  %v5087 = vand.u32 %v5086, 4294901760
  %v5088 = vsub.f32 %v5086, %v5087
  %v5089 = vand.u32 %v5088, 4294901760
  %5090 = vmatpush.msra.mxu0 %v5089
  %v5091 = vand.u32 %v3567, 4294901760
  %v5092 = vsub.f32 %v3567, %v5091
  %v5093 = vand.u32 %v5092, 4294901760
  %v5094 = vsub.f32 %v5092, %v5093
  %v5095 = vand.u32 %v5094, 4294901760
  %5096 = vmatpush.msra.mxu0 %v5095
  %v5097 = vand.u32 %v3560, 4294901760
  %v5098 = vsub.f32 %v3560, %v5097
  %v5099 = vand.u32 %v5098, 4294901760
  %v5100 = vsub.f32 %v5098, %v5099
  %v5101 = vand.u32 %v5100, 4294901760
  %5102 = vmatpush.msra.mxu0 %v5101
  %v5103 = vand.u32 %v3613, 4294901760
  %5104 = vmatmul.f32.gmra.mxu0 %v5103
  %v5105 = vpop.f32.mrf.mxu0
  %v5106 = vadd.f32 %v5041, %v5105
  %v5107 = vand.u32 %v3616, 4294901760
  %5108 = vmatmul.f32.gmra.mxu0 %v5107
  %v5109 = vpop.f32.mrf.mxu0
  %v5110 = vadd.f32 %v5049, %v5109
  %v5111 = vand.u32 %v3619, 4294901760
  %5112 = vmatmul.f32.gmra.mxu0 %v5111
  %v5113 = vpop.f32.mrf.mxu0
  %v5114 = vadd.f32 %v5057, %v5113
  %v5115 = vand.u32 %v3622, 4294901760
  %5116 = vmatmul.f32.gmra.mxu0 %v5115
  %v5117 = vpop.f32.mrf.mxu0
  %v5118 = vadd.f32 %v5065, %v5117
  %5119 = vdwg.mxu0
  %5120 = vmatpush.msra.mxu0 0.0
  %5121 = vmatpush.msra.mxu0 0.0
  %5122 = vmatpush.msra.mxu0 0.0
  %5123 = vmatpush.msra.mxu0 0.0
  %5124 = vmatpush.msra.mxu0 0.0
  %5125 = vmatpush.msra.mxu0 0.0
  %5126 = vmatpush.msra.mxu0 0.0
  %5127 = vmatpush.msra.mxu0 0.0
  %5128 = vmatpush.msra.mxu0 0.0
  %5129 = vmatpush.msra.mxu0 0.0
  %5130 = vmatpush.msra.mxu0 0.0
  %5131 = vmatpush.msra.mxu0 0.0
  %v5132 = vand.u32 %v3581, 4294901760
  %v5133 = vsub.f32 %v3581, %v5132
  %5134 = vmatpush.msra.mxu0 %v5133
  %v5135 = vand.u32 %v3574, 4294901760
  %v5136 = vsub.f32 %v3574, %v5135
  %5137 = vmatpush.msra.mxu0 %v5136
  %v5138 = vand.u32 %v3567, 4294901760
  %v5139 = vsub.f32 %v3567, %v5138
  %5140 = vmatpush.msra.mxu0 %v5139
  %v5141 = vand.u32 %v3560, 4294901760
  %v5142 = vsub.f32 %v3560, %v5141
  %5143 = vmatpush.msra.mxu0 %v5142
  %v5144 = vand.u32 %v3613, 4294901760
  %v5145 = vsub.f32 %v3613, %v5144
  %5146 = vmatmul.f32.gmra.mxu0 %v5145
  %v5147 = vpop.f32.mrf.mxu0
  %v5148 = vadd.f32 %v5106, %v5147
  %v5149 = vand.u32 %v3616, 4294901760
  %v5150 = vsub.f32 %v3616, %v5149
  %5151 = vmatmul.f32.gmra.mxu0 %v5150
  %v5152 = vpop.f32.mrf.mxu0
  %v5153 = vadd.f32 %v5110, %v5152
  %v5154 = vand.u32 %v3619, 4294901760
  %v5155 = vsub.f32 %v3619, %v5154
  %5156 = vmatmul.f32.gmra.mxu0 %v5155
  %v5157 = vpop.f32.mrf.mxu0
  %v5158 = vadd.f32 %v5114, %v5157
  %v5159 = vand.u32 %v3622, 4294901760
  %v5160 = vsub.f32 %v3622, %v5159
  %5161 = vmatmul.f32.gmra.mxu0 %v5160
  %v5162 = vpop.f32.mrf.mxu0
  %v5163 = vadd.f32 %v5118, %v5162
  %5164 = vdwg.mxu0
  %5165 = vmatpush.msra.mxu0 0.0
  %5166 = vmatpush.msra.mxu0 0.0
  %5167 = vmatpush.msra.mxu0 0.0
  %5168 = vmatpush.msra.mxu0 0.0
  %5169 = vmatpush.msra.mxu0 0.0
  %5170 = vmatpush.msra.mxu0 0.0
  %5171 = vmatpush.msra.mxu0 0.0
  %5172 = vmatpush.msra.mxu0 0.0
  %5173 = vmatpush.msra.mxu0 0.0
  %5174 = vmatpush.msra.mxu0 0.0
  %5175 = vmatpush.msra.mxu0 0.0
  %5176 = vmatpush.msra.mxu0 0.0
  %v5177 = vand.u32 %v3581, 4294901760
  %5178 = vmatpush.msra.mxu0 %v5177
  %v5179 = vand.u32 %v3574, 4294901760
  %5180 = vmatpush.msra.mxu0 %v5179
  %v5181 = vand.u32 %v3567, 4294901760
  %5182 = vmatpush.msra.mxu0 %v5181
  %v5183 = vand.u32 %v3560, 4294901760
  %5184 = vmatpush.msra.mxu0 %v5183
  %v5185 = vand.u32 %v3613, 4294901760
  %v5186 = vsub.f32 %v3613, %v5185
  %v5187 = vand.u32 %v5186, 4294901760
  %5188 = vmatmul.f32.gmra.mxu0 %v5187
  %v5189 = vpop.f32.mrf.mxu0
  %v5190 = vadd.f32 %v5148, %v5189
  %v5191 = vand.u32 %v3616, 4294901760
  %v5192 = vsub.f32 %v3616, %v5191
  %v5193 = vand.u32 %v5192, 4294901760
  %5194 = vmatmul.f32.gmra.mxu0 %v5193
  %v5195 = vpop.f32.mrf.mxu0
  %v5196 = vadd.f32 %v5153, %v5195
  %v5197 = vand.u32 %v3619, 4294901760
  %v5198 = vsub.f32 %v3619, %v5197
  %v5199 = vand.u32 %v5198, 4294901760
  %5200 = vmatmul.f32.gmra.mxu0 %v5199
  %v5201 = vpop.f32.mrf.mxu0
  %v5202 = vadd.f32 %v5158, %v5201
  %v5203 = vand.u32 %v3622, 4294901760
  %v5204 = vsub.f32 %v3622, %v5203
  %v5205 = vand.u32 %v5204, 4294901760
  %5206 = vmatmul.f32.gmra.mxu0 %v5205
  %v5207 = vpop.f32.mrf.mxu0
  %v5208 = vadd.f32 %v5163, %v5207
  %5209 = vdwg.mxu0
  %5210 = vmatpush.msra.mxu0 0.0
  %5211 = vmatpush.msra.mxu0 0.0
  %5212 = vmatpush.msra.mxu0 0.0
  %5213 = vmatpush.msra.mxu0 0.0
  %5214 = vmatpush.msra.mxu0 0.0
  %5215 = vmatpush.msra.mxu0 0.0
  %5216 = vmatpush.msra.mxu0 0.0
  %5217 = vmatpush.msra.mxu0 0.0
  %5218 = vmatpush.msra.mxu0 0.0
  %5219 = vmatpush.msra.mxu0 0.0
  %5220 = vmatpush.msra.mxu0 0.0
  %5221 = vmatpush.msra.mxu0 0.0
  %v5222 = vand.u32 %v3581, 4294901760
  %v5223 = vsub.f32 %v3581, %v5222
  %v5224 = vand.u32 %v5223, 4294901760
  %5225 = vmatpush.msra.mxu0 %v5224
  %v5226 = vand.u32 %v3574, 4294901760
  %v5227 = vsub.f32 %v3574, %v5226
  %v5228 = vand.u32 %v5227, 4294901760
  %5229 = vmatpush.msra.mxu0 %v5228
  %v5230 = vand.u32 %v3567, 4294901760
  %v5231 = vsub.f32 %v3567, %v5230
  %v5232 = vand.u32 %v5231, 4294901760
  %5233 = vmatpush.msra.mxu0 %v5232
  %v5234 = vand.u32 %v3560, 4294901760
  %v5235 = vsub.f32 %v3560, %v5234
  %v5236 = vand.u32 %v5235, 4294901760
  %5237 = vmatpush.msra.mxu0 %v5236
  %v5238 = vand.u32 %v3613, 4294901760
  %5239 = vmatmul.f32.gmra.mxu0 %v5238
  %v5240 = vpop.f32.mrf.mxu0
  %v5241 = vadd.f32 %v5190, %v5240
  %v5242 = vand.u32 %v3616, 4294901760
  %5243 = vmatmul.f32.gmra.mxu0 %v5242
  %v5244 = vpop.f32.mrf.mxu0
  %v5245 = vadd.f32 %v5196, %v5244
  %v5246 = vand.u32 %v3619, 4294901760
  %5247 = vmatmul.f32.gmra.mxu0 %v5246
  %v5248 = vpop.f32.mrf.mxu0
  %v5249 = vadd.f32 %v5202, %v5248
  %v5250 = vand.u32 %v3622, 4294901760
  %5251 = vmatmul.f32.gmra.mxu0 %v5250
  %v5252 = vpop.f32.mrf.mxu0
  %v5253 = vadd.f32 %v5208, %v5252
  %5254 = vdwg.mxu0
  %5255 = vmatpush.msra.mxu0 0.0
  %5256 = vmatpush.msra.mxu0 0.0
  %5257 = vmatpush.msra.mxu0 0.0
  %5258 = vmatpush.msra.mxu0 0.0
  %5259 = vmatpush.msra.mxu0 0.0
  %5260 = vmatpush.msra.mxu0 0.0
  %5261 = vmatpush.msra.mxu0 0.0
  %5262 = vmatpush.msra.mxu0 0.0
  %5263 = vmatpush.msra.mxu0 0.0
  %5264 = vmatpush.msra.mxu0 0.0
  %5265 = vmatpush.msra.mxu0 0.0
  %5266 = vmatpush.msra.mxu0 0.0
  %v5267 = vand.u32 %v3581, 4294901760
  %5268 = vmatpush.msra.mxu0 %v5267
  %v5269 = vand.u32 %v3574, 4294901760
  %5270 = vmatpush.msra.mxu0 %v5269
  %v5271 = vand.u32 %v3567, 4294901760
  %5272 = vmatpush.msra.mxu0 %v5271
  %v5273 = vand.u32 %v3560, 4294901760
  %5274 = vmatpush.msra.mxu0 %v5273
  %v5275 = vand.u32 %v3613, 4294901760
  %5276 = vmatmul.f32.gmra.mxu0 %v5275
  %v5277 = vpop.f32.mrf.mxu0
  %v5278 = vadd.f32 %v5241, %v5277
  %v5279 = vand.u32 %v3616, 4294901760
  %5280 = vmatmul.f32.gmra.mxu0 %v5279
  %v5281 = vpop.f32.mrf.mxu0
  %v5282 = vadd.f32 %v5245, %v5281
  %v5283 = vand.u32 %v3619, 4294901760
  %5284 = vmatmul.f32.gmra.mxu0 %v5283
  %v5285 = vpop.f32.mrf.mxu0
  %v5286 = vadd.f32 %v5249, %v5285
  %v5287 = vand.u32 %v3622, 4294901760
  %5288 = vmatmul.f32.gmra.mxu0 %v5287
  %v5289 = vpop.f32.mrf.mxu0
  %v5290 = vadd.f32 %v5253, %v5289
  %5291 = vdwg.mxu0
  %5292 = vmatpush.msra.mxu0 0.0
  %5293 = vmatpush.msra.mxu0 0.0
  %5294 = vmatpush.msra.mxu0 0.0
  %5295 = vmatpush.msra.mxu0 0.0
  %5296 = vmatpush.msra.mxu0 0.0
  %5297 = vmatpush.msra.mxu0 0.0
  %5298 = vmatpush.msra.mxu0 0.0
  %5299 = vmatpush.msra.mxu0 0.0
  %5300 = vmatpush.msra.mxu0 0.0
  %5301 = vmatpush.msra.mxu0 0.0
  %5302 = vmatpush.msra.mxu0 0.0
  %5303 = vmatpush.msra.mxu0 0.0
  %v5304 = vand.u32 %v3582, 4294901760
  %5305 = vmatpush.msra.mxu0 %v5304
  %v5306 = vand.u32 %v3575, 4294901760
  %5307 = vmatpush.msra.mxu0 %v5306
  %v5308 = vand.u32 %v3568, 4294901760
  %5309 = vmatpush.msra.mxu0 %v5308
  %v5310 = vand.u32 %v3561, 4294901760
  %5311 = vmatpush.msra.mxu0 %v5310
  %v5312 = vand.u32 %v3613, 4294901760
  %v5313 = vsub.f32 %v3613, %v5312
  %v5314 = vand.u32 %v5313, 4294901760
  %v5315 = vsub.f32 %v5313, %v5314
  %v5316 = vand.u32 %v5315, 4294901760
  %5317 = vmatmul.f32.gmra.mxu0 %v5316
  %v5318 = vpop.f32.mrf.mxu0
  %v5319 = vadd.f32 %v3594, %v5318
  %v5320 = vand.u32 %v3616, 4294901760
  %v5321 = vsub.f32 %v3616, %v5320
  %v5322 = vand.u32 %v5321, 4294901760
  %v5323 = vsub.f32 %v5321, %v5322
  %v5324 = vand.u32 %v5323, 4294901760
  %5325 = vmatmul.f32.gmra.mxu0 %v5324
  %v5326 = vpop.f32.mrf.mxu0
  %v5327 = vadd.f32 %v3599, %v5326
  %v5328 = vand.u32 %v3619, 4294901760
  %v5329 = vsub.f32 %v3619, %v5328
  %v5330 = vand.u32 %v5329, 4294901760
  %v5331 = vsub.f32 %v5329, %v5330
  %v5332 = vand.u32 %v5331, 4294901760
  %5333 = vmatmul.f32.gmra.mxu0 %v5332
  %v5334 = vpop.f32.mrf.mxu0
  %v5335 = vadd.f32 %v3604, %v5334
  %v5336 = vand.u32 %v3622, 4294901760
  %v5337 = vsub.f32 %v3622, %v5336
  %v5338 = vand.u32 %v5337, 4294901760
  %v5339 = vsub.f32 %v5337, %v5338
  %v5340 = vand.u32 %v5339, 4294901760
  %5341 = vmatmul.f32.gmra.mxu0 %v5340
  %v5342 = vpop.f32.mrf.mxu0
  %v5343 = vadd.f32 %v3609, %v5342
  %5344 = vdwg.mxu0
  %5345 = vmatpush.msra.mxu0 0.0
  %5346 = vmatpush.msra.mxu0 0.0
  %5347 = vmatpush.msra.mxu0 0.0
  %5348 = vmatpush.msra.mxu0 0.0
  %5349 = vmatpush.msra.mxu0 0.0
  %5350 = vmatpush.msra.mxu0 0.0
  %5351 = vmatpush.msra.mxu0 0.0
  %5352 = vmatpush.msra.mxu0 0.0
  %5353 = vmatpush.msra.mxu0 0.0
  %5354 = vmatpush.msra.mxu0 0.0
  %5355 = vmatpush.msra.mxu0 0.0
  %5356 = vmatpush.msra.mxu0 0.0
  %v5357 = vand.u32 %v3582, 4294901760
  %v5358 = vsub.f32 %v3582, %v5357
  %v5359 = vand.u32 %v5358, 4294901760
  %v5360 = vsub.f32 %v5358, %v5359
  %v5361 = vand.u32 %v5360, 4294901760
  %5362 = vmatpush.msra.mxu0 %v5361
  %v5363 = vand.u32 %v3575, 4294901760
  %v5364 = vsub.f32 %v3575, %v5363
  %v5365 = vand.u32 %v5364, 4294901760
  %v5366 = vsub.f32 %v5364, %v5365
  %v5367 = vand.u32 %v5366, 4294901760
  %5368 = vmatpush.msra.mxu0 %v5367
  %v5369 = vand.u32 %v3568, 4294901760
  %v5370 = vsub.f32 %v3568, %v5369
  %v5371 = vand.u32 %v5370, 4294901760
  %v5372 = vsub.f32 %v5370, %v5371
  %v5373 = vand.u32 %v5372, 4294901760
  %5374 = vmatpush.msra.mxu0 %v5373
  %v5375 = vand.u32 %v3561, 4294901760
  %v5376 = vsub.f32 %v3561, %v5375
  %v5377 = vand.u32 %v5376, 4294901760
  %v5378 = vsub.f32 %v5376, %v5377
  %v5379 = vand.u32 %v5378, 4294901760
  %5380 = vmatpush.msra.mxu0 %v5379
  %v5381 = vand.u32 %v3613, 4294901760
  %5382 = vmatmul.f32.gmra.mxu0 %v5381
  %v5383 = vpop.f32.mrf.mxu0
  %v5384 = vadd.f32 %v5319, %v5383
  %v5385 = vand.u32 %v3616, 4294901760
  %5386 = vmatmul.f32.gmra.mxu0 %v5385
  %v5387 = vpop.f32.mrf.mxu0
  %v5388 = vadd.f32 %v5327, %v5387
  %v5389 = vand.u32 %v3619, 4294901760
  %5390 = vmatmul.f32.gmra.mxu0 %v5389
  %v5391 = vpop.f32.mrf.mxu0
  %v5392 = vadd.f32 %v5335, %v5391
  %v5393 = vand.u32 %v3622, 4294901760
  %5394 = vmatmul.f32.gmra.mxu0 %v5393
  %v5395 = vpop.f32.mrf.mxu0
  %v5396 = vadd.f32 %v5343, %v5395
  %5397 = vdwg.mxu0
  %5398 = vmatpush.msra.mxu0 0.0
  %5399 = vmatpush.msra.mxu0 0.0
  %5400 = vmatpush.msra.mxu0 0.0
  %5401 = vmatpush.msra.mxu0 0.0
  %5402 = vmatpush.msra.mxu0 0.0
  %5403 = vmatpush.msra.mxu0 0.0
  %5404 = vmatpush.msra.mxu0 0.0
  %5405 = vmatpush.msra.mxu0 0.0
  %5406 = vmatpush.msra.mxu0 0.0
  %5407 = vmatpush.msra.mxu0 0.0
  %5408 = vmatpush.msra.mxu0 0.0
  %5409 = vmatpush.msra.mxu0 0.0
  %v5410 = vand.u32 %v3582, 4294901760
  %v5411 = vsub.f32 %v3582, %v5410
  %5412 = vmatpush.msra.mxu0 %v5411
  %v5413 = vand.u32 %v3575, 4294901760
  %v5414 = vsub.f32 %v3575, %v5413
  %5415 = vmatpush.msra.mxu0 %v5414
  %v5416 = vand.u32 %v3568, 4294901760
  %v5417 = vsub.f32 %v3568, %v5416
  %5418 = vmatpush.msra.mxu0 %v5417
  %v5419 = vand.u32 %v3561, 4294901760
  %v5420 = vsub.f32 %v3561, %v5419
  %5421 = vmatpush.msra.mxu0 %v5420
  %v5422 = vand.u32 %v3613, 4294901760
  %v5423 = vsub.f32 %v3613, %v5422
  %5424 = vmatmul.f32.gmra.mxu0 %v5423
  %v5425 = vpop.f32.mrf.mxu0
  %v5426 = vadd.f32 %v5384, %v5425
  %v5427 = vand.u32 %v3616, 4294901760
  %v5428 = vsub.f32 %v3616, %v5427
  %5429 = vmatmul.f32.gmra.mxu0 %v5428
  %v5430 = vpop.f32.mrf.mxu0
  %v5431 = vadd.f32 %v5388, %v5430
  %v5432 = vand.u32 %v3619, 4294901760
  %v5433 = vsub.f32 %v3619, %v5432
  %5434 = vmatmul.f32.gmra.mxu0 %v5433
  %v5435 = vpop.f32.mrf.mxu0
  %v5436 = vadd.f32 %v5392, %v5435
  %v5437 = vand.u32 %v3622, 4294901760
  %v5438 = vsub.f32 %v3622, %v5437
  %5439 = vmatmul.f32.gmra.mxu0 %v5438
  %v5440 = vpop.f32.mrf.mxu0
  %v5441 = vadd.f32 %v5396, %v5440
  %5442 = vdwg.mxu0
  %5443 = vmatpush.msra.mxu0 0.0
  %5444 = vmatpush.msra.mxu0 0.0
  %5445 = vmatpush.msra.mxu0 0.0
  %5446 = vmatpush.msra.mxu0 0.0
  %5447 = vmatpush.msra.mxu0 0.0
  %5448 = vmatpush.msra.mxu0 0.0
  %5449 = vmatpush.msra.mxu0 0.0
  %5450 = vmatpush.msra.mxu0 0.0
  %5451 = vmatpush.msra.mxu0 0.0
  %5452 = vmatpush.msra.mxu0 0.0
  %5453 = vmatpush.msra.mxu0 0.0
  %5454 = vmatpush.msra.mxu0 0.0
  %v5455 = vand.u32 %v3582, 4294901760
  %5456 = vmatpush.msra.mxu0 %v5455
  %v5457 = vand.u32 %v3575, 4294901760
  %5458 = vmatpush.msra.mxu0 %v5457
  %v5459 = vand.u32 %v3568, 4294901760
  %5460 = vmatpush.msra.mxu0 %v5459
  %v5461 = vand.u32 %v3561, 4294901760
  %5462 = vmatpush.msra.mxu0 %v5461
  %v5463 = vand.u32 %v3613, 4294901760
  %v5464 = vsub.f32 %v3613, %v5463
  %v5465 = vand.u32 %v5464, 4294901760
  %5466 = vmatmul.f32.gmra.mxu0 %v5465
  %v5467 = vpop.f32.mrf.mxu0
  %v5468 = vadd.f32 %v5426, %v5467
  %v5469 = vand.u32 %v3616, 4294901760
  %v5470 = vsub.f32 %v3616, %v5469
  %v5471 = vand.u32 %v5470, 4294901760
  %5472 = vmatmul.f32.gmra.mxu0 %v5471
  %v5473 = vpop.f32.mrf.mxu0
  %v5474 = vadd.f32 %v5431, %v5473
  %v5475 = vand.u32 %v3619, 4294901760
  %v5476 = vsub.f32 %v3619, %v5475
  %v5477 = vand.u32 %v5476, 4294901760
  %5478 = vmatmul.f32.gmra.mxu0 %v5477
  %v5479 = vpop.f32.mrf.mxu0
  %v5480 = vadd.f32 %v5436, %v5479
  %v5481 = vand.u32 %v3622, 4294901760
  %v5482 = vsub.f32 %v3622, %v5481
  %v5483 = vand.u32 %v5482, 4294901760
  %5484 = vmatmul.f32.gmra.mxu0 %v5483
  %v5485 = vpop.f32.mrf.mxu0
  %v5486 = vadd.f32 %v5441, %v5485
  %5487 = vdwg.mxu0
  %5488 = vmatpush.msra.mxu0 0.0
  %5489 = vmatpush.msra.mxu0 0.0
  %5490 = vmatpush.msra.mxu0 0.0
  %5491 = vmatpush.msra.mxu0 0.0
  %5492 = vmatpush.msra.mxu0 0.0
  %5493 = vmatpush.msra.mxu0 0.0
  %5494 = vmatpush.msra.mxu0 0.0
  %5495 = vmatpush.msra.mxu0 0.0
  %5496 = vmatpush.msra.mxu0 0.0
  %5497 = vmatpush.msra.mxu0 0.0
  %5498 = vmatpush.msra.mxu0 0.0
  %5499 = vmatpush.msra.mxu0 0.0
  %v5500 = vand.u32 %v3582, 4294901760
  %v5501 = vsub.f32 %v3582, %v5500
  %v5502 = vand.u32 %v5501, 4294901760
  %5503 = vmatpush.msra.mxu0 %v5502
  %v5504 = vand.u32 %v3575, 4294901760
  %v5505 = vsub.f32 %v3575, %v5504
  %v5506 = vand.u32 %v5505, 4294901760
  %5507 = vmatpush.msra.mxu0 %v5506
  %v5508 = vand.u32 %v3568, 4294901760
  %v5509 = vsub.f32 %v3568, %v5508
  %v5510 = vand.u32 %v5509, 4294901760
  %5511 = vmatpush.msra.mxu0 %v5510
  %v5512 = vand.u32 %v3561, 4294901760
  %v5513 = vsub.f32 %v3561, %v5512
  %v5514 = vand.u32 %v5513, 4294901760
  %5515 = vmatpush.msra.mxu0 %v5514
  %v5516 = vand.u32 %v3613, 4294901760
  %5517 = vmatmul.f32.gmra.mxu0 %v5516
  %v5518 = vpop.f32.mrf.mxu0
  %v5519 = vadd.f32 %v5468, %v5518
  %v5520 = vand.u32 %v3616, 4294901760
  %5521 = vmatmul.f32.gmra.mxu0 %v5520
  %v5522 = vpop.f32.mrf.mxu0
  %v5523 = vadd.f32 %v5474, %v5522
  %v5524 = vand.u32 %v3619, 4294901760
  %5525 = vmatmul.f32.gmra.mxu0 %v5524
  %v5526 = vpop.f32.mrf.mxu0
  %v5527 = vadd.f32 %v5480, %v5526
  %v5528 = vand.u32 %v3622, 4294901760
  %5529 = vmatmul.f32.gmra.mxu0 %v5528
  %v5530 = vpop.f32.mrf.mxu0
  %v5531 = vadd.f32 %v5486, %v5530
  %5532 = vdwg.mxu0
  %5533 = vmatpush.msra.mxu0 0.0
  %5534 = vmatpush.msra.mxu0 0.0
  %5535 = vmatpush.msra.mxu0 0.0
  %5536 = vmatpush.msra.mxu0 0.0
  %5537 = vmatpush.msra.mxu0 0.0
  %5538 = vmatpush.msra.mxu0 0.0
  %5539 = vmatpush.msra.mxu0 0.0
  %5540 = vmatpush.msra.mxu0 0.0
  %5541 = vmatpush.msra.mxu0 0.0
  %5542 = vmatpush.msra.mxu0 0.0
  %5543 = vmatpush.msra.mxu0 0.0
  %5544 = vmatpush.msra.mxu0 0.0
  %v5545 = vand.u32 %v3582, 4294901760
  %5546 = vmatpush.msra.mxu0 %v5545
  %v5547 = vand.u32 %v3575, 4294901760
  %5548 = vmatpush.msra.mxu0 %v5547
  %v5549 = vand.u32 %v3568, 4294901760
  %5550 = vmatpush.msra.mxu0 %v5549
  %v5551 = vand.u32 %v3561, 4294901760
  %5552 = vmatpush.msra.mxu0 %v5551
  %v5553 = vand.u32 %v3613, 4294901760
  %5554 = vmatmul.f32.gmra.mxu0 %v5553
  %v5555 = vpop.f32.mrf.mxu0
  %v5556 = vadd.f32 %v5519, %v5555
  %v5557 = vand.u32 %v3616, 4294901760
  %5558 = vmatmul.f32.gmra.mxu0 %v5557
  %v5559 = vpop.f32.mrf.mxu0
  %v5560 = vadd.f32 %v5523, %v5559
  %v5561 = vand.u32 %v3619, 4294901760
  %5562 = vmatmul.f32.gmra.mxu0 %v5561
  %v5563 = vpop.f32.mrf.mxu0
  %v5564 = vadd.f32 %v5527, %v5563
  %v5565 = vand.u32 %v3622, 4294901760
  %5566 = vmatmul.f32.gmra.mxu0 %v5565
  %v5567 = vpop.f32.mrf.mxu0
  %v5568 = vadd.f32 %v5531, %v5567
  %5569 = vdwg.mxu0
  %v5570 = vmax.f32 %v3888, 0.0
  %v5571 = vmax.f32 %v4166, 0.0
  %v5572 = vmax.f32 %v4444, 0.0
  %v5573 = vmax.f32 %v4722, 0.0
  %v5574 = vmax.f32 %v5000, 0.0
  %v5575 = vmax.f32 %v5278, 0.0
  %v5576 = vmax.f32 %v5556, 0.0
  %v5577 = vmax.f32 %v3892, 0.0
  %v5578 = vmax.f32 %v4170, 0.0
  %v5579 = vmax.f32 %v4448, 0.0
  %v5580 = vmax.f32 %v4726, 0.0
  %v5581 = vmax.f32 %v5004, 0.0
  %v5582 = vmax.f32 %v5282, 0.0
  %v5583 = vmax.f32 %v5560, 0.0
  %v5584 = vmax.f32 %v3896, 0.0
  %v5585 = vmax.f32 %v4174, 0.0
  %v5586 = vmax.f32 %v4452, 0.0
  %v5587 = vmax.f32 %v4730, 0.0
  %v5588 = vmax.f32 %v5008, 0.0
  %v5589 = vmax.f32 %v5286, 0.0
  %v5590 = vmax.f32 %v5564, 0.0
  %v5591 = vmax.f32 %v3900, 0.0
  %v5592 = vmax.f32 %v4178, 0.0
  %v5593 = vmax.f32 %v4456, 0.0
  %v5594 = vmax.f32 %v4734, 0.0
  %v5595 = vmax.f32 %v5012, 0.0
  %v5596 = vmax.f32 %v5290, 0.0
  %v5597 = vmax.f32 %v5568, 0.0
  %v5598 = vld [vmem:[%s5] sm:$0x1]
  %v5599 = vld [vmem:[#allocation2] sm:$0x1]
  %5601 = vset.pattern.permute.xlu0 0
  %5602 = vperm.xlu0 %5601, %v5599
  %v5603 = vpop.permute.xlu0 %5602
  %v5605 = vperm.slane %v5603, 0
  %v5607 = vsel %vm3611, %v5598, 0
  %5609 = vmatpush.msra.mxu0 0.0
  %5610 = vmatpush.msra.mxu0 0.0
  %5611 = vmatpush.msra.mxu0 0.0
  %5612 = vmatpush.msra.mxu0 0.0
  %5613 = vmatpush.msra.mxu0 0.0
  %5614 = vmatpush.msra.mxu0 0.0
  %5615 = vmatpush.msra.mxu0 0.0
  %5616 = vmatpush.msra.mxu0 0.0
  %5617 = vmatpush.msra.mxu0 0.0
  %5618 = vmatpush.msra.mxu0 0.0
  %5619 = vmatpush.msra.mxu0 0.0
  %5620 = vmatpush.msra.mxu0 0.0
  %v5621 = vand.u32 %v5591, 4294901760
  %5622 = vmatpush.msra.mxu0 %v5621
  %v5623 = vand.u32 %v5584, 4294901760
  %5624 = vmatpush.msra.mxu0 %v5623
  %v5625 = vand.u32 %v5577, 4294901760
  %5626 = vmatpush.msra.mxu0 %v5625
  %v5627 = vand.u32 %v5570, 4294901760
  %5628 = vmatpush.msra.mxu0 %v5627
  %v5629 = vand.u32 %v5607, 4294901760
  %v5630 = vsub.f32 %v5607, %v5629
  %v5631 = vand.u32 %v5630, 4294901760
  %v5632 = vsub.f32 %v5630, %v5631
  %v5633 = vand.u32 %v5632, 4294901760
  %5634 = vmatmul.f32.gmra.mxu0 %v5633
  %v5635 = vpop.f32.mrf.mxu0
  %v5636 = vadd.f32 %v5605, %v5635
  %5637 = vdwg.mxu0
  %5638 = vmatpush.msra.mxu0 0.0
  %5639 = vmatpush.msra.mxu0 0.0
  %5640 = vmatpush.msra.mxu0 0.0
  %5641 = vmatpush.msra.mxu0 0.0
  %5642 = vmatpush.msra.mxu0 0.0
  %5643 = vmatpush.msra.mxu0 0.0
  %5644 = vmatpush.msra.mxu0 0.0
  %5645 = vmatpush.msra.mxu0 0.0
  %5646 = vmatpush.msra.mxu0 0.0
  %5647 = vmatpush.msra.mxu0 0.0
  %5648 = vmatpush.msra.mxu0 0.0
  %5649 = vmatpush.msra.mxu0 0.0
  %v5650 = vand.u32 %v5591, 4294901760
  %v5651 = vsub.f32 %v5591, %v5650
  %v5652 = vand.u32 %v5651, 4294901760
  %v5653 = vsub.f32 %v5651, %v5652
  %v5654 = vand.u32 %v5653, 4294901760
  %5655 = vmatpush.msra.mxu0 %v5654
  %v5656 = vand.u32 %v5584, 4294901760
  %v5657 = vsub.f32 %v5584, %v5656
  %v5658 = vand.u32 %v5657, 4294901760
  %v5659 = vsub.f32 %v5657, %v5658
  %v5660 = vand.u32 %v5659, 4294901760
  %5661 = vmatpush.msra.mxu0 %v5660
  %v5662 = vand.u32 %v5577, 4294901760
  %v5663 = vsub.f32 %v5577, %v5662
  %v5664 = vand.u32 %v5663, 4294901760
  %v5665 = vsub.f32 %v5663, %v5664
  %v5666 = vand.u32 %v5665, 4294901760
  %5667 = vmatpush.msra.mxu0 %v5666
  %v5668 = vand.u32 %v5570, 4294901760
  %v5669 = vsub.f32 %v5570, %v5668
  %v5670 = vand.u32 %v5669, 4294901760
  %v5671 = vsub.f32 %v5669, %v5670
  %v5672 = vand.u32 %v5671, 4294901760
  %5673 = vmatpush.msra.mxu0 %v5672
  %v5674 = vand.u32 %v5607, 4294901760
  %5675 = vmatmul.f32.gmra.mxu0 %v5674
  %v5676 = vpop.f32.mrf.mxu0
  %v5677 = vadd.f32 %v5636, %v5676
  %5678 = vdwg.mxu0
  %5679 = vmatpush.msra.mxu0 0.0
  %5680 = vmatpush.msra.mxu0 0.0
  %5681 = vmatpush.msra.mxu0 0.0
  %5682 = vmatpush.msra.mxu0 0.0
  %5683 = vmatpush.msra.mxu0 0.0
  %5684 = vmatpush.msra.mxu0 0.0
  %5685 = vmatpush.msra.mxu0 0.0
  %5686 = vmatpush.msra.mxu0 0.0
  %5687 = vmatpush.msra.mxu0 0.0
  %5688 = vmatpush.msra.mxu0 0.0
  %5689 = vmatpush.msra.mxu0 0.0
  %5690 = vmatpush.msra.mxu0 0.0
  %v5691 = vand.u32 %v5591, 4294901760
  %v5692 = vsub.f32 %v5591, %v5691
  %5693 = vmatpush.msra.mxu0 %v5692
  %v5694 = vand.u32 %v5584, 4294901760
  %v5695 = vsub.f32 %v5584, %v5694
  %5696 = vmatpush.msra.mxu0 %v5695
  %v5697 = vand.u32 %v5577, 4294901760
  %v5698 = vsub.f32 %v5577, %v5697
  %5699 = vmatpush.msra.mxu0 %v5698
  %v5700 = vand.u32 %v5570, 4294901760
  %v5701 = vsub.f32 %v5570, %v5700
  %5702 = vmatpush.msra.mxu0 %v5701
  %v5703 = vand.u32 %v5607, 4294901760
  %v5704 = vsub.f32 %v5607, %v5703
  %5705 = vmatmul.f32.gmra.mxu0 %v5704
  %v5706 = vpop.f32.mrf.mxu0
  %v5707 = vadd.f32 %v5677, %v5706
  %5708 = vdwg.mxu0
  %5709 = vmatpush.msra.mxu0 0.0
  %5710 = vmatpush.msra.mxu0 0.0
  %5711 = vmatpush.msra.mxu0 0.0
  %5712 = vmatpush.msra.mxu0 0.0
  %5713 = vmatpush.msra.mxu0 0.0
  %5714 = vmatpush.msra.mxu0 0.0
  %5715 = vmatpush.msra.mxu0 0.0
  %5716 = vmatpush.msra.mxu0 0.0
  %5717 = vmatpush.msra.mxu0 0.0
  %5718 = vmatpush.msra.mxu0 0.0
  %5719 = vmatpush.msra.mxu0 0.0
  %5720 = vmatpush.msra.mxu0 0.0
  %v5721 = vand.u32 %v5591, 4294901760
  %5722 = vmatpush.msra.mxu0 %v5721
  %v5723 = vand.u32 %v5584, 4294901760
  %5724 = vmatpush.msra.mxu0 %v5723
  %v5725 = vand.u32 %v5577, 4294901760
  %5726 = vmatpush.msra.mxu0 %v5725
  %v5727 = vand.u32 %v5570, 4294901760
  %5728 = vmatpush.msra.mxu0 %v5727
  %v5729 = vand.u32 %v5607, 4294901760
  %v5730 = vsub.f32 %v5607, %v5729
  %v5731 = vand.u32 %v5730, 4294901760
  %5732 = vmatmul.f32.gmra.mxu0 %v5731
  %v5733 = vpop.f32.mrf.mxu0
  %v5734 = vadd.f32 %v5707, %v5733
  %5735 = vdwg.mxu0
  %5736 = vmatpush.msra.mxu0 0.0
  %5737 = vmatpush.msra.mxu0 0.0
  %5738 = vmatpush.msra.mxu0 0.0
  %5739 = vmatpush.msra.mxu0 0.0
  %5740 = vmatpush.msra.mxu0 0.0
  %5741 = vmatpush.msra.mxu0 0.0
  %5742 = vmatpush.msra.mxu0 0.0
  %5743 = vmatpush.msra.mxu0 0.0
  %5744 = vmatpush.msra.mxu0 0.0
  %5745 = vmatpush.msra.mxu0 0.0
  %5746 = vmatpush.msra.mxu0 0.0
  %5747 = vmatpush.msra.mxu0 0.0
  %v5748 = vand.u32 %v5591, 4294901760
  %v5749 = vsub.f32 %v5591, %v5748
  %v5750 = vand.u32 %v5749, 4294901760
  %5751 = vmatpush.msra.mxu0 %v5750
  %v5752 = vand.u32 %v5584, 4294901760
  %v5753 = vsub.f32 %v5584, %v5752
  %v5754 = vand.u32 %v5753, 4294901760
  %5755 = vmatpush.msra.mxu0 %v5754
  %v5756 = vand.u32 %v5577, 4294901760
  %v5757 = vsub.f32 %v5577, %v5756
  %v5758 = vand.u32 %v5757, 4294901760
  %5759 = vmatpush.msra.mxu0 %v5758
  %v5760 = vand.u32 %v5570, 4294901760
  %v5761 = vsub.f32 %v5570, %v5760
  %v5762 = vand.u32 %v5761, 4294901760
  %5763 = vmatpush.msra.mxu0 %v5762
  %v5764 = vand.u32 %v5607, 4294901760
  %5765 = vmatmul.f32.gmra.mxu0 %v5764
  %v5766 = vpop.f32.mrf.mxu0
  %v5767 = vadd.f32 %v5734, %v5766
  %5768 = vdwg.mxu0
  %5769 = vmatpush.msra.mxu0 0.0
  %5770 = vmatpush.msra.mxu0 0.0
  %5771 = vmatpush.msra.mxu0 0.0
  %5772 = vmatpush.msra.mxu0 0.0
  %5773 = vmatpush.msra.mxu0 0.0
  %5774 = vmatpush.msra.mxu0 0.0
  %5775 = vmatpush.msra.mxu0 0.0
  %5776 = vmatpush.msra.mxu0 0.0
  %5777 = vmatpush.msra.mxu0 0.0
  %5778 = vmatpush.msra.mxu0 0.0
  %5779 = vmatpush.msra.mxu0 0.0
  %5780 = vmatpush.msra.mxu0 0.0
  %v5781 = vand.u32 %v5591, 4294901760
  %5782 = vmatpush.msra.mxu0 %v5781
  %v5783 = vand.u32 %v5584, 4294901760
  %5784 = vmatpush.msra.mxu0 %v5783
  %v5785 = vand.u32 %v5577, 4294901760
  %5786 = vmatpush.msra.mxu0 %v5785
  %v5787 = vand.u32 %v5570, 4294901760
  %5788 = vmatpush.msra.mxu0 %v5787
  %v5789 = vand.u32 %v5607, 4294901760
  %5790 = vmatmul.f32.gmra.mxu0 %v5789
  %v5791 = vpop.f32.mrf.mxu0
  %v5792 = vadd.f32 %v5767, %v5791
  %5793 = vdwg.mxu0
  %5794 = vmatpush.msra.mxu0 0.0
  %5795 = vmatpush.msra.mxu0 0.0
  %5796 = vmatpush.msra.mxu0 0.0
  %5797 = vmatpush.msra.mxu0 0.0
  %5798 = vmatpush.msra.mxu0 0.0
  %5799 = vmatpush.msra.mxu0 0.0
  %5800 = vmatpush.msra.mxu0 0.0
  %5801 = vmatpush.msra.mxu0 0.0
  %5802 = vmatpush.msra.mxu0 0.0
  %5803 = vmatpush.msra.mxu0 0.0
  %5804 = vmatpush.msra.mxu0 0.0
  %5805 = vmatpush.msra.mxu0 0.0
  %v5806 = vand.u32 %v5592, 4294901760
  %5807 = vmatpush.msra.mxu0 %v5806
  %v5808 = vand.u32 %v5585, 4294901760
  %5809 = vmatpush.msra.mxu0 %v5808
  %v5810 = vand.u32 %v5578, 4294901760
  %5811 = vmatpush.msra.mxu0 %v5810
  %v5812 = vand.u32 %v5571, 4294901760
  %5813 = vmatpush.msra.mxu0 %v5812
  %v5814 = vand.u32 %v5607, 4294901760
  %v5815 = vsub.f32 %v5607, %v5814
  %v5816 = vand.u32 %v5815, 4294901760
  %v5817 = vsub.f32 %v5815, %v5816
  %v5818 = vand.u32 %v5817, 4294901760
  %5819 = vmatmul.f32.gmra.mxu0 %v5818
  %v5820 = vpop.f32.mrf.mxu0
  %v5821 = vadd.f32 %v5605, %v5820
  %5822 = vdwg.mxu0
  %5823 = vmatpush.msra.mxu0 0.0
  %5824 = vmatpush.msra.mxu0 0.0
  %5825 = vmatpush.msra.mxu0 0.0
  %5826 = vmatpush.msra.mxu0 0.0
  %5827 = vmatpush.msra.mxu0 0.0
  %5828 = vmatpush.msra.mxu0 0.0
  %5829 = vmatpush.msra.mxu0 0.0
  %5830 = vmatpush.msra.mxu0 0.0
  %5831 = vmatpush.msra.mxu0 0.0
  %5832 = vmatpush.msra.mxu0 0.0
  %5833 = vmatpush.msra.mxu0 0.0
  %5834 = vmatpush.msra.mxu0 0.0
  %v5835 = vand.u32 %v5592, 4294901760
  %v5836 = vsub.f32 %v5592, %v5835
  %v5837 = vand.u32 %v5836, 4294901760
  %v5838 = vsub.f32 %v5836, %v5837
  %v5839 = vand.u32 %v5838, 4294901760
  %5840 = vmatpush.msra.mxu0 %v5839
  %v5841 = vand.u32 %v5585, 4294901760
  %v5842 = vsub.f32 %v5585, %v5841
  %v5843 = vand.u32 %v5842, 4294901760
  %v5844 = vsub.f32 %v5842, %v5843
  %v5845 = vand.u32 %v5844, 4294901760
  %5846 = vmatpush.msra.mxu0 %v5845
  %v5847 = vand.u32 %v5578, 4294901760
  %v5848 = vsub.f32 %v5578, %v5847
  %v5849 = vand.u32 %v5848, 4294901760
  %v5850 = vsub.f32 %v5848, %v5849
  %v5851 = vand.u32 %v5850, 4294901760
  %5852 = vmatpush.msra.mxu0 %v5851
  %v5853 = vand.u32 %v5571, 4294901760
  %v5854 = vsub.f32 %v5571, %v5853
  %v5855 = vand.u32 %v5854, 4294901760
  %v5856 = vsub.f32 %v5854, %v5855
  %v5857 = vand.u32 %v5856, 4294901760
  %5858 = vmatpush.msra.mxu0 %v5857
  %v5859 = vand.u32 %v5607, 4294901760
  %5860 = vmatmul.f32.gmra.mxu0 %v5859
  %v5861 = vpop.f32.mrf.mxu0
  %v5862 = vadd.f32 %v5821, %v5861
  %5863 = vdwg.mxu0
  %5864 = vmatpush.msra.mxu0 0.0
  %5865 = vmatpush.msra.mxu0 0.0
  %5866 = vmatpush.msra.mxu0 0.0
  %5867 = vmatpush.msra.mxu0 0.0
  %5868 = vmatpush.msra.mxu0 0.0
  %5869 = vmatpush.msra.mxu0 0.0
  %5870 = vmatpush.msra.mxu0 0.0
  %5871 = vmatpush.msra.mxu0 0.0
  %5872 = vmatpush.msra.mxu0 0.0
  %5873 = vmatpush.msra.mxu0 0.0
  %5874 = vmatpush.msra.mxu0 0.0
  %5875 = vmatpush.msra.mxu0 0.0
  %v5876 = vand.u32 %v5592, 4294901760
  %v5877 = vsub.f32 %v5592, %v5876
  %5878 = vmatpush.msra.mxu0 %v5877
  %v5879 = vand.u32 %v5585, 4294901760
  %v5880 = vsub.f32 %v5585, %v5879
  %5881 = vmatpush.msra.mxu0 %v5880
  %v5882 = vand.u32 %v5578, 4294901760
  %v5883 = vsub.f32 %v5578, %v5882
  %5884 = vmatpush.msra.mxu0 %v5883
  %v5885 = vand.u32 %v5571, 4294901760
  %v5886 = vsub.f32 %v5571, %v5885
  %5887 = vmatpush.msra.mxu0 %v5886
  %v5888 = vand.u32 %v5607, 4294901760
  %v5889 = vsub.f32 %v5607, %v5888
  %5890 = vmatmul.f32.gmra.mxu0 %v5889
  %v5891 = vpop.f32.mrf.mxu0
  %v5892 = vadd.f32 %v5862, %v5891
  %5893 = vdwg.mxu0
  %5894 = vmatpush.msra.mxu0 0.0
  %5895 = vmatpush.msra.mxu0 0.0
  %5896 = vmatpush.msra.mxu0 0.0
  %5897 = vmatpush.msra.mxu0 0.0
  %5898 = vmatpush.msra.mxu0 0.0
  %5899 = vmatpush.msra.mxu0 0.0
  %5900 = vmatpush.msra.mxu0 0.0
  %5901 = vmatpush.msra.mxu0 0.0
  %5902 = vmatpush.msra.mxu0 0.0
  %5903 = vmatpush.msra.mxu0 0.0
  %5904 = vmatpush.msra.mxu0 0.0
  %5905 = vmatpush.msra.mxu0 0.0
  %v5906 = vand.u32 %v5592, 4294901760
  %5907 = vmatpush.msra.mxu0 %v5906
  %v5908 = vand.u32 %v5585, 4294901760
  %5909 = vmatpush.msra.mxu0 %v5908
  %v5910 = vand.u32 %v5578, 4294901760
  %5911 = vmatpush.msra.mxu0 %v5910
  %v5912 = vand.u32 %v5571, 4294901760
  %5913 = vmatpush.msra.mxu0 %v5912
  %v5914 = vand.u32 %v5607, 4294901760
  %v5915 = vsub.f32 %v5607, %v5914
  %v5916 = vand.u32 %v5915, 4294901760
  %5917 = vmatmul.f32.gmra.mxu0 %v5916
  %v5918 = vpop.f32.mrf.mxu0
  %v5919 = vadd.f32 %v5892, %v5918
  %5920 = vdwg.mxu0
  %5921 = vmatpush.msra.mxu0 0.0
  %5922 = vmatpush.msra.mxu0 0.0
  %5923 = vmatpush.msra.mxu0 0.0
  %5924 = vmatpush.msra.mxu0 0.0
  %5925 = vmatpush.msra.mxu0 0.0
  %5926 = vmatpush.msra.mxu0 0.0
  %5927 = vmatpush.msra.mxu0 0.0
  %5928 = vmatpush.msra.mxu0 0.0
  %5929 = vmatpush.msra.mxu0 0.0
  %5930 = vmatpush.msra.mxu0 0.0
  %5931 = vmatpush.msra.mxu0 0.0
  %5932 = vmatpush.msra.mxu0 0.0
  %v5933 = vand.u32 %v5592, 4294901760
  %v5934 = vsub.f32 %v5592, %v5933
  %v5935 = vand.u32 %v5934, 4294901760
  %5936 = vmatpush.msra.mxu0 %v5935
  %v5937 = vand.u32 %v5585, 4294901760
  %v5938 = vsub.f32 %v5585, %v5937
  %v5939 = vand.u32 %v5938, 4294901760
  %5940 = vmatpush.msra.mxu0 %v5939
  %v5941 = vand.u32 %v5578, 4294901760
  %v5942 = vsub.f32 %v5578, %v5941
  %v5943 = vand.u32 %v5942, 4294901760
  %5944 = vmatpush.msra.mxu0 %v5943
  %v5945 = vand.u32 %v5571, 4294901760
  %v5946 = vsub.f32 %v5571, %v5945
  %v5947 = vand.u32 %v5946, 4294901760
  %5948 = vmatpush.msra.mxu0 %v5947
  %v5949 = vand.u32 %v5607, 4294901760
  %5950 = vmatmul.f32.gmra.mxu0 %v5949
  %v5951 = vpop.f32.mrf.mxu0
  %v5952 = vadd.f32 %v5919, %v5951
  %5953 = vdwg.mxu0
  %5954 = vmatpush.msra.mxu0 0.0
  %5955 = vmatpush.msra.mxu0 0.0
  %5956 = vmatpush.msra.mxu0 0.0
  %5957 = vmatpush.msra.mxu0 0.0
  %5958 = vmatpush.msra.mxu0 0.0
  %5959 = vmatpush.msra.mxu0 0.0
  %5960 = vmatpush.msra.mxu0 0.0
  %5961 = vmatpush.msra.mxu0 0.0
  %5962 = vmatpush.msra.mxu0 0.0
  %5963 = vmatpush.msra.mxu0 0.0
  %5964 = vmatpush.msra.mxu0 0.0
  %5965 = vmatpush.msra.mxu0 0.0
  %v5966 = vand.u32 %v5592, 4294901760
  %5967 = vmatpush.msra.mxu0 %v5966
  %v5968 = vand.u32 %v5585, 4294901760
  %5969 = vmatpush.msra.mxu0 %v5968
  %v5970 = vand.u32 %v5578, 4294901760
  %5971 = vmatpush.msra.mxu0 %v5970
  %v5972 = vand.u32 %v5571, 4294901760
  %5973 = vmatpush.msra.mxu0 %v5972
  %v5974 = vand.u32 %v5607, 4294901760
  %5975 = vmatmul.f32.gmra.mxu0 %v5974
  %v5976 = vpop.f32.mrf.mxu0
  %v5977 = vadd.f32 %v5952, %v5976
  %5978 = vdwg.mxu0
  %5979 = vmatpush.msra.mxu0 0.0
  %5980 = vmatpush.msra.mxu0 0.0
  %5981 = vmatpush.msra.mxu0 0.0
  %5982 = vmatpush.msra.mxu0 0.0
  %5983 = vmatpush.msra.mxu0 0.0
  %5984 = vmatpush.msra.mxu0 0.0
  %5985 = vmatpush.msra.mxu0 0.0
  %5986 = vmatpush.msra.mxu0 0.0
  %5987 = vmatpush.msra.mxu0 0.0
  %5988 = vmatpush.msra.mxu0 0.0
  %5989 = vmatpush.msra.mxu0 0.0
  %5990 = vmatpush.msra.mxu0 0.0
  %v5991 = vand.u32 %v5593, 4294901760
  %5992 = vmatpush.msra.mxu0 %v5991
  %v5993 = vand.u32 %v5586, 4294901760
  %5994 = vmatpush.msra.mxu0 %v5993
  %v5995 = vand.u32 %v5579, 4294901760
  %5996 = vmatpush.msra.mxu0 %v5995
  %v5997 = vand.u32 %v5572, 4294901760
  %5998 = vmatpush.msra.mxu0 %v5997
  %v5999 = vand.u32 %v5607, 4294901760
  %v6000 = vsub.f32 %v5607, %v5999
  %v6001 = vand.u32 %v6000, 4294901760
  %v6002 = vsub.f32 %v6000, %v6001
  %v6003 = vand.u32 %v6002, 4294901760
  %6004 = vmatmul.f32.gmra.mxu0 %v6003
  %v6005 = vpop.f32.mrf.mxu0
  %v6006 = vadd.f32 %v5605, %v6005
  %6007 = vdwg.mxu0
  %6008 = vmatpush.msra.mxu0 0.0
  %6009 = vmatpush.msra.mxu0 0.0
  %6010 = vmatpush.msra.mxu0 0.0
  %6011 = vmatpush.msra.mxu0 0.0
  %6012 = vmatpush.msra.mxu0 0.0
  %6013 = vmatpush.msra.mxu0 0.0
  %6014 = vmatpush.msra.mxu0 0.0
  %6015 = vmatpush.msra.mxu0 0.0
  %6016 = vmatpush.msra.mxu0 0.0
  %6017 = vmatpush.msra.mxu0 0.0
  %6018 = vmatpush.msra.mxu0 0.0
  %6019 = vmatpush.msra.mxu0 0.0
  %v6020 = vand.u32 %v5593, 4294901760
  %v6021 = vsub.f32 %v5593, %v6020
  %v6022 = vand.u32 %v6021, 4294901760
  %v6023 = vsub.f32 %v6021, %v6022
  %v6024 = vand.u32 %v6023, 4294901760
  %6025 = vmatpush.msra.mxu0 %v6024
  %v6026 = vand.u32 %v5586, 4294901760
  %v6027 = vsub.f32 %v5586, %v6026
  %v6028 = vand.u32 %v6027, 4294901760
  %v6029 = vsub.f32 %v6027, %v6028
  %v6030 = vand.u32 %v6029, 4294901760
  %6031 = vmatpush.msra.mxu0 %v6030
  %v6032 = vand.u32 %v5579, 4294901760
  %v6033 = vsub.f32 %v5579, %v6032
  %v6034 = vand.u32 %v6033, 4294901760
  %v6035 = vsub.f32 %v6033, %v6034
  %v6036 = vand.u32 %v6035, 4294901760
  %6037 = vmatpush.msra.mxu0 %v6036
  %v6038 = vand.u32 %v5572, 4294901760
  %v6039 = vsub.f32 %v5572, %v6038
  %v6040 = vand.u32 %v6039, 4294901760
  %v6041 = vsub.f32 %v6039, %v6040
  %v6042 = vand.u32 %v6041, 4294901760
  %6043 = vmatpush.msra.mxu0 %v6042
  %v6044 = vand.u32 %v5607, 4294901760
  %6045 = vmatmul.f32.gmra.mxu0 %v6044
  %v6046 = vpop.f32.mrf.mxu0
  %v6047 = vadd.f32 %v6006, %v6046
  %6048 = vdwg.mxu0
  %6049 = vmatpush.msra.mxu0 0.0
  %6050 = vmatpush.msra.mxu0 0.0
  %6051 = vmatpush.msra.mxu0 0.0
  %6052 = vmatpush.msra.mxu0 0.0
  %6053 = vmatpush.msra.mxu0 0.0
  %6054 = vmatpush.msra.mxu0 0.0
  %6055 = vmatpush.msra.mxu0 0.0
  %6056 = vmatpush.msra.mxu0 0.0
  %6057 = vmatpush.msra.mxu0 0.0
  %6058 = vmatpush.msra.mxu0 0.0
  %6059 = vmatpush.msra.mxu0 0.0
  %6060 = vmatpush.msra.mxu0 0.0
  %v6061 = vand.u32 %v5593, 4294901760
  %v6062 = vsub.f32 %v5593, %v6061
  %6063 = vmatpush.msra.mxu0 %v6062
  %v6064 = vand.u32 %v5586, 4294901760
  %v6065 = vsub.f32 %v5586, %v6064
  %6066 = vmatpush.msra.mxu0 %v6065
  %v6067 = vand.u32 %v5579, 4294901760
  %v6068 = vsub.f32 %v5579, %v6067
  %6069 = vmatpush.msra.mxu0 %v6068
  %v6070 = vand.u32 %v5572, 4294901760
  %v6071 = vsub.f32 %v5572, %v6070
  %6072 = vmatpush.msra.mxu0 %v6071
  %v6073 = vand.u32 %v5607, 4294901760
  %v6074 = vsub.f32 %v5607, %v6073
  %6075 = vmatmul.f32.gmra.mxu0 %v6074
  %v6076 = vpop.f32.mrf.mxu0
  %v6077 = vadd.f32 %v6047, %v6076
  %6078 = vdwg.mxu0
  %6079 = vmatpush.msra.mxu0 0.0
  %6080 = vmatpush.msra.mxu0 0.0
  %6081 = vmatpush.msra.mxu0 0.0
  %6082 = vmatpush.msra.mxu0 0.0
  %6083 = vmatpush.msra.mxu0 0.0
  %6084 = vmatpush.msra.mxu0 0.0
  %6085 = vmatpush.msra.mxu0 0.0
  %6086 = vmatpush.msra.mxu0 0.0
  %6087 = vmatpush.msra.mxu0 0.0
  %6088 = vmatpush.msra.mxu0 0.0
  %6089 = vmatpush.msra.mxu0 0.0
  %6090 = vmatpush.msra.mxu0 0.0
  %v6091 = vand.u32 %v5593, 4294901760
  %6092 = vmatpush.msra.mxu0 %v6091
  %v6093 = vand.u32 %v5586, 4294901760
  %6094 = vmatpush.msra.mxu0 %v6093
  %v6095 = vand.u32 %v5579, 4294901760
  %6096 = vmatpush.msra.mxu0 %v6095
  %v6097 = vand.u32 %v5572, 4294901760
  %6098 = vmatpush.msra.mxu0 %v6097
  %v6099 = vand.u32 %v5607, 4294901760
  %v6100 = vsub.f32 %v5607, %v6099
  %v6101 = vand.u32 %v6100, 4294901760
  %6102 = vmatmul.f32.gmra.mxu0 %v6101
  %v6103 = vpop.f32.mrf.mxu0
  %v6104 = vadd.f32 %v6077, %v6103
  %6105 = vdwg.mxu0
  %6106 = vmatpush.msra.mxu0 0.0
  %6107 = vmatpush.msra.mxu0 0.0
  %6108 = vmatpush.msra.mxu0 0.0
  %6109 = vmatpush.msra.mxu0 0.0
  %6110 = vmatpush.msra.mxu0 0.0
  %6111 = vmatpush.msra.mxu0 0.0
  %6112 = vmatpush.msra.mxu0 0.0
  %6113 = vmatpush.msra.mxu0 0.0
  %6114 = vmatpush.msra.mxu0 0.0
  %6115 = vmatpush.msra.mxu0 0.0
  %6116 = vmatpush.msra.mxu0 0.0
  %6117 = vmatpush.msra.mxu0 0.0
  %v6118 = vand.u32 %v5593, 4294901760
  %v6119 = vsub.f32 %v5593, %v6118
  %v6120 = vand.u32 %v6119, 4294901760
  %6121 = vmatpush.msra.mxu0 %v6120
  %v6122 = vand.u32 %v5586, 4294901760
  %v6123 = vsub.f32 %v5586, %v6122
  %v6124 = vand.u32 %v6123, 4294901760
  %6125 = vmatpush.msra.mxu0 %v6124
  %v6126 = vand.u32 %v5579, 4294901760
  %v6127 = vsub.f32 %v5579, %v6126
  %v6128 = vand.u32 %v6127, 4294901760
  %6129 = vmatpush.msra.mxu0 %v6128
  %v6130 = vand.u32 %v5572, 4294901760
  %v6131 = vsub.f32 %v5572, %v6130
  %v6132 = vand.u32 %v6131, 4294901760
  %6133 = vmatpush.msra.mxu0 %v6132
  %v6134 = vand.u32 %v5607, 4294901760
  %6135 = vmatmul.f32.gmra.mxu0 %v6134
  %v6136 = vpop.f32.mrf.mxu0
  %v6137 = vadd.f32 %v6104, %v6136
  %6138 = vdwg.mxu0
  %6139 = vmatpush.msra.mxu0 0.0
  %6140 = vmatpush.msra.mxu0 0.0
  %6141 = vmatpush.msra.mxu0 0.0
  %6142 = vmatpush.msra.mxu0 0.0
  %6143 = vmatpush.msra.mxu0 0.0
  %6144 = vmatpush.msra.mxu0 0.0
  %6145 = vmatpush.msra.mxu0 0.0
  %6146 = vmatpush.msra.mxu0 0.0
  %6147 = vmatpush.msra.mxu0 0.0
  %6148 = vmatpush.msra.mxu0 0.0
  %6149 = vmatpush.msra.mxu0 0.0
  %6150 = vmatpush.msra.mxu0 0.0
  %v6151 = vand.u32 %v5593, 4294901760
  %6152 = vmatpush.msra.mxu0 %v6151
  %v6153 = vand.u32 %v5586, 4294901760
  %6154 = vmatpush.msra.mxu0 %v6153
  %v6155 = vand.u32 %v5579, 4294901760
  %6156 = vmatpush.msra.mxu0 %v6155
  %v6157 = vand.u32 %v5572, 4294901760
  %6158 = vmatpush.msra.mxu0 %v6157
  %v6159 = vand.u32 %v5607, 4294901760
  %6160 = vmatmul.f32.gmra.mxu0 %v6159
  %v6161 = vpop.f32.mrf.mxu0
  %v6162 = vadd.f32 %v6137, %v6161
  %6163 = vdwg.mxu0
  %6164 = vmatpush.msra.mxu0 0.0
  %6165 = vmatpush.msra.mxu0 0.0
  %6166 = vmatpush.msra.mxu0 0.0
  %6167 = vmatpush.msra.mxu0 0.0
  %6168 = vmatpush.msra.mxu0 0.0
  %6169 = vmatpush.msra.mxu0 0.0
  %6170 = vmatpush.msra.mxu0 0.0
  %6171 = vmatpush.msra.mxu0 0.0
  %6172 = vmatpush.msra.mxu0 0.0
  %6173 = vmatpush.msra.mxu0 0.0
  %6174 = vmatpush.msra.mxu0 0.0
  %6175 = vmatpush.msra.mxu0 0.0
  %v6176 = vand.u32 %v5594, 4294901760
  %6177 = vmatpush.msra.mxu0 %v6176
  %v6178 = vand.u32 %v5587, 4294901760
  %6179 = vmatpush.msra.mxu0 %v6178
  %v6180 = vand.u32 %v5580, 4294901760
  %6181 = vmatpush.msra.mxu0 %v6180
  %v6182 = vand.u32 %v5573, 4294901760
  %6183 = vmatpush.msra.mxu0 %v6182
  %v6184 = vand.u32 %v5607, 4294901760
  %v6185 = vsub.f32 %v5607, %v6184
  %v6186 = vand.u32 %v6185, 4294901760
  %v6187 = vsub.f32 %v6185, %v6186
  %v6188 = vand.u32 %v6187, 4294901760
  %6189 = vmatmul.f32.gmra.mxu0 %v6188
  %v6190 = vpop.f32.mrf.mxu0
  %v6191 = vadd.f32 %v5605, %v6190
  %6192 = vdwg.mxu0
  %6193 = vmatpush.msra.mxu0 0.0
  %6194 = vmatpush.msra.mxu0 0.0
  %6195 = vmatpush.msra.mxu0 0.0
  %6196 = vmatpush.msra.mxu0 0.0
  %6197 = vmatpush.msra.mxu0 0.0
  %6198 = vmatpush.msra.mxu0 0.0
  %6199 = vmatpush.msra.mxu0 0.0
  %6200 = vmatpush.msra.mxu0 0.0
  %6201 = vmatpush.msra.mxu0 0.0
  %6202 = vmatpush.msra.mxu0 0.0
  %6203 = vmatpush.msra.mxu0 0.0
  %6204 = vmatpush.msra.mxu0 0.0
  %v6205 = vand.u32 %v5594, 4294901760
  %v6206 = vsub.f32 %v5594, %v6205
  %v6207 = vand.u32 %v6206, 4294901760
  %v6208 = vsub.f32 %v6206, %v6207
  %v6209 = vand.u32 %v6208, 4294901760
  %6210 = vmatpush.msra.mxu0 %v6209
  %v6211 = vand.u32 %v5587, 4294901760
  %v6212 = vsub.f32 %v5587, %v6211
  %v6213 = vand.u32 %v6212, 4294901760
  %v6214 = vsub.f32 %v6212, %v6213
  %v6215 = vand.u32 %v6214, 4294901760
  %6216 = vmatpush.msra.mxu0 %v6215
  %v6217 = vand.u32 %v5580, 4294901760
  %v6218 = vsub.f32 %v5580, %v6217
  %v6219 = vand.u32 %v6218, 4294901760
  %v6220 = vsub.f32 %v6218, %v6219
  %v6221 = vand.u32 %v6220, 4294901760
  %6222 = vmatpush.msra.mxu0 %v6221
  %v6223 = vand.u32 %v5573, 4294901760
  %v6224 = vsub.f32 %v5573, %v6223
  %v6225 = vand.u32 %v6224, 4294901760
  %v6226 = vsub.f32 %v6224, %v6225
  %v6227 = vand.u32 %v6226, 4294901760
  %6228 = vmatpush.msra.mxu0 %v6227
  %v6229 = vand.u32 %v5607, 4294901760
  %6230 = vmatmul.f32.gmra.mxu0 %v6229
  %v6231 = vpop.f32.mrf.mxu0
  %v6232 = vadd.f32 %v6191, %v6231
  %6233 = vdwg.mxu0
  %6234 = vmatpush.msra.mxu0 0.0
  %6235 = vmatpush.msra.mxu0 0.0
  %6236 = vmatpush.msra.mxu0 0.0
  %6237 = vmatpush.msra.mxu0 0.0
  %6238 = vmatpush.msra.mxu0 0.0
  %6239 = vmatpush.msra.mxu0 0.0
  %6240 = vmatpush.msra.mxu0 0.0
  %6241 = vmatpush.msra.mxu0 0.0
  %6242 = vmatpush.msra.mxu0 0.0
  %6243 = vmatpush.msra.mxu0 0.0
  %6244 = vmatpush.msra.mxu0 0.0
  %6245 = vmatpush.msra.mxu0 0.0
  %v6246 = vand.u32 %v5594, 4294901760
  %v6247 = vsub.f32 %v5594, %v6246
  %6248 = vmatpush.msra.mxu0 %v6247
  %v6249 = vand.u32 %v5587, 4294901760
  %v6250 = vsub.f32 %v5587, %v6249
  %6251 = vmatpush.msra.mxu0 %v6250
  %v6252 = vand.u32 %v5580, 4294901760
  %v6253 = vsub.f32 %v5580, %v6252
  %6254 = vmatpush.msra.mxu0 %v6253
  %v6255 = vand.u32 %v5573, 4294901760
  %v6256 = vsub.f32 %v5573, %v6255
  %6257 = vmatpush.msra.mxu0 %v6256
  %v6258 = vand.u32 %v5607, 4294901760
  %v6259 = vsub.f32 %v5607, %v6258
  %6260 = vmatmul.f32.gmra.mxu0 %v6259
  %v6261 = vpop.f32.mrf.mxu0
  %v6262 = vadd.f32 %v6232, %v6261
  %6263 = vdwg.mxu0
  %6264 = vmatpush.msra.mxu0 0.0
  %6265 = vmatpush.msra.mxu0 0.0
  %6266 = vmatpush.msra.mxu0 0.0
  %6267 = vmatpush.msra.mxu0 0.0
  %6268 = vmatpush.msra.mxu0 0.0
  %6269 = vmatpush.msra.mxu0 0.0
  %6270 = vmatpush.msra.mxu0 0.0
  %6271 = vmatpush.msra.mxu0 0.0
  %6272 = vmatpush.msra.mxu0 0.0
  %6273 = vmatpush.msra.mxu0 0.0
  %6274 = vmatpush.msra.mxu0 0.0
  %6275 = vmatpush.msra.mxu0 0.0
  %v6276 = vand.u32 %v5594, 4294901760
  %6277 = vmatpush.msra.mxu0 %v6276
  %v6278 = vand.u32 %v5587, 4294901760
  %6279 = vmatpush.msra.mxu0 %v6278
  %v6280 = vand.u32 %v5580, 4294901760
  %6281 = vmatpush.msra.mxu0 %v6280
  %v6282 = vand.u32 %v5573, 4294901760
  %6283 = vmatpush.msra.mxu0 %v6282
  %v6284 = vand.u32 %v5607, 4294901760
  %v6285 = vsub.f32 %v5607, %v6284
  %v6286 = vand.u32 %v6285, 4294901760
  %6287 = vmatmul.f32.gmra.mxu0 %v6286
  %v6288 = vpop.f32.mrf.mxu0
  %v6289 = vadd.f32 %v6262, %v6288
  %6290 = vdwg.mxu0
  %6291 = vmatpush.msra.mxu0 0.0
  %6292 = vmatpush.msra.mxu0 0.0
  %6293 = vmatpush.msra.mxu0 0.0
  %6294 = vmatpush.msra.mxu0 0.0
  %6295 = vmatpush.msra.mxu0 0.0
  %6296 = vmatpush.msra.mxu0 0.0
  %6297 = vmatpush.msra.mxu0 0.0
  %6298 = vmatpush.msra.mxu0 0.0
  %6299 = vmatpush.msra.mxu0 0.0
  %6300 = vmatpush.msra.mxu0 0.0
  %6301 = vmatpush.msra.mxu0 0.0
  %6302 = vmatpush.msra.mxu0 0.0
  %v6303 = vand.u32 %v5594, 4294901760
  %v6304 = vsub.f32 %v5594, %v6303
  %v6305 = vand.u32 %v6304, 4294901760
  %6306 = vmatpush.msra.mxu0 %v6305
  %v6307 = vand.u32 %v5587, 4294901760
  %v6308 = vsub.f32 %v5587, %v6307
  %v6309 = vand.u32 %v6308, 4294901760
  %6310 = vmatpush.msra.mxu0 %v6309
  %v6311 = vand.u32 %v5580, 4294901760
  %v6312 = vsub.f32 %v5580, %v6311
  %v6313 = vand.u32 %v6312, 4294901760
  %6314 = vmatpush.msra.mxu0 %v6313
  %v6315 = vand.u32 %v5573, 4294901760
  %v6316 = vsub.f32 %v5573, %v6315
  %v6317 = vand.u32 %v6316, 4294901760
  %6318 = vmatpush.msra.mxu0 %v6317
  %v6319 = vand.u32 %v5607, 4294901760
  %6320 = vmatmul.f32.gmra.mxu0 %v6319
  %v6321 = vpop.f32.mrf.mxu0
  %v6322 = vadd.f32 %v6289, %v6321
  %6323 = vdwg.mxu0
  %6324 = vmatpush.msra.mxu0 0.0
  %6325 = vmatpush.msra.mxu0 0.0
  %6326 = vmatpush.msra.mxu0 0.0
  %6327 = vmatpush.msra.mxu0 0.0
  %6328 = vmatpush.msra.mxu0 0.0
  %6329 = vmatpush.msra.mxu0 0.0
  %6330 = vmatpush.msra.mxu0 0.0
  %6331 = vmatpush.msra.mxu0 0.0
  %6332 = vmatpush.msra.mxu0 0.0
  %6333 = vmatpush.msra.mxu0 0.0
  %6334 = vmatpush.msra.mxu0 0.0
  %6335 = vmatpush.msra.mxu0 0.0
  %v6336 = vand.u32 %v5594, 4294901760
  %6337 = vmatpush.msra.mxu0 %v6336
  %v6338 = vand.u32 %v5587, 4294901760
  %6339 = vmatpush.msra.mxu0 %v6338
  %v6340 = vand.u32 %v5580, 4294901760
  %6341 = vmatpush.msra.mxu0 %v6340
  %v6342 = vand.u32 %v5573, 4294901760
  %6343 = vmatpush.msra.mxu0 %v6342
  %v6344 = vand.u32 %v5607, 4294901760
  %6345 = vmatmul.f32.gmra.mxu0 %v6344
  %v6346 = vpop.f32.mrf.mxu0
  %v6347 = vadd.f32 %v6322, %v6346
  %6348 = vdwg.mxu0
  %6349 = vmatpush.msra.mxu0 0.0
  %6350 = vmatpush.msra.mxu0 0.0
  %6351 = vmatpush.msra.mxu0 0.0
  %6352 = vmatpush.msra.mxu0 0.0
  %6353 = vmatpush.msra.mxu0 0.0
  %6354 = vmatpush.msra.mxu0 0.0
  %6355 = vmatpush.msra.mxu0 0.0
  %6356 = vmatpush.msra.mxu0 0.0
  %6357 = vmatpush.msra.mxu0 0.0
  %6358 = vmatpush.msra.mxu0 0.0
  %6359 = vmatpush.msra.mxu0 0.0
  %6360 = vmatpush.msra.mxu0 0.0
  %v6361 = vand.u32 %v5595, 4294901760
  %6362 = vmatpush.msra.mxu0 %v6361
  %v6363 = vand.u32 %v5588, 4294901760
  %6364 = vmatpush.msra.mxu0 %v6363
  %v6365 = vand.u32 %v5581, 4294901760
  %6366 = vmatpush.msra.mxu0 %v6365
  %v6367 = vand.u32 %v5574, 4294901760
  %6368 = vmatpush.msra.mxu0 %v6367
  %v6369 = vand.u32 %v5607, 4294901760
  %v6370 = vsub.f32 %v5607, %v6369
  %v6371 = vand.u32 %v6370, 4294901760
  %v6372 = vsub.f32 %v6370, %v6371
  %v6373 = vand.u32 %v6372, 4294901760
  %6374 = vmatmul.f32.gmra.mxu0 %v6373
  %v6375 = vpop.f32.mrf.mxu0
  %v6376 = vadd.f32 %v5605, %v6375
  %6377 = vdwg.mxu0
  %6378 = vmatpush.msra.mxu0 0.0
  %6379 = vmatpush.msra.mxu0 0.0
  %6380 = vmatpush.msra.mxu0 0.0
  %6381 = vmatpush.msra.mxu0 0.0
  %6382 = vmatpush.msra.mxu0 0.0
  %6383 = vmatpush.msra.mxu0 0.0
  %6384 = vmatpush.msra.mxu0 0.0
  %6385 = vmatpush.msra.mxu0 0.0
  %6386 = vmatpush.msra.mxu0 0.0
  %6387 = vmatpush.msra.mxu0 0.0
  %6388 = vmatpush.msra.mxu0 0.0
  %6389 = vmatpush.msra.mxu0 0.0
  %v6390 = vand.u32 %v5595, 4294901760
  %v6391 = vsub.f32 %v5595, %v6390
  %v6392 = vand.u32 %v6391, 4294901760
  %v6393 = vsub.f32 %v6391, %v6392
  %v6394 = vand.u32 %v6393, 4294901760
  %6395 = vmatpush.msra.mxu0 %v6394
  %v6396 = vand.u32 %v5588, 4294901760
  %v6397 = vsub.f32 %v5588, %v6396
  %v6398 = vand.u32 %v6397, 4294901760
  %v6399 = vsub.f32 %v6397, %v6398
  %v6400 = vand.u32 %v6399, 4294901760
  %6401 = vmatpush.msra.mxu0 %v6400
  %v6402 = vand.u32 %v5581, 4294901760
  %v6403 = vsub.f32 %v5581, %v6402
  %v6404 = vand.u32 %v6403, 4294901760
  %v6405 = vsub.f32 %v6403, %v6404
  %v6406 = vand.u32 %v6405, 4294901760
  %6407 = vmatpush.msra.mxu0 %v6406
  %v6408 = vand.u32 %v5574, 4294901760
  %v6409 = vsub.f32 %v5574, %v6408
  %v6410 = vand.u32 %v6409, 4294901760
  %v6411 = vsub.f32 %v6409, %v6410
  %v6412 = vand.u32 %v6411, 4294901760
  %6413 = vmatpush.msra.mxu0 %v6412
  %v6414 = vand.u32 %v5607, 4294901760
  %6415 = vmatmul.f32.gmra.mxu0 %v6414
  %v6416 = vpop.f32.mrf.mxu0
  %v6417 = vadd.f32 %v6376, %v6416
  %6418 = vdwg.mxu0
  %6419 = vmatpush.msra.mxu0 0.0
  %6420 = vmatpush.msra.mxu0 0.0
  %6421 = vmatpush.msra.mxu0 0.0
  %6422 = vmatpush.msra.mxu0 0.0
  %6423 = vmatpush.msra.mxu0 0.0
  %6424 = vmatpush.msra.mxu0 0.0
  %6425 = vmatpush.msra.mxu0 0.0
  %6426 = vmatpush.msra.mxu0 0.0
  %6427 = vmatpush.msra.mxu0 0.0
  %6428 = vmatpush.msra.mxu0 0.0
  %6429 = vmatpush.msra.mxu0 0.0
  %6430 = vmatpush.msra.mxu0 0.0
  %v6431 = vand.u32 %v5595, 4294901760
  %v6432 = vsub.f32 %v5595, %v6431
  %6433 = vmatpush.msra.mxu0 %v6432
  %v6434 = vand.u32 %v5588, 4294901760
  %v6435 = vsub.f32 %v5588, %v6434
  %6436 = vmatpush.msra.mxu0 %v6435
  %v6437 = vand.u32 %v5581, 4294901760
  %v6438 = vsub.f32 %v5581, %v6437
  %6439 = vmatpush.msra.mxu0 %v6438
  %v6440 = vand.u32 %v5574, 4294901760
  %v6441 = vsub.f32 %v5574, %v6440
  %6442 = vmatpush.msra.mxu0 %v6441
  %v6443 = vand.u32 %v5607, 4294901760
  %v6444 = vsub.f32 %v5607, %v6443
  %6445 = vmatmul.f32.gmra.mxu0 %v6444
  %v6446 = vpop.f32.mrf.mxu0
  %v6447 = vadd.f32 %v6417, %v6446
  %6448 = vdwg.mxu0
  %6449 = vmatpush.msra.mxu0 0.0
  %6450 = vmatpush.msra.mxu0 0.0
  %6451 = vmatpush.msra.mxu0 0.0
  %6452 = vmatpush.msra.mxu0 0.0
  %6453 = vmatpush.msra.mxu0 0.0
  %6454 = vmatpush.msra.mxu0 0.0
  %6455 = vmatpush.msra.mxu0 0.0
  %6456 = vmatpush.msra.mxu0 0.0
  %6457 = vmatpush.msra.mxu0 0.0
  %6458 = vmatpush.msra.mxu0 0.0
  %6459 = vmatpush.msra.mxu0 0.0
  %6460 = vmatpush.msra.mxu0 0.0
  %v6461 = vand.u32 %v5595, 4294901760
  %6462 = vmatpush.msra.mxu0 %v6461
  %v6463 = vand.u32 %v5588, 4294901760
  %6464 = vmatpush.msra.mxu0 %v6463
  %v6465 = vand.u32 %v5581, 4294901760
  %6466 = vmatpush.msra.mxu0 %v6465
  %v6467 = vand.u32 %v5574, 4294901760
  %6468 = vmatpush.msra.mxu0 %v6467
  %v6469 = vand.u32 %v5607, 4294901760
  %v6470 = vsub.f32 %v5607, %v6469
  %v6471 = vand.u32 %v6470, 4294901760
  %6472 = vmatmul.f32.gmra.mxu0 %v6471
  %v6473 = vpop.f32.mrf.mxu0
  %v6474 = vadd.f32 %v6447, %v6473
  %6475 = vdwg.mxu0
  %6476 = vmatpush.msra.mxu0 0.0
  %6477 = vmatpush.msra.mxu0 0.0
  %6478 = vmatpush.msra.mxu0 0.0
  %6479 = vmatpush.msra.mxu0 0.0
  %6480 = vmatpush.msra.mxu0 0.0
  %6481 = vmatpush.msra.mxu0 0.0
  %6482 = vmatpush.msra.mxu0 0.0
  %6483 = vmatpush.msra.mxu0 0.0
  %6484 = vmatpush.msra.mxu0 0.0
  %6485 = vmatpush.msra.mxu0 0.0
  %6486 = vmatpush.msra.mxu0 0.0
  %6487 = vmatpush.msra.mxu0 0.0
  %v6488 = vand.u32 %v5595, 4294901760
  %v6489 = vsub.f32 %v5595, %v6488
  %v6490 = vand.u32 %v6489, 4294901760
  %6491 = vmatpush.msra.mxu0 %v6490
  %v6492 = vand.u32 %v5588, 4294901760
  %v6493 = vsub.f32 %v5588, %v6492
  %v6494 = vand.u32 %v6493, 4294901760
  %6495 = vmatpush.msra.mxu0 %v6494
  %v6496 = vand.u32 %v5581, 4294901760
  %v6497 = vsub.f32 %v5581, %v6496
  %v6498 = vand.u32 %v6497, 4294901760
  %6499 = vmatpush.msra.mxu0 %v6498
  %v6500 = vand.u32 %v5574, 4294901760
  %v6501 = vsub.f32 %v5574, %v6500
  %v6502 = vand.u32 %v6501, 4294901760
  %6503 = vmatpush.msra.mxu0 %v6502
  %v6504 = vand.u32 %v5607, 4294901760
  %6505 = vmatmul.f32.gmra.mxu0 %v6504
  %v6506 = vpop.f32.mrf.mxu0
  %v6507 = vadd.f32 %v6474, %v6506
  %6508 = vdwg.mxu0
  %6509 = vmatpush.msra.mxu0 0.0
  %6510 = vmatpush.msra.mxu0 0.0
  %6511 = vmatpush.msra.mxu0 0.0
  %6512 = vmatpush.msra.mxu0 0.0
  %6513 = vmatpush.msra.mxu0 0.0
  %6514 = vmatpush.msra.mxu0 0.0
  %6515 = vmatpush.msra.mxu0 0.0
  %6516 = vmatpush.msra.mxu0 0.0
  %6517 = vmatpush.msra.mxu0 0.0
  %6518 = vmatpush.msra.mxu0 0.0
  %6519 = vmatpush.msra.mxu0 0.0
  %6520 = vmatpush.msra.mxu0 0.0
  %v6521 = vand.u32 %v5595, 4294901760
  %6522 = vmatpush.msra.mxu0 %v6521
  %v6523 = vand.u32 %v5588, 4294901760
  %6524 = vmatpush.msra.mxu0 %v6523
  %v6525 = vand.u32 %v5581, 4294901760
  %6526 = vmatpush.msra.mxu0 %v6525
  %v6527 = vand.u32 %v5574, 4294901760
  %6528 = vmatpush.msra.mxu0 %v6527
  %v6529 = vand.u32 %v5607, 4294901760
  %6530 = vmatmul.f32.gmra.mxu0 %v6529
  %v6531 = vpop.f32.mrf.mxu0
  %v6532 = vadd.f32 %v6507, %v6531
  %6533 = vdwg.mxu0
  %6534 = vmatpush.msra.mxu0 0.0
  %6535 = vmatpush.msra.mxu0 0.0
  %6536 = vmatpush.msra.mxu0 0.0
  %6537 = vmatpush.msra.mxu0 0.0
  %6538 = vmatpush.msra.mxu0 0.0
  %6539 = vmatpush.msra.mxu0 0.0
  %6540 = vmatpush.msra.mxu0 0.0
  %6541 = vmatpush.msra.mxu0 0.0
  %6542 = vmatpush.msra.mxu0 0.0
  %6543 = vmatpush.msra.mxu0 0.0
  %6544 = vmatpush.msra.mxu0 0.0
  %6545 = vmatpush.msra.mxu0 0.0
  %v6546 = vand.u32 %v5596, 4294901760
  %6547 = vmatpush.msra.mxu0 %v6546
  %v6548 = vand.u32 %v5589, 4294901760
  %6549 = vmatpush.msra.mxu0 %v6548
  %v6550 = vand.u32 %v5582, 4294901760
  %6551 = vmatpush.msra.mxu0 %v6550
  %v6552 = vand.u32 %v5575, 4294901760
  %6553 = vmatpush.msra.mxu0 %v6552
  %v6554 = vand.u32 %v5607, 4294901760
  %v6555 = vsub.f32 %v5607, %v6554
  %v6556 = vand.u32 %v6555, 4294901760
  %v6557 = vsub.f32 %v6555, %v6556
  %v6558 = vand.u32 %v6557, 4294901760
  %6559 = vmatmul.f32.gmra.mxu0 %v6558
  %v6560 = vpop.f32.mrf.mxu0
  %v6561 = vadd.f32 %v5605, %v6560
  %6562 = vdwg.mxu0
  %6563 = vmatpush.msra.mxu0 0.0
  %6564 = vmatpush.msra.mxu0 0.0
  %6565 = vmatpush.msra.mxu0 0.0
  %6566 = vmatpush.msra.mxu0 0.0
  %6567 = vmatpush.msra.mxu0 0.0
  %6568 = vmatpush.msra.mxu0 0.0
  %6569 = vmatpush.msra.mxu0 0.0
  %6570 = vmatpush.msra.mxu0 0.0
  %6571 = vmatpush.msra.mxu0 0.0
  %6572 = vmatpush.msra.mxu0 0.0
  %6573 = vmatpush.msra.mxu0 0.0
  %6574 = vmatpush.msra.mxu0 0.0
  %v6575 = vand.u32 %v5596, 4294901760
  %v6576 = vsub.f32 %v5596, %v6575
  %v6577 = vand.u32 %v6576, 4294901760
  %v6578 = vsub.f32 %v6576, %v6577
  %v6579 = vand.u32 %v6578, 4294901760
  %6580 = vmatpush.msra.mxu0 %v6579
  %v6581 = vand.u32 %v5589, 4294901760
  %v6582 = vsub.f32 %v5589, %v6581
  %v6583 = vand.u32 %v6582, 4294901760
  %v6584 = vsub.f32 %v6582, %v6583
  %v6585 = vand.u32 %v6584, 4294901760
  %6586 = vmatpush.msra.mxu0 %v6585
  %v6587 = vand.u32 %v5582, 4294901760
  %v6588 = vsub.f32 %v5582, %v6587
  %v6589 = vand.u32 %v6588, 4294901760
  %v6590 = vsub.f32 %v6588, %v6589
  %v6591 = vand.u32 %v6590, 4294901760
  %6592 = vmatpush.msra.mxu0 %v6591
  %v6593 = vand.u32 %v5575, 4294901760
  %v6594 = vsub.f32 %v5575, %v6593
  %v6595 = vand.u32 %v6594, 4294901760
  %v6596 = vsub.f32 %v6594, %v6595
  %v6597 = vand.u32 %v6596, 4294901760
  %6598 = vmatpush.msra.mxu0 %v6597
  %v6599 = vand.u32 %v5607, 4294901760
  %6600 = vmatmul.f32.gmra.mxu0 %v6599
  %v6601 = vpop.f32.mrf.mxu0
  %v6602 = vadd.f32 %v6561, %v6601
  %6603 = vdwg.mxu0
  %6604 = vmatpush.msra.mxu0 0.0
  %6605 = vmatpush.msra.mxu0 0.0
  %6606 = vmatpush.msra.mxu0 0.0
  %6607 = vmatpush.msra.mxu0 0.0
  %6608 = vmatpush.msra.mxu0 0.0
  %6609 = vmatpush.msra.mxu0 0.0
  %6610 = vmatpush.msra.mxu0 0.0
  %6611 = vmatpush.msra.mxu0 0.0
  %6612 = vmatpush.msra.mxu0 0.0
  %6613 = vmatpush.msra.mxu0 0.0
  %6614 = vmatpush.msra.mxu0 0.0
  %6615 = vmatpush.msra.mxu0 0.0
  %v6616 = vand.u32 %v5596, 4294901760
  %v6617 = vsub.f32 %v5596, %v6616
  %6618 = vmatpush.msra.mxu0 %v6617
  %v6619 = vand.u32 %v5589, 4294901760
  %v6620 = vsub.f32 %v5589, %v6619
  %6621 = vmatpush.msra.mxu0 %v6620
  %v6622 = vand.u32 %v5582, 4294901760
  %v6623 = vsub.f32 %v5582, %v6622
  %6624 = vmatpush.msra.mxu0 %v6623
  %v6625 = vand.u32 %v5575, 4294901760
  %v6626 = vsub.f32 %v5575, %v6625
  %6627 = vmatpush.msra.mxu0 %v6626
  %v6628 = vand.u32 %v5607, 4294901760
  %v6629 = vsub.f32 %v5607, %v6628
  %6630 = vmatmul.f32.gmra.mxu0 %v6629
  %v6631 = vpop.f32.mrf.mxu0
  %v6632 = vadd.f32 %v6602, %v6631
  %6633 = vdwg.mxu0
  %6634 = vmatpush.msra.mxu0 0.0
  %6635 = vmatpush.msra.mxu0 0.0
  %6636 = vmatpush.msra.mxu0 0.0
  %6637 = vmatpush.msra.mxu0 0.0
  %6638 = vmatpush.msra.mxu0 0.0
  %6639 = vmatpush.msra.mxu0 0.0
  %6640 = vmatpush.msra.mxu0 0.0
  %6641 = vmatpush.msra.mxu0 0.0
  %6642 = vmatpush.msra.mxu0 0.0
  %6643 = vmatpush.msra.mxu0 0.0
  %6644 = vmatpush.msra.mxu0 0.0
  %6645 = vmatpush.msra.mxu0 0.0
  %v6646 = vand.u32 %v5596, 4294901760
  %6647 = vmatpush.msra.mxu0 %v6646
  %v6648 = vand.u32 %v5589, 4294901760
  %6649 = vmatpush.msra.mxu0 %v6648
  %v6650 = vand.u32 %v5582, 4294901760
  %6651 = vmatpush.msra.mxu0 %v6650
  %v6652 = vand.u32 %v5575, 4294901760
  %6653 = vmatpush.msra.mxu0 %v6652
  %v6654 = vand.u32 %v5607, 4294901760
  %v6655 = vsub.f32 %v5607, %v6654
  %v6656 = vand.u32 %v6655, 4294901760
  %6657 = vmatmul.f32.gmra.mxu0 %v6656
  %v6658 = vpop.f32.mrf.mxu0
  %v6659 = vadd.f32 %v6632, %v6658
  %6660 = vdwg.mxu0
  %6661 = vmatpush.msra.mxu0 0.0
  %6662 = vmatpush.msra.mxu0 0.0
  %6663 = vmatpush.msra.mxu0 0.0
  %6664 = vmatpush.msra.mxu0 0.0
  %6665 = vmatpush.msra.mxu0 0.0
  %6666 = vmatpush.msra.mxu0 0.0
  %6667 = vmatpush.msra.mxu0 0.0
  %6668 = vmatpush.msra.mxu0 0.0
  %6669 = vmatpush.msra.mxu0 0.0
  %6670 = vmatpush.msra.mxu0 0.0
  %6671 = vmatpush.msra.mxu0 0.0
  %6672 = vmatpush.msra.mxu0 0.0
  %v6673 = vand.u32 %v5596, 4294901760
  %v6674 = vsub.f32 %v5596, %v6673
  %v6675 = vand.u32 %v6674, 4294901760
  %6676 = vmatpush.msra.mxu0 %v6675
  %v6677 = vand.u32 %v5589, 4294901760
  %v6678 = vsub.f32 %v5589, %v6677
  %v6679 = vand.u32 %v6678, 4294901760
  %6680 = vmatpush.msra.mxu0 %v6679
  %v6681 = vand.u32 %v5582, 4294901760
  %v6682 = vsub.f32 %v5582, %v6681
  %v6683 = vand.u32 %v6682, 4294901760
  %6684 = vmatpush.msra.mxu0 %v6683
  %v6685 = vand.u32 %v5575, 4294901760
  %v6686 = vsub.f32 %v5575, %v6685
  %v6687 = vand.u32 %v6686, 4294901760
  %6688 = vmatpush.msra.mxu0 %v6687
  %v6689 = vand.u32 %v5607, 4294901760
  %6690 = vmatmul.f32.gmra.mxu0 %v6689
  %v6691 = vpop.f32.mrf.mxu0
  %v6692 = vadd.f32 %v6659, %v6691
  %6693 = vdwg.mxu0
  %6694 = vmatpush.msra.mxu0 0.0
  %6695 = vmatpush.msra.mxu0 0.0
  %6696 = vmatpush.msra.mxu0 0.0
  %6697 = vmatpush.msra.mxu0 0.0
  %6698 = vmatpush.msra.mxu0 0.0
  %6699 = vmatpush.msra.mxu0 0.0
  %6700 = vmatpush.msra.mxu0 0.0
  %6701 = vmatpush.msra.mxu0 0.0
  %6702 = vmatpush.msra.mxu0 0.0
  %6703 = vmatpush.msra.mxu0 0.0
  %6704 = vmatpush.msra.mxu0 0.0
  %6705 = vmatpush.msra.mxu0 0.0
  %v6706 = vand.u32 %v5596, 4294901760
  %6707 = vmatpush.msra.mxu0 %v6706
  %v6708 = vand.u32 %v5589, 4294901760
  %6709 = vmatpush.msra.mxu0 %v6708
  %v6710 = vand.u32 %v5582, 4294901760
  %6711 = vmatpush.msra.mxu0 %v6710
  %v6712 = vand.u32 %v5575, 4294901760
  %6713 = vmatpush.msra.mxu0 %v6712
  %v6714 = vand.u32 %v5607, 4294901760
  %6715 = vmatmul.f32.gmra.mxu0 %v6714
  %v6716 = vpop.f32.mrf.mxu0
  %v6717 = vadd.f32 %v6692, %v6716
  %6718 = vdwg.mxu0
  %6719 = vmatpush.msra.mxu0 0.0
  %6720 = vmatpush.msra.mxu0 0.0
  %6721 = vmatpush.msra.mxu0 0.0
  %6722 = vmatpush.msra.mxu0 0.0
  %6723 = vmatpush.msra.mxu0 0.0
  %6724 = vmatpush.msra.mxu0 0.0
  %6725 = vmatpush.msra.mxu0 0.0
  %6726 = vmatpush.msra.mxu0 0.0
  %6727 = vmatpush.msra.mxu0 0.0
  %6728 = vmatpush.msra.mxu0 0.0
  %6729 = vmatpush.msra.mxu0 0.0
  %6730 = vmatpush.msra.mxu0 0.0
  %v6731 = vand.u32 %v5597, 4294901760
  %6732 = vmatpush.msra.mxu0 %v6731
  %v6733 = vand.u32 %v5590, 4294901760
  %6734 = vmatpush.msra.mxu0 %v6733
  %v6735 = vand.u32 %v5583, 4294901760
  %6736 = vmatpush.msra.mxu0 %v6735
  %v6737 = vand.u32 %v5576, 4294901760
  %6738 = vmatpush.msra.mxu0 %v6737
  %v6739 = vand.u32 %v5607, 4294901760
  %v6740 = vsub.f32 %v5607, %v6739
  %v6741 = vand.u32 %v6740, 4294901760
  %v6742 = vsub.f32 %v6740, %v6741
  %v6743 = vand.u32 %v6742, 4294901760
  %6744 = vmatmul.f32.gmra.mxu0 %v6743
  %v6745 = vpop.f32.mrf.mxu0
  %v6746 = vadd.f32 %v5605, %v6745
  %6747 = vdwg.mxu0
  %6748 = vmatpush.msra.mxu0 0.0
  %6749 = vmatpush.msra.mxu0 0.0
  %6750 = vmatpush.msra.mxu0 0.0
  %6751 = vmatpush.msra.mxu0 0.0
  %6752 = vmatpush.msra.mxu0 0.0
  %6753 = vmatpush.msra.mxu0 0.0
  %6754 = vmatpush.msra.mxu0 0.0
  %6755 = vmatpush.msra.mxu0 0.0
  %6756 = vmatpush.msra.mxu0 0.0
  %6757 = vmatpush.msra.mxu0 0.0
  %6758 = vmatpush.msra.mxu0 0.0
  %6759 = vmatpush.msra.mxu0 0.0
  %v6760 = vand.u32 %v5597, 4294901760
  %v6761 = vsub.f32 %v5597, %v6760
  %v6762 = vand.u32 %v6761, 4294901760
  %v6763 = vsub.f32 %v6761, %v6762
  %v6764 = vand.u32 %v6763, 4294901760
  %6765 = vmatpush.msra.mxu0 %v6764
  %v6766 = vand.u32 %v5590, 4294901760
  %v6767 = vsub.f32 %v5590, %v6766
  %v6768 = vand.u32 %v6767, 4294901760
  %v6769 = vsub.f32 %v6767, %v6768
  %v6770 = vand.u32 %v6769, 4294901760
  %6771 = vmatpush.msra.mxu0 %v6770
  %v6772 = vand.u32 %v5583, 4294901760
  %v6773 = vsub.f32 %v5583, %v6772
  %v6774 = vand.u32 %v6773, 4294901760
  %v6775 = vsub.f32 %v6773, %v6774
  %v6776 = vand.u32 %v6775, 4294901760
  %6777 = vmatpush.msra.mxu0 %v6776
  %v6778 = vand.u32 %v5576, 4294901760
  %v6779 = vsub.f32 %v5576, %v6778
  %v6780 = vand.u32 %v6779, 4294901760
  %v6781 = vsub.f32 %v6779, %v6780
  %v6782 = vand.u32 %v6781, 4294901760
  %6783 = vmatpush.msra.mxu0 %v6782
  %v6784 = vand.u32 %v5607, 4294901760
  %6785 = vmatmul.f32.gmra.mxu0 %v6784
  %v6786 = vpop.f32.mrf.mxu0
  %v6787 = vadd.f32 %v6746, %v6786
  %6788 = vdwg.mxu0
  %6789 = vmatpush.msra.mxu0 0.0
  %6790 = vmatpush.msra.mxu0 0.0
  %6791 = vmatpush.msra.mxu0 0.0
  %6792 = vmatpush.msra.mxu0 0.0
  %6793 = vmatpush.msra.mxu0 0.0
  %6794 = vmatpush.msra.mxu0 0.0
  %6795 = vmatpush.msra.mxu0 0.0
  %6796 = vmatpush.msra.mxu0 0.0
  %6797 = vmatpush.msra.mxu0 0.0
  %6798 = vmatpush.msra.mxu0 0.0
  %6799 = vmatpush.msra.mxu0 0.0
  %6800 = vmatpush.msra.mxu0 0.0
  %v6801 = vand.u32 %v5597, 4294901760
  %v6802 = vsub.f32 %v5597, %v6801
  %6803 = vmatpush.msra.mxu0 %v6802
  %v6804 = vand.u32 %v5590, 4294901760
  %v6805 = vsub.f32 %v5590, %v6804
  %6806 = vmatpush.msra.mxu0 %v6805
  %v6807 = vand.u32 %v5583, 4294901760
  %v6808 = vsub.f32 %v5583, %v6807
  %6809 = vmatpush.msra.mxu0 %v6808
  %v6810 = vand.u32 %v5576, 4294901760
  %v6811 = vsub.f32 %v5576, %v6810
  %6812 = vmatpush.msra.mxu0 %v6811
  %v6813 = vand.u32 %v5607, 4294901760
  %v6814 = vsub.f32 %v5607, %v6813
  %6815 = vmatmul.f32.gmra.mxu0 %v6814
  %v6816 = vpop.f32.mrf.mxu0
  %v6817 = vadd.f32 %v6787, %v6816
  %6818 = vdwg.mxu0
  %6819 = vmatpush.msra.mxu0 0.0
  %6820 = vmatpush.msra.mxu0 0.0
  %6821 = vmatpush.msra.mxu0 0.0
  %6822 = vmatpush.msra.mxu0 0.0
  %6823 = vmatpush.msra.mxu0 0.0
  %6824 = vmatpush.msra.mxu0 0.0
  %6825 = vmatpush.msra.mxu0 0.0
  %6826 = vmatpush.msra.mxu0 0.0
  %6827 = vmatpush.msra.mxu0 0.0
  %6828 = vmatpush.msra.mxu0 0.0
  %6829 = vmatpush.msra.mxu0 0.0
  %6830 = vmatpush.msra.mxu0 0.0
  %v6831 = vand.u32 %v5597, 4294901760
  %6832 = vmatpush.msra.mxu0 %v6831
  %v6833 = vand.u32 %v5590, 4294901760
  %6834 = vmatpush.msra.mxu0 %v6833
  %v6835 = vand.u32 %v5583, 4294901760
  %6836 = vmatpush.msra.mxu0 %v6835
  %v6837 = vand.u32 %v5576, 4294901760
  %6838 = vmatpush.msra.mxu0 %v6837
  %v6839 = vand.u32 %v5607, 4294901760
  %v6840 = vsub.f32 %v5607, %v6839
  %v6841 = vand.u32 %v6840, 4294901760
  %6842 = vmatmul.f32.gmra.mxu0 %v6841
  %v6843 = vpop.f32.mrf.mxu0
  %v6844 = vadd.f32 %v6817, %v6843
  %6845 = vdwg.mxu0
  %6846 = vmatpush.msra.mxu0 0.0
  %6847 = vmatpush.msra.mxu0 0.0
  %6848 = vmatpush.msra.mxu0 0.0
  %6849 = vmatpush.msra.mxu0 0.0
  %6850 = vmatpush.msra.mxu0 0.0
  %6851 = vmatpush.msra.mxu0 0.0
  %6852 = vmatpush.msra.mxu0 0.0
  %6853 = vmatpush.msra.mxu0 0.0
  %6854 = vmatpush.msra.mxu0 0.0
  %6855 = vmatpush.msra.mxu0 0.0
  %6856 = vmatpush.msra.mxu0 0.0
  %6857 = vmatpush.msra.mxu0 0.0
  %v6858 = vand.u32 %v5597, 4294901760
  %v6859 = vsub.f32 %v5597, %v6858
  %v6860 = vand.u32 %v6859, 4294901760
  %6861 = vmatpush.msra.mxu0 %v6860
  %v6862 = vand.u32 %v5590, 4294901760
  %v6863 = vsub.f32 %v5590, %v6862
  %v6864 = vand.u32 %v6863, 4294901760
  %6865 = vmatpush.msra.mxu0 %v6864
  %v6866 = vand.u32 %v5583, 4294901760
  %v6867 = vsub.f32 %v5583, %v6866
  %v6868 = vand.u32 %v6867, 4294901760
  %6869 = vmatpush.msra.mxu0 %v6868
  %v6870 = vand.u32 %v5576, 4294901760
  %v6871 = vsub.f32 %v5576, %v6870
  %v6872 = vand.u32 %v6871, 4294901760
  %6873 = vmatpush.msra.mxu0 %v6872
  %v6874 = vand.u32 %v5607, 4294901760
  %6875 = vmatmul.f32.gmra.mxu0 %v6874
  %v6876 = vpop.f32.mrf.mxu0
  %v6877 = vadd.f32 %v6844, %v6876
  %6878 = vdwg.mxu0
  %6879 = vmatpush.msra.mxu0 0.0
  %6880 = vmatpush.msra.mxu0 0.0
  %6881 = vmatpush.msra.mxu0 0.0
  %6882 = vmatpush.msra.mxu0 0.0
  %6883 = vmatpush.msra.mxu0 0.0
  %6884 = vmatpush.msra.mxu0 0.0
  %6885 = vmatpush.msra.mxu0 0.0
  %6886 = vmatpush.msra.mxu0 0.0
  %6887 = vmatpush.msra.mxu0 0.0
  %6888 = vmatpush.msra.mxu0 0.0
  %6889 = vmatpush.msra.mxu0 0.0
  %6890 = vmatpush.msra.mxu0 0.0
  %v6891 = vand.u32 %v5597, 4294901760
  %6892 = vmatpush.msra.mxu0 %v6891
  %v6893 = vand.u32 %v5590, 4294901760
  %6894 = vmatpush.msra.mxu0 %v6893
  %v6895 = vand.u32 %v5583, 4294901760
  %6896 = vmatpush.msra.mxu0 %v6895
  %v6897 = vand.u32 %v5576, 4294901760
  %6898 = vmatpush.msra.mxu0 %v6897
  %v6899 = vand.u32 %v5607, 4294901760
  %6900 = vmatmul.f32.gmra.mxu0 %v6899
  %v6901 = vpop.f32.mrf.mxu0
  %v6902 = vadd.f32 %v6877, %v6901
  %6903 = vdwg.mxu0
  %v6911 = vrot.slane %v5977, 7
  %v6912 = vrot.slane %v6162, 6
  %v6913 = vrot.slane %v6347, 5
  %v6914 = vrot.slane %v6532, 4
  %v6915 = vrot.slane %v6717, 3
  %v6916 = vrot.slane %v6902, 2
  %vm6917 = vcmask 1040384
  %v6918 = vsel %vm6917, %v5792, %v6911
  %vm6919 = vcmask 1042434
  %v6920 = vsel %vm6919, %v6912, %v6913
  %vm6921 = vcmask 1041408
  %v6922 = vsel %vm6921, %v6918, %v6920
  %vm6923 = vcmask 1044484
  %v6924 = vsel %vm6923, %v6914, %v6915
  %vm6925 = vcmask 1045508
  %v6926 = vsel %vm6925, %v6924, %v6916
  %vm6927 = vcmask 1043456
  %v6928 = vsel %vm6927, %v6922, %v6926
  %v6930 = vlaneseq
  %vm6931 = vcmp.ge.s32.totalorder %v6930, 0
  %vm6932 = vcmp.lt.s32.totalorder %v6930, 896
  %vm6933 = vmand %vm6931, %vm6932
  %6934 = vst.msk [vmem:[%s7] sm:$0x7f] %vm6933, %v6928
  // Predicated region
  $region30: #{titanic_mlp_forward.1} parent=0 // pred_check
    _
  $region31: #{titanic_mlp_forward.1} parent=0 // pred_check_branch
    %6936 = sbr.rel (0) target = $region33
  $region32: #{titanic_mlp_forward.1} parent=0 // pred_region
    _
  $region33: #{titanic_mlp_forward.1} parent=0 // pred_fallthru
    _
  // Predicated region
  $region34: #{titanic_mlp_forward.1} parent=0 // pred_check
    _
  $region35: #{titanic_mlp_forward.1} parent=0 // pred_check_branch
    %6938 = sbr.rel (0) target = $region37
  $region36: #{titanic_mlp_forward.1} parent=0 // pred_region
    _
  $region37: #{titanic_mlp_forward.1} parent=0 // pred_fallthru
    _

</llo_original>
